<compile_context>
chip_gen: v6e
topology: v6e:2x2x1
jax: 0.10.0
libtpu: 0.0.40
codegen_flags: <defaults>
</compile_context>

<pallas_src>
import functools
import math

import jax
import jax.numpy as jnp
from jax.experimental import pallas as pl
from jax.experimental.pallas import tpu as pltpu

# ----------------------------- synthetic config -----------------------------
N_LAYERS = 2          # config['n_layers']
N_HEADS = 2           # config['n_heads']
HIDDEN = 32           # config['embedding_size']
INNER = 64            # config['inner_size']
MAX_LEN = 8           # dataset.field2seqlen[ITEM_SEQ] == MAX_ITEM_LIST_LENGTH
EPS = 1e-12           # config['layer_norm_eps']
INIT_RANGE = 0.02     # config['initializer_range']
SEQ_REAL = MAX_LEN + 2                       # +2 for collection/value tokens
SEQ_PAD = ((SEQ_REAL + 7) // 8) * 8          # sublane-aligned sequence length

# Default batch tile per grid step (production path).  ~3-4 MiB of live f32
# temporaries per step at TB=128 -> far below VMEM limits on v5e/v6e/v7x.
# Push to 256 (v7x cap) / 512 (v5e/v6e) for very large batches; keep grid >= 2
# so the "parallel" batch axis can use both v7x TensorCores.
TILE_B = 128


# --------------------------------- kernel -----------------------------------
def _layernorm(x, gamma, beta, eps):
    x = x.astype(jnp.float32)
    mu = jnp.mean(x, axis=-1, keepdims=True)
    var = jnp.mean(jnp.square(x - mu), axis=-1, keepdims=True)
    return (x - mu) * jax.lax.rsqrt(var + eps) * gamma + beta


def transnet_kernel(x_ref, kmask_ref,
                    ln0_ref, wqkv_ref, bqkv_ref, wo_ref, bo_ref, ln1_ref,
                    w1_ref, b1_ref, w2_ref, b2_ref, ln2_ref,
                    wfn_ref, bfn_ref,
                    alpha_ref, *, n_layers, n_heads, eps, max_len, seq_real):
    tb, s_pad, hid = x_ref.shape
    dh = hid // n_heads
    n_rows = tb * s_pad

    kmask = kmask_ref[...]                                    # [TB, S] f32

    # ---- additive attention bias rebuilt in-kernel (no (B,S,S) HBM input) ----
    row = jax.lax.broadcasted_iota(jnp.int32, (s_pad, s_pad), 0)
    col = jax.lax.broadcasted_iota(jnp.int32, (s_pad, s_pad), 1)
    in_core = (row < max_len) & (col < max_len)   # region governed by causal/key mask
    pad_col = col >= seq_real                     # artificial seq-padding columns
    causal = col <= row
    key_ok = kmask[:, None, :] > 0.5                          # [TB, 1, S]
    blocked = pad_col[None] | (in_core[None] &
                               jnp.logical_not(causal[None] & key_ok))
    bias = jnp.where(blocked, jnp.float32(-10000.0), jnp.float32(0.0))  # [TB,S,S]

    # ---- input LayerNorm (dropout == identity at inference) ----
    x2 = x_ref[...].astype(jnp.float32).reshape(n_rows, hid)
    h2 = _layernorm(x2, ln0_ref[0], ln0_ref[1], eps)          # [TB*S, H] f32

    # TODO(synk): if bundle dumps ever show vreg spills at TB>=256, convert this
    # statically-unrolled layer loop to lax.fori_loop with dynamic weight indexing.
    for l in range(n_layers):
        wqkv_l = wqkv_ref[l]          # [H, 3H] bf16 (Q columns pre-scaled by 1/sqrt(dh))
        bqkv_l = bqkv_ref[l]          # [1, 3H] f32  (Q part pre-scaled)
        wo_l = wo_ref[l]              # [H, H] bf16
        h2b = h2.astype(jnp.bfloat16)                         # one cast per layer

        attn = jnp.zeros((n_rows, hid), jnp.float32)
        for hd in range(n_heads):                             # static, 2 iterations
            qo, ko, vo = hd * dh, hid + hd * dh, 2 * hid + hd * dh
            # Slice the tiny (32, 3H) weight, never the (TB*S, .) activation:
            # three direct per-head matmuls on the under-utilized MXU.
            qh = (jnp.dot(h2b, wqkv_l[:, qo:qo + dh],
                          preferred_element_type=jnp.float32)
                  + bqkv_l[:, qo:qo + dh]).reshape(tb, s_pad, dh)
            kh = (jnp.dot(h2b, wqkv_l[:, ko:ko + dh],
                          preferred_element_type=jnp.float32)
                  + bqkv_l[:, ko:ko + dh]).reshape(tb, s_pad, dh)
            vh = (jnp.dot(h2b, wqkv_l[:, vo:vo + dh],
                          preferred_element_type=jnp.float32)
                  + bqkv_l[:, vo:vo + dh]).reshape(tb, s_pad, dh)

            # scale already folded into qh -> no `* 1/sqrt(dh)` VPU multiply
            s = jnp.einsum('bqd,bkd->bqk', qh.astype(jnp.bfloat16),
                           kh.astype(jnp.bfloat16),
                           preferred_element_type=jnp.float32) + bias
            m = jnp.max(s, axis=-1, keepdims=True)
            e = jnp.exp(s - m)
            p = e * pl.reciprocal(jnp.sum(e, axis=-1, keepdims=True), approx=True)
            ctx = jnp.einsum('bqk,bkd->bqd', p.astype(jnp.bfloat16),
                             vh.astype(jnp.bfloat16),
                             preferred_element_type=jnp.float32)          # [TB,S,dh]
            # fold the head concat into the output projection:
            #   concat_h(ctx_h) @ Wo == sum_h ctx_h @ Wo[h*dh:(h+1)*dh, :]
            attn = attn + jnp.dot(ctx.reshape(n_rows, dh).astype(jnp.bfloat16),
                                  wo_l[hd * dh:(hd + 1) * dh, :],
                                  preferred_element_type=jnp.float32)
        attn = attn + bo_ref[l]
        h2 = _layernorm(attn + h2, ln1_ref[l, 0], ln1_ref[l, 1], eps)

        # position-wise feed-forward (hidden_act = 'relu')
        ff = jnp.dot(h2.astype(jnp.bfloat16), w1_ref[l],
                     preferred_element_type=jnp.float32) + b1_ref[l]
        ff = jnp.maximum(ff, 0.0)
        ff = jnp.dot(ff.astype(jnp.bfloat16), w2_ref[l],
                     preferred_element_type=jnp.float32) + b2_ref[l]
        h2 = _layernorm(ff + h2, ln2_ref[l, 0], ln2_ref[l, 1], eps)

    # ---- alpha = softmax_over_seq( mask ? Linear(h) : -9e15 ), VPU path ----
    h3 = h2.reshape(tb, s_pad, hid)
    logits = jnp.sum(h3 * wfn_ref[...], axis=-1) + bfn_ref[0, 0]        # [TB, S]
    # artificial SEQ_PAD columns get a strictly more negative sentinel than the
    # module's -9e15 mask so fully-padded sequences still softmax uniformly over
    # the real L+2 positions (matches torch for empty sequences).
    col1 = jax.lax.broadcasted_iota(jnp.int32, (1, s_pad), 1)
    masked_val = jnp.where(col1 < seq_real, jnp.float32(-9e15), jnp.float32(-1e30))
    logits = jnp.where(kmask > 0.5, logits, masked_val)
    m = jnp.max(logits, axis=-1, keepdims=True)
    e = jnp.exp(logits - m)
    alpha_ref[...] = e / jnp.sum(e, axis=-1, keepdims=True)    # exact final softmax


# ------------------------------ glue / wrapper -------------------------------
def _round_up(x, m):
    return ((x + m - 1) // m) * m


def _pick_tile_b(batch, requested=TILE_B):
    """Batch tile: whole (8-aligned) batch in one step for small batches, else a
    128-multiple tile so big batches keep >= 2 grid steps (v7x megacore)."""
    if batch <= requested:
        return max(_round_up(batch, 8), 8)
    return _round_up(requested, 128)


def _preprocess(item_seq, item_emb, collection_emb, value_emb, params):
    """Plain-JAX glue: embedding add / concat, seq padding and key-mask."""
    B, L = item_seq.shape
    pos = params["pos_table"][None, :, :]                               # [1,L,H]
    x = jnp.concatenate([pos + item_emb, collection_emb, value_emb], axis=1)
    x = x.astype(jnp.bfloat16)                                          # bf16 storage
    x = jnp.pad(x, ((0, 0), (0, SEQ_PAD - (L + 2)), (0, 0)))            # [B,Sp,H]
    kmask = jnp.pad((item_seq != 0).astype(jnp.float32),
                    ((0, 0), (0, SEQ_PAD - L)))                         # [B,Sp]
    return x, kmask


def prep_kernel_params(params, n_heads=N_HEADS):
    """One-time parameter prep for the kernel: fold 1/sqrt(dh) into the Q columns
    of the fused QKV weight/bias.  scale = 0.25 is a power of two, so the fold is
    exact even in bf16 storage."""
    h = params["wqkv"].shape[1]
    dh = h // n_heads
    scale = 1.0 / math.sqrt(dh)
    colscale = jnp.where(jnp.arange(3 * h) < h, jnp.float32(scale), jnp.float32(1.0))
    kp = dict(params)
    kp["wqkv"] = (params["wqkv"].astype(jnp.float32) * colscale).astype(
        params["wqkv"].dtype)
    kp["bqkv"] = params["bqkv"] * colscale
    return kp


def transnet_forward(item_seq, item_emb, collection_emb, value_emb, params,
                     *, tb=None):
    B, L = item_seq.shape
    H, I, nL = HIDDEN, INNER, N_LAYERS
    x, kmask = _preprocess(item_seq, item_emb, collection_emb, value_emb, params)

    tb = _pick_tile_b(B, TILE_B if tb is None else tb)
    bp = pl.cdiv(B, tb) * tb
    if bp != B:   # padded samples are provably inert (kmask == 0 everywhere)
        x = jnp.pad(x, ((0, bp - B), (0, 0), (0, 0)))
        kmask = jnp.pad(kmask, ((0, bp - B), (0, 0)))

    kernel = functools.partial(transnet_kernel, n_layers=nL, n_heads=N_HEADS,
                               eps=EPS, max_len=L, seq_real=L + 2)

    def rep(n):
        return lambda b: (0,) * n

    in_specs = [
        pl.BlockSpec((tb, SEQ_PAD, H), lambda b: (b, 0, 0)),   # x (bf16)
        pl.BlockSpec((tb, SEQ_PAD), lambda b: (b, 0)),         # key mask (f32)
        pl.BlockSpec((2, 1, H), rep(3)),                       # input LN (gamma, beta)
        pl.BlockSpec((nL, H, 3 * H), rep(3)),                  # fused Wq|Wk|Wv (bf16, Q prescaled)
        pl.BlockSpec((nL, 1, 3 * H), rep(3)),                  # fused bq|bk|bv (Q prescaled)
        pl.BlockSpec((nL, H, H), rep(3)),                      # Wo (bf16)
        pl.BlockSpec((nL, 1, H), rep(3)),                      # bo
        pl.BlockSpec((nL, 2, 1, H), rep(4)),                   # attn LN
        pl.BlockSpec((nL, H, I), rep(3)),                      # ffn W1 (bf16)
        pl.BlockSpec((nL, 1, I), rep(3)),                      # ffn b1
        pl.BlockSpec((nL, I, H), rep(3)),                      # ffn W2 (bf16)
        pl.BlockSpec((nL, 1, H), rep(3)),                      # ffn b2
        pl.BlockSpec((nL, 2, 1, H), rep(4)),                   # ffn LN
        pl.BlockSpec((1, H), rep(2)),                          # fn weight (as row)
        pl.BlockSpec(memory_space=pltpu.MemorySpace.SMEM),     # fn bias (1,1) scalar
    ]
    out_specs = pl.BlockSpec((tb, SEQ_PAD), lambda b: (b, 0))

    alpha = pl.pallas_call(
        kernel,
        out_shape=jax.ShapeDtypeStruct((bp, SEQ_PAD), jnp.float32),
        grid=(bp // tb,),
        in_specs=in_specs,
        out_specs=out_specs,
        compiler_params=pltpu.CompilerParams(
            dimension_semantics=("parallel",)),   # lets v7x shard batch over 2 TCs
    )(x, kmask,
      params["ln0"], params["wqkv"], params["bqkv"], params["wo"], params["bo"],
      params["ln1"], params["w1"], params["b1"], params["w2"], params["b2"],
      params["ln2"], params["wfn"], params["bfn"])

    # back to the module's (B, L+2, 1) output shape
    return alpha[:B, :L + 2, None]


# ------------------------- pure-JAX reference (check) -------------------------
def transnet_reference(item_seq, item_emb, collection_emb, value_emb, params):
    """Mirrors the torch forward (and the kernel's bf16 rounding points)."""
    B, L = item_seq.shape
    H, nH = HIDDEN, N_HEADS
    dh = H // nH
    f32, bf16 = jnp.float32, jnp.bfloat16

    def q16(a):  # bf16 round-trip, matching the kernel's MXU input casts
        return a.astype(bf16).astype(f32)

    pos = params["pos_table"][None, :, :]
    x = q16(jnp.concatenate([pos + item_emb, collection_emb, value_emb], axis=1))

    key_valid = item_seq != 0
    allowed = key_valid[:, None, :] & jnp.tril(jnp.ones((L, L), bool))[None]
    bias = jnp.where(allowed, 0.0, -10000.0).astype(f32)
    bias = jnp.pad(bias, ((0, 0), (0, 2), (0, 2)))             # F.pad(..., (0,2,0,2))
    fmask = jnp.pad(item_seq > 0, ((0, 0), (0, 2)))[..., None]  # [B,S,1]

    scale = 1.0 / math.sqrt(dh)
    h = _layernorm(x, params["ln0"][0], params["ln0"][1], EPS)
    for l in range(N_LAYERS):
        qkv = jnp.einsum('bsh,hk->bsk', q16(h), params["wqkv"][l].astype(f32))
        qkv = qkv + params["bqkv"][l]
        q, k, v = qkv[..., :H], qkv[..., H:2 * H], qkv[..., 2 * H:]
        ctxs = []
        for hd in range(nH):
            sl = slice(hd * dh, (hd + 1) * dh)
            s = jnp.einsum('bqd,bkd->bqk', q16(q[..., sl]), q16(k[..., sl]))
            s = s * scale + bias
            p = jax.nn.softmax(s, axis=-1)
            ctxs.append(jnp.einsum('bqk,bkd->bqd', q16(p), q16(v[..., sl])))
        ctx = jnp.concatenate(ctxs, axis=-1)
        attn = jnp.einsum('bsh,hk->bsk', q16(ctx), params["wo"][l].astype(f32))
        attn = attn + params["bo"][l]
        h = _layernorm(attn + h, params["ln1"][l, 0], params["ln1"][l, 1], EPS)
        ff = jnp.einsum('bsh,hk->bsk', q16(h), params["w1"][l].astype(f32))
        ff = jnp.maximum(ff + params["b1"][l], 0.0)
        ff = jnp.einsum('bsh,hk->bsk', q16(ff), params["w2"][l].astype(f32))
        ff = ff + params["b2"][l]
        h = _layernorm(ff + h, params["ln2"][l, 0], params["ln2"][l, 1], EPS)

    logits = jnp.sum(h * params["wfn"], axis=-1, keepdims=True) + params["bfn"][0, 0]
    logits = jnp.where(fmask, logits, f32(-9e15))
    return jax.nn.softmax(logits, axis=1)                      # [B, S, 1]


# ------------------------------ parameter init --------------------------------
def init_params(rng):
    ks = jax.random.split(rng, 6)
    std = INIT_RANGE
    f32, bf16 = jnp.float32, jnp.bfloat16
    ln_pair = jnp.stack([jnp.ones((1, HIDDEN), f32), jnp.zeros((1, HIDDEN), f32)])
    ln_stack = jnp.asarray(jnp.broadcast_to(ln_pair, (N_LAYERS, 2, 1, HIDDEN)))
    return dict(
        pos_table=std * jax.random.normal(ks[0], (MAX_LEN, HIDDEN), f32),
        ln0=ln_pair,
        # fused [Wq | Wk | Wv] along the output dim, bf16 storage
        wqkv=(std * jax.random.normal(ks[1], (N_LAYERS, HIDDEN, 3 * HIDDEN), f32)
              ).astype(bf16),
        bqkv=jnp.zeros((N_LAYERS, 1, 3 * HIDDEN), f32),
        wo=(std * jax.random.normal(ks[2], (N_LAYERS, HIDDEN, HIDDEN), f32)
            ).astype(bf16),
        bo=jnp.zeros((N_LAYERS, 1, HIDDEN), f32),
        ln1=ln_stack,
        w1=(std * jax.random.normal(ks[3], (N_LAYERS, HIDDEN, INNER), f32)
            ).astype(bf16),
        b1=jnp.zeros((N_LAYERS, 1, INNER), f32),
        w2=(std * jax.random.normal(ks[4], (N_LAYERS, INNER, HIDDEN), f32)
            ).astype(bf16),
        b2=jnp.zeros((N_LAYERS, 1, HIDDEN), f32),
        ln2=ln_stack,
        wfn=std * jax.random.normal(ks[5], (1, HIDDEN), f32),   # Linear(H,1), row form
        bfn=jnp.zeros((1, 1), f32),
    )


# ----------------------------------- main -------------------------------------
if __name__ == "__main__":
    rng = jax.random.PRNGKey(0)
    k1, k2, k3, kp, ks, kl2, ke2 = jax.random.split(rng, 7)
    B, L, H = 8, MAX_LEN, HIDDEN

    # random item sequences, 0 = padding id at the tail; one fully-empty sequence
    # exercises the degenerate-softmax path.
    lengths = jnp.array([4, 6, 8, 0, 3, 7, 5, 2], dtype=jnp.int32)
    base = jax.random.randint(ks, (B, L), 1, 100)
    pos_idx = jnp.arange(L)[None, :]
    item_seq = jnp.where(pos_idx < lengths[:, None], base, 0).astype(jnp.int32)

    item_emb = jax.random.normal(k1, (B, L, H), jnp.float32)
    collection_emb = jax.random.normal(k2, (B, 1, H), jnp.float32)
    value_emb = jax.random.normal(k3, (B, 1, H), jnp.float32)

    params = init_params(kp)
    kparams = prep_kernel_params(params)   # one-time: fold 1/sqrt(dh) into Q weights

    # ---- small-shape run (single grid step) ----
    alpha = transnet_forward(item_seq, item_emb, collection_emb, value_emb, kparams)
    alpha = jax.block_until_ready(alpha)
    alpha_ref = transnet_reference(item_seq, item_emb, collection_emb, value_emb, params)

    assert alpha.shape == (B, L + 2, 1), alpha.shape
    assert jnp.allclose(jnp.sum(alpha, axis=1), 1.0, atol=1e-5), "softmax not normalized"
    # tolerance accounts for approx reciprocal in the attention softmax
    err = float(jnp.max(jnp.abs(alpha - alpha_ref)))
    assert err < 1e-3, f"mismatch vs reference: {err}"
    # masked (pad + collection/value) positions must get ~zero weight for
    # non-empty sequences
    nonempty = lengths > 0
    assert float(jnp.max(alpha[nonempty, L:, 0])) < 1e-6

    # ---- larger batch: exercises the production tile (TB=128, grid=3, parallel) ----
    B2 = 320
    lengths2 = jax.random.randint(kl2, (B2,), 0, L + 1)
    base2 = jax.random.randint(ke2, (B2, L), 1, 100)
    item_seq2 = jnp.where(pos_idx < lengths2[:, None], base2, 0).astype(jnp.int32)
    keys2 = jax.random.split(jax.random.PRNGKey(1), 3)
    item_emb2 = jax.random.normal(keys2[0], (B2, L, H), jnp.float32)
    collection_emb2 = jax.random.normal(keys2[1], (B2, 1, H), jnp.float32)
    value_emb2 = jax.random.normal(keys2[2], (B2, 1, H), jnp.float32)

    alpha2 = transnet_forward(item_seq2, item_emb2, collection_emb2, value_emb2, kparams)
    alpha2 = jax.block_until_ready(alpha2)
    alpha2_ref = transnet_reference(item_seq2, item_emb2, collection_emb2,
                                    value_emb2, params)
    assert alpha2.shape == (B2, L + 2, 1), alpha2.shape
    assert jnp.allclose(jnp.sum(alpha2, axis=1), 1.0, atol=1e-5)
    err2 = float(jnp.max(jnp.abs(alpha2 - alpha2_ref)))
    assert err2 < 1e-3, f"large-batch mismatch vs reference: {err2}"

    print("KERNEL_OK")
</pallas_src>

<mosaic_0001>
module attributes {stable_mosaic.version = 11 : i64} {
  func.func @transnet_kernel(%arg0: i32, %arg1: memref<8x16x32xbf16, #tpu.memory_space<vmem>>, %arg2: memref<8x16xf32, #tpu.memory_space<vmem>>, %arg3: memref<2x1x32xf32, #tpu.memory_space<vmem>>, %arg4: memref<2x32x96xbf16, #tpu.memory_space<vmem>>, %arg5: memref<2x1x96xf32, #tpu.memory_space<vmem>>, %arg6: memref<2x32x32xbf16, #tpu.memory_space<vmem>>, %arg7: memref<2x1x32xf32, #tpu.memory_space<vmem>>, %arg8: memref<2x2x1x32xf32, #tpu.memory_space<vmem>>, %arg9: memref<2x32x64xbf16, #tpu.memory_space<vmem>>, %arg10: memref<2x1x64xf32, #tpu.memory_space<vmem>>, %arg11: memref<2x64x32xbf16, #tpu.memory_space<vmem>>, %arg12: memref<2x1x32xf32, #tpu.memory_space<vmem>>, %arg13: memref<2x2x1x32xf32, #tpu.memory_space<vmem>>, %arg14: memref<1x32xf32, #tpu.memory_space<vmem>>, %arg15: memref<1x1xf32, #tpu.memory_space<smem>>, %arg16: memref<8x16xf32, #tpu.memory_space<vmem>>) attributes {dimension_semantics = [#tpu.dimension_semantics<parallel>], iteration_bounds = array<i64: 1>, scalar_prefetch = 0 : i64, scratch_operands = 0 : i64, tpu.core_type = #tpu.core_type<tc>, window_params = [{transform_indices = @transform_0, window_bounds = array<i64: 8, 16, 32>}, {transform_indices = @transform_1, window_bounds = array<i64: 8, 16>}, {pipeline_mode = #tpu.pipeline_mode<synchronous>, transform_indices = @transform_2, window_bounds = array<i64: 2, 1, 32>}, {pipeline_mode = #tpu.pipeline_mode<synchronous>, transform_indices = @transform_3, window_bounds = array<i64: 2, 32, 96>}, {pipeline_mode = #tpu.pipeline_mode<synchronous>, transform_indices = @transform_4, window_bounds = array<i64: 2, 1, 96>}, {pipeline_mode = #tpu.pipeline_mode<synchronous>, transform_indices = @transform_5, window_bounds = array<i64: 2, 32, 32>}, {pipeline_mode = #tpu.pipeline_mode<synchronous>, transform_indices = @transform_6, window_bounds = array<i64: 2, 1, 32>}, {pipeline_mode = #tpu.pipeline_mode<synchronous>, transform_indices = @transform_7, window_bounds = array<i64: 2, 2, 1, 32>}, {pipeline_mode = #tpu.pipeline_mode<synchronous>, transform_indices = @transform_8, window_bounds = array<i64: 2, 32, 64>}, {pipeline_mode = #tpu.pipeline_mode<synchronous>, transform_indices = @transform_9, window_bounds = array<i64: 2, 1, 64>}, {pipeline_mode = #tpu.pipeline_mode<synchronous>, transform_indices = @transform_10, window_bounds = array<i64: 2, 64, 32>}, {pipeline_mode = #tpu.pipeline_mode<synchronous>, transform_indices = @transform_11, window_bounds = array<i64: 2, 1, 32>}, {pipeline_mode = #tpu.pipeline_mode<synchronous>, transform_indices = @transform_12, window_bounds = array<i64: 2, 2, 1, 32>}, {pipeline_mode = #tpu.pipeline_mode<synchronous>, transform_indices = @transform_13, window_bounds = array<i64: 1, 32>}, {transform_indices = @transform_14, window_bounds = array<i64: 1, 1>}, {transform_indices = @transform_15, window_bounds = array<i64: 8, 16>}]} {
    %c0 = arith.constant 0 : index
    %c0_0 = arith.constant 0 : index
    %0 = vector.load %arg2[%c0, %c0_0] : memref<8x16xf32, #tpu.memory_space<vmem>>, vector<8x16xf32>
    %1 = tpu.iota {dimensions = array<i32: 0>} : vector<16x16xi32>
    %2 = tpu.iota {dimensions = array<i32: 1>} : vector<16x16xi32>
    %c8_i32 = arith.constant 8 : i32
    %3 = vector.broadcast %c8_i32 : i32 to vector<16x16xi32>
    %4 = arith.cmpi slt, %1, %3 : vector<16x16xi32>
    %c8_i32_1 = arith.constant 8 : i32
    %5 = vector.broadcast %c8_i32_1 : i32 to vector<16x16xi32>
    %6 = arith.cmpi slt, %2, %5 : vector<16x16xi32>
    %7 = arith.andi %4, %6 : vector<16x16xi1>
    %c10_i32 = arith.constant 10 : i32
    %8 = vector.broadcast %c10_i32 : i32 to vector<16x16xi32>
    %9 = arith.cmpi sge, %2, %8 : vector<16x16xi32>
    %10 = arith.cmpi sle, %2, %1 : vector<16x16xi32>
    %11 = vector.shape_cast %0 : vector<8x16xf32> to vector<8x1x16xf32>
    %cst = arith.constant 5.000000e-01 : f32
    %12 = vector.broadcast %cst : f32 to vector<8x1x16xf32>
    %13 = arith.cmpf ogt, %11, %12 : vector<8x1x16xf32>
    %14 = vector.shape_cast %9 : vector<16x16xi1> to vector<1x16x16xi1>
    %15 = vector.shape_cast %7 : vector<16x16xi1> to vector<1x16x16xi1>
    %16 = vector.shape_cast %10 : vector<16x16xi1> to vector<1x16x16xi1>
    %17 = vector.broadcast %16 : vector<1x16x16xi1> to vector<8x16x16xi1>
    %18 = vector.broadcast %13 : vector<8x1x16xi1> to vector<8x16x16xi1>
    %19 = arith.andi %17, %18 : vector<8x16x16xi1>
    %cst_2 = arith.constant dense<true> : vector<8x16x16xi1>
    %20 = arith.xori %19, %cst_2 : vector<8x16x16xi1>
    %21 = vector.broadcast %15 : vector<1x16x16xi1> to vector<8x16x16xi1>
    %22 = arith.andi %21, %20 : vector<8x16x16xi1>
    %23 = vector.broadcast %14 : vector<1x16x16xi1> to vector<8x16x16xi1>
    %24 = arith.ori %23, %22 : vector<8x16x16xi1>
    %cst_3 = arith.constant -1.000000e+04 : f32
    %cst_4 = arith.constant 0.000000e+00 : f32
    %25 = vector.broadcast %cst_3 : f32 to vector<8x16x16xf32>
    %26 = vector.broadcast %cst_4 : f32 to vector<8x16x16xf32>
    %27 = arith.select %24, %25, %26 : vector<8x16x16xi1>, vector<8x16x16xf32>
    %c0_5 = arith.constant 0 : index
    %c0_6 = arith.constant 0 : index
    %c0_7 = arith.constant 0 : index
    %28 = vector.load %arg1[%c0_5, %c0_6, %c0_7] : memref<8x16x32xbf16, #tpu.memory_space<vmem>>, vector<8x16x32xbf16>
    %29 = arith.extf %28 : vector<8x16x32xbf16> to vector<8x16x32xf32>
    %30 = vector.shape_cast %29 : vector<8x16x32xf32> to vector<128x32xf32>
    %c0_8 = arith.constant 0 : index
    %c0_9 = arith.constant 0 : index
    %c0_10 = arith.constant 0 : index
    %31 = vector.load %arg3[%c0_8, %c0_9, %c0_10] : memref<2x1x32xf32, #tpu.memory_space<vmem>>, vector<1x1x32xf32>
    %32 = vector.shape_cast %31 : vector<1x1x32xf32> to vector<1x32xf32>
    %c1 = arith.constant 1 : index
    %c0_11 = arith.constant 0 : index
    %c0_12 = arith.constant 0 : index
    %33 = vector.load %arg3[%c1, %c0_11, %c0_12] : memref<2x1x32xf32, #tpu.memory_space<vmem>>, vector<1x1x32xf32>
    %34 = vector.shape_cast %33 : vector<1x1x32xf32> to vector<1x32xf32>
    %cst_13 = arith.constant dense<0.000000e+00> : vector<128xf32>
    %35 = vector.multi_reduction <add>, %30, %cst_13 [1] : vector<128x32xf32> to vector<128xf32>
    %36 = vector.shape_cast %35 : vector<128xf32> to vector<128x1xf32>
    %cst_14 = arith.constant 3.200000e+01 : f32
    %37 = vector.broadcast %cst_14 : f32 to vector<128x1xf32>
    %38 = arith.divf %36, %37 : vector<128x1xf32>
    %39 = vector.broadcast %38 : vector<128x1xf32> to vector<128x32xf32>
    %40 = arith.subf %30, %39 : vector<128x32xf32>
    %41 = arith.mulf %40, %40 : vector<128x32xf32>
    %cst_15 = arith.constant dense<0.000000e+00> : vector<128xf32>
    %42 = vector.multi_reduction <add>, %41, %cst_15 [1] : vector<128x32xf32> to vector<128xf32>
    %43 = vector.shape_cast %42 : vector<128xf32> to vector<128x1xf32>
    %cst_16 = arith.constant 3.200000e+01 : f32
    %44 = vector.broadcast %cst_16 : f32 to vector<128x1xf32>
    %45 = arith.divf %43, %44 : vector<128x1xf32>
    %46 = vector.broadcast %38 : vector<128x1xf32> to vector<128x32xf32>
    %47 = arith.subf %30, %46 : vector<128x32xf32>
    %cst_17 = arith.constant 9.99999996E-13 : f32
    %48 = vector.broadcast %cst_17 : f32 to vector<128x1xf32>
    %49 = arith.addf %45, %48 : vector<128x1xf32>
    %50 = math.rsqrt %49 : vector<128x1xf32>
    %51 = vector.broadcast %50 : vector<128x1xf32> to vector<128x32xf32>
    %52 = arith.mulf %47, %51 : vector<128x32xf32>
    %53 = vector.broadcast %32 : vector<1x32xf32> to vector<128x32xf32>
    %54 = arith.mulf %52, %53 : vector<128x32xf32>
    %55 = vector.broadcast %34 : vector<1x32xf32> to vector<128x32xf32>
    %56 = arith.addf %54, %55 : vector<128x32xf32>
    %c0_18 = arith.constant 0 : index
    %c0_19 = arith.constant 0 : index
    %c0_20 = arith.constant 0 : index
    %57 = vector.load %arg4[%c0_18, %c0_19, %c0_20] : memref<2x32x96xbf16, #tpu.memory_space<vmem>>, vector<1x32x96xbf16>
    %58 = vector.shape_cast %57 : vector<1x32x96xbf16> to vector<32x96xbf16>
    %c0_21 = arith.constant 0 : index
    %c0_22 = arith.constant 0 : index
    %c0_23 = arith.constant 0 : index
    %59 = vector.load %arg5[%c0_21, %c0_22, %c0_23] : memref<2x1x96xf32, #tpu.memory_space<vmem>>, vector<1x1x96xf32>
    %60 = vector.shape_cast %59 : vector<1x1x96xf32> to vector<1x96xf32>
    %c0_24 = arith.constant 0 : index
    %c0_25 = arith.constant 0 : index
    %c0_26 = arith.constant 0 : index
    %61 = vector.load %arg6[%c0_24, %c0_25, %c0_26] : memref<2x32x32xbf16, #tpu.memory_space<vmem>>, vector<1x32x32xbf16>
    %62 = vector.shape_cast %61 : vector<1x32x32xbf16> to vector<32x32xbf16>
    %63 = arith.truncf %56 : vector<128x32xf32> to vector<128x32xbf16>
    %cst_27 = arith.constant 0.000000e+00 : f32
    %64 = vector.broadcast %cst_27 : f32 to vector<128x32xf32>
    %65 = vector.extract_strided_slice %58 {offsets = [0, 0], sizes = [32, 16], strides = [1, 1]} : vector<32x96xbf16> to vector<32x16xbf16>
    %cst_28 = arith.constant dense<0.000000e+00> : vector<128x16xf32>
    %66 = tpu.matmul %63, %65, %cst_28 {dimension_numbers = #tpu.dot_dimension_numbers<[1], [0], [0], [1], [0, 0, 1, 1], [], []>} : vector<128x32xbf16>, vector<32x16xbf16>, vector<128x16xf32> -> vector<128x16xf32>
    %67 = vector.extract_strided_slice %60 {offsets = [0, 0], sizes = [1, 16], strides = [1, 1]} : vector<1x96xf32> to vector<1x16xf32>
    %68 = vector.broadcast %67 : vector<1x16xf32> to vector<128x16xf32>
    %69 = arith.addf %66, %68 : vector<128x16xf32>
    %70 = vector.shape_cast %69 : vector<128x16xf32> to vector<8x16x16xf32>
    %71 = vector.extract_strided_slice %58 {offsets = [0, 32], sizes = [32, 16], strides = [1, 1]} : vector<32x96xbf16> to vector<32x16xbf16>
    %cst_29 = arith.constant dense<0.000000e+00> : vector<128x16xf32>
    %72 = tpu.matmul %63, %71, %cst_29 {dimension_numbers = #tpu.dot_dimension_numbers<[1], [0], [0], [1], [0, 0, 1, 1], [], []>} : vector<128x32xbf16>, vector<32x16xbf16>, vector<128x16xf32> -> vector<128x16xf32>
    %73 = vector.extract_strided_slice %60 {offsets = [0, 32], sizes = [1, 16], strides = [1, 1]} : vector<1x96xf32> to vector<1x16xf32>
    %74 = vector.broadcast %73 : vector<1x16xf32> to vector<128x16xf32>
    %75 = arith.addf %72, %74 : vector<128x16xf32>
    %76 = vector.shape_cast %75 : vector<128x16xf32> to vector<8x16x16xf32>
    %77 = vector.extract_strided_slice %58 {offsets = [0, 64], sizes = [32, 16], strides = [1, 1]} : vector<32x96xbf16> to vector<32x16xbf16>
    %cst_30 = arith.constant dense<0.000000e+00> : vector<128x16xf32>
    %78 = tpu.matmul %63, %77, %cst_30 {dimension_numbers = #tpu.dot_dimension_numbers<[1], [0], [0], [1], [0, 0, 1, 1], [], []>} : vector<128x32xbf16>, vector<32x16xbf16>, vector<128x16xf32> -> vector<128x16xf32>
    %79 = vector.extract_strided_slice %60 {offsets = [0, 64], sizes = [1, 16], strides = [1, 1]} : vector<1x96xf32> to vector<1x16xf32>
    %80 = vector.broadcast %79 : vector<1x16xf32> to vector<128x16xf32>
    %81 = arith.addf %78, %80 : vector<128x16xf32>
    %82 = vector.shape_cast %81 : vector<128x16xf32> to vector<8x16x16xf32>
    %83 = arith.truncf %70 : vector<8x16x16xf32> to vector<8x16x16xbf16>
    %84 = arith.truncf %76 : vector<8x16x16xf32> to vector<8x16x16xbf16>
    "tpu.trace_start"() <{level = 10 : i32, message = "bqd,bkd->bqk"}> : () -> ()
    %cst_31 = arith.constant dense<0.000000e+00> : vector<8x16x16xf32>
    %85 = tpu.matmul %83, %84, %cst_31 {dimension_numbers = #tpu.dot_dimension_numbers<[2], [2], [1], [1], [0, 0, 0, 1, 1, 1], [0], [0]>} : vector<8x16x16xbf16>, vector<8x16x16xbf16>, vector<8x16x16xf32> -> vector<8x16x16xf32>
    "tpu.trace_stop"() : () -> ()
    %86 = arith.addf %85, %27 : vector<8x16x16xf32>
    %cst_32 = arith.constant dense<0xFF800000> : vector<8x16xf32>
    %87 = vector.multi_reduction <maximumf>, %86, %cst_32 [2] : vector<8x16x16xf32> to vector<8x16xf32>
    %88 = vector.shape_cast %87 : vector<8x16xf32> to vector<8x16x1xf32>
    %89 = vector.broadcast %88 : vector<8x16x1xf32> to vector<8x16x16xf32>
    %90 = arith.subf %86, %89 : vector<8x16x16xf32>
    %91 = math.exp %90 : vector<8x16x16xf32>
    %cst_33 = arith.constant dense<0.000000e+00> : vector<8x16xf32>
    %92 = vector.multi_reduction <add>, %91, %cst_33 [2] : vector<8x16x16xf32> to vector<8x16xf32>
    %93 = vector.shape_cast %92 : vector<8x16xf32> to vector<8x16x1xf32>
    %94 = tpu.reciprocal %93 {approx = true} : vector<8x16x1xf32> -> vector<8x16x1xf32>
    %95 = vector.broadcast %94 : vector<8x16x1xf32> to vector<8x16x16xf32>
    %96 = arith.mulf %91, %95 : vector<8x16x16xf32>
    %97 = arith.truncf %96 : vector<8x16x16xf32> to vector<8x16x16xbf16>
    %98 = arith.truncf %82 : vector<8x16x16xf32> to vector<8x16x16xbf16>
    "tpu.trace_start"() <{level = 10 : i32, message = "bqk,bkd->bqd"}> : () -> ()
    %cst_34 = arith.constant dense<0.000000e+00> : vector<8x16x16xf32>
    %99 = tpu.matmul %97, %98, %cst_34 {dimension_numbers = #tpu.dot_dimension_numbers<[2], [1], [1], [2], [0, 0, 0, 1, 1, 2], [0], [0]>} : vector<8x16x16xbf16>, vector<8x16x16xbf16>, vector<8x16x16xf32> -> vector<8x16x16xf32>
    "tpu.trace_stop"() : () -> ()
    %100 = vector.shape_cast %99 : vector<8x16x16xf32> to vector<128x16xf32>
    %101 = arith.truncf %100 : vector<128x16xf32> to vector<128x16xbf16>
    %102 = vector.extract_strided_slice %62 {offsets = [0, 0], sizes = [16, 32], strides = [1, 1]} : vector<32x32xbf16> to vector<16x32xbf16>
    %cst_35 = arith.constant dense<0.000000e+00> : vector<128x32xf32>
    %103 = tpu.matmul %101, %102, %cst_35 {dimension_numbers = #tpu.dot_dimension_numbers<[1], [0], [0], [1], [0, 0, 1, 1], [], []>} : vector<128x16xbf16>, vector<16x32xbf16>, vector<128x32xf32> -> vector<128x32xf32>
    %104 = arith.addf %64, %103 : vector<128x32xf32>
    %105 = vector.extract_strided_slice %58 {offsets = [0, 16], sizes = [32, 16], strides = [1, 1]} : vector<32x96xbf16> to vector<32x16xbf16>
    %cst_36 = arith.constant dense<0.000000e+00> : vector<128x16xf32>
    %106 = tpu.matmul %63, %105, %cst_36 {dimension_numbers = #tpu.dot_dimension_numbers<[1], [0], [0], [1], [0, 0, 1, 1], [], []>} : vector<128x32xbf16>, vector<32x16xbf16>, vector<128x16xf32> -> vector<128x16xf32>
    %107 = vector.extract_strided_slice %60 {offsets = [0, 16], sizes = [1, 16], strides = [1, 1]} : vector<1x96xf32> to vector<1x16xf32>
    %108 = vector.broadcast %107 : vector<1x16xf32> to vector<128x16xf32>
    %109 = arith.addf %106, %108 : vector<128x16xf32>
    %110 = vector.shape_cast %109 : vector<128x16xf32> to vector<8x16x16xf32>
    %111 = vector.extract_strided_slice %58 {offsets = [0, 48], sizes = [32, 16], strides = [1, 1]} : vector<32x96xbf16> to vector<32x16xbf16>
    %cst_37 = arith.constant dense<0.000000e+00> : vector<128x16xf32>
    %112 = tpu.matmul %63, %111, %cst_37 {dimension_numbers = #tpu.dot_dimension_numbers<[1], [0], [0], [1], [0, 0, 1, 1], [], []>} : vector<128x32xbf16>, vector<32x16xbf16>, vector<128x16xf32> -> vector<128x16xf32>
    %113 = vector.extract_strided_slice %60 {offsets = [0, 48], sizes = [1, 16], strides = [1, 1]} : vector<1x96xf32> to vector<1x16xf32>
    %114 = vector.broadcast %113 : vector<1x16xf32> to vector<128x16xf32>
    %115 = arith.addf %112, %114 : vector<128x16xf32>
    %116 = vector.shape_cast %115 : vector<128x16xf32> to vector<8x16x16xf32>
    %117 = vector.extract_strided_slice %58 {offsets = [0, 80], sizes = [32, 16], strides = [1, 1]} : vector<32x96xbf16> to vector<32x16xbf16>
    %cst_38 = arith.constant dense<0.000000e+00> : vector<128x16xf32>
    %118 = tpu.matmul %63, %117, %cst_38 {dimension_numbers = #tpu.dot_dimension_numbers<[1], [0], [0], [1], [0, 0, 1, 1], [], []>} : vector<128x32xbf16>, vector<32x16xbf16>, vector<128x16xf32> -> vector<128x16xf32>
    %119 = vector.extract_strided_slice %60 {offsets = [0, 80], sizes = [1, 16], strides = [1, 1]} : vector<1x96xf32> to vector<1x16xf32>
    %120 = vector.broadcast %119 : vector<1x16xf32> to vector<128x16xf32>
    %121 = arith.addf %118, %120 : vector<128x16xf32>
    %122 = vector.shape_cast %121 : vector<128x16xf32> to vector<8x16x16xf32>
    %123 = arith.truncf %110 : vector<8x16x16xf32> to vector<8x16x16xbf16>
    %124 = arith.truncf %116 : vector<8x16x16xf32> to vector<8x16x16xbf16>
    "tpu.trace_start"() <{level = 10 : i32, message = "bqd,bkd->bqk"}> : () -> ()
    %cst_39 = arith.constant dense<0.000000e+00> : vector<8x16x16xf32>
    %125 = tpu.matmul %123, %124, %cst_39 {dimension_numbers = #tpu.dot_dimension_numbers<[2], [2], [1], [1], [0, 0, 0, 1, 1, 1], [0], [0]>} : vector<8x16x16xbf16>, vector<8x16x16xbf16>, vector<8x16x16xf32> -> vector<8x16x16xf32>
    "tpu.trace_stop"() : () -> ()
    %126 = arith.addf %125, %27 : vector<8x16x16xf32>
    %cst_40 = arith.constant dense<0xFF800000> : vector<8x16xf32>
    %127 = vector.multi_reduction <maximumf>, %126, %cst_40 [2] : vector<8x16x16xf32> to vector<8x16xf32>
    %128 = vector.shape_cast %127 : vector<8x16xf32> to vector<8x16x1xf32>
    %129 = vector.broadcast %128 : vector<8x16x1xf32> to vector<8x16x16xf32>
    %130 = arith.subf %126, %129 : vector<8x16x16xf32>
    %131 = math.exp %130 : vector<8x16x16xf32>
    %cst_41 = arith.constant dense<0.000000e+00> : vector<8x16xf32>
    %132 = vector.multi_reduction <add>, %131, %cst_41 [2] : vector<8x16x16xf32> to vector<8x16xf32>
    %133 = vector.shape_cast %132 : vector<8x16xf32> to vector<8x16x1xf32>
    %134 = tpu.reciprocal %133 {approx = true} : vector<8x16x1xf32> -> vector<8x16x1xf32>
    %135 = vector.broadcast %134 : vector<8x16x1xf32> to vector<8x16x16xf32>
    %136 = arith.mulf %131, %135 : vector<8x16x16xf32>
    %137 = arith.truncf %136 : vector<8x16x16xf32> to vector<8x16x16xbf16>
    %138 = arith.truncf %122 : vector<8x16x16xf32> to vector<8x16x16xbf16>
    "tpu.trace_start"() <{level = 10 : i32, message = "bqk,bkd->bqd"}> : () -> ()
    %cst_42 = arith.constant dense<0.000000e+00> : vector<8x16x16xf32>
    %139 = tpu.matmul %137, %138, %cst_42 {dimension_numbers = #tpu.dot_dimension_numbers<[2], [1], [1], [2], [0, 0, 0, 1, 1, 2], [0], [0]>} : vector<8x16x16xbf16>, vector<8x16x16xbf16>, vector<8x16x16xf32> -> vector<8x16x16xf32>
    "tpu.trace_stop"() : () -> ()
    %140 = vector.shape_cast %139 : vector<8x16x16xf32> to vector<128x16xf32>
    %141 = arith.truncf %140 : vector<128x16xf32> to vector<128x16xbf16>
    %142 = vector.extract_strided_slice %62 {offsets = [16, 0], sizes = [16, 32], strides = [1, 1]} : vector<32x32xbf16> to vector<16x32xbf16>
    %cst_43 = arith.constant dense<0.000000e+00> : vector<128x32xf32>
    %143 = tpu.matmul %141, %142, %cst_43 {dimension_numbers = #tpu.dot_dimension_numbers<[1], [0], [0], [1], [0, 0, 1, 1], [], []>} : vector<128x16xbf16>, vector<16x32xbf16>, vector<128x32xf32> -> vector<128x32xf32>
    %144 = arith.addf %104, %143 : vector<128x32xf32>
    %c0_44 = arith.constant 0 : index
    %c0_45 = arith.constant 0 : index
    %c0_46 = arith.constant 0 : index
    %145 = vector.load %arg7[%c0_44, %c0_45, %c0_46] : memref<2x1x32xf32, #tpu.memory_space<vmem>>, vector<1x1x32xf32>
    %146 = vector.shape_cast %145 : vector<1x1x32xf32> to vector<1x32xf32>
    %147 = vector.broadcast %146 : vector<1x32xf32> to vector<128x32xf32>
    %148 = arith.addf %144, %147 : vector<128x32xf32>
    %149 = arith.addf %148, %56 : vector<128x32xf32>
    %c0_47 = arith.constant 0 : index
    %c0_48 = arith.constant 0 : index
    %c0_49 = arith.constant 0 : index
    %c0_50 = arith.constant 0 : index
    %150 = vector.load %arg8[%c0_47, %c0_48, %c0_49, %c0_50] : memref<2x2x1x32xf32, #tpu.memory_space<vmem>>, vector<1x1x1x32xf32>
    %151 = vector.shape_cast %150 : vector<1x1x1x32xf32> to vector<1x32xf32>
    %c0_51 = arith.constant 0 : index
    %c1_52 = arith.constant 1 : index
    %c0_53 = arith.constant 0 : index
    %c0_54 = arith.constant 0 : index
    %152 = vector.load %arg8[%c0_51, %c1_52, %c0_53, %c0_54] : memref<2x2x1x32xf32, #tpu.memory_space<vmem>>, vector<1x1x1x32xf32>
    %153 = vector.shape_cast %152 : vector<1x1x1x32xf32> to vector<1x32xf32>
    %cst_55 = arith.constant dense<0.000000e+00> : vector<128xf32>
    %154 = vector.multi_reduction <add>, %149, %cst_55 [1] : vector<128x32xf32> to vector<128xf32>
    %155 = vector.shape_cast %154 : vector<128xf32> to vector<128x1xf32>
    %cst_56 = arith.constant 3.200000e+01 : f32
    %156 = vector.broadcast %cst_56 : f32 to vector<128x1xf32>
    %157 = arith.divf %155, %156 : vector<128x1xf32>
    %158 = vector.broadcast %157 : vector<128x1xf32> to vector<128x32xf32>
    %159 = arith.subf %149, %158 : vector<128x32xf32>
    %160 = arith.mulf %159, %159 : vector<128x32xf32>
    %cst_57 = arith.constant dense<0.000000e+00> : vector<128xf32>
    %161 = vector.multi_reduction <add>, %160, %cst_57 [1] : vector<128x32xf32> to vector<128xf32>
    %162 = vector.shape_cast %161 : vector<128xf32> to vector<128x1xf32>
    %cst_58 = arith.constant 3.200000e+01 : f32
    %163 = vector.broadcast %cst_58 : f32 to vector<128x1xf32>
    %164 = arith.divf %162, %163 : vector<128x1xf32>
    %165 = vector.broadcast %157 : vector<128x1xf32> to vector<128x32xf32>
    %166 = arith.subf %149, %165 : vector<128x32xf32>
    %cst_59 = arith.constant 9.99999996E-13 : f32
    %167 = vector.broadcast %cst_59 : f32 to vector<128x1xf32>
    %168 = arith.addf %164, %167 : vector<128x1xf32>
    %169 = math.rsqrt %168 : vector<128x1xf32>
    %170 = vector.broadcast %169 : vector<128x1xf32> to vector<128x32xf32>
    %171 = arith.mulf %166, %170 : vector<128x32xf32>
    %172 = vector.broadcast %151 : vector<1x32xf32> to vector<128x32xf32>
    %173 = arith.mulf %171, %172 : vector<128x32xf32>
    %174 = vector.broadcast %153 : vector<1x32xf32> to vector<128x32xf32>
    %175 = arith.addf %173, %174 : vector<128x32xf32>
    %176 = arith.truncf %175 : vector<128x32xf32> to vector<128x32xbf16>
    %c0_60 = arith.constant 0 : index
    %c0_61 = arith.constant 0 : index
    %c0_62 = arith.constant 0 : index
    %177 = vector.load %arg9[%c0_60, %c0_61, %c0_62] : memref<2x32x64xbf16, #tpu.memory_space<vmem>>, vector<1x32x64xbf16>
    %178 = vector.shape_cast %177 : vector<1x32x64xbf16> to vector<32x64xbf16>
    %cst_63 = arith.constant dense<0.000000e+00> : vector<128x64xf32>
    %179 = tpu.matmul %176, %178, %cst_63 {dimension_numbers = #tpu.dot_dimension_numbers<[1], [0], [0], [1], [0, 0, 1, 1], [], []>} : vector<128x32xbf16>, vector<32x64xbf16>, vector<128x64xf32> -> vector<128x64xf32>
    %c0_64 = arith.constant 0 : index
    %c0_65 = arith.constant 0 : index
    %c0_66 = arith.constant 0 : index
    %180 = vector.load %arg10[%c0_64, %c0_65, %c0_66] : memref<2x1x64xf32, #tpu.memory_space<vmem>>, vector<1x1x64xf32>
    %181 = vector.shape_cast %180 : vector<1x1x64xf32> to vector<1x64xf32>
    %182 = vector.broadcast %181 : vector<1x64xf32> to vector<128x64xf32>
    %183 = arith.addf %179, %182 : vector<128x64xf32>
    %cst_67 = arith.constant 0.000000e+00 : f32
    %184 = vector.broadcast %cst_67 : f32 to vector<128x64xf32>
    %185 = arith.maximumf %183, %184 : vector<128x64xf32>
    %186 = arith.truncf %185 : vector<128x64xf32> to vector<128x64xbf16>
    %c0_68 = arith.constant 0 : index
    %c0_69 = arith.constant 0 : index
    %c0_70 = arith.constant 0 : index
    %187 = vector.load %arg11[%c0_68, %c0_69, %c0_70] : memref<2x64x32xbf16, #tpu.memory_space<vmem>>, vector<1x64x32xbf16>
    %188 = vector.shape_cast %187 : vector<1x64x32xbf16> to vector<64x32xbf16>
    %cst_71 = arith.constant dense<0.000000e+00> : vector<128x32xf32>
    %189 = tpu.matmul %186, %188, %cst_71 {dimension_numbers = #tpu.dot_dimension_numbers<[1], [0], [0], [1], [0, 0, 1, 1], [], []>} : vector<128x64xbf16>, vector<64x32xbf16>, vector<128x32xf32> -> vector<128x32xf32>
    %c0_72 = arith.constant 0 : index
    %c0_73 = arith.constant 0 : index
    %c0_74 = arith.constant 0 : index
    %190 = vector.load %arg12[%c0_72, %c0_73, %c0_74] : memref<2x1x32xf32, #tpu.memory_space<vmem>>, vector<1x1x32xf32>
    %191 = vector.shape_cast %190 : vector<1x1x32xf32> to vector<1x32xf32>
    %192 = vector.broadcast %191 : vector<1x32xf32> to vector<128x32xf32>
    %193 = arith.addf %189, %192 : vector<128x32xf32>
    %194 = arith.addf %193, %175 : vector<128x32xf32>
    %c0_75 = arith.constant 0 : index
    %c0_76 = arith.constant 0 : index
    %c0_77 = arith.constant 0 : index
    %c0_78 = arith.constant 0 : index
    %195 = vector.load %arg13[%c0_75, %c0_76, %c0_77, %c0_78] : memref<2x2x1x32xf32, #tpu.memory_space<vmem>>, vector<1x1x1x32xf32>
    %196 = vector.shape_cast %195 : vector<1x1x1x32xf32> to vector<1x32xf32>
    %c0_79 = arith.constant 0 : index
    %c1_80 = arith.constant 1 : index
    %c0_81 = arith.constant 0 : index
    %c0_82 = arith.constant 0 : index
    %197 = vector.load %arg13[%c0_79, %c1_80, %c0_81, %c0_82] : memref<2x2x1x32xf32, #tpu.memory_space<vmem>>, vector<1x1x1x32xf32>
    %198 = vector.shape_cast %197 : vector<1x1x1x32xf32> to vector<1x32xf32>
    %cst_83 = arith.constant dense<0.000000e+00> : vector<128xf32>
    %199 = vector.multi_reduction <add>, %194, %cst_83 [1] : vector<128x32xf32> to vector<128xf32>
    %200 = vector.shape_cast %199 : vector<128xf32> to vector<128x1xf32>
    %cst_84 = arith.constant 3.200000e+01 : f32
    %201 = vector.broadcast %cst_84 : f32 to vector<128x1xf32>
    %202 = arith.divf %200, %201 : vector<128x1xf32>
    %203 = vector.broadcast %202 : vector<128x1xf32> to vector<128x32xf32>
    %204 = arith.subf %194, %203 : vector<128x32xf32>
    %205 = arith.mulf %204, %204 : vector<128x32xf32>
    %cst_85 = arith.constant dense<0.000000e+00> : vector<128xf32>
    %206 = vector.multi_reduction <add>, %205, %cst_85 [1] : vector<128x32xf32> to vector<128xf32>
    %207 = vector.shape_cast %206 : vector<128xf32> to vector<128x1xf32>
    %cst_86 = arith.constant 3.200000e+01 : f32
    %208 = vector.broadcast %cst_86 : f32 to vector<128x1xf32>
    %209 = arith.divf %207, %208 : vector<128x1xf32>
    %210 = vector.broadcast %202 : vector<128x1xf32> to vector<128x32xf32>
    %211 = arith.subf %194, %210 : vector<128x32xf32>
    %cst_87 = arith.constant 9.99999996E-13 : f32
    %212 = vector.broadcast %cst_87 : f32 to vector<128x1xf32>
    %213 = arith.addf %209, %212 : vector<128x1xf32>
    %214 = math.rsqrt %213 : vector<128x1xf32>
    %215 = vector.broadcast %214 : vector<128x1xf32> to vector<128x32xf32>
    %216 = arith.mulf %211, %215 : vector<128x32xf32>
    %217 = vector.broadcast %196 : vector<1x32xf32> to vector<128x32xf32>
    %218 = arith.mulf %216, %217 : vector<128x32xf32>
    %219 = vector.broadcast %198 : vector<1x32xf32> to vector<128x32xf32>
    %220 = arith.addf %218, %219 : vector<128x32xf32>
    %c1_88 = arith.constant 1 : index
    %c0_89 = arith.constant 0 : index
    %c0_90 = arith.constant 0 : index
    %221 = vector.load %arg4[%c1_88, %c0_89, %c0_90] : memref<2x32x96xbf16, #tpu.memory_space<vmem>>, vector<1x32x96xbf16>
    %222 = vector.shape_cast %221 : vector<1x32x96xbf16> to vector<32x96xbf16>
    %c1_91 = arith.constant 1 : index
    %c0_92 = arith.constant 0 : index
    %c0_93 = arith.constant 0 : index
    %223 = vector.load %arg5[%c1_91, %c0_92, %c0_93] : memref<2x1x96xf32, #tpu.memory_space<vmem>>, vector<1x1x96xf32>
    %224 = vector.shape_cast %223 : vector<1x1x96xf32> to vector<1x96xf32>
    %c1_94 = arith.constant 1 : index
    %c0_95 = arith.constant 0 : index
    %c0_96 = arith.constant 0 : index
    %225 = vector.load %arg6[%c1_94, %c0_95, %c0_96] : memref<2x32x32xbf16, #tpu.memory_space<vmem>>, vector<1x32x32xbf16>
    %226 = vector.shape_cast %225 : vector<1x32x32xbf16> to vector<32x32xbf16>
    %227 = arith.truncf %220 : vector<128x32xf32> to vector<128x32xbf16>
    %cst_97 = arith.constant 0.000000e+00 : f32
    %228 = vector.broadcast %cst_97 : f32 to vector<128x32xf32>
    %229 = vector.extract_strided_slice %222 {offsets = [0, 0], sizes = [32, 16], strides = [1, 1]} : vector<32x96xbf16> to vector<32x16xbf16>
    %cst_98 = arith.constant dense<0.000000e+00> : vector<128x16xf32>
    %230 = tpu.matmul %227, %229, %cst_98 {dimension_numbers = #tpu.dot_dimension_numbers<[1], [0], [0], [1], [0, 0, 1, 1], [], []>} : vector<128x32xbf16>, vector<32x16xbf16>, vector<128x16xf32> -> vector<128x16xf32>
    %231 = vector.extract_strided_slice %224 {offsets = [0, 0], sizes = [1, 16], strides = [1, 1]} : vector<1x96xf32> to vector<1x16xf32>
    %232 = vector.broadcast %231 : vector<1x16xf32> to vector<128x16xf32>
    %233 = arith.addf %230, %232 : vector<128x16xf32>
    %234 = vector.shape_cast %233 : vector<128x16xf32> to vector<8x16x16xf32>
    %235 = vector.extract_strided_slice %222 {offsets = [0, 32], sizes = [32, 16], strides = [1, 1]} : vector<32x96xbf16> to vector<32x16xbf16>
    %cst_99 = arith.constant dense<0.000000e+00> : vector<128x16xf32>
    %236 = tpu.matmul %227, %235, %cst_99 {dimension_numbers = #tpu.dot_dimension_numbers<[1], [0], [0], [1], [0, 0, 1, 1], [], []>} : vector<128x32xbf16>, vector<32x16xbf16>, vector<128x16xf32> -> vector<128x16xf32>
    %237 = vector.extract_strided_slice %224 {offsets = [0, 32], sizes = [1, 16], strides = [1, 1]} : vector<1x96xf32> to vector<1x16xf32>
    %238 = vector.broadcast %237 : vector<1x16xf32> to vector<128x16xf32>
    %239 = arith.addf %236, %238 : vector<128x16xf32>
    %240 = vector.shape_cast %239 : vector<128x16xf32> to vector<8x16x16xf32>
    %241 = vector.extract_strided_slice %222 {offsets = [0, 64], sizes = [32, 16], strides = [1, 1]} : vector<32x96xbf16> to vector<32x16xbf16>
    %cst_100 = arith.constant dense<0.000000e+00> : vector<128x16xf32>
    %242 = tpu.matmul %227, %241, %cst_100 {dimension_numbers = #tpu.dot_dimension_numbers<[1], [0], [0], [1], [0, 0, 1, 1], [], []>} : vector<128x32xbf16>, vector<32x16xbf16>, vector<128x16xf32> -> vector<128x16xf32>
    %243 = vector.extract_strided_slice %224 {offsets = [0, 64], sizes = [1, 16], strides = [1, 1]} : vector<1x96xf32> to vector<1x16xf32>
    %244 = vector.broadcast %243 : vector<1x16xf32> to vector<128x16xf32>
    %245 = arith.addf %242, %244 : vector<128x16xf32>
    %246 = vector.shape_cast %245 : vector<128x16xf32> to vector<8x16x16xf32>
    %247 = arith.truncf %234 : vector<8x16x16xf32> to vector<8x16x16xbf16>
    %248 = arith.truncf %240 : vector<8x16x16xf32> to vector<8x16x16xbf16>
    "tpu.trace_start"() <{level = 10 : i32, message = "bqd,bkd->bqk"}> : () -> ()
    %cst_101 = arith.constant dense<0.000000e+00> : vector<8x16x16xf32>
    %249 = tpu.matmul %247, %248, %cst_101 {dimension_numbers = #tpu.dot_dimension_numbers<[2], [2], [1], [1], [0, 0, 0, 1, 1, 1], [0], [0]>} : vector<8x16x16xbf16>, vector<8x16x16xbf16>, vector<8x16x16xf32> -> vector<8x16x16xf32>
    "tpu.trace_stop"() : () -> ()
    %250 = arith.addf %249, %27 : vector<8x16x16xf32>
    %cst_102 = arith.constant dense<0xFF800000> : vector<8x16xf32>
    %251 = vector.multi_reduction <maximumf>, %250, %cst_102 [2] : vector<8x16x16xf32> to vector<8x16xf32>
    %252 = vector.shape_cast %251 : vector<8x16xf32> to vector<8x16x1xf32>
    %253 = vector.broadcast %252 : vector<8x16x1xf32> to vector<8x16x16xf32>
    %254 = arith.subf %250, %253 : vector<8x16x16xf32>
    %255 = math.exp %254 : vector<8x16x16xf32>
    %cst_103 = arith.constant dense<0.000000e+00> : vector<8x16xf32>
    %256 = vector.multi_reduction <add>, %255, %cst_103 [2] : vector<8x16x16xf32> to vector<8x16xf32>
    %257 = vector.shape_cast %256 : vector<8x16xf32> to vector<8x16x1xf32>
    %258 = tpu.reciprocal %257 {approx = true} : vector<8x16x1xf32> -> vector<8x16x1xf32>
    %259 = vector.broadcast %258 : vector<8x16x1xf32> to vector<8x16x16xf32>
    %260 = arith.mulf %255, %259 : vector<8x16x16xf32>
    %261 = arith.truncf %260 : vector<8x16x16xf32> to vector<8x16x16xbf16>
    %262 = arith.truncf %246 : vector<8x16x16xf32> to vector<8x16x16xbf16>
    "tpu.trace_start"() <{level = 10 : i32, message = "bqk,bkd->bqd"}> : () -> ()
    %cst_104 = arith.constant dense<0.000000e+00> : vector<8x16x16xf32>
    %263 = tpu.matmul %261, %262, %cst_104 {dimension_numbers = #tpu.dot_dimension_numbers<[2], [1], [1], [2], [0, 0, 0, 1, 1, 2], [0], [0]>} : vector<8x16x16xbf16>, vector<8x16x16xbf16>, vector<8x16x16xf32> -> vector<8x16x16xf32>
    "tpu.trace_stop"() : () -> ()
    %264 = vector.shape_cast %263 : vector<8x16x16xf32> to vector<128x16xf32>
    %265 = arith.truncf %264 : vector<128x16xf32> to vector<128x16xbf16>
    %266 = vector.extract_strided_slice %226 {offsets = [0, 0], sizes = [16, 32], strides = [1, 1]} : vector<32x32xbf16> to vector<16x32xbf16>
    %cst_105 = arith.constant dense<0.000000e+00> : vector<128x32xf32>
    %267 = tpu.matmul %265, %266, %cst_105 {dimension_numbers = #tpu.dot_dimension_numbers<[1], [0], [0], [1], [0, 0, 1, 1], [], []>} : vector<128x16xbf16>, vector<16x32xbf16>, vector<128x32xf32> -> vector<128x32xf32>
    %268 = arith.addf %228, %267 : vector<128x32xf32>
    %269 = vector.extract_strided_slice %222 {offsets = [0, 16], sizes = [32, 16], strides = [1, 1]} : vector<32x96xbf16> to vector<32x16xbf16>
    %cst_106 = arith.constant dense<0.000000e+00> : vector<128x16xf32>
    %270 = tpu.matmul %227, %269, %cst_106 {dimension_numbers = #tpu.dot_dimension_numbers<[1], [0], [0], [1], [0, 0, 1, 1], [], []>} : vector<128x32xbf16>, vector<32x16xbf16>, vector<128x16xf32> -> vector<128x16xf32>
    %271 = vector.extract_strided_slice %224 {offsets = [0, 16], sizes = [1, 16], strides = [1, 1]} : vector<1x96xf32> to vector<1x16xf32>
    %272 = vector.broadcast %271 : vector<1x16xf32> to vector<128x16xf32>
    %273 = arith.addf %270, %272 : vector<128x16xf32>
    %274 = vector.shape_cast %273 : vector<128x16xf32> to vector<8x16x16xf32>
    %275 = vector.extract_strided_slice %222 {offsets = [0, 48], sizes = [32, 16], strides = [1, 1]} : vector<32x96xbf16> to vector<32x16xbf16>
    %cst_107 = arith.constant dense<0.000000e+00> : vector<128x16xf32>
    %276 = tpu.matmul %227, %275, %cst_107 {dimension_numbers = #tpu.dot_dimension_numbers<[1], [0], [0], [1], [0, 0, 1, 1], [], []>} : vector<128x32xbf16>, vector<32x16xbf16>, vector<128x16xf32> -> vector<128x16xf32>
    %277 = vector.extract_strided_slice %224 {offsets = [0, 48], sizes = [1, 16], strides = [1, 1]} : vector<1x96xf32> to vector<1x16xf32>
    %278 = vector.broadcast %277 : vector<1x16xf32> to vector<128x16xf32>
    %279 = arith.addf %276, %278 : vector<128x16xf32>
    %280 = vector.shape_cast %279 : vector<128x16xf32> to vector<8x16x16xf32>
    %281 = vector.extract_strided_slice %222 {offsets = [0, 80], sizes = [32, 16], strides = [1, 1]} : vector<32x96xbf16> to vector<32x16xbf16>
    %cst_108 = arith.constant dense<0.000000e+00> : vector<128x16xf32>
    %282 = tpu.matmul %227, %281, %cst_108 {dimension_numbers = #tpu.dot_dimension_numbers<[1], [0], [0], [1], [0, 0, 1, 1], [], []>} : vector<128x32xbf16>, vector<32x16xbf16>, vector<128x16xf32> -> vector<128x16xf32>
    %283 = vector.extract_strided_slice %224 {offsets = [0, 80], sizes = [1, 16], strides = [1, 1]} : vector<1x96xf32> to vector<1x16xf32>
    %284 = vector.broadcast %283 : vector<1x16xf32> to vector<128x16xf32>
    %285 = arith.addf %282, %284 : vector<128x16xf32>
    %286 = vector.shape_cast %285 : vector<128x16xf32> to vector<8x16x16xf32>
    %287 = arith.truncf %274 : vector<8x16x16xf32> to vector<8x16x16xbf16>
    %288 = arith.truncf %280 : vector<8x16x16xf32> to vector<8x16x16xbf16>
    "tpu.trace_start"() <{level = 10 : i32, message = "bqd,bkd->bqk"}> : () -> ()
    %cst_109 = arith.constant dense<0.000000e+00> : vector<8x16x16xf32>
    %289 = tpu.matmul %287, %288, %cst_109 {dimension_numbers = #tpu.dot_dimension_numbers<[2], [2], [1], [1], [0, 0, 0, 1, 1, 1], [0], [0]>} : vector<8x16x16xbf16>, vector<8x16x16xbf16>, vector<8x16x16xf32> -> vector<8x16x16xf32>
    "tpu.trace_stop"() : () -> ()
    %290 = arith.addf %289, %27 : vector<8x16x16xf32>
    %cst_110 = arith.constant dense<0xFF800000> : vector<8x16xf32>
    %291 = vector.multi_reduction <maximumf>, %290, %cst_110 [2] : vector<8x16x16xf32> to vector<8x16xf32>
    %292 = vector.shape_cast %291 : vector<8x16xf32> to vector<8x16x1xf32>
    %293 = vector.broadcast %292 : vector<8x16x1xf32> to vector<8x16x16xf32>
    %294 = arith.subf %290, %293 : vector<8x16x16xf32>
    %295 = math.exp %294 : vector<8x16x16xf32>
    %cst_111 = arith.constant dense<0.000000e+00> : vector<8x16xf32>
    %296 = vector.multi_reduction <add>, %295, %cst_111 [2] : vector<8x16x16xf32> to vector<8x16xf32>
    %297 = vector.shape_cast %296 : vector<8x16xf32> to vector<8x16x1xf32>
    %298 = tpu.reciprocal %297 {approx = true} : vector<8x16x1xf32> -> vector<8x16x1xf32>
    %299 = vector.broadcast %298 : vector<8x16x1xf32> to vector<8x16x16xf32>
    %300 = arith.mulf %295, %299 : vector<8x16x16xf32>
    %301 = arith.truncf %300 : vector<8x16x16xf32> to vector<8x16x16xbf16>
    %302 = arith.truncf %286 : vector<8x16x16xf32> to vector<8x16x16xbf16>
    "tpu.trace_start"() <{level = 10 : i32, message = "bqk,bkd->bqd"}> : () -> ()
    %cst_112 = arith.constant dense<0.000000e+00> : vector<8x16x16xf32>
    %303 = tpu.matmul %301, %302, %cst_112 {dimension_numbers = #tpu.dot_dimension_numbers<[2], [1], [1], [2], [0, 0, 0, 1, 1, 2], [0], [0]>} : vector<8x16x16xbf16>, vector<8x16x16xbf16>, vector<8x16x16xf32> -> vector<8x16x16xf32>
    "tpu.trace_stop"() : () -> ()
    %304 = vector.shape_cast %303 : vector<8x16x16xf32> to vector<128x16xf32>
    %305 = arith.truncf %304 : vector<128x16xf32> to vector<128x16xbf16>
    %306 = vector.extract_strided_slice %226 {offsets = [16, 0], sizes = [16, 32], strides = [1, 1]} : vector<32x32xbf16> to vector<16x32xbf16>
    %cst_113 = arith.constant dense<0.000000e+00> : vector<128x32xf32>
    %307 = tpu.matmul %305, %306, %cst_113 {dimension_numbers = #tpu.dot_dimension_numbers<[1], [0], [0], [1], [0, 0, 1, 1], [], []>} : vector<128x16xbf16>, vector<16x32xbf16>, vector<128x32xf32> -> vector<128x32xf32>
    %308 = arith.addf %268, %307 : vector<128x32xf32>
    %c1_114 = arith.constant 1 : index
    %c0_115 = arith.constant 0 : index
    %c0_116 = arith.constant 0 : index
    %309 = vector.load %arg7[%c1_114, %c0_115, %c0_116] : memref<2x1x32xf32, #tpu.memory_space<vmem>>, vector<1x1x32xf32>
    %310 = vector.shape_cast %309 : vector<1x1x32xf32> to vector<1x32xf32>
    %311 = vector.broadcast %310 : vector<1x32xf32> to vector<128x32xf32>
    %312 = arith.addf %308, %311 : vector<128x32xf32>
    %313 = arith.addf %312, %220 : vector<128x32xf32>
    %c1_117 = arith.constant 1 : index
    %c0_118 = arith.constant 0 : index
    %c0_119 = arith.constant 0 : index
    %c0_120 = arith.constant 0 : index
    %314 = vector.load %arg8[%c1_117, %c0_118, %c0_119, %c0_120] : memref<2x2x1x32xf32, #tpu.memory_space<vmem>>, vector<1x1x1x32xf32>
    %315 = vector.shape_cast %314 : vector<1x1x1x32xf32> to vector<1x32xf32>
    %c1_121 = arith.constant 1 : index
    %c1_122 = arith.constant 1 : index
    %c0_123 = arith.constant 0 : index
    %c0_124 = arith.constant 0 : index
    %316 = vector.load %arg8[%c1_121, %c1_122, %c0_123, %c0_124] : memref<2x2x1x32xf32, #tpu.memory_space<vmem>>, vector<1x1x1x32xf32>
    %317 = vector.shape_cast %316 : vector<1x1x1x32xf32> to vector<1x32xf32>
    %cst_125 = arith.constant dense<0.000000e+00> : vector<128xf32>
    %318 = vector.multi_reduction <add>, %313, %cst_125 [1] : vector<128x32xf32> to vector<128xf32>
    %319 = vector.shape_cast %318 : vector<128xf32> to vector<128x1xf32>
    %cst_126 = arith.constant 3.200000e+01 : f32
    %320 = vector.broadcast %cst_126 : f32 to vector<128x1xf32>
    %321 = arith.divf %319, %320 : vector<128x1xf32>
    %322 = vector.broadcast %321 : vector<128x1xf32> to vector<128x32xf32>
    %323 = arith.subf %313, %322 : vector<128x32xf32>
    %324 = arith.mulf %323, %323 : vector<128x32xf32>
    %cst_127 = arith.constant dense<0.000000e+00> : vector<128xf32>
    %325 = vector.multi_reduction <add>, %324, %cst_127 [1] : vector<128x32xf32> to vector<128xf32>
    %326 = vector.shape_cast %325 : vector<128xf32> to vector<128x1xf32>
    %cst_128 = arith.constant 3.200000e+01 : f32
    %327 = vector.broadcast %cst_128 : f32 to vector<128x1xf32>
    %328 = arith.divf %326, %327 : vector<128x1xf32>
    %329 = vector.broadcast %321 : vector<128x1xf32> to vector<128x32xf32>
    %330 = arith.subf %313, %329 : vector<128x32xf32>
    %cst_129 = arith.constant 9.99999996E-13 : f32
    %331 = vector.broadcast %cst_129 : f32 to vector<128x1xf32>
    %332 = arith.addf %328, %331 : vector<128x1xf32>
    %333 = math.rsqrt %332 : vector<128x1xf32>
    %334 = vector.broadcast %333 : vector<128x1xf32> to vector<128x32xf32>
    %335 = arith.mulf %330, %334 : vector<128x32xf32>
    %336 = vector.broadcast %315 : vector<1x32xf32> to vector<128x32xf32>
    %337 = arith.mulf %335, %336 : vector<128x32xf32>
    %338 = vector.broadcast %317 : vector<1x32xf32> to vector<128x32xf32>
    %339 = arith.addf %337, %338 : vector<128x32xf32>
    %340 = arith.truncf %339 : vector<128x32xf32> to vector<128x32xbf16>
    %c1_130 = arith.constant 1 : index
    %c0_131 = arith.constant 0 : index
    %c0_132 = arith.constant 0 : index
    %341 = vector.load %arg9[%c1_130, %c0_131, %c0_132] : memref<2x32x64xbf16, #tpu.memory_space<vmem>>, vector<1x32x64xbf16>
    %342 = vector.shape_cast %341 : vector<1x32x64xbf16> to vector<32x64xbf16>
    %cst_133 = arith.constant dense<0.000000e+00> : vector<128x64xf32>
    %343 = tpu.matmul %340, %342, %cst_133 {dimension_numbers = #tpu.dot_dimension_numbers<[1], [0], [0], [1], [0, 0, 1, 1], [], []>} : vector<128x32xbf16>, vector<32x64xbf16>, vector<128x64xf32> -> vector<128x64xf32>
    %c1_134 = arith.constant 1 : index
    %c0_135 = arith.constant 0 : index
    %c0_136 = arith.constant 0 : index
    %344 = vector.load %arg10[%c1_134, %c0_135, %c0_136] : memref<2x1x64xf32, #tpu.memory_space<vmem>>, vector<1x1x64xf32>
    %345 = vector.shape_cast %344 : vector<1x1x64xf32> to vector<1x64xf32>
    %346 = vector.broadcast %345 : vector<1x64xf32> to vector<128x64xf32>
    %347 = arith.addf %343, %346 : vector<128x64xf32>
    %cst_137 = arith.constant 0.000000e+00 : f32
    %348 = vector.broadcast %cst_137 : f32 to vector<128x64xf32>
    %349 = arith.maximumf %347, %348 : vector<128x64xf32>
    %350 = arith.truncf %349 : vector<128x64xf32> to vector<128x64xbf16>
    %c1_138 = arith.constant 1 : index
    %c0_139 = arith.constant 0 : index
    %c0_140 = arith.constant 0 : index
    %351 = vector.load %arg11[%c1_138, %c0_139, %c0_140] : memref<2x64x32xbf16, #tpu.memory_space<vmem>>, vector<1x64x32xbf16>
    %352 = vector.shape_cast %351 : vector<1x64x32xbf16> to vector<64x32xbf16>
    %cst_141 = arith.constant dense<0.000000e+00> : vector<128x32xf32>
    %353 = tpu.matmul %350, %352, %cst_141 {dimension_numbers = #tpu.dot_dimension_numbers<[1], [0], [0], [1], [0, 0, 1, 1], [], []>} : vector<128x64xbf16>, vector<64x32xbf16>, vector<128x32xf32> -> vector<128x32xf32>
    %c1_142 = arith.constant 1 : index
    %c0_143 = arith.constant 0 : index
    %c0_144 = arith.constant 0 : index
    %354 = vector.load %arg12[%c1_142, %c0_143, %c0_144] : memref<2x1x32xf32, #tpu.memory_space<vmem>>, vector<1x1x32xf32>
    %355 = vector.shape_cast %354 : vector<1x1x32xf32> to vector<1x32xf32>
    %356 = vector.broadcast %355 : vector<1x32xf32> to vector<128x32xf32>
    %357 = arith.addf %353, %356 : vector<128x32xf32>
    %358 = arith.addf %357, %339 : vector<128x32xf32>
    %c1_145 = arith.constant 1 : index
    %c0_146 = arith.constant 0 : index
    %c0_147 = arith.constant 0 : index
    %c0_148 = arith.constant 0 : index
    %359 = vector.load %arg13[%c1_145, %c0_146, %c0_147, %c0_148] : memref<2x2x1x32xf32, #tpu.memory_space<vmem>>, vector<1x1x1x32xf32>
    %360 = vector.shape_cast %359 : vector<1x1x1x32xf32> to vector<1x32xf32>
    %c1_149 = arith.constant 1 : index
    %c1_150 = arith.constant 1 : index
    %c0_151 = arith.constant 0 : index
    %c0_152 = arith.constant 0 : index
    %361 = vector.load %arg13[%c1_149, %c1_150, %c0_151, %c0_152] : memref<2x2x1x32xf32, #tpu.memory_space<vmem>>, vector<1x1x1x32xf32>
    %362 = vector.shape_cast %361 : vector<1x1x1x32xf32> to vector<1x32xf32>
    %cst_153 = arith.constant dense<0.000000e+00> : vector<128xf32>
    %363 = vector.multi_reduction <add>, %358, %cst_153 [1] : vector<128x32xf32> to vector<128xf32>
    %364 = vector.shape_cast %363 : vector<128xf32> to vector<128x1xf32>
    %cst_154 = arith.constant 3.200000e+01 : f32
    %365 = vector.broadcast %cst_154 : f32 to vector<128x1xf32>
    %366 = arith.divf %364, %365 : vector<128x1xf32>
    %367 = vector.broadcast %366 : vector<128x1xf32> to vector<128x32xf32>
    %368 = arith.subf %358, %367 : vector<128x32xf32>
    %369 = arith.mulf %368, %368 : vector<128x32xf32>
    %cst_155 = arith.constant dense<0.000000e+00> : vector<128xf32>
    %370 = vector.multi_reduction <add>, %369, %cst_155 [1] : vector<128x32xf32> to vector<128xf32>
    %371 = vector.shape_cast %370 : vector<128xf32> to vector<128x1xf32>
    %cst_156 = arith.constant 3.200000e+01 : f32
    %372 = vector.broadcast %cst_156 : f32 to vector<128x1xf32>
    %373 = arith.divf %371, %372 : vector<128x1xf32>
    %374 = vector.broadcast %366 : vector<128x1xf32> to vector<128x32xf32>
    %375 = arith.subf %358, %374 : vector<128x32xf32>
    %cst_157 = arith.constant 9.99999996E-13 : f32
    %376 = vector.broadcast %cst_157 : f32 to vector<128x1xf32>
    %377 = arith.addf %373, %376 : vector<128x1xf32>
    %378 = math.rsqrt %377 : vector<128x1xf32>
    %379 = vector.broadcast %378 : vector<128x1xf32> to vector<128x32xf32>
    %380 = arith.mulf %375, %379 : vector<128x32xf32>
    %381 = vector.broadcast %360 : vector<1x32xf32> to vector<128x32xf32>
    %382 = arith.mulf %380, %381 : vector<128x32xf32>
    %383 = vector.broadcast %362 : vector<1x32xf32> to vector<128x32xf32>
    %384 = arith.addf %382, %383 : vector<128x32xf32>
    %385 = vector.shape_cast %384 : vector<128x32xf32> to vector<8x16x32xf32>
    %c0_158 = arith.constant 0 : index
    %c0_159 = arith.constant 0 : index
    %386 = vector.load %arg14[%c0_158, %c0_159] : memref<1x32xf32, #tpu.memory_space<vmem>>, vector<1x32xf32>
    %387 = vector.shape_cast %386 : vector<1x32xf32> to vector<1x1x32xf32>
    %388 = vector.broadcast %387 : vector<1x1x32xf32> to vector<8x16x32xf32>
    %389 = arith.mulf %385, %388 : vector<8x16x32xf32>
    %cst_160 = arith.constant dense<0.000000e+00> : vector<8x16xf32>
    %390 = vector.multi_reduction <add>, %389, %cst_160 [2] : vector<8x16x32xf32> to vector<8x16xf32>
    %c0_161 = arith.constant 0 : index
    %c0_162 = arith.constant 0 : index
    %391 = memref.load %arg15[%c0_161, %c0_162] : memref<1x1xf32, #tpu.memory_space<smem>>
    %392 = vector.broadcast %391 : f32 to vector<8x16xf32>
    %393 = arith.addf %390, %392 : vector<8x16xf32>
    %394 = tpu.iota {dimensions = array<i32: 1>} : vector<1x16xi32>
    %c10_i32_163 = arith.constant 10 : i32
    %395 = vector.broadcast %c10_i32_163 : i32 to vector<1x16xi32>
    %396 = arith.cmpi slt, %394, %395 : vector<1x16xi32>
    %cst_164 = arith.constant -9.000000e+15 : f32
    %cst_165 = arith.constant -1.000000e+30 : f32
    %397 = vector.broadcast %cst_164 : f32 to vector<1x16xf32>
    %398 = vector.broadcast %cst_165 : f32 to vector<1x16xf32>
    %399 = arith.select %396, %397, %398 : vector<1x16xi1>, vector<1x16xf32>
    %cst_166 = arith.constant 5.000000e-01 : f32
    %400 = vector.broadcast %cst_166 : f32 to vector<8x16xf32>
    %401 = arith.cmpf ogt, %0, %400 : vector<8x16xf32>
    %402 = vector.shape_cast %399 : vector<1x16xf32> to vector<1x16xf32>
    %403 = vector.broadcast %402 : vector<1x16xf32> to vector<8x16xf32>
    %404 = arith.select %401, %393, %403 : vector<8x16xi1>, vector<8x16xf32>
    %cst_167 = arith.constant dense<0xFF800000> : vector<8xf32>
    %405 = vector.multi_reduction <maximumf>, %404, %cst_167 [1] : vector<8x16xf32> to vector<8xf32>
    %406 = vector.shape_cast %405 : vector<8xf32> to vector<8x1xf32>
    %407 = vector.broadcast %406 : vector<8x1xf32> to vector<8x16xf32>
    %408 = arith.subf %404, %407 : vector<8x16xf32>
    %409 = math.exp %408 : vector<8x16xf32>
    %cst_168 = arith.constant dense<0.000000e+00> : vector<8xf32>
    %410 = vector.multi_reduction <add>, %409, %cst_168 [1] : vector<8x16xf32> to vector<8xf32>
    %411 = vector.shape_cast %410 : vector<8xf32> to vector<8x1xf32>
    %412 = vector.broadcast %411 : vector<8x1xf32> to vector<8x16xf32>
    %413 = arith.divf %409, %412 : vector<8x16xf32>
    %c0_169 = arith.constant 0 : index
    %c0_170 = arith.constant 0 : index
    %414 = vector.load %arg16[%c0_169, %c0_170] : memref<8x16xf32, #tpu.memory_space<vmem>>, vector<8x16xf32>
    tpu.vector_store %arg16[%c0_169, %c0_170], %413 {strides = array<i32>} : memref<8x16xf32, #tpu.memory_space<vmem>>, vector<8x16xf32>,
    return
  }
  func.func @transform_0(%arg0: i32) -> (i32, i32, i32) {
    %c0_i32 = arith.constant 0 : i32
    %c0_i32_0 = arith.constant 0 : i32
    %c0_i32_1 = arith.constant 0 : i32
    return %arg0, %c0_i32, %c0_i32_0 : i32, i32, i32
  }
  func.func @transform_1(%arg0: i32) -> (i32, i32) {
    %c0_i32 = arith.constant 0 : i32
    %c0_i32_0 = arith.constant 0 : i32
    return %arg0, %c0_i32 : i32, i32
  }
  func.func @transform_2(%arg0: i32) -> (i32, i32, i32) {
    %c0_i32 = arith.constant 0 : i32
    %c0_i32_0 = arith.constant 0 : i32
    %c0_i32_1 = arith.constant 0 : i32
    %c0_i32_2 = arith.constant 0 : i32
    return %c0_i32, %c0_i32_0, %c0_i32_1 : i32, i32, i32
  }
  func.func @transform_3(%arg0: i32) -> (i32, i32, i32) {
    %c0_i32 = arith.constant 0 : i32
    %c0_i32_0 = arith.constant 0 : i32
    %c0_i32_1 = arith.constant 0 : i32
    %c0_i32_2 = arith.constant 0 : i32
    return %c0_i32, %c0_i32_0, %c0_i32_1 : i32, i32, i32
  }
  func.func @transform_4(%arg0: i32) -> (i32, i32, i32) {
    %c0_i32 = arith.constant 0 : i32
    %c0_i32_0 = arith.constant 0 : i32
    %c0_i32_1 = arith.constant 0 : i32
    %c0_i32_2 = arith.constant 0 : i32
    return %c0_i32, %c0_i32_0, %c0_i32_1 : i32, i32, i32
  }
  func.func @transform_5(%arg0: i32) -> (i32, i32, i32) {
    %c0_i32 = arith.constant 0 : i32
    %c0_i32_0 = arith.constant 0 : i32
    %c0_i32_1 = arith.constant 0 : i32
    %c0_i32_2 = arith.constant 0 : i32
    return %c0_i32, %c0_i32_0, %c0_i32_1 : i32, i32, i32
  }
  func.func @transform_6(%arg0: i32) -> (i32, i32, i32) {
    %c0_i32 = arith.constant 0 : i32
    %c0_i32_0 = arith.constant 0 : i32
    %c0_i32_1 = arith.constant 0 : i32
    %c0_i32_2 = arith.constant 0 : i32
    return %c0_i32, %c0_i32_0, %c0_i32_1 : i32, i32, i32
  }
  func.func @transform_7(%arg0: i32) -> (i32, i32, i32, i32) {
    %c0_i32 = arith.constant 0 : i32
    %c0_i32_0 = arith.constant 0 : i32
    %c0_i32_1 = arith.constant 0 : i32
    %c0_i32_2 = arith.constant 0 : i32
    %c0_i32_3 = arith.constant 0 : i32
    return %c0_i32, %c0_i32_0, %c0_i32_1, %c0_i32_2 : i32, i32, i32, i32
  }
  func.func @transform_8(%arg0: i32) -> (i32, i32, i32) {
    %c0_i32 = arith.constant 0 : i32
    %c0_i32_0 = arith.constant 0 : i32
    %c0_i32_1 = arith.constant 0 : i32
    %c0_i32_2 = arith.constant 0 : i32
    return %c0_i32, %c0_i32_0, %c0_i32_1 : i32, i32, i32
  }
  func.func @transform_9(%arg0: i32) -> (i32, i32, i32) {
    %c0_i32 = arith.constant 0 : i32
    %c0_i32_0 = arith.constant 0 : i32
    %c0_i32_1 = arith.constant 0 : i32
    %c0_i32_2 = arith.constant 0 : i32
    return %c0_i32, %c0_i32_0, %c0_i32_1 : i32, i32, i32
  }
  func.func @transform_10(%arg0: i32) -> (i32, i32, i32) {
    %c0_i32 = arith.constant 0 : i32
    %c0_i32_0 = arith.constant 0 : i32
    %c0_i32_1 = arith.constant 0 : i32
    %c0_i32_2 = arith.constant 0 : i32
    return %c0_i32, %c0_i32_0, %c0_i32_1 : i32, i32, i32
  }
  func.func @transform_11(%arg0: i32) -> (i32, i32, i32) {
    %c0_i32 = arith.constant 0 : i32
    %c0_i32_0 = arith.constant 0 : i32
    %c0_i32_1 = arith.constant 0 : i32
    %c0_i32_2 = arith.constant 0 : i32
    return %c0_i32, %c0_i32_0, %c0_i32_1 : i32, i32, i32
  }
  func.func @transform_12(%arg0: i32) -> (i32, i32, i32, i32) {
    %c0_i32 = arith.constant 0 : i32
    %c0_i32_0 = arith.constant 0 : i32
    %c0_i32_1 = arith.constant 0 : i32
    %c0_i32_2 = arith.constant 0 : i32
    %c0_i32_3 = arith.constant 0 : i32
    return %c0_i32, %c0_i32_0, %c0_i32_1, %c0_i32_2 : i32, i32, i32, i32
  }
  func.func @transform_13(%arg0: i32) -> (i32, i32) {
    %c0_i32 = arith.constant 0 : i32
    %c0_i32_0 = arith.constant 0 : i32
    %c0_i32_1 = arith.constant 0 : i32
    return %c0_i32, %c0_i32_0 : i32, i32
  }
  func.func @transform_14(%arg0: i32) -> (i32, i32) {
    %c0_i32 = arith.constant 0 : i32
    %c0_i32_0 = arith.constant 0 : i32
    %c0_i32_1 = arith.constant 0 : i32
    return %c0_i32, %c0_i32_0 : i32, i32
  }
  func.func @transform_15(%arg0: i32) -> (i32, i32) {
    %c0_i32 = arith.constant 0 : i32
    %c0_i32_0 = arith.constant 0 : i32
    return %arg0, %c0_i32 : i32, i32
  }
}

</mosaic_0001>

<llo_original>
// kernel: tpu_custom_call.1
$region0: #{tpu_custom_call.1}
  #allocation0 [shape = 'u32[]', space=smem, size = 0x4, offset = 0x4, fixed_abs, tag = 'smem constant byte address 0x4 - core index']
  #allocation1 [shape = 'u32[144,128]{1,0:T(1,128)}', space=vmem, size = 0x12000, scoped, tag = 'internal scratch']
  #allocation2 [shape = 'f32[1,1]{1,0:T(1,128)S(6)}', space=smem, size = 0x200, scoped, tag = 'scoped memory for tpu_custom_call.1']
  %s0 = inlined_call_operand.vmem [shape: bf16[8,16,32], index: 0, kind: input, shape index: {}]
  %s1 = inlined_call_operand.hbm [shape: f32[8,16], index: 1, kind: input, shape index: {}]
  %s2 = inlined_call_operand.hbm [shape: f32[2,1,32], index: 2, kind: input, shape index: {}]
  %s3 = inlined_call_operand.vmem [shape: bf16[2,32,96], index: 3, kind: input, shape index: {}]
  %s4 = inlined_call_operand.hbm [shape: f32[2,1,96], index: 4, kind: input, shape index: {}]
  %s5 = inlined_call_operand.hbm [shape: bf16[2,32,32], index: 5, kind: input, shape index: {}]
  %s6 = inlined_call_operand.vmem [shape: f32[2,1,32], index: 6, kind: input, shape index: {}]
  %s7 = inlined_call_operand.vmem [shape: f32[2,2,1,32], index: 7, kind: input, shape index: {}]
  %s8 = inlined_call_operand.hbm [shape: bf16[2,32,64], index: 8, kind: input, shape index: {}]
  %s9 = inlined_call_operand.vmem [shape: f32[2,1,64], index: 9, kind: input, shape index: {}]
  %s10 = inlined_call_operand.vmem [shape: bf16[2,64,32], index: 10, kind: input, shape index: {}]
  %s11 = inlined_call_operand.vmem [shape: f32[2,1,32], index: 11, kind: input, shape index: {}]
  %s12 = inlined_call_operand.vmem [shape: f32[2,2,1,32], index: 12, kind: input, shape index: {}]
  %s13 = inlined_call_operand.vmem [shape: f32[1,32], index: 13, kind: input, shape index: {}]
  %s14 = inlined_call_operand.<no memory space> [shape: f32[1,1], index: 14, kind: input, shape index: {}]
  %s15 = inlined_call_operand.hbm [shape: f32[8,16], index: 15, kind: output, shape index: {}]
  %s16 = sld [smem:[#allocation0]]
  $region90: #{tpu_custom_call.1} parent=0
    _
  %s18 = ssub.s32 1, %s16
  %s19 = scalar_select 0, %s18, %s16
  %20 = sst [smem:[#allocation2]] %s14
  $region1: #{tpu_custom_call.1} parent=0
    #allocation3 [shape = 'u8[4096]{0}', space=vmem, size = 0x1000, scoped, tag = 'input window, operand 1, single buffered']
    #allocation4 [shape = 's32[1]{0}', space=sflag, size = 0x4, scoped, tag = 'scoped memory for tpu_custom_call.1']
    #allocation5 [shape = 's32[1]{0}', space=sflag, size = 0x4, scoped, tag = 'scoped memory for tpu_custom_call.1']
    #allocation6 [shape = 'u8[1024]{0}', space=vmem, size = 0x400, scoped, tag = 'input window, operand 2, single buffered']
    #allocation7 [shape = 's32[1]{0}', space=sflag, size = 0x4, scoped, tag = 'scoped memory for tpu_custom_call.1']
    #allocation8 [shape = 'u8[1024]{0}', space=vmem, size = 0x400, scoped, tag = 'input window, operand 4, single buffered']
    #allocation9 [shape = 'u8[16384]{0}', space=vmem, size = 0x4000, scoped, tag = 'input window, operand 5, single buffered']
    #allocation10 [shape = 's32[1]{0}', space=sflag, size = 0x4, scoped, tag = 'scoped memory for tpu_custom_call.1']
    #allocation11 [shape = 'u8[16384]{0}', space=vmem, size = 0x4000, scoped, tag = 'input window, operand 8, single buffered']
    #allocation12 [shape = 'u8[4096]{0}', space=vmem, size = 0x1000, scoped, tag = 'output window, operand 0, single buffered']
    %21 = vsyncpa [#allocation4], 0
    %22 = vsyncpa [#allocation7], 0
    %23 = vsyncpa [#allocation10], 0
    %24 = vsyncpa [#allocation5], 0
    // Predicated region
    $region2: #{tpu_custom_call.1} parent=1 // pred_check
      _
    $region3: #{tpu_custom_call.1} parent=1 // pred_check_branch
      %26 = sbr.rel (0) target = $region5
    $region4: #{tpu_custom_call.1} parent=1 // pred_region
      _
    $region5: #{tpu_custom_call.1} parent=1 // pred_fallthru
      _
    // Predicated region
    $region6: #{tpu_custom_call.1} parent=1 // pred_check
      _
    $region7: #{tpu_custom_call.1} parent=1 // pred_check_branch
      %28 = sbr.rel (0) target = $region9
    $region8: #{tpu_custom_call.1} parent=1 // pred_region
      %s30 = ssub.s32 128, 128
      %31 = vsyncadd [#allocation4], %s30
      %s33 = sshll.u32 [#allocation3], 4
      %s34 = int_to_ptr.vmem [resolvable:$true] %s33
      %36 = dma.hbm_to_vmem [thread:$0]  %s1, 128, %s34, [#allocation4]
    $region9: #{tpu_custom_call.1} parent=1 // pred_fallthru
      _
    // Predicated region
    $region10: #{tpu_custom_call.1} parent=1 // pred_check
      _
    $region11: #{tpu_custom_call.1} parent=1 // pred_check_branch
      %38 = sbr.rel (0) target = $region13
    $region12: #{tpu_custom_call.1} parent=1 // pred_region
      %s40 = ssub.s32 32, 32
      %41 = vsyncadd [#allocation7], %s40
      %s42 = sshll.u32 [#allocation6], 4
      %s43 = int_to_ptr.vmem [resolvable:$true] %s42
      %48 = dma.hbm_to_vmem [thread:$0]  %s2, 32, %s43, [#allocation7], 16, 16, 1
    $region13: #{tpu_custom_call.1} parent=1 // pred_fallthru
      _
    // Predicated region
    $region14: #{tpu_custom_call.1} parent=1 // pred_check
      _
    $region15: #{tpu_custom_call.1} parent=1 // pred_check_branch
      %50 = sbr.rel (0) target = $region17
    $region16: #{tpu_custom_call.1} parent=1 // pred_region
      _
    $region17: #{tpu_custom_call.1} parent=1 // pred_fallthru
      _
    // Predicated region
    $region18: #{tpu_custom_call.1} parent=1 // pred_check
      _
    $region19: #{tpu_custom_call.1} parent=1 // pred_check_branch
      %52 = sbr.rel (0) target = $region21
    $region20: #{tpu_custom_call.1} parent=1 // pred_region
      %s54 = ssub.s32 32, 32
      %55 = vsyncadd [#allocation7], %s54
      %s56 = sshll.u32 [#allocation8], 4
      %s57 = int_to_ptr.vmem [resolvable:$true] %s56
      %62 = dma.hbm_to_vmem [thread:$0]  %s4, 32, %s57, [#allocation7], 16, 16, 1
    $region21: #{tpu_custom_call.1} parent=1 // pred_fallthru
      _
    // Predicated region
    $region22: #{tpu_custom_call.1} parent=1 // pred_check
      _
    $region23: #{tpu_custom_call.1} parent=1 // pred_check_branch
      %64 = sbr.rel (0) target = $region25
    $region24: #{tpu_custom_call.1} parent=1 // pred_region
      %s66 = ssub.s32 512, 512
      %67 = vsyncadd [#allocation10], %s66
      %s68 = sshll.u32 [#allocation9], 4
      %s69 = int_to_ptr.vmem [resolvable:$true] %s68
      %74 = dma.hbm_to_vmem [thread:$0]  %s5, 512, %s69, [#allocation10], 64, 64, 4
    $region25: #{tpu_custom_call.1} parent=1 // pred_fallthru
      _
    // Predicated region
    $region26: #{tpu_custom_call.1} parent=1 // pred_check
      _
    $region27: #{tpu_custom_call.1} parent=1 // pred_check_branch
      %76 = sbr.rel (0) target = $region29
    $region28: #{tpu_custom_call.1} parent=1 // pred_region
      _
    $region29: #{tpu_custom_call.1} parent=1 // pred_fallthru
      _
    // Predicated region
    $region30: #{tpu_custom_call.1} parent=1 // pred_check
      _
    $region31: #{tpu_custom_call.1} parent=1 // pred_check_branch
      %78 = sbr.rel (0) target = $region33
    $region32: #{tpu_custom_call.1} parent=1 // pred_region
      _
    $region33: #{tpu_custom_call.1} parent=1 // pred_fallthru
      _
    // Predicated region
    $region34: #{tpu_custom_call.1} parent=1 // pred_check
      _
    $region35: #{tpu_custom_call.1} parent=1 // pred_check_branch
      %80 = sbr.rel (0) target = $region37
    $region36: #{tpu_custom_call.1} parent=1 // pred_region
      %s82 = ssub.s32 512, 512
      %83 = vsyncadd [#allocation10], %s82
      %s84 = sshll.u32 [#allocation11], 4
      %s85 = int_to_ptr.vmem [resolvable:$true] %s84
      %90 = dma.hbm_to_vmem [thread:$0]  %s8, 512, %s85, [#allocation10], 64, 64, 4
    $region37: #{tpu_custom_call.1} parent=1 // pred_fallthru
      _
    // Predicated region
    $region38: #{tpu_custom_call.1} parent=1 // pred_check
      _
    $region39: #{tpu_custom_call.1} parent=1 // pred_check_branch
      %92 = sbr.rel (0) target = $region41
    $region40: #{tpu_custom_call.1} parent=1 // pred_region
      _
    $region41: #{tpu_custom_call.1} parent=1 // pred_fallthru
      _
    // Predicated region
    $region42: #{tpu_custom_call.1} parent=1 // pred_check
      _
    $region43: #{tpu_custom_call.1} parent=1 // pred_check_branch
      %94 = sbr.rel (0) target = $region45
    $region44: #{tpu_custom_call.1} parent=1 // pred_region
      _
    $region45: #{tpu_custom_call.1} parent=1 // pred_fallthru
      _
    // Predicated region
    $region46: #{tpu_custom_call.1} parent=1 // pred_check
      _
    $region47: #{tpu_custom_call.1} parent=1 // pred_check_branch
      %96 = sbr.rel (0) target = $region49
    $region48: #{tpu_custom_call.1} parent=1 // pred_region
      _
    $region49: #{tpu_custom_call.1} parent=1 // pred_fallthru
      _
    // Predicated region
    $region50: #{tpu_custom_call.1} parent=1 // pred_check
      _
    $region51: #{tpu_custom_call.1} parent=1 // pred_check_branch
      %98 = sbr.rel (0) target = $region53
    $region52: #{tpu_custom_call.1} parent=1 // pred_region
      _
    $region53: #{tpu_custom_call.1} parent=1 // pred_fallthru
      _
    // Predicated region
    $region54: #{tpu_custom_call.1} parent=1 // pred_check
      _
    $region55: #{tpu_custom_call.1} parent=1 // pred_check_branch
      %100 = sbr.rel (0) target = $region57
    $region56: #{tpu_custom_call.1} parent=1 // pred_region
      _
    $region57: #{tpu_custom_call.1} parent=1 // pred_fallthru
      _
    // Predicated region
    $region58: #{tpu_custom_call.1} parent=1 // pred_check
      _
    $region59: #{tpu_custom_call.1} parent=1 // pred_check_branch
      %102 = sbr.rel (0) target = $region61
    $region60: #{tpu_custom_call.1} parent=1 // pred_region
      _
    $region61: #{tpu_custom_call.1} parent=1 // pred_fallthru
      _
    // Predicated region
    $region62: #{tpu_custom_call.1} parent=1 // pred_check
      _
    $region63: #{tpu_custom_call.1} parent=1 // pred_check_branch
      %104 = sbr.rel (0) target = $region65
    $region64: #{tpu_custom_call.1} parent=1 // pred_region
      %105 = dma.done [#allocation4], 128
    $region65: #{tpu_custom_call.1} parent=1 // pred_fallthru
      _
    // Predicated region
    $region66: #{tpu_custom_call.1} parent=1 // pred_check
      _
    $region67: #{tpu_custom_call.1} parent=1 // pred_check_branch
      %107 = sbr.rel (0) target = $region69
    $region68: #{tpu_custom_call.1} parent=1 // pred_region
      %108 = dma.done [#allocation7], 32
    $region69: #{tpu_custom_call.1} parent=1 // pred_fallthru
      _
    // Predicated region
    $region70: #{tpu_custom_call.1} parent=1 // pred_check
      _
    $region71: #{tpu_custom_call.1} parent=1 // pred_check_branch
      %110 = sbr.rel (0) target = $region73
    $region72: #{tpu_custom_call.1} parent=1 // pred_region
      %111 = dma.done [#allocation7], 32
    $region73: #{tpu_custom_call.1} parent=1 // pred_fallthru
      _
    // Predicated region
    $region74: #{tpu_custom_call.1} parent=1 // pred_check
      _
    $region75: #{tpu_custom_call.1} parent=1 // pred_check_branch
      %113 = sbr.rel (0) target = $region77
    $region76: #{tpu_custom_call.1} parent=1 // pred_region
      %114 = dma.done [#allocation10], 512
    $region77: #{tpu_custom_call.1} parent=1 // pred_fallthru
      _
    // Predicated region
    $region78: #{tpu_custom_call.1} parent=1 // pred_check
      _
    $region79: #{tpu_custom_call.1} parent=1 // pred_check_branch
      %116 = sbr.rel (0) target = $region81
    $region80: #{tpu_custom_call.1} parent=1 // pred_region
      %117 = dma.done [#allocation10], 512
    $region81: #{tpu_custom_call.1} parent=1 // pred_fallthru
      _
    %v119 = vld [vmem:[#allocation3] sm:$0xff]
    %v120 = vlaneseq
    %v121 = vshrl.u32 %v120, 7
    %v122 = vadd.s32 %v121, 8
    %v123 = vlaneseq
    %v124 = vand.u32 %v123, 127
    %vm125 = vcmp.lt.s32.totalorder %v121, 8
    %vm126 = vcmp.lt.s32.totalorder %v122, 8
    %vm127 = vcmp.lt.s32.totalorder %v124, 8
    %vm128 = vmand %vm125, %vm127
    %vm129 = vmand %vm126, %vm127
    %vm130 = vcmp.ge.s32.totalorder %v124, 10
    %vm131 = vcmp.le.s32.totalorder %v124, %v121
    %vm132 = vcmp.le.s32.totalorder %v124, %v122
    %v134 = vcombine.high %v119, %v119
    %v136 = vunpack.c.l.s4 1966171168
    %v137 = vunpack.c.0.s8 %v136
    %v138 = vlaneseq
    %v139 = vshrl.u32 %v138, 7
    %v140 = vsub.s32 %v137, %v139
    %v141 = vrot.slane %v119, %v140
    %v143 = vunpack.c.l.s4 1966171168
    %v144 = vunpack.c.0.s8 %v143
    %v145 = vlaneseq
    %v146 = vshrl.u32 %v145, 7
    %v147 = vsub.s32 %v144, %v146
    %v148 = vrot.slane %v134, %v147
    %v149 = vcombine.high %v141, %v141
    %v150 = vcombine.high %v148, %v148
    %v152 = vunpack.c.l.s4 1966171168
    %v153 = vunpack.c.0.s8 %v152
    %v154 = vlaneseq
    %v155 = vshrl.u32 %v154, 7
    %v156 = vsub.s32 %v153, %v155
    %v157 = vrot.slane %v141, %v156
    %v159 = vunpack.c.l.s4 1966171168
    %v160 = vunpack.c.0.s8 %v159
    %v161 = vlaneseq
    %v162 = vshrl.u32 %v161, 7
    %v163 = vsub.s32 %v160, %v162
    %v164 = vrot.slane %v148, %v163
    %v166 = vunpack.c.l.s4 1966171168
    %v167 = vunpack.c.0.s8 %v166
    %v168 = vlaneseq
    %v169 = vshrl.u32 %v168, 7
    %v170 = vsub.s32 %v167, %v169
    %v171 = vrot.slane %v149, %v170
    %v173 = vunpack.c.l.s4 1966171168
    %v174 = vunpack.c.0.s8 %v173
    %v175 = vlaneseq
    %v176 = vshrl.u32 %v175, 7
    %v177 = vsub.s32 %v174, %v176
    %v178 = vrot.slane %v150, %v177
    %v179 = vcombine.high %v157, %v157
    %v180 = vcombine.high %v164, %v164
    %v181 = vcombine.high %v171, %v171
    %v182 = vcombine.high %v178, %v178
    %vm191 = vcmp.gt.f32.partialorder %v157, 0.5
    %vm192 = vcmp.gt.f32.partialorder %v171, 0.5
    %vm193 = vcmp.gt.f32.partialorder %v179, 0.5
    %vm194 = vcmp.gt.f32.partialorder %v181, 0.5
    %vm195 = vcmp.gt.f32.partialorder %v164, 0.5
    %vm196 = vcmp.gt.f32.partialorder %v178, 0.5
    %vm197 = vcmp.gt.f32.partialorder %v180, 0.5
    %vm198 = vcmp.gt.f32.partialorder %v182, 0.5
    %v199 = vsel %vm131, 1, 0
    %v200 = vsel %vm132, 1, 0
    %vm201 = vcmp.eq.s32.totalorder %v199, 1
    %vm202 = vcmp.eq.s32.totalorder %v200, 1
    %v203 = vsel %vm191, 1, 0
    %v204 = vsel %vm192, 1, 0
    %v205 = vsel %vm193, 1, 0
    %v206 = vsel %vm194, 1, 0
    %v207 = vsel %vm195, 1, 0
    %v208 = vsel %vm196, 1, 0
    %v209 = vsel %vm197, 1, 0
    %v210 = vsel %vm198, 1, 0
    %v211 = vlaneseq
    %v212 = vshrl.u32 %v211, 7
    %v213 = vsub.s32 0, %v212
    %v214 = vrot.slane %v203, %v213
    %v215 = vlaneseq
    %v216 = vshrl.u32 %v215, 7
    %v217 = vsub.s32 0, %v216
    %v218 = vrot.slane %v204, %v217
    %v219 = vlaneseq
    %v220 = vshrl.u32 %v219, 7
    %v221 = vsub.s32 0, %v220
    %v222 = vrot.slane %v205, %v221
    %v223 = vlaneseq
    %v224 = vshrl.u32 %v223, 7
    %v225 = vsub.s32 0, %v224
    %v226 = vrot.slane %v206, %v225
    %v227 = vlaneseq
    %v228 = vshrl.u32 %v227, 7
    %v229 = vsub.s32 0, %v228
    %v230 = vrot.slane %v207, %v229
    %v231 = vlaneseq
    %v232 = vshrl.u32 %v231, 7
    %v233 = vsub.s32 0, %v232
    %v234 = vrot.slane %v208, %v233
    %v235 = vlaneseq
    %v236 = vshrl.u32 %v235, 7
    %v237 = vsub.s32 0, %v236
    %v238 = vrot.slane %v209, %v237
    %v239 = vlaneseq
    %v240 = vshrl.u32 %v239, 7
    %v241 = vsub.s32 0, %v240
    %v242 = vrot.slane %v210, %v241
    %vm243 = vcmp.eq.s32.totalorder %v214, 1
    %vm244 = vcmp.eq.s32.totalorder %v218, 1
    %vm245 = vcmp.eq.s32.totalorder %v222, 1
    %vm246 = vcmp.eq.s32.totalorder %v226, 1
    %vm247 = vcmp.eq.s32.totalorder %v230, 1
    %vm248 = vcmp.eq.s32.totalorder %v234, 1
    %vm249 = vcmp.eq.s32.totalorder %v238, 1
    %vm250 = vcmp.eq.s32.totalorder %v242, 1
    %vm251 = vmand %vm201, %vm243
    %vm252 = vmand %vm202, %vm243
    %vm253 = vmand %vm201, %vm244
    %vm254 = vmand %vm202, %vm244
    %vm255 = vmand %vm201, %vm245
    %vm256 = vmand %vm202, %vm245
    %vm257 = vmand %vm201, %vm246
    %vm258 = vmand %vm202, %vm246
    %vm259 = vmand %vm201, %vm247
    %vm260 = vmand %vm202, %vm247
    %vm261 = vmand %vm201, %vm248
    %vm262 = vmand %vm202, %vm248
    %vm263 = vmand %vm201, %vm249
    %vm264 = vmand %vm202, %vm249
    %vm265 = vmand %vm201, %vm250
    %vm266 = vmand %vm202, %vm250
    %vm267 = vmxor %vm251, 1
    %vm268 = vmxor %vm252, 1
    %vm269 = vmxor %vm253, 1
    %vm270 = vmxor %vm254, 1
    %vm271 = vmxor %vm255, 1
    %vm272 = vmxor %vm256, 1
    %vm273 = vmxor %vm257, 1
    %vm274 = vmxor %vm258, 1
    %vm275 = vmxor %vm259, 1
    %vm276 = vmxor %vm260, 1
    %vm277 = vmxor %vm261, 1
    %vm278 = vmxor %vm262, 1
    %vm279 = vmxor %vm263, 1
    %vm280 = vmxor %vm264, 1
    %vm281 = vmxor %vm265, 1
    %vm282 = vmxor %vm266, 1
    %v283 = vsel %vm128, 1, 0
    %v284 = vsel %vm129, 1, 0
    %vm285 = vcmp.eq.s32.totalorder %v283, 1
    %vm286 = vcmp.eq.s32.totalorder %v284, 1
    %vm287 = vmand %vm285, %vm267
    %vm288 = vmand %vm286, %vm268
    %vm289 = vmand %vm285, %vm269
    %vm290 = vmand %vm286, %vm270
    %vm291 = vmand %vm285, %vm271
    %vm292 = vmand %vm286, %vm272
    %vm293 = vmand %vm285, %vm273
    %vm294 = vmand %vm286, %vm274
    %vm295 = vmand %vm285, %vm275
    %vm296 = vmand %vm286, %vm276
    %vm297 = vmand %vm285, %vm277
    %vm298 = vmand %vm286, %vm278
    %vm299 = vmand %vm285, %vm279
    %vm300 = vmand %vm286, %vm280
    %vm301 = vmand %vm285, %vm281
    %vm302 = vmand %vm286, %vm282
    %v303 = vsel %vm130, 1, 0
    %vm304 = vcmp.eq.s32.totalorder %v303, 1
    %vm305 = vmor %vm304, %vm287
    %vm306 = vmor %vm304, %vm288
    %vm307 = vmor %vm304, %vm289
    %vm308 = vmor %vm304, %vm290
    %vm309 = vmor %vm304, %vm291
    %vm310 = vmor %vm304, %vm292
    %vm311 = vmor %vm304, %vm293
    %vm312 = vmor %vm304, %vm294
    %vm313 = vmor %vm304, %vm295
    %vm314 = vmor %vm304, %vm296
    %vm315 = vmor %vm304, %vm297
    %vm316 = vmor %vm304, %vm298
    %vm317 = vmor %vm304, %vm299
    %vm318 = vmor %vm304, %vm300
    %vm319 = vmor %vm304, %vm301
    %vm320 = vmor %vm304, %vm302
    %v321 = vsel %vm305, -10000.0, 0.0
    %v322 = vsel %vm306, -10000.0, 0.0
    %v323 = vsel %vm307, -10000.0, 0.0
    %v324 = vsel %vm308, -10000.0, 0.0
    %v325 = vsel %vm309, -10000.0, 0.0
    %v326 = vsel %vm310, -10000.0, 0.0
    %v327 = vsel %vm311, -10000.0, 0.0
    %v328 = vsel %vm312, -10000.0, 0.0
    %v329 = vsel %vm313, -10000.0, 0.0
    %v330 = vsel %vm314, -10000.0, 0.0
    %v331 = vsel %vm315, -10000.0, 0.0
    %v332 = vsel %vm316, -10000.0, 0.0
    %v333 = vsel %vm317, -10000.0, 0.0
    %v334 = vsel %vm318, -10000.0, 0.0
    %v335 = vsel %vm319, -10000.0, 0.0
    %v336 = vsel %vm320, -10000.0, 0.0
    %v337 = vld [vmem:[%s0] sm:$0xf]
    %v338 = vld [vmem:[%s0 + $0x4] sm:$0xf]
    %v339 = vld [vmem:[%s0 + $0x8] sm:$0xf]
    %v340 = vld [vmem:[%s0 + $0xc] sm:$0xf]
    %v341 = vld [vmem:[%s0 + $0x10] sm:$0xf]
    %v342 = vld [vmem:[%s0 + $0x14] sm:$0xf]
    %v343 = vld [vmem:[%s0 + $0x18] sm:$0xf]
    %v344 = vld [vmem:[%s0 + $0x1c] sm:$0xf]
    %v345 = vld [vmem:[%s0 + $0x20] sm:$0xf]
    %v346 = vld [vmem:[%s0 + $0x24] sm:$0xf]
    %v347 = vld [vmem:[%s0 + $0x28] sm:$0xf]
    %v348 = vld [vmem:[%s0 + $0x2c] sm:$0xf]
    %v349 = vld [vmem:[%s0 + $0x30] sm:$0xf]
    %v350 = vld [vmem:[%s0 + $0x34] sm:$0xf]
    %v351 = vld [vmem:[%s0 + $0x38] sm:$0xf]
    %v352 = vld [vmem:[%s0 + $0x3c] sm:$0xf]
    %v353 = vunpack.c.l.bf16 %v337
    %v354 = vunpack.c.l.bf16 %v338
    %v355 = vunpack.c.l.bf16 %v339
    %v356 = vunpack.c.l.bf16 %v340
    %v357 = vunpack.c.l.bf16 %v341
    %v358 = vunpack.c.l.bf16 %v342
    %v359 = vunpack.c.l.bf16 %v343
    %v360 = vunpack.c.l.bf16 %v344
    %v361 = vunpack.c.l.bf16 %v345
    %v362 = vunpack.c.l.bf16 %v346
    %v363 = vunpack.c.l.bf16 %v347
    %v364 = vunpack.c.l.bf16 %v348
    %v365 = vunpack.c.l.bf16 %v349
    %v366 = vunpack.c.l.bf16 %v350
    %v367 = vunpack.c.l.bf16 %v351
    %v368 = vunpack.c.l.bf16 %v352
    %v369 = vld [vmem:[#allocation6] sm:$0x1]
    %s370 = scalar_lea.vmem [#allocation6], 1
    %v371 = vld [vmem:[%s370] sm:$0x1]
    %vm372 = vcmask 261120
    %v373 = vsel %vm372, %v353, 0.0
    %374 = vadd.xlane.f32.xlu0 %v373
    %v375 = vpop.xlane.xlu0 %374
    %v376 = vsel %vm372, %v354, 0.0
    %377 = vadd.xlane.f32.xlu0 %v376
    %v378 = vpop.xlane.xlu0 %377
    %v379 = vsel %vm372, %v355, 0.0
    %380 = vadd.xlane.f32.xlu0 %v379
    %v381 = vpop.xlane.xlu0 %380
    %v382 = vsel %vm372, %v356, 0.0
    %383 = vadd.xlane.f32.xlu0 %v382
    %v384 = vpop.xlane.xlu0 %383
    %v385 = vsel %vm372, %v357, 0.0
    %386 = vadd.xlane.f32.xlu0 %v385
    %v387 = vpop.xlane.xlu0 %386
    %v388 = vsel %vm372, %v358, 0.0
    %389 = vadd.xlane.f32.xlu0 %v388
    %v390 = vpop.xlane.xlu0 %389
    %v391 = vsel %vm372, %v359, 0.0
    %392 = vadd.xlane.f32.xlu0 %v391
    %v393 = vpop.xlane.xlu0 %392
    %v394 = vsel %vm372, %v360, 0.0
    %395 = vadd.xlane.f32.xlu0 %v394
    %v396 = vpop.xlane.xlu0 %395
    %v397 = vsel %vm372, %v361, 0.0
    %398 = vadd.xlane.f32.xlu0 %v397
    %v399 = vpop.xlane.xlu0 %398
    %v400 = vsel %vm372, %v362, 0.0
    %401 = vadd.xlane.f32.xlu0 %v400
    %v402 = vpop.xlane.xlu0 %401
    %v403 = vsel %vm372, %v363, 0.0
    %404 = vadd.xlane.f32.xlu0 %v403
    %v405 = vpop.xlane.xlu0 %404
    %v406 = vsel %vm372, %v364, 0.0
    %407 = vadd.xlane.f32.xlu0 %v406
    %v408 = vpop.xlane.xlu0 %407
    %v409 = vsel %vm372, %v365, 0.0
    %410 = vadd.xlane.f32.xlu0 %v409
    %v411 = vpop.xlane.xlu0 %410
    %v412 = vsel %vm372, %v366, 0.0
    %413 = vadd.xlane.f32.xlu0 %v412
    %v414 = vpop.xlane.xlu0 %413
    %v415 = vsel %vm372, %v367, 0.0
    %416 = vadd.xlane.f32.xlu0 %v415
    %v417 = vpop.xlane.xlu0 %416
    %v418 = vsel %vm372, %v368, 0.0
    %419 = vadd.xlane.f32.xlu0 %v418
    %v420 = vpop.xlane.xlu0 %419
    %v421 = vrcp.pop 32.0
    %v422 = vmul.f32 %v375, %v421
    %v423 = vmul.f32 %v378, %v421
    %v424 = vmul.f32 %v381, %v421
    %v425 = vmul.f32 %v384, %v421
    %v426 = vmul.f32 %v387, %v421
    %v427 = vmul.f32 %v390, %v421
    %v428 = vmul.f32 %v393, %v421
    %v429 = vmul.f32 %v396, %v421
    %v430 = vmul.f32 %v399, %v421
    %v431 = vmul.f32 %v402, %v421
    %v432 = vmul.f32 %v405, %v421
    %v433 = vmul.f32 %v408, %v421
    %v434 = vmul.f32 %v411, %v421
    %v435 = vmul.f32 %v414, %v421
    %v436 = vmul.f32 %v417, %v421
    %v437 = vmul.f32 %v420, %v421
    %v438 = vsub.f32 %v353, %v422
    %v439 = vsub.f32 %v354, %v423
    %v440 = vsub.f32 %v355, %v424
    %v441 = vsub.f32 %v356, %v425
    %v442 = vsub.f32 %v357, %v426
    %v443 = vsub.f32 %v358, %v427
    %v444 = vsub.f32 %v359, %v428
    %v445 = vsub.f32 %v360, %v429
    %v446 = vsub.f32 %v361, %v430
    %v447 = vsub.f32 %v362, %v431
    %v448 = vsub.f32 %v363, %v432
    %v449 = vsub.f32 %v364, %v433
    %v450 = vsub.f32 %v365, %v434
    %v451 = vsub.f32 %v366, %v435
    %v452 = vsub.f32 %v367, %v436
    %v453 = vsub.f32 %v368, %v437
    %v454 = vmul.f32 %v438, %v438
    %v455 = vmul.f32 %v439, %v439
    %v456 = vmul.f32 %v440, %v440
    %v457 = vmul.f32 %v441, %v441
    %v458 = vmul.f32 %v442, %v442
    %v459 = vmul.f32 %v443, %v443
    %v460 = vmul.f32 %v444, %v444
    %v461 = vmul.f32 %v445, %v445
    %v462 = vmul.f32 %v446, %v446
    %v463 = vmul.f32 %v447, %v447
    %v464 = vmul.f32 %v448, %v448
    %v465 = vmul.f32 %v449, %v449
    %v466 = vmul.f32 %v450, %v450
    %v467 = vmul.f32 %v451, %v451
    %v468 = vmul.f32 %v452, %v452
    %v469 = vmul.f32 %v453, %v453
    %v470 = vsel %vm372, %v454, 0.0
    %471 = vadd.xlane.f32.xlu0 %v470
    %v472 = vpop.xlane.xlu0 %471
    %v473 = vsel %vm372, %v455, 0.0
    %474 = vadd.xlane.f32.xlu0 %v473
    %v475 = vpop.xlane.xlu0 %474
    %v476 = vsel %vm372, %v456, 0.0
    %477 = vadd.xlane.f32.xlu0 %v476
    %v478 = vpop.xlane.xlu0 %477
    %v479 = vsel %vm372, %v457, 0.0
    %480 = vadd.xlane.f32.xlu0 %v479
    %v481 = vpop.xlane.xlu0 %480
    %v482 = vsel %vm372, %v458, 0.0
    %483 = vadd.xlane.f32.xlu0 %v482
    %v484 = vpop.xlane.xlu0 %483
    %v485 = vsel %vm372, %v459, 0.0
    %486 = vadd.xlane.f32.xlu0 %v485
    %v487 = vpop.xlane.xlu0 %486
    %v488 = vsel %vm372, %v460, 0.0
    %489 = vadd.xlane.f32.xlu0 %v488
    %v490 = vpop.xlane.xlu0 %489
    %v491 = vsel %vm372, %v461, 0.0
    %492 = vadd.xlane.f32.xlu0 %v491
    %v493 = vpop.xlane.xlu0 %492
    %v494 = vsel %vm372, %v462, 0.0
    %495 = vadd.xlane.f32.xlu0 %v494
    %v496 = vpop.xlane.xlu0 %495
    %v497 = vsel %vm372, %v463, 0.0
    %498 = vadd.xlane.f32.xlu0 %v497
    %v499 = vpop.xlane.xlu0 %498
    %v500 = vsel %vm372, %v464, 0.0
    %501 = vadd.xlane.f32.xlu0 %v500
    %v502 = vpop.xlane.xlu0 %501
    %v503 = vsel %vm372, %v465, 0.0
    %504 = vadd.xlane.f32.xlu0 %v503
    %v505 = vpop.xlane.xlu0 %504
    %v506 = vsel %vm372, %v466, 0.0
    %507 = vadd.xlane.f32.xlu0 %v506
    %v508 = vpop.xlane.xlu0 %507
    %v509 = vsel %vm372, %v467, 0.0
    %510 = vadd.xlane.f32.xlu0 %v509
    %v511 = vpop.xlane.xlu0 %510
    %v512 = vsel %vm372, %v468, 0.0
    %513 = vadd.xlane.f32.xlu0 %v512
    %v514 = vpop.xlane.xlu0 %513
    %v515 = vsel %vm372, %v469, 0.0
    %516 = vadd.xlane.f32.xlu0 %v515
    %v517 = vpop.xlane.xlu0 %516
    %v518 = vmul.f32 %v472, %v421
    %v519 = vmul.f32 %v475, %v421
    %v520 = vmul.f32 %v478, %v421
    %v521 = vmul.f32 %v481, %v421
    %v522 = vmul.f32 %v484, %v421
    %v523 = vmul.f32 %v487, %v421
    %v524 = vmul.f32 %v490, %v421
    %v525 = vmul.f32 %v493, %v421
    %v526 = vmul.f32 %v496, %v421
    %v527 = vmul.f32 %v499, %v421
    %v528 = vmul.f32 %v502, %v421
    %v529 = vmul.f32 %v505, %v421
    %v530 = vmul.f32 %v508, %v421
    %v531 = vmul.f32 %v511, %v421
    %v532 = vmul.f32 %v514, %v421
    %v533 = vmul.f32 %v517, %v421
    %v534 = vadd.f32 %v518, 1e-12
    %v535 = vadd.f32 %v519, 1e-12
    %v536 = vadd.f32 %v520, 1e-12
    %v537 = vadd.f32 %v521, 1e-12
    %v538 = vadd.f32 %v522, 1e-12
    %v539 = vadd.f32 %v523, 1e-12
    %v540 = vadd.f32 %v524, 1e-12
    %v541 = vadd.f32 %v525, 1e-12
    %v542 = vadd.f32 %v526, 1e-12
    %v543 = vadd.f32 %v527, 1e-12
    %v544 = vadd.f32 %v528, 1e-12
    %v545 = vadd.f32 %v529, 1e-12
    %v546 = vadd.f32 %v530, 1e-12
    %v547 = vadd.f32 %v531, 1e-12
    %v548 = vadd.f32 %v532, 1e-12
    %v549 = vadd.f32 %v533, 1e-12
    %v550 = vrsqrt.pop %v534
    %v551 = vrsqrt.pop %v535
    %v552 = vrsqrt.pop %v536
    %v553 = vrsqrt.pop %v537
    %v554 = vrsqrt.pop %v538
    %v555 = vrsqrt.pop %v539
    %v556 = vrsqrt.pop %v540
    %v557 = vrsqrt.pop %v541
    %v558 = vrsqrt.pop %v542
    %v559 = vrsqrt.pop %v543
    %v560 = vrsqrt.pop %v544
    %v561 = vrsqrt.pop %v545
    %v562 = vrsqrt.pop %v546
    %v563 = vrsqrt.pop %v547
    %v564 = vrsqrt.pop %v548
    %v565 = vrsqrt.pop %v549
    %v566 = vmul.f32 %v438, %v550
    %v567 = vmul.f32 %v439, %v551
    %v568 = vmul.f32 %v440, %v552
    %v569 = vmul.f32 %v441, %v553
    %v570 = vmul.f32 %v442, %v554
    %v571 = vmul.f32 %v443, %v555
    %v572 = vmul.f32 %v444, %v556
    %v573 = vmul.f32 %v445, %v557
    %v574 = vmul.f32 %v446, %v558
    %v575 = vmul.f32 %v447, %v559
    %v576 = vmul.f32 %v448, %v560
    %v577 = vmul.f32 %v449, %v561
    %v578 = vmul.f32 %v450, %v562
    %v579 = vmul.f32 %v451, %v563
    %v580 = vmul.f32 %v452, %v564
    %v581 = vmul.f32 %v453, %v565
    %v583 = vlaneseq
    %v584 = vshrl.u32 %v583, 7
    %v585 = vsub.s32 0, %v584
    %v586 = vrot.slane %v369, %v585
    %v588 = vmul.f32 %v566, %v586
    %v589 = vmul.f32 %v567, %v586
    %v590 = vmul.f32 %v568, %v586
    %v591 = vmul.f32 %v569, %v586
    %v592 = vmul.f32 %v570, %v586
    %v593 = vmul.f32 %v571, %v586
    %v594 = vmul.f32 %v572, %v586
    %v595 = vmul.f32 %v573, %v586
    %v596 = vmul.f32 %v574, %v586
    %v597 = vmul.f32 %v575, %v586
    %v598 = vmul.f32 %v576, %v586
    %v599 = vmul.f32 %v577, %v586
    %v600 = vmul.f32 %v578, %v586
    %v601 = vmul.f32 %v579, %v586
    %v602 = vmul.f32 %v580, %v586
    %v603 = vmul.f32 %v581, %v586
    %v605 = vlaneseq
    %v606 = vshrl.u32 %v605, 7
    %v607 = vsub.s32 0, %v606
    %v608 = vrot.slane %v371, %v607
    %v610 = vadd.f32 %v588, %v608
    %v611 = vadd.f32 %v589, %v608
    %v612 = vadd.f32 %v590, %v608
    %v613 = vadd.f32 %v591, %v608
    %v614 = vadd.f32 %v592, %v608
    %v615 = vadd.f32 %v593, %v608
    %v616 = vadd.f32 %v594, %v608
    %v617 = vadd.f32 %v595, %v608
    %v618 = vadd.f32 %v596, %v608
    %v619 = vadd.f32 %v597, %v608
    %v620 = vadd.f32 %v598, %v608
    %v621 = vadd.f32 %v599, %v608
    %v622 = vadd.f32 %v600, %v608
    %v623 = vadd.f32 %v601, %v608
    %v624 = vadd.f32 %v602, %v608
    %v625 = vadd.f32 %v603, %v608
    %v626 = vld [vmem:[%s3] sm:$0xf]
    %v627 = vld [vmem:[%s3 + $0x4] sm:$0xf]
    %v628 = vld [vmem:[%s3 + $0x8] sm:$0xf]
    %v629 = vld [vmem:[%s3 + $0xc] sm:$0xf]
    %v630 = vld [vmem:[#allocation8] sm:$0x1]
    %v631 = vld [vmem:[#allocation9] sm:$0xf]
    %v632 = vld [vmem:[#allocation9 + $0x4] sm:$0xf]
    %v633 = vld [vmem:[#allocation9 + $0x8] sm:$0xf]
    %v634 = vld [vmem:[#allocation9 + $0xc] sm:$0xf]
    %v635 = vpack.c.bf16 %v611, %v610
    %v636 = vpack.c.bf16 %v613, %v612
    %v637 = vpack.c.bf16 %v615, %v614
    %v638 = vpack.c.bf16 %v617, %v616
    %v639 = vpack.c.bf16 %v619, %v618
    %v640 = vpack.c.bf16 %v621, %v620
    %v641 = vpack.c.bf16 %v623, %v622
    %v642 = vpack.c.bf16 %v625, %v624
    %v644 = vlaneseq
    %v645 = vshrl.u32 %v644, 7
    %v646 = vsub.s32 0, %v645
    %v647 = vrot.slane %v630, %v646
    %v653 = vunpack.c.l.b16 %v626
    %v654 = vunpack.c.l.b16 %v627
    %v655 = vunpack.c.l.b16 %v628
    %v656 = vunpack.c.l.b16 %v629
    %v657 = vpack.c.b16 %v654, %v653
    %v658 = vpack.c.b16 %v656, %v655
    %v662 = vsel %vm372, %v635, 0
    %v665 = vsel %vm372, %v636, 0
    %v668 = vsel %vm372, %v637, 0
    %v671 = vsel %vm372, %v638, 0
    %v674 = vsel %vm372, %v639, 0
    %v677 = vsel %vm372, %v640, 0
    %v680 = vsel %vm372, %v641, 0
    %v683 = vsel %vm372, %v642, 0
    %685 = vmatprep.subr.bf16.mxu0 0
    %686 = vmatpush1.bf16.msra.mxu0 0
    %687 = vmatprep.subr.bf16.mxu0 0
    %688 = vmatpush1.bf16.msra.mxu0 0
    %689 = vmatprep.subr.bf16.mxu0 0
    %690 = vmatpush1.bf16.msra.mxu0 0
    %691 = vmatprep.subr.bf16.mxu0 0
    %692 = vmatpush1.bf16.msra.mxu0 0
    %693 = vmatprep.subr.bf16.mxu0 0
    %694 = vmatpush1.bf16.msra.mxu0 0
    %695 = vmatprep.subr.bf16.mxu0 0
    %696 = vmatpush1.bf16.msra.mxu0 0
    %697 = vmatprep.subr.bf16.mxu0 0
    %698 = vmatpush1.bf16.msra.mxu0 %v658
    %699 = vmatprep.subr.bf16.mxu0 0
    %700 = vmatpush1.bf16.msra.mxu0 %v657
    %701 = vmatprep.subr.bf16.mxu0 0
    %702 = vmatpush2.bf16.msra.mxu0 0
    %703 = vmatprep.subr.bf16.mxu0 0
    %704 = vmatpush2.bf16.msra.mxu0 0
    %705 = vmatprep.subr.bf16.mxu0 0
    %706 = vmatpush2.bf16.msra.mxu0 0
    %707 = vmatprep.subr.bf16.mxu0 0
    %708 = vmatpush2.bf16.msra.mxu0 0
    %709 = vmatprep.subr.bf16.mxu0 0
    %710 = vmatpush2.bf16.msra.mxu0 0
    %711 = vmatprep.subr.bf16.mxu0 0
    %712 = vmatpush2.bf16.msra.mxu0 0
    %713 = vmatprep.subr.bf16.mxu0 0
    %714 = vmatpush2.bf16.msra.mxu0 0
    %715 = vmatprep.subr.bf16.mxu0 0
    %716 = vmatpush2.bf16.msra.mxu0 0
    %717 = vmatprep.mubr.bf16.mxu0 0
    %718 = vmatmul.mubr.bf16.gmra.mxu0 %v662
    %v719 = vpop.f32.mrf.mxu0
    %v720 = vadd.f32 %v647, %v719
    %v721 = vpop.f32.mrf.mxu0
    %v722 = vpop.f32.mrf.mxu0
    %v723 = vadd.f32 %v647, %v722
    %v724 = vpop.f32.mrf.mxu0
    %725 = vmatprep.mubr.bf16.mxu0 0
    %726 = vmatmul.mubr.bf16.gmra.mxu0 %v665
    %v727 = vpop.f32.mrf.mxu0
    %v728 = vadd.f32 %v647, %v727
    %v729 = vpop.f32.mrf.mxu0
    %v730 = vpop.f32.mrf.mxu0
    %v731 = vadd.f32 %v647, %v730
    %v732 = vpop.f32.mrf.mxu0
    %733 = vmatprep.mubr.bf16.mxu0 0
    %734 = vmatmul.mubr.bf16.gmra.mxu0 %v668
    %v735 = vpop.f32.mrf.mxu0
    %v736 = vadd.f32 %v647, %v735
    %v737 = vpop.f32.mrf.mxu0
    %v738 = vpop.f32.mrf.mxu0
    %v739 = vadd.f32 %v647, %v738
    %v740 = vpop.f32.mrf.mxu0
    %741 = vmatprep.mubr.bf16.mxu0 0
    %742 = vmatmul.mubr.bf16.gmra.mxu0 %v671
    %v743 = vpop.f32.mrf.mxu0
    %v744 = vadd.f32 %v647, %v743
    %v745 = vpop.f32.mrf.mxu0
    %v746 = vpop.f32.mrf.mxu0
    %v747 = vadd.f32 %v647, %v746
    %v748 = vpop.f32.mrf.mxu0
    %749 = vmatprep.mubr.bf16.mxu0 0
    %750 = vmatmul.mubr.bf16.gmra.mxu0 %v674
    %v751 = vpop.f32.mrf.mxu0
    %v752 = vadd.f32 %v647, %v751
    %v753 = vpop.f32.mrf.mxu0
    %v754 = vpop.f32.mrf.mxu0
    %v755 = vadd.f32 %v647, %v754
    %v756 = vpop.f32.mrf.mxu0
    %757 = vmatprep.mubr.bf16.mxu0 0
    %758 = vmatmul.mubr.bf16.gmra.mxu0 %v677
    %v759 = vpop.f32.mrf.mxu0
    %v760 = vadd.f32 %v647, %v759
    %v761 = vpop.f32.mrf.mxu0
    %v762 = vpop.f32.mrf.mxu0
    %v763 = vadd.f32 %v647, %v762
    %v764 = vpop.f32.mrf.mxu0
    %765 = vmatprep.mubr.bf16.mxu0 0
    %766 = vmatmul.mubr.bf16.gmra.mxu0 %v680
    %v767 = vpop.f32.mrf.mxu0
    %v768 = vadd.f32 %v647, %v767
    %v769 = vpop.f32.mrf.mxu0
    %v770 = vpop.f32.mrf.mxu0
    %v771 = vadd.f32 %v647, %v770
    %v772 = vpop.f32.mrf.mxu0
    %773 = vmatprep.mubr.bf16.mxu0 0
    %774 = vmatmul.mubr.bf16.gmra.mxu0 %v683
    %v775 = vpop.f32.mrf.mxu0
    %v776 = vadd.f32 %v647, %v775
    %v777 = vpop.f32.mrf.mxu0
    %v778 = vpop.f32.mrf.mxu0
    %v779 = vadd.f32 %v647, %v778
    %v780 = vpop.f32.mrf.mxu0
    %781 = vdwg.mxu0
    %782 = vrot.lane.b32.xlu0 %v657, 96
    %v783 = vpop.permute.xlu0 %782
    %784 = vrot.lane.b32.xlu0 %v658, 96
    %v785 = vpop.permute.xlu0 %784
    %788 = vrot.lane.b32.xlu0 %v647, 96
    %v789 = vpop.permute.xlu0 %788
    %791 = vmatprep.subr.bf16.mxu0 0
    %792 = vmatpush1.bf16.msra.mxu0 0
    %793 = vmatprep.subr.bf16.mxu0 0
    %794 = vmatpush1.bf16.msra.mxu0 0
    %795 = vmatprep.subr.bf16.mxu0 0
    %796 = vmatpush1.bf16.msra.mxu0 0
    %797 = vmatprep.subr.bf16.mxu0 0
    %798 = vmatpush1.bf16.msra.mxu0 0
    %799 = vmatprep.subr.bf16.mxu0 0
    %800 = vmatpush1.bf16.msra.mxu0 0
    %801 = vmatprep.subr.bf16.mxu0 0
    %802 = vmatpush1.bf16.msra.mxu0 0
    %803 = vmatprep.subr.bf16.mxu0 0
    %804 = vmatpush1.bf16.msra.mxu0 %v785
    %805 = vmatprep.subr.bf16.mxu0 0
    %806 = vmatpush1.bf16.msra.mxu0 %v783
    %807 = vmatprep.subr.bf16.mxu0 0
    %808 = vmatpush2.bf16.msra.mxu0 0
    %809 = vmatprep.subr.bf16.mxu0 0
    %810 = vmatpush2.bf16.msra.mxu0 0
    %811 = vmatprep.subr.bf16.mxu0 0
    %812 = vmatpush2.bf16.msra.mxu0 0
    %813 = vmatprep.subr.bf16.mxu0 0
    %814 = vmatpush2.bf16.msra.mxu0 0
    %815 = vmatprep.subr.bf16.mxu0 0
    %816 = vmatpush2.bf16.msra.mxu0 0
    %817 = vmatprep.subr.bf16.mxu0 0
    %818 = vmatpush2.bf16.msra.mxu0 0
    %819 = vmatprep.subr.bf16.mxu0 0
    %820 = vmatpush2.bf16.msra.mxu0 0
    %821 = vmatprep.subr.bf16.mxu0 0
    %822 = vmatpush2.bf16.msra.mxu0 0
    %823 = vmatprep.mubr.bf16.mxu0 0
    %824 = vmatmul.mubr.bf16.gmra.mxu0 %v662
    %v825 = vpop.f32.mrf.mxu0
    %v826 = vadd.f32 %v789, %v825
    %v827 = vpop.f32.mrf.mxu0
    %v828 = vpop.f32.mrf.mxu0
    %v829 = vadd.f32 %v789, %v828
    %v830 = vpop.f32.mrf.mxu0
    %831 = vmatprep.mubr.bf16.mxu0 0
    %832 = vmatmul.mubr.bf16.gmra.mxu0 %v665
    %v833 = vpop.f32.mrf.mxu0
    %v834 = vadd.f32 %v789, %v833
    %v835 = vpop.f32.mrf.mxu0
    %v836 = vpop.f32.mrf.mxu0
    %v837 = vadd.f32 %v789, %v836
    %v838 = vpop.f32.mrf.mxu0
    %839 = vmatprep.mubr.bf16.mxu0 0
    %840 = vmatmul.mubr.bf16.gmra.mxu0 %v668
    %v841 = vpop.f32.mrf.mxu0
    %v842 = vadd.f32 %v789, %v841
    %v843 = vpop.f32.mrf.mxu0
    %v844 = vpop.f32.mrf.mxu0
    %v845 = vadd.f32 %v789, %v844
    %v846 = vpop.f32.mrf.mxu0
    %847 = vmatprep.mubr.bf16.mxu0 0
    %848 = vmatmul.mubr.bf16.gmra.mxu0 %v671
    %v849 = vpop.f32.mrf.mxu0
    %v850 = vadd.f32 %v789, %v849
    %v851 = vpop.f32.mrf.mxu0
    %v852 = vpop.f32.mrf.mxu0
    %v853 = vadd.f32 %v789, %v852
    %v854 = vpop.f32.mrf.mxu0
    %855 = vmatprep.mubr.bf16.mxu0 0
    %856 = vmatmul.mubr.bf16.gmra.mxu0 %v674
    %v857 = vpop.f32.mrf.mxu0
    %v858 = vadd.f32 %v789, %v857
    %v859 = vpop.f32.mrf.mxu0
    %v860 = vpop.f32.mrf.mxu0
    %v861 = vadd.f32 %v789, %v860
    %v862 = vpop.f32.mrf.mxu0
    %863 = vmatprep.mubr.bf16.mxu0 0
    %864 = vmatmul.mubr.bf16.gmra.mxu0 %v677
    %v865 = vpop.f32.mrf.mxu0
    %v866 = vadd.f32 %v789, %v865
    %v867 = vpop.f32.mrf.mxu0
    %v868 = vpop.f32.mrf.mxu0
    %v869 = vadd.f32 %v789, %v868
    %v870 = vpop.f32.mrf.mxu0
    %871 = vmatprep.mubr.bf16.mxu0 0
    %872 = vmatmul.mubr.bf16.gmra.mxu0 %v680
    %v873 = vpop.f32.mrf.mxu0
    %v874 = vadd.f32 %v789, %v873
    %v875 = vpop.f32.mrf.mxu0
    %v876 = vpop.f32.mrf.mxu0
    %v877 = vadd.f32 %v789, %v876
    %v878 = vpop.f32.mrf.mxu0
    %879 = vmatprep.mubr.bf16.mxu0 0
    %880 = vmatmul.mubr.bf16.gmra.mxu0 %v683
    %v881 = vpop.f32.mrf.mxu0
    %v882 = vadd.f32 %v789, %v881
    %v883 = vpop.f32.mrf.mxu0
    %v884 = vpop.f32.mrf.mxu0
    %v885 = vadd.f32 %v789, %v884
    %v886 = vpop.f32.mrf.mxu0
    %887 = vdwg.mxu0
    %888 = vrot.lane.b32.xlu0 %v657, 64
    %v889 = vpop.permute.xlu0 %888
    %890 = vrot.lane.b32.xlu0 %v658, 64
    %v891 = vpop.permute.xlu0 %890
    %894 = vrot.lane.b32.xlu0 %v647, 64
    %v895 = vpop.permute.xlu0 %894
    %897 = vmatprep.subr.bf16.mxu0 0
    %898 = vmatpush1.bf16.msra.mxu0 0
    %899 = vmatprep.subr.bf16.mxu0 0
    %900 = vmatpush1.bf16.msra.mxu0 0
    %901 = vmatprep.subr.bf16.mxu0 0
    %902 = vmatpush1.bf16.msra.mxu0 0
    %903 = vmatprep.subr.bf16.mxu0 0
    %904 = vmatpush1.bf16.msra.mxu0 0
    %905 = vmatprep.subr.bf16.mxu0 0
    %906 = vmatpush1.bf16.msra.mxu0 0
    %907 = vmatprep.subr.bf16.mxu0 0
    %908 = vmatpush1.bf16.msra.mxu0 0
    %909 = vmatprep.subr.bf16.mxu0 0
    %910 = vmatpush1.bf16.msra.mxu0 %v891
    %911 = vmatprep.subr.bf16.mxu0 0
    %912 = vmatpush1.bf16.msra.mxu0 %v889
    %913 = vmatprep.subr.bf16.mxu0 0
    %914 = vmatpush2.bf16.msra.mxu0 0
    %915 = vmatprep.subr.bf16.mxu0 0
    %916 = vmatpush2.bf16.msra.mxu0 0
    %917 = vmatprep.subr.bf16.mxu0 0
    %918 = vmatpush2.bf16.msra.mxu0 0
    %919 = vmatprep.subr.bf16.mxu0 0
    %920 = vmatpush2.bf16.msra.mxu0 0
    %921 = vmatprep.subr.bf16.mxu0 0
    %922 = vmatpush2.bf16.msra.mxu0 0
    %923 = vmatprep.subr.bf16.mxu0 0
    %924 = vmatpush2.bf16.msra.mxu0 0
    %925 = vmatprep.subr.bf16.mxu0 0
    %926 = vmatpush2.bf16.msra.mxu0 0
    %927 = vmatprep.subr.bf16.mxu0 0
    %928 = vmatpush2.bf16.msra.mxu0 0
    %929 = vmatprep.mubr.bf16.mxu0 0
    %930 = vmatmul.mubr.bf16.gmra.mxu0 %v662
    %v931 = vpop.f32.mrf.mxu0
    %v932 = vadd.f32 %v895, %v931
    %v933 = vpop.f32.mrf.mxu0
    %v934 = vpop.f32.mrf.mxu0
    %v935 = vadd.f32 %v895, %v934
    %v936 = vpop.f32.mrf.mxu0
    %937 = vmatprep.mubr.bf16.mxu0 0
    %938 = vmatmul.mubr.bf16.gmra.mxu0 %v665
    %v939 = vpop.f32.mrf.mxu0
    %v940 = vadd.f32 %v895, %v939
    %v941 = vpop.f32.mrf.mxu0
    %v942 = vpop.f32.mrf.mxu0
    %v943 = vadd.f32 %v895, %v942
    %v944 = vpop.f32.mrf.mxu0
    %945 = vmatprep.mubr.bf16.mxu0 0
    %946 = vmatmul.mubr.bf16.gmra.mxu0 %v668
    %v947 = vpop.f32.mrf.mxu0
    %v948 = vadd.f32 %v895, %v947
    %v949 = vpop.f32.mrf.mxu0
    %v950 = vpop.f32.mrf.mxu0
    %v951 = vadd.f32 %v895, %v950
    %v952 = vpop.f32.mrf.mxu0
    %953 = vmatprep.mubr.bf16.mxu0 0
    %954 = vmatmul.mubr.bf16.gmra.mxu0 %v671
    %v955 = vpop.f32.mrf.mxu0
    %v956 = vadd.f32 %v895, %v955
    %v957 = vpop.f32.mrf.mxu0
    %v958 = vpop.f32.mrf.mxu0
    %v959 = vadd.f32 %v895, %v958
    %v960 = vpop.f32.mrf.mxu0
    %961 = vmatprep.mubr.bf16.mxu0 0
    %962 = vmatmul.mubr.bf16.gmra.mxu0 %v674
    %v963 = vpop.f32.mrf.mxu0
    %v964 = vadd.f32 %v895, %v963
    %v965 = vpop.f32.mrf.mxu0
    %v966 = vpop.f32.mrf.mxu0
    %v967 = vadd.f32 %v895, %v966
    %v968 = vpop.f32.mrf.mxu0
    %969 = vmatprep.mubr.bf16.mxu0 0
    %970 = vmatmul.mubr.bf16.gmra.mxu0 %v677
    %v971 = vpop.f32.mrf.mxu0
    %v972 = vadd.f32 %v895, %v971
    %v973 = vpop.f32.mrf.mxu0
    %v974 = vpop.f32.mrf.mxu0
    %v975 = vadd.f32 %v895, %v974
    %v976 = vpop.f32.mrf.mxu0
    %977 = vmatprep.mubr.bf16.mxu0 0
    %978 = vmatmul.mubr.bf16.gmra.mxu0 %v680
    %v979 = vpop.f32.mrf.mxu0
    %v980 = vadd.f32 %v895, %v979
    %v981 = vpop.f32.mrf.mxu0
    %v982 = vpop.f32.mrf.mxu0
    %v983 = vadd.f32 %v895, %v982
    %v984 = vpop.f32.mrf.mxu0
    %985 = vmatprep.mubr.bf16.mxu0 0
    %986 = vmatmul.mubr.bf16.gmra.mxu0 %v683
    %v987 = vpop.f32.mrf.mxu0
    %v988 = vadd.f32 %v895, %v987
    %v989 = vpop.f32.mrf.mxu0
    %v990 = vpop.f32.mrf.mxu0
    %v991 = vadd.f32 %v895, %v990
    %v992 = vpop.f32.mrf.mxu0
    %993 = vdwg.mxu0
    %v994 = vpack.c.bf16 %v723, %v720
    %v995 = vpack.c.bf16 %v731, %v728
    %v996 = vpack.c.bf16 %v739, %v736
    %v997 = vpack.c.bf16 %v747, %v744
    %v998 = vpack.c.bf16 %v755, %v752
    %v999 = vpack.c.bf16 %v763, %v760
    %v1000 = vpack.c.bf16 %v771, %v768
    %v1001 = vpack.c.bf16 %v779, %v776
    %v1002 = vpack.c.bf16 %v829, %v826
    %v1003 = vpack.c.bf16 %v837, %v834
    %v1004 = vpack.c.bf16 %v845, %v842
    %v1005 = vpack.c.bf16 %v853, %v850
    %v1006 = vpack.c.bf16 %v861, %v858
    %v1007 = vpack.c.bf16 %v869, %v866
    %v1008 = vpack.c.bf16 %v877, %v874
    %v1009 = vpack.c.bf16 %v885, %v882
    %vm1010 = vcmask 130048
    %v1012 = vsel %vm1010, %v994, 0
    %v1015 = vsel %vm1010, %v1002, 0
    %1017 = vmatprep.subr.bf16.mxu0 0
    %1018 = vmatpush1.bf16.xpose.msra.mxu0 0
    %1019 = vmatprep.subr.bf16.mxu0 0
    %1020 = vmatpush1.bf16.xpose.msra.mxu0 0
    %1021 = vmatprep.subr.bf16.mxu0 0
    %1022 = vmatpush1.bf16.xpose.msra.mxu0 0
    %1023 = vmatprep.subr.bf16.mxu0 0
    %1024 = vmatpush1.bf16.xpose.msra.mxu0 0
    %1025 = vmatprep.subr.bf16.mxu0 0
    %1026 = vmatpush1.bf16.xpose.msra.mxu0 0
    %1027 = vmatprep.subr.bf16.mxu0 0
    %1028 = vmatpush1.bf16.xpose.msra.mxu0 0
    %1029 = vmatprep.subr.bf16.mxu0 0
    %1030 = vmatpush1.bf16.xpose.msra.mxu0 0
    %1031 = vmatprep.subr.bf16.mxu0 0
    %1032 = vmatpush1.bf16.xpose.msra.mxu0 %v1015
    %1033 = vmatprep.subr.bf16.mxu0 0
    %1034 = vmatpush2.bf16.xpose.msra.mxu0 0
    %1035 = vmatprep.subr.bf16.mxu0 0
    %1036 = vmatpush2.bf16.xpose.msra.mxu0 0
    %1037 = vmatprep.subr.bf16.mxu0 0
    %1038 = vmatpush2.bf16.xpose.msra.mxu0 0
    %1039 = vmatprep.subr.bf16.mxu0 0
    %1040 = vmatpush2.bf16.xpose.msra.mxu0 0
    %1041 = vmatprep.subr.bf16.mxu0 0
    %1042 = vmatpush2.bf16.xpose.msra.mxu0 0
    %1043 = vmatprep.subr.bf16.mxu0 0
    %1044 = vmatpush2.bf16.xpose.msra.mxu0 0
    %1045 = vmatprep.subr.bf16.mxu0 0
    %1046 = vmatpush2.bf16.xpose.msra.mxu0 0
    %1047 = vmatprep.subr.bf16.mxu0 0
    %1048 = vmatpush2.bf16.xpose.msra.mxu0 0
    %1049 = vmatprep.mubr.bf16.mxu0 0
    %1050 = vmatmul.mubr.bf16.gmra.mxu0 %v1012
    %v1051 = vpop.f32.mrf.mxu0
    %v1052 = vadd.f32 %v321, %v1051
    %v1053 = vpop.f32.mrf.mxu0
    %v1054 = vpop.f32.mrf.mxu0
    %v1055 = vadd.f32 %v322, %v1054
    %v1056 = vpop.f32.mrf.mxu0
    %1057 = vdwg.mxu0
    %v1059 = vsel %vm1010, %v995, 0
    %v1062 = vsel %vm1010, %v1003, 0
    %1064 = vmatprep.subr.bf16.mxu0 0
    %1065 = vmatpush1.bf16.xpose.msra.mxu0 0
    %1066 = vmatprep.subr.bf16.mxu0 0
    %1067 = vmatpush1.bf16.xpose.msra.mxu0 0
    %1068 = vmatprep.subr.bf16.mxu0 0
    %1069 = vmatpush1.bf16.xpose.msra.mxu0 0
    %1070 = vmatprep.subr.bf16.mxu0 0
    %1071 = vmatpush1.bf16.xpose.msra.mxu0 0
    %1072 = vmatprep.subr.bf16.mxu0 0
    %1073 = vmatpush1.bf16.xpose.msra.mxu0 0
    %1074 = vmatprep.subr.bf16.mxu0 0
    %1075 = vmatpush1.bf16.xpose.msra.mxu0 0
    %1076 = vmatprep.subr.bf16.mxu0 0
    %1077 = vmatpush1.bf16.xpose.msra.mxu0 0
    %1078 = vmatprep.subr.bf16.mxu0 0
    %1079 = vmatpush1.bf16.xpose.msra.mxu0 %v1062
    %1080 = vmatprep.subr.bf16.mxu0 0
    %1081 = vmatpush2.bf16.xpose.msra.mxu0 0
    %1082 = vmatprep.subr.bf16.mxu0 0
    %1083 = vmatpush2.bf16.xpose.msra.mxu0 0
    %1084 = vmatprep.subr.bf16.mxu0 0
    %1085 = vmatpush2.bf16.xpose.msra.mxu0 0
    %1086 = vmatprep.subr.bf16.mxu0 0
    %1087 = vmatpush2.bf16.xpose.msra.mxu0 0
    %1088 = vmatprep.subr.bf16.mxu0 0
    %1089 = vmatpush2.bf16.xpose.msra.mxu0 0
    %1090 = vmatprep.subr.bf16.mxu0 0
    %1091 = vmatpush2.bf16.xpose.msra.mxu0 0
    %1092 = vmatprep.subr.bf16.mxu0 0
    %1093 = vmatpush2.bf16.xpose.msra.mxu0 0
    %1094 = vmatprep.subr.bf16.mxu0 0
    %1095 = vmatpush2.bf16.xpose.msra.mxu0 0
    %1096 = vmatprep.mubr.bf16.mxu0 0
    %1097 = vmatmul.mubr.bf16.gmra.mxu0 %v1059
    %v1098 = vpop.f32.mrf.mxu0
    %v1099 = vadd.f32 %v323, %v1098
    %v1100 = vpop.f32.mrf.mxu0
    %v1101 = vpop.f32.mrf.mxu0
    %v1102 = vadd.f32 %v324, %v1101
    %v1103 = vpop.f32.mrf.mxu0
    %1104 = vdwg.mxu0
    %v1106 = vsel %vm1010, %v996, 0
    %v1109 = vsel %vm1010, %v1004, 0
    %1111 = vmatprep.subr.bf16.mxu0 0
    %1112 = vmatpush1.bf16.xpose.msra.mxu0 0
    %1113 = vmatprep.subr.bf16.mxu0 0
    %1114 = vmatpush1.bf16.xpose.msra.mxu0 0
    %1115 = vmatprep.subr.bf16.mxu0 0
    %1116 = vmatpush1.bf16.xpose.msra.mxu0 0
    %1117 = vmatprep.subr.bf16.mxu0 0
    %1118 = vmatpush1.bf16.xpose.msra.mxu0 0
    %1119 = vmatprep.subr.bf16.mxu0 0
    %1120 = vmatpush1.bf16.xpose.msra.mxu0 0
    %1121 = vmatprep.subr.bf16.mxu0 0
    %1122 = vmatpush1.bf16.xpose.msra.mxu0 0
    %1123 = vmatprep.subr.bf16.mxu0 0
    %1124 = vmatpush1.bf16.xpose.msra.mxu0 0
    %1125 = vmatprep.subr.bf16.mxu0 0
    %1126 = vmatpush1.bf16.xpose.msra.mxu0 %v1109
    %1127 = vmatprep.subr.bf16.mxu0 0
    %1128 = vmatpush2.bf16.xpose.msra.mxu0 0
    %1129 = vmatprep.subr.bf16.mxu0 0
    %1130 = vmatpush2.bf16.xpose.msra.mxu0 0
    %1131 = vmatprep.subr.bf16.mxu0 0
    %1132 = vmatpush2.bf16.xpose.msra.mxu0 0
    %1133 = vmatprep.subr.bf16.mxu0 0
    %1134 = vmatpush2.bf16.xpose.msra.mxu0 0
    %1135 = vmatprep.subr.bf16.mxu0 0
    %1136 = vmatpush2.bf16.xpose.msra.mxu0 0
    %1137 = vmatprep.subr.bf16.mxu0 0
    %1138 = vmatpush2.bf16.xpose.msra.mxu0 0
    %1139 = vmatprep.subr.bf16.mxu0 0
    %1140 = vmatpush2.bf16.xpose.msra.mxu0 0
    %1141 = vmatprep.subr.bf16.mxu0 0
    %1142 = vmatpush2.bf16.xpose.msra.mxu0 0
    %1143 = vmatprep.mubr.bf16.mxu0 0
    %1144 = vmatmul.mubr.bf16.gmra.mxu0 %v1106
    %v1145 = vpop.f32.mrf.mxu0
    %v1146 = vadd.f32 %v325, %v1145
    %v1147 = vpop.f32.mrf.mxu0
    %v1148 = vpop.f32.mrf.mxu0
    %v1149 = vadd.f32 %v326, %v1148
    %v1150 = vpop.f32.mrf.mxu0
    %1151 = vdwg.mxu0
    %v1153 = vsel %vm1010, %v997, 0
    %v1156 = vsel %vm1010, %v1005, 0
    %1158 = vmatprep.subr.bf16.mxu0 0
    %1159 = vmatpush1.bf16.xpose.msra.mxu0 0
    %1160 = vmatprep.subr.bf16.mxu0 0
    %1161 = vmatpush1.bf16.xpose.msra.mxu0 0
    %1162 = vmatprep.subr.bf16.mxu0 0
    %1163 = vmatpush1.bf16.xpose.msra.mxu0 0
    %1164 = vmatprep.subr.bf16.mxu0 0
    %1165 = vmatpush1.bf16.xpose.msra.mxu0 0
    %1166 = vmatprep.subr.bf16.mxu0 0
    %1167 = vmatpush1.bf16.xpose.msra.mxu0 0
    %1168 = vmatprep.subr.bf16.mxu0 0
    %1169 = vmatpush1.bf16.xpose.msra.mxu0 0
    %1170 = vmatprep.subr.bf16.mxu0 0
    %1171 = vmatpush1.bf16.xpose.msra.mxu0 0
    %1172 = vmatprep.subr.bf16.mxu0 0
    %1173 = vmatpush1.bf16.xpose.msra.mxu0 %v1156
    %1174 = vmatprep.subr.bf16.mxu0 0
    %1175 = vmatpush2.bf16.xpose.msra.mxu0 0
    %1176 = vmatprep.subr.bf16.mxu0 0
    %1177 = vmatpush2.bf16.xpose.msra.mxu0 0
    %1178 = vmatprep.subr.bf16.mxu0 0
    %1179 = vmatpush2.bf16.xpose.msra.mxu0 0
    %1180 = vmatprep.subr.bf16.mxu0 0
    %1181 = vmatpush2.bf16.xpose.msra.mxu0 0
    %1182 = vmatprep.subr.bf16.mxu0 0
    %1183 = vmatpush2.bf16.xpose.msra.mxu0 0
    %1184 = vmatprep.subr.bf16.mxu0 0
    %1185 = vmatpush2.bf16.xpose.msra.mxu0 0
    %1186 = vmatprep.subr.bf16.mxu0 0
    %1187 = vmatpush2.bf16.xpose.msra.mxu0 0
    %1188 = vmatprep.subr.bf16.mxu0 0
    %1189 = vmatpush2.bf16.xpose.msra.mxu0 0
    %1190 = vmatprep.mubr.bf16.mxu0 0
    %1191 = vmatmul.mubr.bf16.gmra.mxu0 %v1153
    %v1192 = vpop.f32.mrf.mxu0
    %v1193 = vadd.f32 %v327, %v1192
    %v1194 = vpop.f32.mrf.mxu0
    %v1195 = vpop.f32.mrf.mxu0
    %v1196 = vadd.f32 %v328, %v1195
    %v1197 = vpop.f32.mrf.mxu0
    %1198 = vdwg.mxu0
    %v1200 = vsel %vm1010, %v998, 0
    %v1203 = vsel %vm1010, %v1006, 0
    %1205 = vmatprep.subr.bf16.mxu0 0
    %1206 = vmatpush1.bf16.xpose.msra.mxu0 0
    %1207 = vmatprep.subr.bf16.mxu0 0
    %1208 = vmatpush1.bf16.xpose.msra.mxu0 0
    %1209 = vmatprep.subr.bf16.mxu0 0
    %1210 = vmatpush1.bf16.xpose.msra.mxu0 0
    %1211 = vmatprep.subr.bf16.mxu0 0
    %1212 = vmatpush1.bf16.xpose.msra.mxu0 0
    %1213 = vmatprep.subr.bf16.mxu0 0
    %1214 = vmatpush1.bf16.xpose.msra.mxu0 0
    %1215 = vmatprep.subr.bf16.mxu0 0
    %1216 = vmatpush1.bf16.xpose.msra.mxu0 0
    %1217 = vmatprep.subr.bf16.mxu0 0
    %1218 = vmatpush1.bf16.xpose.msra.mxu0 0
    %1219 = vmatprep.subr.bf16.mxu0 0
    %1220 = vmatpush1.bf16.xpose.msra.mxu0 %v1203
    %1221 = vmatprep.subr.bf16.mxu0 0
    %1222 = vmatpush2.bf16.xpose.msra.mxu0 0
    %1223 = vmatprep.subr.bf16.mxu0 0
    %1224 = vmatpush2.bf16.xpose.msra.mxu0 0
    %1225 = vmatprep.subr.bf16.mxu0 0
    %1226 = vmatpush2.bf16.xpose.msra.mxu0 0
    %1227 = vmatprep.subr.bf16.mxu0 0
    %1228 = vmatpush2.bf16.xpose.msra.mxu0 0
    %1229 = vmatprep.subr.bf16.mxu0 0
    %1230 = vmatpush2.bf16.xpose.msra.mxu0 0
    %1231 = vmatprep.subr.bf16.mxu0 0
    %1232 = vmatpush2.bf16.xpose.msra.mxu0 0
    %1233 = vmatprep.subr.bf16.mxu0 0
    %1234 = vmatpush2.bf16.xpose.msra.mxu0 0
    %1235 = vmatprep.subr.bf16.mxu0 0
    %1236 = vmatpush2.bf16.xpose.msra.mxu0 0
    %1237 = vmatprep.mubr.bf16.mxu0 0
    %1238 = vmatmul.mubr.bf16.gmra.mxu0 %v1200
    %v1239 = vpop.f32.mrf.mxu0
    %v1240 = vadd.f32 %v329, %v1239
    %v1241 = vpop.f32.mrf.mxu0
    %v1242 = vpop.f32.mrf.mxu0
    %v1243 = vadd.f32 %v330, %v1242
    %v1244 = vpop.f32.mrf.mxu0
    %1245 = vdwg.mxu0
    %v1247 = vsel %vm1010, %v999, 0
    %v1250 = vsel %vm1010, %v1007, 0
    %1252 = vmatprep.subr.bf16.mxu0 0
    %1253 = vmatpush1.bf16.xpose.msra.mxu0 0
    %1254 = vmatprep.subr.bf16.mxu0 0
    %1255 = vmatpush1.bf16.xpose.msra.mxu0 0
    %1256 = vmatprep.subr.bf16.mxu0 0
    %1257 = vmatpush1.bf16.xpose.msra.mxu0 0
    %1258 = vmatprep.subr.bf16.mxu0 0
    %1259 = vmatpush1.bf16.xpose.msra.mxu0 0
    %1260 = vmatprep.subr.bf16.mxu0 0
    %1261 = vmatpush1.bf16.xpose.msra.mxu0 0
    %1262 = vmatprep.subr.bf16.mxu0 0
    %1263 = vmatpush1.bf16.xpose.msra.mxu0 0
    %1264 = vmatprep.subr.bf16.mxu0 0
    %1265 = vmatpush1.bf16.xpose.msra.mxu0 0
    %1266 = vmatprep.subr.bf16.mxu0 0
    %1267 = vmatpush1.bf16.xpose.msra.mxu0 %v1250
    %1268 = vmatprep.subr.bf16.mxu0 0
    %1269 = vmatpush2.bf16.xpose.msra.mxu0 0
    %1270 = vmatprep.subr.bf16.mxu0 0
    %1271 = vmatpush2.bf16.xpose.msra.mxu0 0
    %1272 = vmatprep.subr.bf16.mxu0 0
    %1273 = vmatpush2.bf16.xpose.msra.mxu0 0
    %1274 = vmatprep.subr.bf16.mxu0 0
    %1275 = vmatpush2.bf16.xpose.msra.mxu0 0
    %1276 = vmatprep.subr.bf16.mxu0 0
    %1277 = vmatpush2.bf16.xpose.msra.mxu0 0
    %1278 = vmatprep.subr.bf16.mxu0 0
    %1279 = vmatpush2.bf16.xpose.msra.mxu0 0
    %1280 = vmatprep.subr.bf16.mxu0 0
    %1281 = vmatpush2.bf16.xpose.msra.mxu0 0
    %1282 = vmatprep.subr.bf16.mxu0 0
    %1283 = vmatpush2.bf16.xpose.msra.mxu0 0
    %1284 = vmatprep.mubr.bf16.mxu0 0
    %1285 = vmatmul.mubr.bf16.gmra.mxu0 %v1247
    %v1286 = vpop.f32.mrf.mxu0
    %v1287 = vadd.f32 %v331, %v1286
    %v1288 = vpop.f32.mrf.mxu0
    %v1289 = vpop.f32.mrf.mxu0
    %v1290 = vadd.f32 %v332, %v1289
    %v1291 = vpop.f32.mrf.mxu0
    %1292 = vdwg.mxu0
    %v1294 = vsel %vm1010, %v1000, 0
    %v1297 = vsel %vm1010, %v1008, 0
    %1299 = vmatprep.subr.bf16.mxu0 0
    %1300 = vmatpush1.bf16.xpose.msra.mxu0 0
    %1301 = vmatprep.subr.bf16.mxu0 0
    %1302 = vmatpush1.bf16.xpose.msra.mxu0 0
    %1303 = vmatprep.subr.bf16.mxu0 0
    %1304 = vmatpush1.bf16.xpose.msra.mxu0 0
    %1305 = vmatprep.subr.bf16.mxu0 0
    %1306 = vmatpush1.bf16.xpose.msra.mxu0 0
    %1307 = vmatprep.subr.bf16.mxu0 0
    %1308 = vmatpush1.bf16.xpose.msra.mxu0 0
    %1309 = vmatprep.subr.bf16.mxu0 0
    %1310 = vmatpush1.bf16.xpose.msra.mxu0 0
    %1311 = vmatprep.subr.bf16.mxu0 0
    %1312 = vmatpush1.bf16.xpose.msra.mxu0 0
    %1313 = vmatprep.subr.bf16.mxu0 0
    %1314 = vmatpush1.bf16.xpose.msra.mxu0 %v1297
    %1315 = vmatprep.subr.bf16.mxu0 0
    %1316 = vmatpush2.bf16.xpose.msra.mxu0 0
    %1317 = vmatprep.subr.bf16.mxu0 0
    %1318 = vmatpush2.bf16.xpose.msra.mxu0 0
    %1319 = vmatprep.subr.bf16.mxu0 0
    %1320 = vmatpush2.bf16.xpose.msra.mxu0 0
    %1321 = vmatprep.subr.bf16.mxu0 0
    %1322 = vmatpush2.bf16.xpose.msra.mxu0 0
    %1323 = vmatprep.subr.bf16.mxu0 0
    %1324 = vmatpush2.bf16.xpose.msra.mxu0 0
    %1325 = vmatprep.subr.bf16.mxu0 0
    %1326 = vmatpush2.bf16.xpose.msra.mxu0 0
    %1327 = vmatprep.subr.bf16.mxu0 0
    %1328 = vmatpush2.bf16.xpose.msra.mxu0 0
    %1329 = vmatprep.subr.bf16.mxu0 0
    %1330 = vmatpush2.bf16.xpose.msra.mxu0 0
    %1331 = vmatprep.mubr.bf16.mxu0 0
    %1332 = vmatmul.mubr.bf16.gmra.mxu0 %v1294
    %v1333 = vpop.f32.mrf.mxu0
    %v1334 = vadd.f32 %v333, %v1333
    %v1335 = vpop.f32.mrf.mxu0
    %v1336 = vpop.f32.mrf.mxu0
    %v1337 = vadd.f32 %v334, %v1336
    %v1338 = vpop.f32.mrf.mxu0
    %1339 = vdwg.mxu0
    %v1341 = vsel %vm1010, %v1001, 0
    %v1344 = vsel %vm1010, %v1009, 0
    %1346 = vmatprep.subr.bf16.mxu0 0
    %1347 = vmatpush1.bf16.xpose.msra.mxu0 0
    %1348 = vmatprep.subr.bf16.mxu0 0
    %1349 = vmatpush1.bf16.xpose.msra.mxu0 0
    %1350 = vmatprep.subr.bf16.mxu0 0
    %1351 = vmatpush1.bf16.xpose.msra.mxu0 0
    %1352 = vmatprep.subr.bf16.mxu0 0
    %1353 = vmatpush1.bf16.xpose.msra.mxu0 0
    %1354 = vmatprep.subr.bf16.mxu0 0
    %1355 = vmatpush1.bf16.xpose.msra.mxu0 0
    %1356 = vmatprep.subr.bf16.mxu0 0
    %1357 = vmatpush1.bf16.xpose.msra.mxu0 0
    %1358 = vmatprep.subr.bf16.mxu0 0
    %1359 = vmatpush1.bf16.xpose.msra.mxu0 0
    %1360 = vmatprep.subr.bf16.mxu0 0
    %1361 = vmatpush1.bf16.xpose.msra.mxu0 %v1344
    %1362 = vmatprep.subr.bf16.mxu0 0
    %1363 = vmatpush2.bf16.xpose.msra.mxu0 0
    %1364 = vmatprep.subr.bf16.mxu0 0
    %1365 = vmatpush2.bf16.xpose.msra.mxu0 0
    %1366 = vmatprep.subr.bf16.mxu0 0
    %1367 = vmatpush2.bf16.xpose.msra.mxu0 0
    %1368 = vmatprep.subr.bf16.mxu0 0
    %1369 = vmatpush2.bf16.xpose.msra.mxu0 0
    %1370 = vmatprep.subr.bf16.mxu0 0
    %1371 = vmatpush2.bf16.xpose.msra.mxu0 0
    %1372 = vmatprep.subr.bf16.mxu0 0
    %1373 = vmatpush2.bf16.xpose.msra.mxu0 0
    %1374 = vmatprep.subr.bf16.mxu0 0
    %1375 = vmatpush2.bf16.xpose.msra.mxu0 0
    %1376 = vmatprep.subr.bf16.mxu0 0
    %1377 = vmatpush2.bf16.xpose.msra.mxu0 0
    %1378 = vmatprep.mubr.bf16.mxu0 0
    %1379 = vmatmul.mubr.bf16.gmra.mxu0 %v1341
    %v1380 = vpop.f32.mrf.mxu0
    %v1381 = vadd.f32 %v335, %v1380
    %v1382 = vpop.f32.mrf.mxu0
    %v1383 = vpop.f32.mrf.mxu0
    %v1384 = vadd.f32 %v336, %v1383
    %v1385 = vpop.f32.mrf.mxu0
    %1386 = vdwg.mxu0
    %v1387 = vsel %vm1010, %v1052, -inf
    %1388 = vmax.xlane.f32.xlu0 %v1387
    %v1389 = vpop.xlane.xlu0 %1388
    %v1390 = vsel %vm1010, %v1055, -inf
    %1391 = vmax.xlane.f32.xlu0 %v1390
    %v1392 = vpop.xlane.xlu0 %1391
    %v1393 = vsel %vm1010, %v1099, -inf
    %1394 = vmax.xlane.f32.xlu0 %v1393
    %v1395 = vpop.xlane.xlu0 %1394
    %v1396 = vsel %vm1010, %v1102, -inf
    %1397 = vmax.xlane.f32.xlu0 %v1396
    %v1398 = vpop.xlane.xlu0 %1397
    %v1399 = vsel %vm1010, %v1146, -inf
    %1400 = vmax.xlane.f32.xlu0 %v1399
    %v1401 = vpop.xlane.xlu0 %1400
    %v1402 = vsel %vm1010, %v1149, -inf
    %1403 = vmax.xlane.f32.xlu0 %v1402
    %v1404 = vpop.xlane.xlu0 %1403
    %v1405 = vsel %vm1010, %v1193, -inf
    %1406 = vmax.xlane.f32.xlu0 %v1405
    %v1407 = vpop.xlane.xlu0 %1406
    %v1408 = vsel %vm1010, %v1196, -inf
    %1409 = vmax.xlane.f32.xlu0 %v1408
    %v1410 = vpop.xlane.xlu0 %1409
    %v1411 = vsel %vm1010, %v1240, -inf
    %1412 = vmax.xlane.f32.xlu0 %v1411
    %v1413 = vpop.xlane.xlu0 %1412
    %v1414 = vsel %vm1010, %v1243, -inf
    %1415 = vmax.xlane.f32.xlu0 %v1414
    %v1416 = vpop.xlane.xlu0 %1415
    %v1417 = vsel %vm1010, %v1287, -inf
    %1418 = vmax.xlane.f32.xlu0 %v1417
    %v1419 = vpop.xlane.xlu0 %1418
    %v1420 = vsel %vm1010, %v1290, -inf
    %1421 = vmax.xlane.f32.xlu0 %v1420
    %v1422 = vpop.xlane.xlu0 %1421
    %v1423 = vsel %vm1010, %v1334, -inf
    %1424 = vmax.xlane.f32.xlu0 %v1423
    %v1425 = vpop.xlane.xlu0 %1424
    %v1426 = vsel %vm1010, %v1337, -inf
    %1427 = vmax.xlane.f32.xlu0 %v1426
    %v1428 = vpop.xlane.xlu0 %1427
    %v1429 = vsel %vm1010, %v1381, -inf
    %1430 = vmax.xlane.f32.xlu0 %v1429
    %v1431 = vpop.xlane.xlu0 %1430
    %v1432 = vsel %vm1010, %v1384, -inf
    %1433 = vmax.xlane.f32.xlu0 %v1432
    %v1434 = vpop.xlane.xlu0 %1433
    %v1435 = vsub.f32 %v1052, %v1389
    %v1436 = vsub.f32 %v1055, %v1392
    %v1437 = vsub.f32 %v1099, %v1395
    %v1438 = vsub.f32 %v1102, %v1398
    %v1439 = vsub.f32 %v1146, %v1401
    %v1440 = vsub.f32 %v1149, %v1404
    %v1441 = vsub.f32 %v1193, %v1407
    %v1442 = vsub.f32 %v1196, %v1410
    %v1443 = vsub.f32 %v1240, %v1413
    %v1444 = vsub.f32 %v1243, %v1416
    %v1445 = vsub.f32 %v1287, %v1419
    %v1446 = vsub.f32 %v1290, %v1422
    %v1447 = vsub.f32 %v1334, %v1425
    %v1448 = vsub.f32 %v1337, %v1428
    %v1449 = vsub.f32 %v1381, %v1431
    %v1450 = vsub.f32 %v1384, %v1434
    %v1451 = vmul.f32 %v1435, 1.442695
    %v1452 = vpow.pop %v1451
    %v1453 = vmul.f32 %v1436, 1.442695
    %v1454 = vpow.pop %v1453
    %v1455 = vmul.f32 %v1437, 1.442695
    %v1456 = vpow.pop %v1455
    %v1457 = vmul.f32 %v1438, 1.442695
    %v1458 = vpow.pop %v1457
    %v1459 = vmul.f32 %v1439, 1.442695
    %v1460 = vpow.pop %v1459
    %v1461 = vmul.f32 %v1440, 1.442695
    %v1462 = vpow.pop %v1461
    %v1463 = vmul.f32 %v1441, 1.442695
    %v1464 = vpow.pop %v1463
    %v1465 = vmul.f32 %v1442, 1.442695
    %v1466 = vpow.pop %v1465
    %v1467 = vmul.f32 %v1443, 1.442695
    %v1468 = vpow.pop %v1467
    %v1469 = vmul.f32 %v1444, 1.442695
    %v1470 = vpow.pop %v1469
    %v1471 = vmul.f32 %v1445, 1.442695
    %v1472 = vpow.pop %v1471
    %v1473 = vmul.f32 %v1446, 1.442695
    %v1474 = vpow.pop %v1473
    %v1475 = vmul.f32 %v1447, 1.442695
    %v1476 = vpow.pop %v1475
    %v1477 = vmul.f32 %v1448, 1.442695
    %v1478 = vpow.pop %v1477
    %v1479 = vmul.f32 %v1449, 1.442695
    %v1480 = vpow.pop %v1479
    %v1481 = vmul.f32 %v1450, 1.442695
    %v1482 = vpow.pop %v1481
    %v1483 = vsel %vm1010, %v1452, 0.0
    %1484 = vadd.xlane.f32.xlu0 %v1483
    %v1485 = vpop.xlane.xlu0 %1484
    %v1486 = vsel %vm1010, %v1454, 0.0
    %1487 = vadd.xlane.f32.xlu0 %v1486
    %v1488 = vpop.xlane.xlu0 %1487
    %v1489 = vsel %vm1010, %v1456, 0.0
    %1490 = vadd.xlane.f32.xlu0 %v1489
    %v1491 = vpop.xlane.xlu0 %1490
    %v1492 = vsel %vm1010, %v1458, 0.0
    %1493 = vadd.xlane.f32.xlu0 %v1492
    %v1494 = vpop.xlane.xlu0 %1493
    %v1495 = vsel %vm1010, %v1460, 0.0
    %1496 = vadd.xlane.f32.xlu0 %v1495
    %v1497 = vpop.xlane.xlu0 %1496
    %v1498 = vsel %vm1010, %v1462, 0.0
    %1499 = vadd.xlane.f32.xlu0 %v1498
    %v1500 = vpop.xlane.xlu0 %1499
    %v1501 = vsel %vm1010, %v1464, 0.0
    %1502 = vadd.xlane.f32.xlu0 %v1501
    %v1503 = vpop.xlane.xlu0 %1502
    %v1504 = vsel %vm1010, %v1466, 0.0
    %1505 = vadd.xlane.f32.xlu0 %v1504
    %v1506 = vpop.xlane.xlu0 %1505
    %v1507 = vsel %vm1010, %v1468, 0.0
    %1508 = vadd.xlane.f32.xlu0 %v1507
    %v1509 = vpop.xlane.xlu0 %1508
    %v1510 = vsel %vm1010, %v1470, 0.0
    %1511 = vadd.xlane.f32.xlu0 %v1510
    %v1512 = vpop.xlane.xlu0 %1511
    %v1513 = vsel %vm1010, %v1472, 0.0
    %1514 = vadd.xlane.f32.xlu0 %v1513
    %v1515 = vpop.xlane.xlu0 %1514
    %v1516 = vsel %vm1010, %v1474, 0.0
    %1517 = vadd.xlane.f32.xlu0 %v1516
    %v1518 = vpop.xlane.xlu0 %1517
    %v1519 = vsel %vm1010, %v1476, 0.0
    %1520 = vadd.xlane.f32.xlu0 %v1519
    %v1521 = vpop.xlane.xlu0 %1520
    %v1522 = vsel %vm1010, %v1478, 0.0
    %1523 = vadd.xlane.f32.xlu0 %v1522
    %v1524 = vpop.xlane.xlu0 %1523
    %v1525 = vsel %vm1010, %v1480, 0.0
    %1526 = vadd.xlane.f32.xlu0 %v1525
    %v1527 = vpop.xlane.xlu0 %1526
    %v1528 = vsel %vm1010, %v1482, 0.0
    %1529 = vadd.xlane.f32.xlu0 %v1528
    %v1530 = vpop.xlane.xlu0 %1529
    %v1531 = vrcp.pop %v1485
    %v1532 = vrcp.pop %v1488
    %v1533 = vrcp.pop %v1491
    %v1534 = vrcp.pop %v1494
    %v1535 = vrcp.pop %v1497
    %v1536 = vrcp.pop %v1500
    %v1537 = vrcp.pop %v1503
    %v1538 = vrcp.pop %v1506
    %v1539 = vrcp.pop %v1509
    %v1540 = vrcp.pop %v1512
    %v1541 = vrcp.pop %v1515
    %v1542 = vrcp.pop %v1518
    %v1543 = vrcp.pop %v1521
    %v1544 = vrcp.pop %v1524
    %v1545 = vrcp.pop %v1527
    %v1546 = vrcp.pop %v1530
    %v1547 = vmul.f32 %v1452, %v1531
    %v1548 = vmul.f32 %v1454, %v1532
    %v1549 = vmul.f32 %v1456, %v1533
    %v1550 = vmul.f32 %v1458, %v1534
    %v1551 = vmul.f32 %v1460, %v1535
    %v1552 = vmul.f32 %v1462, %v1536
    %v1553 = vmul.f32 %v1464, %v1537
    %v1554 = vmul.f32 %v1466, %v1538
    %v1555 = vmul.f32 %v1468, %v1539
    %v1556 = vmul.f32 %v1470, %v1540
    %v1557 = vmul.f32 %v1472, %v1541
    %v1558 = vmul.f32 %v1474, %v1542
    %v1559 = vmul.f32 %v1476, %v1543
    %v1560 = vmul.f32 %v1478, %v1544
    %v1561 = vmul.f32 %v1480, %v1545
    %v1562 = vmul.f32 %v1482, %v1546
    %v1563 = vpack.c.bf16 %v1548, %v1547
    %v1564 = vpack.c.bf16 %v1550, %v1549
    %v1565 = vpack.c.bf16 %v1552, %v1551
    %v1566 = vpack.c.bf16 %v1554, %v1553
    %v1567 = vpack.c.bf16 %v1556, %v1555
    %v1568 = vpack.c.bf16 %v1558, %v1557
    %v1569 = vpack.c.bf16 %v1560, %v1559
    %v1570 = vpack.c.bf16 %v1562, %v1561
    %v1571 = vpack.c.bf16 %v935, %v932
    %v1572 = vpack.c.bf16 %v943, %v940
    %v1573 = vpack.c.bf16 %v951, %v948
    %v1574 = vpack.c.bf16 %v959, %v956
    %v1575 = vpack.c.bf16 %v967, %v964
    %v1576 = vpack.c.bf16 %v975, %v972
    %v1577 = vpack.c.bf16 %v983, %v980
    %v1578 = vpack.c.bf16 %v991, %v988
    %v1580 = vsel %vm1010, %v1563, 0
    %1582 = vmatprep.subr.bf16.mxu0 0
    %1583 = vmatpush1.bf16.msra.mxu0 0
    %1584 = vmatprep.subr.bf16.mxu0 0
    %1585 = vmatpush1.bf16.msra.mxu0 0
    %1586 = vmatprep.subr.bf16.mxu0 0
    %1587 = vmatpush1.bf16.msra.mxu0 0
    %1588 = vmatprep.subr.bf16.mxu0 0
    %1589 = vmatpush1.bf16.msra.mxu0 0
    %1590 = vmatprep.subr.bf16.mxu0 0
    %1591 = vmatpush1.bf16.msra.mxu0 0
    %1592 = vmatprep.subr.bf16.mxu0 0
    %1593 = vmatpush1.bf16.msra.mxu0 0
    %1594 = vmatprep.subr.bf16.mxu0 0
    %1595 = vmatpush1.bf16.msra.mxu0 0
    %1596 = vmatprep.subr.bf16.mxu0 0
    %1597 = vmatpush1.bf16.msra.mxu0 %v1571
    %1598 = vmatprep.subr.bf16.mxu0 0
    %1599 = vmatpush2.bf16.msra.mxu0 0
    %1600 = vmatprep.subr.bf16.mxu0 0
    %1601 = vmatpush2.bf16.msra.mxu0 0
    %1602 = vmatprep.subr.bf16.mxu0 0
    %1603 = vmatpush2.bf16.msra.mxu0 0
    %1604 = vmatprep.subr.bf16.mxu0 0
    %1605 = vmatpush2.bf16.msra.mxu0 0
    %1606 = vmatprep.subr.bf16.mxu0 0
    %1607 = vmatpush2.bf16.msra.mxu0 0
    %1608 = vmatprep.subr.bf16.mxu0 0
    %1609 = vmatpush2.bf16.msra.mxu0 0
    %1610 = vmatprep.subr.bf16.mxu0 0
    %1611 = vmatpush2.bf16.msra.mxu0 0
    %1612 = vmatprep.subr.bf16.mxu0 0
    %1613 = vmatpush2.bf16.msra.mxu0 0
    %1614 = vmatprep.mubr.bf16.mxu0 0
    %1615 = vmatmul.mubr.bf16.gmra.mxu0 %v1580
    %v1616 = vpop.f32.mrf.mxu0
    %v1617 = vadd.f32 0.0, %v1616
    %v1618 = vpop.f32.mrf.mxu0
    %v1619 = vpop.f32.mrf.mxu0
    %v1620 = vadd.f32 0.0, %v1619
    %v1621 = vpop.f32.mrf.mxu0
    %1622 = vdwg.mxu0
    %v1624 = vsel %vm1010, %v1564, 0
    %1626 = vmatprep.subr.bf16.mxu0 0
    %1627 = vmatpush1.bf16.msra.mxu0 0
    %1628 = vmatprep.subr.bf16.mxu0 0
    %1629 = vmatpush1.bf16.msra.mxu0 0
    %1630 = vmatprep.subr.bf16.mxu0 0
    %1631 = vmatpush1.bf16.msra.mxu0 0
    %1632 = vmatprep.subr.bf16.mxu0 0
    %1633 = vmatpush1.bf16.msra.mxu0 0
    %1634 = vmatprep.subr.bf16.mxu0 0
    %1635 = vmatpush1.bf16.msra.mxu0 0
    %1636 = vmatprep.subr.bf16.mxu0 0
    %1637 = vmatpush1.bf16.msra.mxu0 0
    %1638 = vmatprep.subr.bf16.mxu0 0
    %1639 = vmatpush1.bf16.msra.mxu0 0
    %1640 = vmatprep.subr.bf16.mxu0 0
    %1641 = vmatpush1.bf16.msra.mxu0 %v1572
    %1642 = vmatprep.subr.bf16.mxu0 0
    %1643 = vmatpush2.bf16.msra.mxu0 0
    %1644 = vmatprep.subr.bf16.mxu0 0
    %1645 = vmatpush2.bf16.msra.mxu0 0
    %1646 = vmatprep.subr.bf16.mxu0 0
    %1647 = vmatpush2.bf16.msra.mxu0 0
    %1648 = vmatprep.subr.bf16.mxu0 0
    %1649 = vmatpush2.bf16.msra.mxu0 0
    %1650 = vmatprep.subr.bf16.mxu0 0
    %1651 = vmatpush2.bf16.msra.mxu0 0
    %1652 = vmatprep.subr.bf16.mxu0 0
    %1653 = vmatpush2.bf16.msra.mxu0 0
    %1654 = vmatprep.subr.bf16.mxu0 0
    %1655 = vmatpush2.bf16.msra.mxu0 0
    %1656 = vmatprep.subr.bf16.mxu0 0
    %1657 = vmatpush2.bf16.msra.mxu0 0
    %1658 = vmatprep.mubr.bf16.mxu0 0
    %1659 = vmatmul.mubr.bf16.gmra.mxu0 %v1624
    %v1660 = vpop.f32.mrf.mxu0
    %v1661 = vadd.f32 0.0, %v1660
    %v1662 = vpop.f32.mrf.mxu0
    %v1663 = vpop.f32.mrf.mxu0
    %v1664 = vadd.f32 0.0, %v1663
    %v1665 = vpop.f32.mrf.mxu0
    %1666 = vdwg.mxu0
    %v1668 = vsel %vm1010, %v1565, 0
    %1670 = vmatprep.subr.bf16.mxu0 0
    %1671 = vmatpush1.bf16.msra.mxu0 0
    %1672 = vmatprep.subr.bf16.mxu0 0
    %1673 = vmatpush1.bf16.msra.mxu0 0
    %1674 = vmatprep.subr.bf16.mxu0 0
    %1675 = vmatpush1.bf16.msra.mxu0 0
    %1676 = vmatprep.subr.bf16.mxu0 0
    %1677 = vmatpush1.bf16.msra.mxu0 0
    %1678 = vmatprep.subr.bf16.mxu0 0
    %1679 = vmatpush1.bf16.msra.mxu0 0
    %1680 = vmatprep.subr.bf16.mxu0 0
    %1681 = vmatpush1.bf16.msra.mxu0 0
    %1682 = vmatprep.subr.bf16.mxu0 0
    %1683 = vmatpush1.bf16.msra.mxu0 0
    %1684 = vmatprep.subr.bf16.mxu0 0
    %1685 = vmatpush1.bf16.msra.mxu0 %v1573
    %1686 = vmatprep.subr.bf16.mxu0 0
    %1687 = vmatpush2.bf16.msra.mxu0 0
    %1688 = vmatprep.subr.bf16.mxu0 0
    %1689 = vmatpush2.bf16.msra.mxu0 0
    %1690 = vmatprep.subr.bf16.mxu0 0
    %1691 = vmatpush2.bf16.msra.mxu0 0
    %1692 = vmatprep.subr.bf16.mxu0 0
    %1693 = vmatpush2.bf16.msra.mxu0 0
    %1694 = vmatprep.subr.bf16.mxu0 0
    %1695 = vmatpush2.bf16.msra.mxu0 0
    %1696 = vmatprep.subr.bf16.mxu0 0
    %1697 = vmatpush2.bf16.msra.mxu0 0
    %1698 = vmatprep.subr.bf16.mxu0 0
    %1699 = vmatpush2.bf16.msra.mxu0 0
    %1700 = vmatprep.subr.bf16.mxu0 0
    %1701 = vmatpush2.bf16.msra.mxu0 0
    %1702 = vmatprep.mubr.bf16.mxu0 0
    %1703 = vmatmul.mubr.bf16.gmra.mxu0 %v1668
    %v1704 = vpop.f32.mrf.mxu0
    %v1705 = vadd.f32 0.0, %v1704
    %v1706 = vpop.f32.mrf.mxu0
    %v1707 = vpop.f32.mrf.mxu0
    %v1708 = vadd.f32 0.0, %v1707
    %v1709 = vpop.f32.mrf.mxu0
    %1710 = vdwg.mxu0
    %v1712 = vsel %vm1010, %v1566, 0
    %1714 = vmatprep.subr.bf16.mxu0 0
    %1715 = vmatpush1.bf16.msra.mxu0 0
    %1716 = vmatprep.subr.bf16.mxu0 0
    %1717 = vmatpush1.bf16.msra.mxu0 0
    %1718 = vmatprep.subr.bf16.mxu0 0
    %1719 = vmatpush1.bf16.msra.mxu0 0
    %1720 = vmatprep.subr.bf16.mxu0 0
    %1721 = vmatpush1.bf16.msra.mxu0 0
    %1722 = vmatprep.subr.bf16.mxu0 0
    %1723 = vmatpush1.bf16.msra.mxu0 0
    %1724 = vmatprep.subr.bf16.mxu0 0
    %1725 = vmatpush1.bf16.msra.mxu0 0
    %1726 = vmatprep.subr.bf16.mxu0 0
    %1727 = vmatpush1.bf16.msra.mxu0 0
    %1728 = vmatprep.subr.bf16.mxu0 0
    %1729 = vmatpush1.bf16.msra.mxu0 %v1574
    %1730 = vmatprep.subr.bf16.mxu0 0
    %1731 = vmatpush2.bf16.msra.mxu0 0
    %1732 = vmatprep.subr.bf16.mxu0 0
    %1733 = vmatpush2.bf16.msra.mxu0 0
    %1734 = vmatprep.subr.bf16.mxu0 0
    %1735 = vmatpush2.bf16.msra.mxu0 0
    %1736 = vmatprep.subr.bf16.mxu0 0
    %1737 = vmatpush2.bf16.msra.mxu0 0
    %1738 = vmatprep.subr.bf16.mxu0 0
    %1739 = vmatpush2.bf16.msra.mxu0 0
    %1740 = vmatprep.subr.bf16.mxu0 0
    %1741 = vmatpush2.bf16.msra.mxu0 0
    %1742 = vmatprep.subr.bf16.mxu0 0
    %1743 = vmatpush2.bf16.msra.mxu0 0
    %1744 = vmatprep.subr.bf16.mxu0 0
    %1745 = vmatpush2.bf16.msra.mxu0 0
    %1746 = vmatprep.mubr.bf16.mxu0 0
    %1747 = vmatmul.mubr.bf16.gmra.mxu0 %v1712
    %v1748 = vpop.f32.mrf.mxu0
    %v1749 = vadd.f32 0.0, %v1748
    %v1750 = vpop.f32.mrf.mxu0
    %v1751 = vpop.f32.mrf.mxu0
    %v1752 = vadd.f32 0.0, %v1751
    %v1753 = vpop.f32.mrf.mxu0
    %1754 = vdwg.mxu0
    %v1756 = vsel %vm1010, %v1567, 0
    %1758 = vmatprep.subr.bf16.mxu0 0
    %1759 = vmatpush1.bf16.msra.mxu0 0
    %1760 = vmatprep.subr.bf16.mxu0 0
    %1761 = vmatpush1.bf16.msra.mxu0 0
    %1762 = vmatprep.subr.bf16.mxu0 0
    %1763 = vmatpush1.bf16.msra.mxu0 0
    %1764 = vmatprep.subr.bf16.mxu0 0
    %1765 = vmatpush1.bf16.msra.mxu0 0
    %1766 = vmatprep.subr.bf16.mxu0 0
    %1767 = vmatpush1.bf16.msra.mxu0 0
    %1768 = vmatprep.subr.bf16.mxu0 0
    %1769 = vmatpush1.bf16.msra.mxu0 0
    %1770 = vmatprep.subr.bf16.mxu0 0
    %1771 = vmatpush1.bf16.msra.mxu0 0
    %1772 = vmatprep.subr.bf16.mxu0 0
    %1773 = vmatpush1.bf16.msra.mxu0 %v1575
    %1774 = vmatprep.subr.bf16.mxu0 0
    %1775 = vmatpush2.bf16.msra.mxu0 0
    %1776 = vmatprep.subr.bf16.mxu0 0
    %1777 = vmatpush2.bf16.msra.mxu0 0
    %1778 = vmatprep.subr.bf16.mxu0 0
    %1779 = vmatpush2.bf16.msra.mxu0 0
    %1780 = vmatprep.subr.bf16.mxu0 0
    %1781 = vmatpush2.bf16.msra.mxu0 0
    %1782 = vmatprep.subr.bf16.mxu0 0
    %1783 = vmatpush2.bf16.msra.mxu0 0
    %1784 = vmatprep.subr.bf16.mxu0 0
    %1785 = vmatpush2.bf16.msra.mxu0 0
    %1786 = vmatprep.subr.bf16.mxu0 0
    %1787 = vmatpush2.bf16.msra.mxu0 0
    %1788 = vmatprep.subr.bf16.mxu0 0
    %1789 = vmatpush2.bf16.msra.mxu0 0
    %1790 = vmatprep.mubr.bf16.mxu0 0
    %1791 = vmatmul.mubr.bf16.gmra.mxu0 %v1756
    %v1792 = vpop.f32.mrf.mxu0
    %v1793 = vadd.f32 0.0, %v1792
    %v1794 = vpop.f32.mrf.mxu0
    %v1795 = vpop.f32.mrf.mxu0
    %v1796 = vadd.f32 0.0, %v1795
    %v1797 = vpop.f32.mrf.mxu0
    %1798 = vdwg.mxu0
    %v1800 = vsel %vm1010, %v1568, 0
    %1802 = vmatprep.subr.bf16.mxu0 0
    %1803 = vmatpush1.bf16.msra.mxu0 0
    %1804 = vmatprep.subr.bf16.mxu0 0
    %1805 = vmatpush1.bf16.msra.mxu0 0
    %1806 = vmatprep.subr.bf16.mxu0 0
    %1807 = vmatpush1.bf16.msra.mxu0 0
    %1808 = vmatprep.subr.bf16.mxu0 0
    %1809 = vmatpush1.bf16.msra.mxu0 0
    %1810 = vmatprep.subr.bf16.mxu0 0
    %1811 = vmatpush1.bf16.msra.mxu0 0
    %1812 = vmatprep.subr.bf16.mxu0 0
    %1813 = vmatpush1.bf16.msra.mxu0 0
    %1814 = vmatprep.subr.bf16.mxu0 0
    %1815 = vmatpush1.bf16.msra.mxu0 0
    %1816 = vmatprep.subr.bf16.mxu0 0
    %1817 = vmatpush1.bf16.msra.mxu0 %v1576
    %1818 = vmatprep.subr.bf16.mxu0 0
    %1819 = vmatpush2.bf16.msra.mxu0 0
    %1820 = vmatprep.subr.bf16.mxu0 0
    %1821 = vmatpush2.bf16.msra.mxu0 0
    %1822 = vmatprep.subr.bf16.mxu0 0
    %1823 = vmatpush2.bf16.msra.mxu0 0
    %1824 = vmatprep.subr.bf16.mxu0 0
    %1825 = vmatpush2.bf16.msra.mxu0 0
    %1826 = vmatprep.subr.bf16.mxu0 0
    %1827 = vmatpush2.bf16.msra.mxu0 0
    %1828 = vmatprep.subr.bf16.mxu0 0
    %1829 = vmatpush2.bf16.msra.mxu0 0
    %1830 = vmatprep.subr.bf16.mxu0 0
    %1831 = vmatpush2.bf16.msra.mxu0 0
    %1832 = vmatprep.subr.bf16.mxu0 0
    %1833 = vmatpush2.bf16.msra.mxu0 0
    %1834 = vmatprep.mubr.bf16.mxu0 0
    %1835 = vmatmul.mubr.bf16.gmra.mxu0 %v1800
    %v1836 = vpop.f32.mrf.mxu0
    %v1837 = vadd.f32 0.0, %v1836
    %v1838 = vpop.f32.mrf.mxu0
    %v1839 = vpop.f32.mrf.mxu0
    %v1840 = vadd.f32 0.0, %v1839
    %v1841 = vpop.f32.mrf.mxu0
    %1842 = vdwg.mxu0
    %v1844 = vsel %vm1010, %v1569, 0
    %1846 = vmatprep.subr.bf16.mxu0 0
    %1847 = vmatpush1.bf16.msra.mxu0 0
    %1848 = vmatprep.subr.bf16.mxu0 0
    %1849 = vmatpush1.bf16.msra.mxu0 0
    %1850 = vmatprep.subr.bf16.mxu0 0
    %1851 = vmatpush1.bf16.msra.mxu0 0
    %1852 = vmatprep.subr.bf16.mxu0 0
    %1853 = vmatpush1.bf16.msra.mxu0 0
    %1854 = vmatprep.subr.bf16.mxu0 0
    %1855 = vmatpush1.bf16.msra.mxu0 0
    %1856 = vmatprep.subr.bf16.mxu0 0
    %1857 = vmatpush1.bf16.msra.mxu0 0
    %1858 = vmatprep.subr.bf16.mxu0 0
    %1859 = vmatpush1.bf16.msra.mxu0 0
    %1860 = vmatprep.subr.bf16.mxu0 0
    %1861 = vmatpush1.bf16.msra.mxu0 %v1577
    %1862 = vmatprep.subr.bf16.mxu0 0
    %1863 = vmatpush2.bf16.msra.mxu0 0
    %1864 = vmatprep.subr.bf16.mxu0 0
    %1865 = vmatpush2.bf16.msra.mxu0 0
    %1866 = vmatprep.subr.bf16.mxu0 0
    %1867 = vmatpush2.bf16.msra.mxu0 0
    %1868 = vmatprep.subr.bf16.mxu0 0
    %1869 = vmatpush2.bf16.msra.mxu0 0
    %1870 = vmatprep.subr.bf16.mxu0 0
    %1871 = vmatpush2.bf16.msra.mxu0 0
    %1872 = vmatprep.subr.bf16.mxu0 0
    %1873 = vmatpush2.bf16.msra.mxu0 0
    %1874 = vmatprep.subr.bf16.mxu0 0
    %1875 = vmatpush2.bf16.msra.mxu0 0
    %1876 = vmatprep.subr.bf16.mxu0 0
    %1877 = vmatpush2.bf16.msra.mxu0 0
    %1878 = vmatprep.mubr.bf16.mxu0 0
    %1879 = vmatmul.mubr.bf16.gmra.mxu0 %v1844
    %v1880 = vpop.f32.mrf.mxu0
    %v1881 = vadd.f32 0.0, %v1880
    %v1882 = vpop.f32.mrf.mxu0
    %v1883 = vpop.f32.mrf.mxu0
    %v1884 = vadd.f32 0.0, %v1883
    %v1885 = vpop.f32.mrf.mxu0
    %1886 = vdwg.mxu0
    %v1888 = vsel %vm1010, %v1570, 0
    %1890 = vmatprep.subr.bf16.mxu0 0
    %1891 = vmatpush1.bf16.msra.mxu0 0
    %1892 = vmatprep.subr.bf16.mxu0 0
    %1893 = vmatpush1.bf16.msra.mxu0 0
    %1894 = vmatprep.subr.bf16.mxu0 0
    %1895 = vmatpush1.bf16.msra.mxu0 0
    %1896 = vmatprep.subr.bf16.mxu0 0
    %1897 = vmatpush1.bf16.msra.mxu0 0
    %1898 = vmatprep.subr.bf16.mxu0 0
    %1899 = vmatpush1.bf16.msra.mxu0 0
    %1900 = vmatprep.subr.bf16.mxu0 0
    %1901 = vmatpush1.bf16.msra.mxu0 0
    %1902 = vmatprep.subr.bf16.mxu0 0
    %1903 = vmatpush1.bf16.msra.mxu0 0
    %1904 = vmatprep.subr.bf16.mxu0 0
    %1905 = vmatpush1.bf16.msra.mxu0 %v1578
    %1906 = vmatprep.subr.bf16.mxu0 0
    %1907 = vmatpush2.bf16.msra.mxu0 0
    %1908 = vmatprep.subr.bf16.mxu0 0
    %1909 = vmatpush2.bf16.msra.mxu0 0
    %1910 = vmatprep.subr.bf16.mxu0 0
    %1911 = vmatpush2.bf16.msra.mxu0 0
    %1912 = vmatprep.subr.bf16.mxu0 0
    %1913 = vmatpush2.bf16.msra.mxu0 0
    %1914 = vmatprep.subr.bf16.mxu0 0
    %1915 = vmatpush2.bf16.msra.mxu0 0
    %1916 = vmatprep.subr.bf16.mxu0 0
    %1917 = vmatpush2.bf16.msra.mxu0 0
    %1918 = vmatprep.subr.bf16.mxu0 0
    %1919 = vmatpush2.bf16.msra.mxu0 0
    %1920 = vmatprep.subr.bf16.mxu0 0
    %1921 = vmatpush2.bf16.msra.mxu0 0
    %1922 = vmatprep.mubr.bf16.mxu0 0
    %1923 = vmatmul.mubr.bf16.gmra.mxu0 %v1888
    %v1924 = vpop.f32.mrf.mxu0
    %v1925 = vadd.f32 0.0, %v1924
    %v1926 = vpop.f32.mrf.mxu0
    %v1927 = vpop.f32.mrf.mxu0
    %v1928 = vadd.f32 0.0, %v1927
    %v1929 = vpop.f32.mrf.mxu0
    %1930 = vdwg.mxu0
    %v1931 = vpack.c.bf16 %v1620, %v1617
    %v1932 = vpack.c.bf16 %v1664, %v1661
    %v1933 = vpack.c.bf16 %v1708, %v1705
    %v1934 = vpack.c.bf16 %v1752, %v1749
    %v1935 = vpack.c.bf16 %v1796, %v1793
    %v1936 = vpack.c.bf16 %v1840, %v1837
    %v1937 = vpack.c.bf16 %v1884, %v1881
    %v1938 = vpack.c.bf16 %v1928, %v1925
    %1939 = vrot.lane.b32.xlu0 %v657, 112
    %v1940 = vpop.permute.xlu0 %1939
    %1941 = vrot.lane.b32.xlu0 %v658, 112
    %v1942 = vpop.permute.xlu0 %1941
    %1945 = vrot.lane.b32.xlu0 %v647, 112
    %v1946 = vpop.permute.xlu0 %1945
    %1948 = vmatprep.subr.bf16.mxu0 0
    %1949 = vmatpush1.bf16.msra.mxu0 0
    %1950 = vmatprep.subr.bf16.mxu0 0
    %1951 = vmatpush1.bf16.msra.mxu0 0
    %1952 = vmatprep.subr.bf16.mxu0 0
    %1953 = vmatpush1.bf16.msra.mxu0 0
    %1954 = vmatprep.subr.bf16.mxu0 0
    %1955 = vmatpush1.bf16.msra.mxu0 0
    %1956 = vmatprep.subr.bf16.mxu0 0
    %1957 = vmatpush1.bf16.msra.mxu0 0
    %1958 = vmatprep.subr.bf16.mxu0 0
    %1959 = vmatpush1.bf16.msra.mxu0 0
    %1960 = vmatprep.subr.bf16.mxu0 0
    %1961 = vmatpush1.bf16.msra.mxu0 %v1942
    %1962 = vmatprep.subr.bf16.mxu0 0
    %1963 = vmatpush1.bf16.msra.mxu0 %v1940
    %1964 = vmatprep.subr.bf16.mxu0 0
    %1965 = vmatpush2.bf16.msra.mxu0 0
    %1966 = vmatprep.subr.bf16.mxu0 0
    %1967 = vmatpush2.bf16.msra.mxu0 0
    %1968 = vmatprep.subr.bf16.mxu0 0
    %1969 = vmatpush2.bf16.msra.mxu0 0
    %1970 = vmatprep.subr.bf16.mxu0 0
    %1971 = vmatpush2.bf16.msra.mxu0 0
    %1972 = vmatprep.subr.bf16.mxu0 0
    %1973 = vmatpush2.bf16.msra.mxu0 0
    %1974 = vmatprep.subr.bf16.mxu0 0
    %1975 = vmatpush2.bf16.msra.mxu0 0
    %1976 = vmatprep.subr.bf16.mxu0 0
    %1977 = vmatpush2.bf16.msra.mxu0 0
    %1978 = vmatprep.subr.bf16.mxu0 0
    %1979 = vmatpush2.bf16.msra.mxu0 0
    %1980 = vmatprep.mubr.bf16.mxu0 0
    %1981 = vmatmul.mubr.bf16.gmra.mxu0 %v662
    %v1982 = vpop.f32.mrf.mxu0
    %v1983 = vadd.f32 %v1946, %v1982
    %v1984 = vpop.f32.mrf.mxu0
    %v1985 = vpop.f32.mrf.mxu0
    %v1986 = vadd.f32 %v1946, %v1985
    %v1987 = vpop.f32.mrf.mxu0
    %1988 = vmatprep.mubr.bf16.mxu0 0
    %1989 = vmatmul.mubr.bf16.gmra.mxu0 %v665
    %v1990 = vpop.f32.mrf.mxu0
    %v1991 = vadd.f32 %v1946, %v1990
    %v1992 = vpop.f32.mrf.mxu0
    %v1993 = vpop.f32.mrf.mxu0
    %v1994 = vadd.f32 %v1946, %v1993
    %v1995 = vpop.f32.mrf.mxu0
    %1996 = vmatprep.mubr.bf16.mxu0 0
    %1997 = vmatmul.mubr.bf16.gmra.mxu0 %v668
    %v1998 = vpop.f32.mrf.mxu0
    %v1999 = vadd.f32 %v1946, %v1998
    %v2000 = vpop.f32.mrf.mxu0
    %v2001 = vpop.f32.mrf.mxu0
    %v2002 = vadd.f32 %v1946, %v2001
    %v2003 = vpop.f32.mrf.mxu0
    %2004 = vmatprep.mubr.bf16.mxu0 0
    %2005 = vmatmul.mubr.bf16.gmra.mxu0 %v671
    %v2006 = vpop.f32.mrf.mxu0
    %v2007 = vadd.f32 %v1946, %v2006
    %v2008 = vpop.f32.mrf.mxu0
    %v2009 = vpop.f32.mrf.mxu0
    %v2010 = vadd.f32 %v1946, %v2009
    %v2011 = vpop.f32.mrf.mxu0
    %2012 = vmatprep.mubr.bf16.mxu0 0
    %2013 = vmatmul.mubr.bf16.gmra.mxu0 %v674
    %v2014 = vpop.f32.mrf.mxu0
    %v2015 = vadd.f32 %v1946, %v2014
    %v2016 = vpop.f32.mrf.mxu0
    %v2017 = vpop.f32.mrf.mxu0
    %v2018 = vadd.f32 %v1946, %v2017
    %v2019 = vpop.f32.mrf.mxu0
    %2020 = vmatprep.mubr.bf16.mxu0 0
    %2021 = vmatmul.mubr.bf16.gmra.mxu0 %v677
    %v2022 = vpop.f32.mrf.mxu0
    %v2023 = vadd.f32 %v1946, %v2022
    %v2024 = vpop.f32.mrf.mxu0
    %v2025 = vpop.f32.mrf.mxu0
    %v2026 = vadd.f32 %v1946, %v2025
    %v2027 = vpop.f32.mrf.mxu0
    %2028 = vmatprep.mubr.bf16.mxu0 0
    %2029 = vmatmul.mubr.bf16.gmra.mxu0 %v680
    %v2030 = vpop.f32.mrf.mxu0
    %v2031 = vadd.f32 %v1946, %v2030
    %v2032 = vpop.f32.mrf.mxu0
    %v2033 = vpop.f32.mrf.mxu0
    %v2034 = vadd.f32 %v1946, %v2033
    %v2035 = vpop.f32.mrf.mxu0
    %2036 = vmatprep.mubr.bf16.mxu0 0
    %2037 = vmatmul.mubr.bf16.gmra.mxu0 %v683
    %v2038 = vpop.f32.mrf.mxu0
    %v2039 = vadd.f32 %v1946, %v2038
    %v2040 = vpop.f32.mrf.mxu0
    %v2041 = vpop.f32.mrf.mxu0
    %v2042 = vadd.f32 %v1946, %v2041
    %v2043 = vpop.f32.mrf.mxu0
    %2044 = vdwg.mxu0
    %2045 = vrot.lane.b32.xlu0 %v657, 80
    %v2046 = vpop.permute.xlu0 %2045
    %2047 = vrot.lane.b32.xlu0 %v658, 80
    %v2048 = vpop.permute.xlu0 %2047
    %2051 = vrot.lane.b32.xlu0 %v647, 80
    %v2052 = vpop.permute.xlu0 %2051
    %2054 = vmatprep.subr.bf16.mxu0 0
    %2055 = vmatpush1.bf16.msra.mxu0 0
    %2056 = vmatprep.subr.bf16.mxu0 0
    %2057 = vmatpush1.bf16.msra.mxu0 0
    %2058 = vmatprep.subr.bf16.mxu0 0
    %2059 = vmatpush1.bf16.msra.mxu0 0
    %2060 = vmatprep.subr.bf16.mxu0 0
    %2061 = vmatpush1.bf16.msra.mxu0 0
    %2062 = vmatprep.subr.bf16.mxu0 0
    %2063 = vmatpush1.bf16.msra.mxu0 0
    %2064 = vmatprep.subr.bf16.mxu0 0
    %2065 = vmatpush1.bf16.msra.mxu0 0
    %2066 = vmatprep.subr.bf16.mxu0 0
    %2067 = vmatpush1.bf16.msra.mxu0 %v2048
    %2068 = vmatprep.subr.bf16.mxu0 0
    %2069 = vmatpush1.bf16.msra.mxu0 %v2046
    %2070 = vmatprep.subr.bf16.mxu0 0
    %2071 = vmatpush2.bf16.msra.mxu0 0
    %2072 = vmatprep.subr.bf16.mxu0 0
    %2073 = vmatpush2.bf16.msra.mxu0 0
    %2074 = vmatprep.subr.bf16.mxu0 0
    %2075 = vmatpush2.bf16.msra.mxu0 0
    %2076 = vmatprep.subr.bf16.mxu0 0
    %2077 = vmatpush2.bf16.msra.mxu0 0
    %2078 = vmatprep.subr.bf16.mxu0 0
    %2079 = vmatpush2.bf16.msra.mxu0 0
    %2080 = vmatprep.subr.bf16.mxu0 0
    %2081 = vmatpush2.bf16.msra.mxu0 0
    %2082 = vmatprep.subr.bf16.mxu0 0
    %2083 = vmatpush2.bf16.msra.mxu0 0
    %2084 = vmatprep.subr.bf16.mxu0 0
    %2085 = vmatpush2.bf16.msra.mxu0 0
    %2086 = vmatprep.mubr.bf16.mxu0 0
    %2087 = vmatmul.mubr.bf16.gmra.mxu0 %v662
    %v2088 = vpop.f32.mrf.mxu0
    %v2089 = vadd.f32 %v2052, %v2088
    %v2090 = vpop.f32.mrf.mxu0
    %v2091 = vpop.f32.mrf.mxu0
    %v2092 = vadd.f32 %v2052, %v2091
    %v2093 = vpop.f32.mrf.mxu0
    %2094 = vmatprep.mubr.bf16.mxu0 0
    %2095 = vmatmul.mubr.bf16.gmra.mxu0 %v665
    %v2096 = vpop.f32.mrf.mxu0
    %v2097 = vadd.f32 %v2052, %v2096
    %v2098 = vpop.f32.mrf.mxu0
    %v2099 = vpop.f32.mrf.mxu0
    %v2100 = vadd.f32 %v2052, %v2099
    %v2101 = vpop.f32.mrf.mxu0
    %2102 = vmatprep.mubr.bf16.mxu0 0
    %2103 = vmatmul.mubr.bf16.gmra.mxu0 %v668
    %v2104 = vpop.f32.mrf.mxu0
    %v2105 = vadd.f32 %v2052, %v2104
    %v2106 = vpop.f32.mrf.mxu0
    %v2107 = vpop.f32.mrf.mxu0
    %v2108 = vadd.f32 %v2052, %v2107
    %v2109 = vpop.f32.mrf.mxu0
    %2110 = vmatprep.mubr.bf16.mxu0 0
    %2111 = vmatmul.mubr.bf16.gmra.mxu0 %v671
    %v2112 = vpop.f32.mrf.mxu0
    %v2113 = vadd.f32 %v2052, %v2112
    %v2114 = vpop.f32.mrf.mxu0
    %v2115 = vpop.f32.mrf.mxu0
    %v2116 = vadd.f32 %v2052, %v2115
    %v2117 = vpop.f32.mrf.mxu0
    %2118 = vmatprep.mubr.bf16.mxu0 0
    %2119 = vmatmul.mubr.bf16.gmra.mxu0 %v674
    %v2120 = vpop.f32.mrf.mxu0
    %v2121 = vadd.f32 %v2052, %v2120
    %v2122 = vpop.f32.mrf.mxu0
    %v2123 = vpop.f32.mrf.mxu0
    %v2124 = vadd.f32 %v2052, %v2123
    %v2125 = vpop.f32.mrf.mxu0
    %2126 = vmatprep.mubr.bf16.mxu0 0
    %2127 = vmatmul.mubr.bf16.gmra.mxu0 %v677
    %v2128 = vpop.f32.mrf.mxu0
    %v2129 = vadd.f32 %v2052, %v2128
    %v2130 = vpop.f32.mrf.mxu0
    %v2131 = vpop.f32.mrf.mxu0
    %v2132 = vadd.f32 %v2052, %v2131
    %v2133 = vpop.f32.mrf.mxu0
    %2134 = vmatprep.mubr.bf16.mxu0 0
    %2135 = vmatmul.mubr.bf16.gmra.mxu0 %v680
    %v2136 = vpop.f32.mrf.mxu0
    %v2137 = vadd.f32 %v2052, %v2136
    %v2138 = vpop.f32.mrf.mxu0
    %v2139 = vpop.f32.mrf.mxu0
    %v2140 = vadd.f32 %v2052, %v2139
    %v2141 = vpop.f32.mrf.mxu0
    %2142 = vmatprep.mubr.bf16.mxu0 0
    %2143 = vmatmul.mubr.bf16.gmra.mxu0 %v683
    %v2144 = vpop.f32.mrf.mxu0
    %v2145 = vadd.f32 %v2052, %v2144
    %v2146 = vpop.f32.mrf.mxu0
    %v2147 = vpop.f32.mrf.mxu0
    %v2148 = vadd.f32 %v2052, %v2147
    %v2149 = vpop.f32.mrf.mxu0
    %2150 = vdwg.mxu0
    %2151 = vrot.lane.b32.xlu0 %v657, 48
    %v2152 = vpop.permute.xlu0 %2151
    %2153 = vrot.lane.b32.xlu0 %v658, 48
    %v2154 = vpop.permute.xlu0 %2153
    %2157 = vrot.lane.b32.xlu0 %v647, 48
    %v2158 = vpop.permute.xlu0 %2157
    %2160 = vmatprep.subr.bf16.mxu0 0
    %2161 = vmatpush1.bf16.msra.mxu0 0
    %2162 = vmatprep.subr.bf16.mxu0 0
    %2163 = vmatpush1.bf16.msra.mxu0 0
    %2164 = vmatprep.subr.bf16.mxu0 0
    %2165 = vmatpush1.bf16.msra.mxu0 0
    %2166 = vmatprep.subr.bf16.mxu0 0
    %2167 = vmatpush1.bf16.msra.mxu0 0
    %2168 = vmatprep.subr.bf16.mxu0 0
    %2169 = vmatpush1.bf16.msra.mxu0 0
    %2170 = vmatprep.subr.bf16.mxu0 0
    %2171 = vmatpush1.bf16.msra.mxu0 0
    %2172 = vmatprep.subr.bf16.mxu0 0
    %2173 = vmatpush1.bf16.msra.mxu0 %v2154
    %2174 = vmatprep.subr.bf16.mxu0 0
    %2175 = vmatpush1.bf16.msra.mxu0 %v2152
    %2176 = vmatprep.subr.bf16.mxu0 0
    %2177 = vmatpush2.bf16.msra.mxu0 0
    %2178 = vmatprep.subr.bf16.mxu0 0
    %2179 = vmatpush2.bf16.msra.mxu0 0
    %2180 = vmatprep.subr.bf16.mxu0 0
    %2181 = vmatpush2.bf16.msra.mxu0 0
    %2182 = vmatprep.subr.bf16.mxu0 0
    %2183 = vmatpush2.bf16.msra.mxu0 0
    %2184 = vmatprep.subr.bf16.mxu0 0
    %2185 = vmatpush2.bf16.msra.mxu0 0
    %2186 = vmatprep.subr.bf16.mxu0 0
    %2187 = vmatpush2.bf16.msra.mxu0 0
    %2188 = vmatprep.subr.bf16.mxu0 0
    %2189 = vmatpush2.bf16.msra.mxu0 0
    %2190 = vmatprep.subr.bf16.mxu0 0
    %2191 = vmatpush2.bf16.msra.mxu0 0
    %2192 = vmatprep.mubr.bf16.mxu0 0
    %2193 = vmatmul.mubr.bf16.gmra.mxu0 %v662
    %v2194 = vpop.f32.mrf.mxu0
    %v2195 = vadd.f32 %v2158, %v2194
    %v2196 = vpop.f32.mrf.mxu0
    %v2197 = vpop.f32.mrf.mxu0
    %v2198 = vadd.f32 %v2158, %v2197
    %v2199 = vpop.f32.mrf.mxu0
    %2200 = vmatprep.mubr.bf16.mxu0 0
    %2201 = vmatmul.mubr.bf16.gmra.mxu0 %v665
    %v2202 = vpop.f32.mrf.mxu0
    %v2203 = vadd.f32 %v2158, %v2202
    %v2204 = vpop.f32.mrf.mxu0
    %v2205 = vpop.f32.mrf.mxu0
    %v2206 = vadd.f32 %v2158, %v2205
    %v2207 = vpop.f32.mrf.mxu0
    %2208 = vmatprep.mubr.bf16.mxu0 0
    %2209 = vmatmul.mubr.bf16.gmra.mxu0 %v668
    %v2210 = vpop.f32.mrf.mxu0
    %v2211 = vadd.f32 %v2158, %v2210
    %v2212 = vpop.f32.mrf.mxu0
    %v2213 = vpop.f32.mrf.mxu0
    %v2214 = vadd.f32 %v2158, %v2213
    %v2215 = vpop.f32.mrf.mxu0
    %2216 = vmatprep.mubr.bf16.mxu0 0
    %2217 = vmatmul.mubr.bf16.gmra.mxu0 %v671
    %v2218 = vpop.f32.mrf.mxu0
    %v2219 = vadd.f32 %v2158, %v2218
    %v2220 = vpop.f32.mrf.mxu0
    %v2221 = vpop.f32.mrf.mxu0
    %v2222 = vadd.f32 %v2158, %v2221
    %v2223 = vpop.f32.mrf.mxu0
    %2224 = vmatprep.mubr.bf16.mxu0 0
    %2225 = vmatmul.mubr.bf16.gmra.mxu0 %v674
    %v2226 = vpop.f32.mrf.mxu0
    %v2227 = vadd.f32 %v2158, %v2226
    %v2228 = vpop.f32.mrf.mxu0
    %v2229 = vpop.f32.mrf.mxu0
    %v2230 = vadd.f32 %v2158, %v2229
    %v2231 = vpop.f32.mrf.mxu0
    %2232 = vmatprep.mubr.bf16.mxu0 0
    %2233 = vmatmul.mubr.bf16.gmra.mxu0 %v677
    %v2234 = vpop.f32.mrf.mxu0
    %v2235 = vadd.f32 %v2158, %v2234
    %v2236 = vpop.f32.mrf.mxu0
    %v2237 = vpop.f32.mrf.mxu0
    %v2238 = vadd.f32 %v2158, %v2237
    %v2239 = vpop.f32.mrf.mxu0
    %2240 = vmatprep.mubr.bf16.mxu0 0
    %2241 = vmatmul.mubr.bf16.gmra.mxu0 %v680
    %v2242 = vpop.f32.mrf.mxu0
    %v2243 = vadd.f32 %v2158, %v2242
    %v2244 = vpop.f32.mrf.mxu0
    %v2245 = vpop.f32.mrf.mxu0
    %v2246 = vadd.f32 %v2158, %v2245
    %v2247 = vpop.f32.mrf.mxu0
    %2248 = vmatprep.mubr.bf16.mxu0 0
    %2249 = vmatmul.mubr.bf16.gmra.mxu0 %v683
    %v2250 = vpop.f32.mrf.mxu0
    %v2251 = vadd.f32 %v2158, %v2250
    %v2252 = vpop.f32.mrf.mxu0
    %v2253 = vpop.f32.mrf.mxu0
    %v2254 = vadd.f32 %v2158, %v2253
    %v2255 = vpop.f32.mrf.mxu0
    %2256 = vdwg.mxu0
    %v2257 = vpack.c.bf16 %v1986, %v1983
    %v2258 = vpack.c.bf16 %v1994, %v1991
    %v2259 = vpack.c.bf16 %v2002, %v1999
    %v2260 = vpack.c.bf16 %v2010, %v2007
    %v2261 = vpack.c.bf16 %v2018, %v2015
    %v2262 = vpack.c.bf16 %v2026, %v2023
    %v2263 = vpack.c.bf16 %v2034, %v2031
    %v2264 = vpack.c.bf16 %v2042, %v2039
    %v2265 = vpack.c.bf16 %v2092, %v2089
    %v2266 = vpack.c.bf16 %v2100, %v2097
    %v2267 = vpack.c.bf16 %v2108, %v2105
    %v2268 = vpack.c.bf16 %v2116, %v2113
    %v2269 = vpack.c.bf16 %v2124, %v2121
    %v2270 = vpack.c.bf16 %v2132, %v2129
    %v2271 = vpack.c.bf16 %v2140, %v2137
    %v2272 = vpack.c.bf16 %v2148, %v2145
    %v2274 = vsel %vm1010, %v2257, 0
    %v2277 = vsel %vm1010, %v2265, 0
    %2279 = vmatprep.subr.bf16.mxu0 0
    %2280 = vmatpush1.bf16.xpose.msra.mxu0 0
    %2281 = vmatprep.subr.bf16.mxu0 0
    %2282 = vmatpush1.bf16.xpose.msra.mxu0 0
    %2283 = vmatprep.subr.bf16.mxu0 0
    %2284 = vmatpush1.bf16.xpose.msra.mxu0 0
    %2285 = vmatprep.subr.bf16.mxu0 0
    %2286 = vmatpush1.bf16.xpose.msra.mxu0 0
    %2287 = vmatprep.subr.bf16.mxu0 0
    %2288 = vmatpush1.bf16.xpose.msra.mxu0 0
    %2289 = vmatprep.subr.bf16.mxu0 0
    %2290 = vmatpush1.bf16.xpose.msra.mxu0 0
    %2291 = vmatprep.subr.bf16.mxu0 0
    %2292 = vmatpush1.bf16.xpose.msra.mxu0 0
    %2293 = vmatprep.subr.bf16.mxu0 0
    %2294 = vmatpush1.bf16.xpose.msra.mxu0 %v2277
    %2295 = vmatprep.subr.bf16.mxu0 0
    %2296 = vmatpush2.bf16.xpose.msra.mxu0 0
    %2297 = vmatprep.subr.bf16.mxu0 0
    %2298 = vmatpush2.bf16.xpose.msra.mxu0 0
    %2299 = vmatprep.subr.bf16.mxu0 0
    %2300 = vmatpush2.bf16.xpose.msra.mxu0 0
    %2301 = vmatprep.subr.bf16.mxu0 0
    %2302 = vmatpush2.bf16.xpose.msra.mxu0 0
    %2303 = vmatprep.subr.bf16.mxu0 0
    %2304 = vmatpush2.bf16.xpose.msra.mxu0 0
    %2305 = vmatprep.subr.bf16.mxu0 0
    %2306 = vmatpush2.bf16.xpose.msra.mxu0 0
    %2307 = vmatprep.subr.bf16.mxu0 0
    %2308 = vmatpush2.bf16.xpose.msra.mxu0 0
    %2309 = vmatprep.subr.bf16.mxu0 0
    %2310 = vmatpush2.bf16.xpose.msra.mxu0 0
    %2311 = vmatprep.mubr.bf16.mxu0 0
    %2312 = vmatmul.mubr.bf16.gmra.mxu0 %v2274
    %v2313 = vpop.f32.mrf.mxu0
    %v2314 = vadd.f32 %v321, %v2313
    %v2315 = vpop.f32.mrf.mxu0
    %v2316 = vpop.f32.mrf.mxu0
    %v2317 = vadd.f32 %v322, %v2316
    %v2318 = vpop.f32.mrf.mxu0
    %2319 = vdwg.mxu0
    %v2321 = vsel %vm1010, %v2258, 0
    %v2324 = vsel %vm1010, %v2266, 0
    %2326 = vmatprep.subr.bf16.mxu0 0
    %2327 = vmatpush1.bf16.xpose.msra.mxu0 0
    %2328 = vmatprep.subr.bf16.mxu0 0
    %2329 = vmatpush1.bf16.xpose.msra.mxu0 0
    %2330 = vmatprep.subr.bf16.mxu0 0
    %2331 = vmatpush1.bf16.xpose.msra.mxu0 0
    %2332 = vmatprep.subr.bf16.mxu0 0
    %2333 = vmatpush1.bf16.xpose.msra.mxu0 0
    %2334 = vmatprep.subr.bf16.mxu0 0
    %2335 = vmatpush1.bf16.xpose.msra.mxu0 0
    %2336 = vmatprep.subr.bf16.mxu0 0
    %2337 = vmatpush1.bf16.xpose.msra.mxu0 0
    %2338 = vmatprep.subr.bf16.mxu0 0
    %2339 = vmatpush1.bf16.xpose.msra.mxu0 0
    %2340 = vmatprep.subr.bf16.mxu0 0
    %2341 = vmatpush1.bf16.xpose.msra.mxu0 %v2324
    %2342 = vmatprep.subr.bf16.mxu0 0
    %2343 = vmatpush2.bf16.xpose.msra.mxu0 0
    %2344 = vmatprep.subr.bf16.mxu0 0
    %2345 = vmatpush2.bf16.xpose.msra.mxu0 0
    %2346 = vmatprep.subr.bf16.mxu0 0
    %2347 = vmatpush2.bf16.xpose.msra.mxu0 0
    %2348 = vmatprep.subr.bf16.mxu0 0
    %2349 = vmatpush2.bf16.xpose.msra.mxu0 0
    %2350 = vmatprep.subr.bf16.mxu0 0
    %2351 = vmatpush2.bf16.xpose.msra.mxu0 0
    %2352 = vmatprep.subr.bf16.mxu0 0
    %2353 = vmatpush2.bf16.xpose.msra.mxu0 0
    %2354 = vmatprep.subr.bf16.mxu0 0
    %2355 = vmatpush2.bf16.xpose.msra.mxu0 0
    %2356 = vmatprep.subr.bf16.mxu0 0
    %2357 = vmatpush2.bf16.xpose.msra.mxu0 0
    %2358 = vmatprep.mubr.bf16.mxu0 0
    %2359 = vmatmul.mubr.bf16.gmra.mxu0 %v2321
    %v2360 = vpop.f32.mrf.mxu0
    %v2361 = vadd.f32 %v323, %v2360
    %v2362 = vpop.f32.mrf.mxu0
    %v2363 = vpop.f32.mrf.mxu0
    %v2364 = vadd.f32 %v324, %v2363
    %v2365 = vpop.f32.mrf.mxu0
    %2366 = vdwg.mxu0
    %v2368 = vsel %vm1010, %v2259, 0
    %v2371 = vsel %vm1010, %v2267, 0
    %2373 = vmatprep.subr.bf16.mxu0 0
    %2374 = vmatpush1.bf16.xpose.msra.mxu0 0
    %2375 = vmatprep.subr.bf16.mxu0 0
    %2376 = vmatpush1.bf16.xpose.msra.mxu0 0
    %2377 = vmatprep.subr.bf16.mxu0 0
    %2378 = vmatpush1.bf16.xpose.msra.mxu0 0
    %2379 = vmatprep.subr.bf16.mxu0 0
    %2380 = vmatpush1.bf16.xpose.msra.mxu0 0
    %2381 = vmatprep.subr.bf16.mxu0 0
    %2382 = vmatpush1.bf16.xpose.msra.mxu0 0
    %2383 = vmatprep.subr.bf16.mxu0 0
    %2384 = vmatpush1.bf16.xpose.msra.mxu0 0
    %2385 = vmatprep.subr.bf16.mxu0 0
    %2386 = vmatpush1.bf16.xpose.msra.mxu0 0
    %2387 = vmatprep.subr.bf16.mxu0 0
    %2388 = vmatpush1.bf16.xpose.msra.mxu0 %v2371
    %2389 = vmatprep.subr.bf16.mxu0 0
    %2390 = vmatpush2.bf16.xpose.msra.mxu0 0
    %2391 = vmatprep.subr.bf16.mxu0 0
    %2392 = vmatpush2.bf16.xpose.msra.mxu0 0
    %2393 = vmatprep.subr.bf16.mxu0 0
    %2394 = vmatpush2.bf16.xpose.msra.mxu0 0
    %2395 = vmatprep.subr.bf16.mxu0 0
    %2396 = vmatpush2.bf16.xpose.msra.mxu0 0
    %2397 = vmatprep.subr.bf16.mxu0 0
    %2398 = vmatpush2.bf16.xpose.msra.mxu0 0
    %2399 = vmatprep.subr.bf16.mxu0 0
    %2400 = vmatpush2.bf16.xpose.msra.mxu0 0
    %2401 = vmatprep.subr.bf16.mxu0 0
    %2402 = vmatpush2.bf16.xpose.msra.mxu0 0
    %2403 = vmatprep.subr.bf16.mxu0 0
    %2404 = vmatpush2.bf16.xpose.msra.mxu0 0
    %2405 = vmatprep.mubr.bf16.mxu0 0
    %2406 = vmatmul.mubr.bf16.gmra.mxu0 %v2368
    %v2407 = vpop.f32.mrf.mxu0
    %v2408 = vadd.f32 %v325, %v2407
    %v2409 = vpop.f32.mrf.mxu0
    %v2410 = vpop.f32.mrf.mxu0
    %v2411 = vadd.f32 %v326, %v2410
    %v2412 = vpop.f32.mrf.mxu0
    %2413 = vdwg.mxu0
    %v2415 = vsel %vm1010, %v2260, 0
    %v2418 = vsel %vm1010, %v2268, 0
    %2420 = vmatprep.subr.bf16.mxu0 0
    %2421 = vmatpush1.bf16.xpose.msra.mxu0 0
    %2422 = vmatprep.subr.bf16.mxu0 0
    %2423 = vmatpush1.bf16.xpose.msra.mxu0 0
    %2424 = vmatprep.subr.bf16.mxu0 0
    %2425 = vmatpush1.bf16.xpose.msra.mxu0 0
    %2426 = vmatprep.subr.bf16.mxu0 0
    %2427 = vmatpush1.bf16.xpose.msra.mxu0 0
    %2428 = vmatprep.subr.bf16.mxu0 0
    %2429 = vmatpush1.bf16.xpose.msra.mxu0 0
    %2430 = vmatprep.subr.bf16.mxu0 0
    %2431 = vmatpush1.bf16.xpose.msra.mxu0 0
    %2432 = vmatprep.subr.bf16.mxu0 0
    %2433 = vmatpush1.bf16.xpose.msra.mxu0 0
    %2434 = vmatprep.subr.bf16.mxu0 0
    %2435 = vmatpush1.bf16.xpose.msra.mxu0 %v2418
    %2436 = vmatprep.subr.bf16.mxu0 0
    %2437 = vmatpush2.bf16.xpose.msra.mxu0 0
    %2438 = vmatprep.subr.bf16.mxu0 0
    %2439 = vmatpush2.bf16.xpose.msra.mxu0 0
    %2440 = vmatprep.subr.bf16.mxu0 0
    %2441 = vmatpush2.bf16.xpose.msra.mxu0 0
    %2442 = vmatprep.subr.bf16.mxu0 0
    %2443 = vmatpush2.bf16.xpose.msra.mxu0 0
    %2444 = vmatprep.subr.bf16.mxu0 0
    %2445 = vmatpush2.bf16.xpose.msra.mxu0 0
    %2446 = vmatprep.subr.bf16.mxu0 0
    %2447 = vmatpush2.bf16.xpose.msra.mxu0 0
    %2448 = vmatprep.subr.bf16.mxu0 0
    %2449 = vmatpush2.bf16.xpose.msra.mxu0 0
    %2450 = vmatprep.subr.bf16.mxu0 0
    %2451 = vmatpush2.bf16.xpose.msra.mxu0 0
    %2452 = vmatprep.mubr.bf16.mxu0 0
    %2453 = vmatmul.mubr.bf16.gmra.mxu0 %v2415
    %v2454 = vpop.f32.mrf.mxu0
    %v2455 = vadd.f32 %v327, %v2454
    %v2456 = vpop.f32.mrf.mxu0
    %v2457 = vpop.f32.mrf.mxu0
    %v2458 = vadd.f32 %v328, %v2457
    %v2459 = vpop.f32.mrf.mxu0
    %2460 = vdwg.mxu0
    %v2462 = vsel %vm1010, %v2261, 0
    %v2465 = vsel %vm1010, %v2269, 0
    %2467 = vmatprep.subr.bf16.mxu0 0
    %2468 = vmatpush1.bf16.xpose.msra.mxu0 0
    %2469 = vmatprep.subr.bf16.mxu0 0
    %2470 = vmatpush1.bf16.xpose.msra.mxu0 0
    %2471 = vmatprep.subr.bf16.mxu0 0
    %2472 = vmatpush1.bf16.xpose.msra.mxu0 0
    %2473 = vmatprep.subr.bf16.mxu0 0
    %2474 = vmatpush1.bf16.xpose.msra.mxu0 0
    %2475 = vmatprep.subr.bf16.mxu0 0
    %2476 = vmatpush1.bf16.xpose.msra.mxu0 0
    %2477 = vmatprep.subr.bf16.mxu0 0
    %2478 = vmatpush1.bf16.xpose.msra.mxu0 0
    %2479 = vmatprep.subr.bf16.mxu0 0
    %2480 = vmatpush1.bf16.xpose.msra.mxu0 0
    %2481 = vmatprep.subr.bf16.mxu0 0
    %2482 = vmatpush1.bf16.xpose.msra.mxu0 %v2465
    %2483 = vmatprep.subr.bf16.mxu0 0
    %2484 = vmatpush2.bf16.xpose.msra.mxu0 0
    %2485 = vmatprep.subr.bf16.mxu0 0
    %2486 = vmatpush2.bf16.xpose.msra.mxu0 0
    %2487 = vmatprep.subr.bf16.mxu0 0
    %2488 = vmatpush2.bf16.xpose.msra.mxu0 0
    %2489 = vmatprep.subr.bf16.mxu0 0
    %2490 = vmatpush2.bf16.xpose.msra.mxu0 0
    %2491 = vmatprep.subr.bf16.mxu0 0
    %2492 = vmatpush2.bf16.xpose.msra.mxu0 0
    %2493 = vmatprep.subr.bf16.mxu0 0
    %2494 = vmatpush2.bf16.xpose.msra.mxu0 0
    %2495 = vmatprep.subr.bf16.mxu0 0
    %2496 = vmatpush2.bf16.xpose.msra.mxu0 0
    %2497 = vmatprep.subr.bf16.mxu0 0
    %2498 = vmatpush2.bf16.xpose.msra.mxu0 0
    %2499 = vmatprep.mubr.bf16.mxu0 0
    %2500 = vmatmul.mubr.bf16.gmra.mxu0 %v2462
    %v2501 = vpop.f32.mrf.mxu0
    %v2502 = vadd.f32 %v329, %v2501
    %v2503 = vpop.f32.mrf.mxu0
    %v2504 = vpop.f32.mrf.mxu0
    %v2505 = vadd.f32 %v330, %v2504
    %v2506 = vpop.f32.mrf.mxu0
    %2507 = vdwg.mxu0
    %v2509 = vsel %vm1010, %v2262, 0
    %v2512 = vsel %vm1010, %v2270, 0
    %2514 = vmatprep.subr.bf16.mxu0 0
    %2515 = vmatpush1.bf16.xpose.msra.mxu0 0
    %2516 = vmatprep.subr.bf16.mxu0 0
    %2517 = vmatpush1.bf16.xpose.msra.mxu0 0
    %2518 = vmatprep.subr.bf16.mxu0 0
    %2519 = vmatpush1.bf16.xpose.msra.mxu0 0
    %2520 = vmatprep.subr.bf16.mxu0 0
    %2521 = vmatpush1.bf16.xpose.msra.mxu0 0
    %2522 = vmatprep.subr.bf16.mxu0 0
    %2523 = vmatpush1.bf16.xpose.msra.mxu0 0
    %2524 = vmatprep.subr.bf16.mxu0 0
    %2525 = vmatpush1.bf16.xpose.msra.mxu0 0
    %2526 = vmatprep.subr.bf16.mxu0 0
    %2527 = vmatpush1.bf16.xpose.msra.mxu0 0
    %2528 = vmatprep.subr.bf16.mxu0 0
    %2529 = vmatpush1.bf16.xpose.msra.mxu0 %v2512
    %2530 = vmatprep.subr.bf16.mxu0 0
    %2531 = vmatpush2.bf16.xpose.msra.mxu0 0
    %2532 = vmatprep.subr.bf16.mxu0 0
    %2533 = vmatpush2.bf16.xpose.msra.mxu0 0
    %2534 = vmatprep.subr.bf16.mxu0 0
    %2535 = vmatpush2.bf16.xpose.msra.mxu0 0
    %2536 = vmatprep.subr.bf16.mxu0 0
    %2537 = vmatpush2.bf16.xpose.msra.mxu0 0
    %2538 = vmatprep.subr.bf16.mxu0 0
    %2539 = vmatpush2.bf16.xpose.msra.mxu0 0
    %2540 = vmatprep.subr.bf16.mxu0 0
    %2541 = vmatpush2.bf16.xpose.msra.mxu0 0
    %2542 = vmatprep.subr.bf16.mxu0 0
    %2543 = vmatpush2.bf16.xpose.msra.mxu0 0
    %2544 = vmatprep.subr.bf16.mxu0 0
    %2545 = vmatpush2.bf16.xpose.msra.mxu0 0
    %2546 = vmatprep.mubr.bf16.mxu0 0
    %2547 = vmatmul.mubr.bf16.gmra.mxu0 %v2509
    %v2548 = vpop.f32.mrf.mxu0
    %v2549 = vadd.f32 %v331, %v2548
    %v2550 = vpop.f32.mrf.mxu0
    %v2551 = vpop.f32.mrf.mxu0
    %v2552 = vadd.f32 %v332, %v2551
    %v2553 = vpop.f32.mrf.mxu0
    %2554 = vdwg.mxu0
    %v2556 = vsel %vm1010, %v2263, 0
    %v2559 = vsel %vm1010, %v2271, 0
    %2561 = vmatprep.subr.bf16.mxu0 0
    %2562 = vmatpush1.bf16.xpose.msra.mxu0 0
    %2563 = vmatprep.subr.bf16.mxu0 0
    %2564 = vmatpush1.bf16.xpose.msra.mxu0 0
    %2565 = vmatprep.subr.bf16.mxu0 0
    %2566 = vmatpush1.bf16.xpose.msra.mxu0 0
    %2567 = vmatprep.subr.bf16.mxu0 0
    %2568 = vmatpush1.bf16.xpose.msra.mxu0 0
    %2569 = vmatprep.subr.bf16.mxu0 0
    %2570 = vmatpush1.bf16.xpose.msra.mxu0 0
    %2571 = vmatprep.subr.bf16.mxu0 0
    %2572 = vmatpush1.bf16.xpose.msra.mxu0 0
    %2573 = vmatprep.subr.bf16.mxu0 0
    %2574 = vmatpush1.bf16.xpose.msra.mxu0 0
    %2575 = vmatprep.subr.bf16.mxu0 0
    %2576 = vmatpush1.bf16.xpose.msra.mxu0 %v2559
    %2577 = vmatprep.subr.bf16.mxu0 0
    %2578 = vmatpush2.bf16.xpose.msra.mxu0 0
    %2579 = vmatprep.subr.bf16.mxu0 0
    %2580 = vmatpush2.bf16.xpose.msra.mxu0 0
    %2581 = vmatprep.subr.bf16.mxu0 0
    %2582 = vmatpush2.bf16.xpose.msra.mxu0 0
    %2583 = vmatprep.subr.bf16.mxu0 0
    %2584 = vmatpush2.bf16.xpose.msra.mxu0 0
    %2585 = vmatprep.subr.bf16.mxu0 0
    %2586 = vmatpush2.bf16.xpose.msra.mxu0 0
    %2587 = vmatprep.subr.bf16.mxu0 0
    %2588 = vmatpush2.bf16.xpose.msra.mxu0 0
    %2589 = vmatprep.subr.bf16.mxu0 0
    %2590 = vmatpush2.bf16.xpose.msra.mxu0 0
    %2591 = vmatprep.subr.bf16.mxu0 0
    %2592 = vmatpush2.bf16.xpose.msra.mxu0 0
    %2593 = vmatprep.mubr.bf16.mxu0 0
    %2594 = vmatmul.mubr.bf16.gmra.mxu0 %v2556
    %v2595 = vpop.f32.mrf.mxu0
    %v2596 = vadd.f32 %v333, %v2595
    %v2597 = vpop.f32.mrf.mxu0
    %v2598 = vpop.f32.mrf.mxu0
    %v2599 = vadd.f32 %v334, %v2598
    %v2600 = vpop.f32.mrf.mxu0
    %2601 = vdwg.mxu0
    %v2603 = vsel %vm1010, %v2264, 0
    %v2606 = vsel %vm1010, %v2272, 0
    %2608 = vmatprep.subr.bf16.mxu0 0
    %2609 = vmatpush1.bf16.xpose.msra.mxu0 0
    %2610 = vmatprep.subr.bf16.mxu0 0
    %2611 = vmatpush1.bf16.xpose.msra.mxu0 0
    %2612 = vmatprep.subr.bf16.mxu0 0
    %2613 = vmatpush1.bf16.xpose.msra.mxu0 0
    %2614 = vmatprep.subr.bf16.mxu0 0
    %2615 = vmatpush1.bf16.xpose.msra.mxu0 0
    %2616 = vmatprep.subr.bf16.mxu0 0
    %2617 = vmatpush1.bf16.xpose.msra.mxu0 0
    %2618 = vmatprep.subr.bf16.mxu0 0
    %2619 = vmatpush1.bf16.xpose.msra.mxu0 0
    %2620 = vmatprep.subr.bf16.mxu0 0
    %2621 = vmatpush1.bf16.xpose.msra.mxu0 0
    %2622 = vmatprep.subr.bf16.mxu0 0
    %2623 = vmatpush1.bf16.xpose.msra.mxu0 %v2606
    %2624 = vmatprep.subr.bf16.mxu0 0
    %2625 = vmatpush2.bf16.xpose.msra.mxu0 0
    %2626 = vmatprep.subr.bf16.mxu0 0
    %2627 = vmatpush2.bf16.xpose.msra.mxu0 0
    %2628 = vmatprep.subr.bf16.mxu0 0
    %2629 = vmatpush2.bf16.xpose.msra.mxu0 0
    %2630 = vmatprep.subr.bf16.mxu0 0
    %2631 = vmatpush2.bf16.xpose.msra.mxu0 0
    %2632 = vmatprep.subr.bf16.mxu0 0
    %2633 = vmatpush2.bf16.xpose.msra.mxu0 0
    %2634 = vmatprep.subr.bf16.mxu0 0
    %2635 = vmatpush2.bf16.xpose.msra.mxu0 0
    %2636 = vmatprep.subr.bf16.mxu0 0
    %2637 = vmatpush2.bf16.xpose.msra.mxu0 0
    %2638 = vmatprep.subr.bf16.mxu0 0
    %2639 = vmatpush2.bf16.xpose.msra.mxu0 0
    %2640 = vmatprep.mubr.bf16.mxu0 0
    %2641 = vmatmul.mubr.bf16.gmra.mxu0 %v2603
    %v2642 = vpop.f32.mrf.mxu0
    %v2643 = vadd.f32 %v335, %v2642
    %v2644 = vpop.f32.mrf.mxu0
    %v2645 = vpop.f32.mrf.mxu0
    %v2646 = vadd.f32 %v336, %v2645
    %v2647 = vpop.f32.mrf.mxu0
    %2648 = vdwg.mxu0
    %v2649 = vsel %vm1010, %v2314, -inf
    %2650 = vmax.xlane.f32.xlu0 %v2649
    %v2651 = vpop.xlane.xlu0 %2650
    %v2652 = vsel %vm1010, %v2317, -inf
    %2653 = vmax.xlane.f32.xlu0 %v2652
    %v2654 = vpop.xlane.xlu0 %2653
    %v2655 = vsel %vm1010, %v2361, -inf
    %2656 = vmax.xlane.f32.xlu0 %v2655
    %v2657 = vpop.xlane.xlu0 %2656
    %v2658 = vsel %vm1010, %v2364, -inf
    %2659 = vmax.xlane.f32.xlu0 %v2658
    %v2660 = vpop.xlane.xlu0 %2659
    %v2661 = vsel %vm1010, %v2408, -inf
    %2662 = vmax.xlane.f32.xlu0 %v2661
    %v2663 = vpop.xlane.xlu0 %2662
    %v2664 = vsel %vm1010, %v2411, -inf
    %2665 = vmax.xlane.f32.xlu0 %v2664
    %v2666 = vpop.xlane.xlu0 %2665
    %v2667 = vsel %vm1010, %v2455, -inf
    %2668 = vmax.xlane.f32.xlu0 %v2667
    %v2669 = vpop.xlane.xlu0 %2668
    %v2670 = vsel %vm1010, %v2458, -inf
    %2671 = vmax.xlane.f32.xlu0 %v2670
    %v2672 = vpop.xlane.xlu0 %2671
    %v2673 = vsel %vm1010, %v2502, -inf
    %2674 = vmax.xlane.f32.xlu0 %v2673
    %v2675 = vpop.xlane.xlu0 %2674
    %v2676 = vsel %vm1010, %v2505, -inf
    %2677 = vmax.xlane.f32.xlu0 %v2676
    %v2678 = vpop.xlane.xlu0 %2677
    %v2679 = vsel %vm1010, %v2549, -inf
    %2680 = vmax.xlane.f32.xlu0 %v2679
    %v2681 = vpop.xlane.xlu0 %2680
    %v2682 = vsel %vm1010, %v2552, -inf
    %2683 = vmax.xlane.f32.xlu0 %v2682
    %v2684 = vpop.xlane.xlu0 %2683
    %v2685 = vsel %vm1010, %v2596, -inf
    %2686 = vmax.xlane.f32.xlu0 %v2685
    %v2687 = vpop.xlane.xlu0 %2686
    %v2688 = vsel %vm1010, %v2599, -inf
    %2689 = vmax.xlane.f32.xlu0 %v2688
    %v2690 = vpop.xlane.xlu0 %2689
    %v2691 = vsel %vm1010, %v2643, -inf
    %2692 = vmax.xlane.f32.xlu0 %v2691
    %v2693 = vpop.xlane.xlu0 %2692
    %v2694 = vsel %vm1010, %v2646, -inf
    %2695 = vmax.xlane.f32.xlu0 %v2694
    %v2696 = vpop.xlane.xlu0 %2695
    %v2697 = vsub.f32 %v2314, %v2651
    %v2698 = vsub.f32 %v2317, %v2654
    %v2699 = vsub.f32 %v2361, %v2657
    %v2700 = vsub.f32 %v2364, %v2660
    %v2701 = vsub.f32 %v2408, %v2663
    %v2702 = vsub.f32 %v2411, %v2666
    %v2703 = vsub.f32 %v2455, %v2669
    %v2704 = vsub.f32 %v2458, %v2672
    %v2705 = vsub.f32 %v2502, %v2675
    %v2706 = vsub.f32 %v2505, %v2678
    %v2707 = vsub.f32 %v2549, %v2681
    %v2708 = vsub.f32 %v2552, %v2684
    %v2709 = vsub.f32 %v2596, %v2687
    %v2710 = vsub.f32 %v2599, %v2690
    %v2711 = vsub.f32 %v2643, %v2693
    %v2712 = vsub.f32 %v2646, %v2696
    %v2713 = vmul.f32 %v2697, 1.442695
    %v2714 = vpow.pop %v2713
    %v2715 = vmul.f32 %v2698, 1.442695
    %v2716 = vpow.pop %v2715
    %v2717 = vmul.f32 %v2699, 1.442695
    %v2718 = vpow.pop %v2717
    %v2719 = vmul.f32 %v2700, 1.442695
    %v2720 = vpow.pop %v2719
    %v2721 = vmul.f32 %v2701, 1.442695
    %v2722 = vpow.pop %v2721
    %v2723 = vmul.f32 %v2702, 1.442695
    %v2724 = vpow.pop %v2723
    %v2725 = vmul.f32 %v2703, 1.442695
    %v2726 = vpow.pop %v2725
    %v2727 = vmul.f32 %v2704, 1.442695
    %v2728 = vpow.pop %v2727
    %v2729 = vmul.f32 %v2705, 1.442695
    %v2730 = vpow.pop %v2729
    %v2731 = vmul.f32 %v2706, 1.442695
    %v2732 = vpow.pop %v2731
    %v2733 = vmul.f32 %v2707, 1.442695
    %v2734 = vpow.pop %v2733
    %v2735 = vmul.f32 %v2708, 1.442695
    %v2736 = vpow.pop %v2735
    %v2737 = vmul.f32 %v2709, 1.442695
    %v2738 = vpow.pop %v2737
    %v2739 = vmul.f32 %v2710, 1.442695
    %v2740 = vpow.pop %v2739
    %v2741 = vmul.f32 %v2711, 1.442695
    %v2742 = vpow.pop %v2741
    %v2743 = vmul.f32 %v2712, 1.442695
    %v2744 = vpow.pop %v2743
    %v2745 = vsel %vm1010, %v2714, 0.0
    %2746 = vadd.xlane.f32.xlu0 %v2745
    %v2747 = vpop.xlane.xlu0 %2746
    %v2748 = vsel %vm1010, %v2716, 0.0
    %2749 = vadd.xlane.f32.xlu0 %v2748
    %v2750 = vpop.xlane.xlu0 %2749
    %v2751 = vsel %vm1010, %v2718, 0.0
    %2752 = vadd.xlane.f32.xlu0 %v2751
    %v2753 = vpop.xlane.xlu0 %2752
    %v2754 = vsel %vm1010, %v2720, 0.0
    %2755 = vadd.xlane.f32.xlu0 %v2754
    %v2756 = vpop.xlane.xlu0 %2755
    %v2757 = vsel %vm1010, %v2722, 0.0
    %2758 = vadd.xlane.f32.xlu0 %v2757
    %v2759 = vpop.xlane.xlu0 %2758
    %v2760 = vsel %vm1010, %v2724, 0.0
    %2761 = vadd.xlane.f32.xlu0 %v2760
    %v2762 = vpop.xlane.xlu0 %2761
    %v2763 = vsel %vm1010, %v2726, 0.0
    %2764 = vadd.xlane.f32.xlu0 %v2763
    %v2765 = vpop.xlane.xlu0 %2764
    %v2766 = vsel %vm1010, %v2728, 0.0
    %2767 = vadd.xlane.f32.xlu0 %v2766
    %v2768 = vpop.xlane.xlu0 %2767
    %v2769 = vsel %vm1010, %v2730, 0.0
    %2770 = vadd.xlane.f32.xlu0 %v2769
    %v2771 = vpop.xlane.xlu0 %2770
    %v2772 = vsel %vm1010, %v2732, 0.0
    %2773 = vadd.xlane.f32.xlu0 %v2772
    %v2774 = vpop.xlane.xlu0 %2773
    %v2775 = vsel %vm1010, %v2734, 0.0
    %2776 = vadd.xlane.f32.xlu0 %v2775
    %v2777 = vpop.xlane.xlu0 %2776
    %v2778 = vsel %vm1010, %v2736, 0.0
    %2779 = vadd.xlane.f32.xlu0 %v2778
    %v2780 = vpop.xlane.xlu0 %2779
    %v2781 = vsel %vm1010, %v2738, 0.0
    %2782 = vadd.xlane.f32.xlu0 %v2781
    %v2783 = vpop.xlane.xlu0 %2782
    %v2784 = vsel %vm1010, %v2740, 0.0
    %2785 = vadd.xlane.f32.xlu0 %v2784
    %v2786 = vpop.xlane.xlu0 %2785
    %v2787 = vsel %vm1010, %v2742, 0.0
    %2788 = vadd.xlane.f32.xlu0 %v2787
    %v2789 = vpop.xlane.xlu0 %2788
    %v2790 = vsel %vm1010, %v2744, 0.0
    %2791 = vadd.xlane.f32.xlu0 %v2790
    %v2792 = vpop.xlane.xlu0 %2791
    %v2793 = vrcp.pop %v2747
    %v2794 = vrcp.pop %v2750
    %v2795 = vrcp.pop %v2753
    %v2796 = vrcp.pop %v2756
    %v2797 = vrcp.pop %v2759
    %v2798 = vrcp.pop %v2762
    %v2799 = vrcp.pop %v2765
    %v2800 = vrcp.pop %v2768
    %v2801 = vrcp.pop %v2771
    %v2802 = vrcp.pop %v2774
    %v2803 = vrcp.pop %v2777
    %v2804 = vrcp.pop %v2780
    %v2805 = vrcp.pop %v2783
    %v2806 = vrcp.pop %v2786
    %v2807 = vrcp.pop %v2789
    %v2808 = vrcp.pop %v2792
    %v2809 = vmul.f32 %v2714, %v2793
    %v2810 = vmul.f32 %v2716, %v2794
    %v2811 = vmul.f32 %v2718, %v2795
    %v2812 = vmul.f32 %v2720, %v2796
    %v2813 = vmul.f32 %v2722, %v2797
    %v2814 = vmul.f32 %v2724, %v2798
    %v2815 = vmul.f32 %v2726, %v2799
    %v2816 = vmul.f32 %v2728, %v2800
    %v2817 = vmul.f32 %v2730, %v2801
    %v2818 = vmul.f32 %v2732, %v2802
    %v2819 = vmul.f32 %v2734, %v2803
    %v2820 = vmul.f32 %v2736, %v2804
    %v2821 = vmul.f32 %v2738, %v2805
    %v2822 = vmul.f32 %v2740, %v2806
    %v2823 = vmul.f32 %v2742, %v2807
    %v2824 = vmul.f32 %v2744, %v2808
    %v2825 = vpack.c.bf16 %v2810, %v2809
    %v2826 = vpack.c.bf16 %v2812, %v2811
    %v2827 = vpack.c.bf16 %v2814, %v2813
    %v2828 = vpack.c.bf16 %v2816, %v2815
    %v2829 = vpack.c.bf16 %v2818, %v2817
    %v2830 = vpack.c.bf16 %v2820, %v2819
    %v2831 = vpack.c.bf16 %v2822, %v2821
    %v2832 = vpack.c.bf16 %v2824, %v2823
    %v2833 = vpack.c.bf16 %v2198, %v2195
    %v2834 = vpack.c.bf16 %v2206, %v2203
    %v2835 = vpack.c.bf16 %v2214, %v2211
    %v2836 = vpack.c.bf16 %v2222, %v2219
    %v2837 = vpack.c.bf16 %v2230, %v2227
    %v2838 = vpack.c.bf16 %v2238, %v2235
    %v2839 = vpack.c.bf16 %v2246, %v2243
    %v2840 = vpack.c.bf16 %v2254, %v2251
    %v2842 = vsel %vm1010, %v2825, 0
    %2844 = vmatprep.subr.bf16.mxu0 0
    %2845 = vmatpush1.bf16.msra.mxu0 0
    %2846 = vmatprep.subr.bf16.mxu0 0
    %2847 = vmatpush1.bf16.msra.mxu0 0
    %2848 = vmatprep.subr.bf16.mxu0 0
    %2849 = vmatpush1.bf16.msra.mxu0 0
    %2850 = vmatprep.subr.bf16.mxu0 0
    %2851 = vmatpush1.bf16.msra.mxu0 0
    %2852 = vmatprep.subr.bf16.mxu0 0
    %2853 = vmatpush1.bf16.msra.mxu0 0
    %2854 = vmatprep.subr.bf16.mxu0 0
    %2855 = vmatpush1.bf16.msra.mxu0 0
    %2856 = vmatprep.subr.bf16.mxu0 0
    %2857 = vmatpush1.bf16.msra.mxu0 0
    %2858 = vmatprep.subr.bf16.mxu0 0
    %2859 = vmatpush1.bf16.msra.mxu0 %v2833
    %2860 = vmatprep.subr.bf16.mxu0 0
    %2861 = vmatpush2.bf16.msra.mxu0 0
    %2862 = vmatprep.subr.bf16.mxu0 0
    %2863 = vmatpush2.bf16.msra.mxu0 0
    %2864 = vmatprep.subr.bf16.mxu0 0
    %2865 = vmatpush2.bf16.msra.mxu0 0
    %2866 = vmatprep.subr.bf16.mxu0 0
    %2867 = vmatpush2.bf16.msra.mxu0 0
    %2868 = vmatprep.subr.bf16.mxu0 0
    %2869 = vmatpush2.bf16.msra.mxu0 0
    %2870 = vmatprep.subr.bf16.mxu0 0
    %2871 = vmatpush2.bf16.msra.mxu0 0
    %2872 = vmatprep.subr.bf16.mxu0 0
    %2873 = vmatpush2.bf16.msra.mxu0 0
    %2874 = vmatprep.subr.bf16.mxu0 0
    %2875 = vmatpush2.bf16.msra.mxu0 0
    %2876 = vmatprep.mubr.bf16.mxu0 0
    %2877 = vmatmul.mubr.bf16.gmra.mxu0 %v2842
    %v2878 = vpop.f32.mrf.mxu0
    %v2879 = vadd.f32 0.0, %v2878
    %v2880 = vpop.f32.mrf.mxu0
    %v2881 = vpop.f32.mrf.mxu0
    %v2882 = vadd.f32 0.0, %v2881
    %v2883 = vpop.f32.mrf.mxu0
    %2884 = vdwg.mxu0
    %v2886 = vsel %vm1010, %v2826, 0
    %2888 = vmatprep.subr.bf16.mxu0 0
    %2889 = vmatpush1.bf16.msra.mxu0 0
    %2890 = vmatprep.subr.bf16.mxu0 0
    %2891 = vmatpush1.bf16.msra.mxu0 0
    %2892 = vmatprep.subr.bf16.mxu0 0
    %2893 = vmatpush1.bf16.msra.mxu0 0
    %2894 = vmatprep.subr.bf16.mxu0 0
    %2895 = vmatpush1.bf16.msra.mxu0 0
    %2896 = vmatprep.subr.bf16.mxu0 0
    %2897 = vmatpush1.bf16.msra.mxu0 0
    %2898 = vmatprep.subr.bf16.mxu0 0
    %2899 = vmatpush1.bf16.msra.mxu0 0
    %2900 = vmatprep.subr.bf16.mxu0 0
    %2901 = vmatpush1.bf16.msra.mxu0 0
    %2902 = vmatprep.subr.bf16.mxu0 0
    %2903 = vmatpush1.bf16.msra.mxu0 %v2834
    %2904 = vmatprep.subr.bf16.mxu0 0
    %2905 = vmatpush2.bf16.msra.mxu0 0
    %2906 = vmatprep.subr.bf16.mxu0 0
    %2907 = vmatpush2.bf16.msra.mxu0 0
    %2908 = vmatprep.subr.bf16.mxu0 0
    %2909 = vmatpush2.bf16.msra.mxu0 0
    %2910 = vmatprep.subr.bf16.mxu0 0
    %2911 = vmatpush2.bf16.msra.mxu0 0
    %2912 = vmatprep.subr.bf16.mxu0 0
    %2913 = vmatpush2.bf16.msra.mxu0 0
    %2914 = vmatprep.subr.bf16.mxu0 0
    %2915 = vmatpush2.bf16.msra.mxu0 0
    %2916 = vmatprep.subr.bf16.mxu0 0
    %2917 = vmatpush2.bf16.msra.mxu0 0
    %2918 = vmatprep.subr.bf16.mxu0 0
    %2919 = vmatpush2.bf16.msra.mxu0 0
    %2920 = vmatprep.mubr.bf16.mxu0 0
    %2921 = vmatmul.mubr.bf16.gmra.mxu0 %v2886
    %v2922 = vpop.f32.mrf.mxu0
    %v2923 = vadd.f32 0.0, %v2922
    %v2924 = vpop.f32.mrf.mxu0
    %v2925 = vpop.f32.mrf.mxu0
    %v2926 = vadd.f32 0.0, %v2925
    %v2927 = vpop.f32.mrf.mxu0
    %2928 = vdwg.mxu0
    %v2930 = vsel %vm1010, %v2827, 0
    %2932 = vmatprep.subr.bf16.mxu0 0
    %2933 = vmatpush1.bf16.msra.mxu0 0
    %2934 = vmatprep.subr.bf16.mxu0 0
    %2935 = vmatpush1.bf16.msra.mxu0 0
    %2936 = vmatprep.subr.bf16.mxu0 0
    %2937 = vmatpush1.bf16.msra.mxu0 0
    %2938 = vmatprep.subr.bf16.mxu0 0
    %2939 = vmatpush1.bf16.msra.mxu0 0
    %2940 = vmatprep.subr.bf16.mxu0 0
    %2941 = vmatpush1.bf16.msra.mxu0 0
    %2942 = vmatprep.subr.bf16.mxu0 0
    %2943 = vmatpush1.bf16.msra.mxu0 0
    %2944 = vmatprep.subr.bf16.mxu0 0
    %2945 = vmatpush1.bf16.msra.mxu0 0
    %2946 = vmatprep.subr.bf16.mxu0 0
    %2947 = vmatpush1.bf16.msra.mxu0 %v2835
    %2948 = vmatprep.subr.bf16.mxu0 0
    %2949 = vmatpush2.bf16.msra.mxu0 0
    %2950 = vmatprep.subr.bf16.mxu0 0
    %2951 = vmatpush2.bf16.msra.mxu0 0
    %2952 = vmatprep.subr.bf16.mxu0 0
    %2953 = vmatpush2.bf16.msra.mxu0 0
    %2954 = vmatprep.subr.bf16.mxu0 0
    %2955 = vmatpush2.bf16.msra.mxu0 0
    %2956 = vmatprep.subr.bf16.mxu0 0
    %2957 = vmatpush2.bf16.msra.mxu0 0
    %2958 = vmatprep.subr.bf16.mxu0 0
    %2959 = vmatpush2.bf16.msra.mxu0 0
    %2960 = vmatprep.subr.bf16.mxu0 0
    %2961 = vmatpush2.bf16.msra.mxu0 0
    %2962 = vmatprep.subr.bf16.mxu0 0
    %2963 = vmatpush2.bf16.msra.mxu0 0
    %2964 = vmatprep.mubr.bf16.mxu0 0
    %2965 = vmatmul.mubr.bf16.gmra.mxu0 %v2930
    %v2966 = vpop.f32.mrf.mxu0
    %v2967 = vadd.f32 0.0, %v2966
    %v2968 = vpop.f32.mrf.mxu0
    %v2969 = vpop.f32.mrf.mxu0
    %v2970 = vadd.f32 0.0, %v2969
    %v2971 = vpop.f32.mrf.mxu0
    %2972 = vdwg.mxu0
    %v2974 = vsel %vm1010, %v2828, 0
    %2976 = vmatprep.subr.bf16.mxu0 0
    %2977 = vmatpush1.bf16.msra.mxu0 0
    %2978 = vmatprep.subr.bf16.mxu0 0
    %2979 = vmatpush1.bf16.msra.mxu0 0
    %2980 = vmatprep.subr.bf16.mxu0 0
    %2981 = vmatpush1.bf16.msra.mxu0 0
    %2982 = vmatprep.subr.bf16.mxu0 0
    %2983 = vmatpush1.bf16.msra.mxu0 0
    %2984 = vmatprep.subr.bf16.mxu0 0
    %2985 = vmatpush1.bf16.msra.mxu0 0
    %2986 = vmatprep.subr.bf16.mxu0 0
    %2987 = vmatpush1.bf16.msra.mxu0 0
    %2988 = vmatprep.subr.bf16.mxu0 0
    %2989 = vmatpush1.bf16.msra.mxu0 0
    %2990 = vmatprep.subr.bf16.mxu0 0
    %2991 = vmatpush1.bf16.msra.mxu0 %v2836
    %2992 = vmatprep.subr.bf16.mxu0 0
    %2993 = vmatpush2.bf16.msra.mxu0 0
    %2994 = vmatprep.subr.bf16.mxu0 0
    %2995 = vmatpush2.bf16.msra.mxu0 0
    %2996 = vmatprep.subr.bf16.mxu0 0
    %2997 = vmatpush2.bf16.msra.mxu0 0
    %2998 = vmatprep.subr.bf16.mxu0 0
    %2999 = vmatpush2.bf16.msra.mxu0 0
    %3000 = vmatprep.subr.bf16.mxu0 0
    %3001 = vmatpush2.bf16.msra.mxu0 0
    %3002 = vmatprep.subr.bf16.mxu0 0
    %3003 = vmatpush2.bf16.msra.mxu0 0
    %3004 = vmatprep.subr.bf16.mxu0 0
    %3005 = vmatpush2.bf16.msra.mxu0 0
    %3006 = vmatprep.subr.bf16.mxu0 0
    %3007 = vmatpush2.bf16.msra.mxu0 0
    %3008 = vmatprep.mubr.bf16.mxu0 0
    %3009 = vmatmul.mubr.bf16.gmra.mxu0 %v2974
    %v3010 = vpop.f32.mrf.mxu0
    %v3011 = vadd.f32 0.0, %v3010
    %v3012 = vpop.f32.mrf.mxu0
    %v3013 = vpop.f32.mrf.mxu0
    %v3014 = vadd.f32 0.0, %v3013
    %v3015 = vpop.f32.mrf.mxu0
    %3016 = vdwg.mxu0
    %v3018 = vsel %vm1010, %v2829, 0
    %3020 = vmatprep.subr.bf16.mxu0 0
    %3021 = vmatpush1.bf16.msra.mxu0 0
    %3022 = vmatprep.subr.bf16.mxu0 0
    %3023 = vmatpush1.bf16.msra.mxu0 0
    %3024 = vmatprep.subr.bf16.mxu0 0
    %3025 = vmatpush1.bf16.msra.mxu0 0
    %3026 = vmatprep.subr.bf16.mxu0 0
    %3027 = vmatpush1.bf16.msra.mxu0 0
    %3028 = vmatprep.subr.bf16.mxu0 0
    %3029 = vmatpush1.bf16.msra.mxu0 0
    %3030 = vmatprep.subr.bf16.mxu0 0
    %3031 = vmatpush1.bf16.msra.mxu0 0
    %3032 = vmatprep.subr.bf16.mxu0 0
    %3033 = vmatpush1.bf16.msra.mxu0 0
    %3034 = vmatprep.subr.bf16.mxu0 0
    %3035 = vmatpush1.bf16.msra.mxu0 %v2837
    %3036 = vmatprep.subr.bf16.mxu0 0
    %3037 = vmatpush2.bf16.msra.mxu0 0
    %3038 = vmatprep.subr.bf16.mxu0 0
    %3039 = vmatpush2.bf16.msra.mxu0 0
    %3040 = vmatprep.subr.bf16.mxu0 0
    %3041 = vmatpush2.bf16.msra.mxu0 0
    %3042 = vmatprep.subr.bf16.mxu0 0
    %3043 = vmatpush2.bf16.msra.mxu0 0
    %3044 = vmatprep.subr.bf16.mxu0 0
    %3045 = vmatpush2.bf16.msra.mxu0 0
    %3046 = vmatprep.subr.bf16.mxu0 0
    %3047 = vmatpush2.bf16.msra.mxu0 0
    %3048 = vmatprep.subr.bf16.mxu0 0
    %3049 = vmatpush2.bf16.msra.mxu0 0
    %3050 = vmatprep.subr.bf16.mxu0 0
    %3051 = vmatpush2.bf16.msra.mxu0 0
    %3052 = vmatprep.mubr.bf16.mxu0 0
    %3053 = vmatmul.mubr.bf16.gmra.mxu0 %v3018
    %v3054 = vpop.f32.mrf.mxu0
    %v3055 = vadd.f32 0.0, %v3054
    %v3056 = vpop.f32.mrf.mxu0
    %v3057 = vpop.f32.mrf.mxu0
    %v3058 = vadd.f32 0.0, %v3057
    %v3059 = vpop.f32.mrf.mxu0
    %3060 = vdwg.mxu0
    %v3062 = vsel %vm1010, %v2830, 0
    %3064 = vmatprep.subr.bf16.mxu0 0
    %3065 = vmatpush1.bf16.msra.mxu0 0
    %3066 = vmatprep.subr.bf16.mxu0 0
    %3067 = vmatpush1.bf16.msra.mxu0 0
    %3068 = vmatprep.subr.bf16.mxu0 0
    %3069 = vmatpush1.bf16.msra.mxu0 0
    %3070 = vmatprep.subr.bf16.mxu0 0
    %3071 = vmatpush1.bf16.msra.mxu0 0
    %3072 = vmatprep.subr.bf16.mxu0 0
    %3073 = vmatpush1.bf16.msra.mxu0 0
    %3074 = vmatprep.subr.bf16.mxu0 0
    %3075 = vmatpush1.bf16.msra.mxu0 0
    %3076 = vmatprep.subr.bf16.mxu0 0
    %3077 = vmatpush1.bf16.msra.mxu0 0
    %3078 = vmatprep.subr.bf16.mxu0 0
    %3079 = vmatpush1.bf16.msra.mxu0 %v2838
    %3080 = vmatprep.subr.bf16.mxu0 0
    %3081 = vmatpush2.bf16.msra.mxu0 0
    %3082 = vmatprep.subr.bf16.mxu0 0
    %3083 = vmatpush2.bf16.msra.mxu0 0
    %3084 = vmatprep.subr.bf16.mxu0 0
    %3085 = vmatpush2.bf16.msra.mxu0 0
    %3086 = vmatprep.subr.bf16.mxu0 0
    %3087 = vmatpush2.bf16.msra.mxu0 0
    %3088 = vmatprep.subr.bf16.mxu0 0
    %3089 = vmatpush2.bf16.msra.mxu0 0
    %3090 = vmatprep.subr.bf16.mxu0 0
    %3091 = vmatpush2.bf16.msra.mxu0 0
    %3092 = vmatprep.subr.bf16.mxu0 0
    %3093 = vmatpush2.bf16.msra.mxu0 0
    %3094 = vmatprep.subr.bf16.mxu0 0
    %3095 = vmatpush2.bf16.msra.mxu0 0
    %3096 = vmatprep.mubr.bf16.mxu0 0
    %3097 = vmatmul.mubr.bf16.gmra.mxu0 %v3062
    %v3098 = vpop.f32.mrf.mxu0
    %v3099 = vadd.f32 0.0, %v3098
    %v3100 = vpop.f32.mrf.mxu0
    %v3101 = vpop.f32.mrf.mxu0
    %v3102 = vadd.f32 0.0, %v3101
    %v3103 = vpop.f32.mrf.mxu0
    %3104 = vdwg.mxu0
    %v3106 = vsel %vm1010, %v2831, 0
    %3108 = vmatprep.subr.bf16.mxu0 0
    %3109 = vmatpush1.bf16.msra.mxu0 0
    %3110 = vmatprep.subr.bf16.mxu0 0
    %3111 = vmatpush1.bf16.msra.mxu0 0
    %3112 = vmatprep.subr.bf16.mxu0 0
    %3113 = vmatpush1.bf16.msra.mxu0 0
    %3114 = vmatprep.subr.bf16.mxu0 0
    %3115 = vmatpush1.bf16.msra.mxu0 0
    %3116 = vmatprep.subr.bf16.mxu0 0
    %3117 = vmatpush1.bf16.msra.mxu0 0
    %3118 = vmatprep.subr.bf16.mxu0 0
    %3119 = vmatpush1.bf16.msra.mxu0 0
    %3120 = vmatprep.subr.bf16.mxu0 0
    %3121 = vmatpush1.bf16.msra.mxu0 0
    %3122 = vmatprep.subr.bf16.mxu0 0
    %3123 = vmatpush1.bf16.msra.mxu0 %v2839
    %3124 = vmatprep.subr.bf16.mxu0 0
    %3125 = vmatpush2.bf16.msra.mxu0 0
    %3126 = vmatprep.subr.bf16.mxu0 0
    %3127 = vmatpush2.bf16.msra.mxu0 0
    %3128 = vmatprep.subr.bf16.mxu0 0
    %3129 = vmatpush2.bf16.msra.mxu0 0
    %3130 = vmatprep.subr.bf16.mxu0 0
    %3131 = vmatpush2.bf16.msra.mxu0 0
    %3132 = vmatprep.subr.bf16.mxu0 0
    %3133 = vmatpush2.bf16.msra.mxu0 0
    %3134 = vmatprep.subr.bf16.mxu0 0
    %3135 = vmatpush2.bf16.msra.mxu0 0
    %3136 = vmatprep.subr.bf16.mxu0 0
    %3137 = vmatpush2.bf16.msra.mxu0 0
    %3138 = vmatprep.subr.bf16.mxu0 0
    %3139 = vmatpush2.bf16.msra.mxu0 0
    %3140 = vmatprep.mubr.bf16.mxu0 0
    %3141 = vmatmul.mubr.bf16.gmra.mxu0 %v3106
    %v3142 = vpop.f32.mrf.mxu0
    %v3143 = vadd.f32 0.0, %v3142
    %v3144 = vpop.f32.mrf.mxu0
    %v3145 = vpop.f32.mrf.mxu0
    %v3146 = vadd.f32 0.0, %v3145
    %v3147 = vpop.f32.mrf.mxu0
    %3148 = vdwg.mxu0
    %v3150 = vsel %vm1010, %v2832, 0
    %3152 = vmatprep.subr.bf16.mxu0 0
    %3153 = vmatpush1.bf16.msra.mxu0 0
    %3154 = vmatprep.subr.bf16.mxu0 0
    %3155 = vmatpush1.bf16.msra.mxu0 0
    %3156 = vmatprep.subr.bf16.mxu0 0
    %3157 = vmatpush1.bf16.msra.mxu0 0
    %3158 = vmatprep.subr.bf16.mxu0 0
    %3159 = vmatpush1.bf16.msra.mxu0 0
    %3160 = vmatprep.subr.bf16.mxu0 0
    %3161 = vmatpush1.bf16.msra.mxu0 0
    %3162 = vmatprep.subr.bf16.mxu0 0
    %3163 = vmatpush1.bf16.msra.mxu0 0
    %3164 = vmatprep.subr.bf16.mxu0 0
    %3165 = vmatpush1.bf16.msra.mxu0 0
    %3166 = vmatprep.subr.bf16.mxu0 0
    %3167 = vmatpush1.bf16.msra.mxu0 %v2840
    %3168 = vmatprep.subr.bf16.mxu0 0
    %3169 = vmatpush2.bf16.msra.mxu0 0
    %3170 = vmatprep.subr.bf16.mxu0 0
    %3171 = vmatpush2.bf16.msra.mxu0 0
    %3172 = vmatprep.subr.bf16.mxu0 0
    %3173 = vmatpush2.bf16.msra.mxu0 0
    %3174 = vmatprep.subr.bf16.mxu0 0
    %3175 = vmatpush2.bf16.msra.mxu0 0
    %3176 = vmatprep.subr.bf16.mxu0 0
    %3177 = vmatpush2.bf16.msra.mxu0 0
    %3178 = vmatprep.subr.bf16.mxu0 0
    %3179 = vmatpush2.bf16.msra.mxu0 0
    %3180 = vmatprep.subr.bf16.mxu0 0
    %3181 = vmatpush2.bf16.msra.mxu0 0
    %3182 = vmatprep.subr.bf16.mxu0 0
    %3183 = vmatpush2.bf16.msra.mxu0 0
    %3184 = vmatprep.mubr.bf16.mxu0 0
    %3185 = vmatmul.mubr.bf16.gmra.mxu0 %v3150
    %v3186 = vpop.f32.mrf.mxu0
    %v3187 = vadd.f32 0.0, %v3186
    %v3188 = vpop.f32.mrf.mxu0
    %v3189 = vpop.f32.mrf.mxu0
    %v3190 = vadd.f32 0.0, %v3189
    %v3191 = vpop.f32.mrf.mxu0
    %3192 = vdwg.mxu0
    %v3193 = vpack.c.bf16 %v2882, %v2879
    %v3194 = vpack.c.bf16 %v2926, %v2923
    %v3195 = vpack.c.bf16 %v2970, %v2967
    %v3196 = vpack.c.bf16 %v3014, %v3011
    %v3197 = vpack.c.bf16 %v3058, %v3055
    %v3198 = vpack.c.bf16 %v3102, %v3099
    %v3199 = vpack.c.bf16 %v3146, %v3143
    %v3200 = vpack.c.bf16 %v3190, %v3187
    %v3203 = vunpack.c.l.b16 %v633
    %v3204 = vunpack.c.l.b16 %v634
    %v3205 = vpack.c.b16 %v3204, %v3203
    %v3208 = vsel %vm1010, %v3193, 0
    %v3211 = vsel %vm1010, %v3194, 0
    %v3214 = vsel %vm1010, %v3195, 0
    %v3217 = vsel %vm1010, %v3196, 0
    %v3220 = vsel %vm1010, %v3197, 0
    %v3223 = vsel %vm1010, %v3198, 0
    %v3226 = vsel %vm1010, %v3199, 0
    %v3229 = vsel %vm1010, %v3200, 0
    %3231 = vmatprep.subr.bf16.mxu0 0
    %3232 = vmatpush1.bf16.msra.mxu0 0
    %3233 = vmatprep.subr.bf16.mxu0 0
    %3234 = vmatpush1.bf16.msra.mxu0 0
    %3235 = vmatprep.subr.bf16.mxu0 0
    %3236 = vmatpush1.bf16.msra.mxu0 0
    %3237 = vmatprep.subr.bf16.mxu0 0
    %3238 = vmatpush1.bf16.msra.mxu0 0
    %3239 = vmatprep.subr.bf16.mxu0 0
    %3240 = vmatpush1.bf16.msra.mxu0 0
    %3241 = vmatprep.subr.bf16.mxu0 0
    %3242 = vmatpush1.bf16.msra.mxu0 0
    %3243 = vmatprep.subr.bf16.mxu0 0
    %3244 = vmatpush1.bf16.msra.mxu0 0
    %3245 = vmatprep.subr.bf16.mxu0 0
    %3246 = vmatpush1.bf16.msra.mxu0 %v3205
    %3247 = vmatprep.subr.bf16.mxu0 0
    %3248 = vmatpush2.bf16.msra.mxu0 0
    %3249 = vmatprep.subr.bf16.mxu0 0
    %3250 = vmatpush2.bf16.msra.mxu0 0
    %3251 = vmatprep.subr.bf16.mxu0 0
    %3252 = vmatpush2.bf16.msra.mxu0 0
    %3253 = vmatprep.subr.bf16.mxu0 0
    %3254 = vmatpush2.bf16.msra.mxu0 0
    %3255 = vmatprep.subr.bf16.mxu0 0
    %3256 = vmatpush2.bf16.msra.mxu0 0
    %3257 = vmatprep.subr.bf16.mxu0 0
    %3258 = vmatpush2.bf16.msra.mxu0 0
    %3259 = vmatprep.subr.bf16.mxu0 0
    %3260 = vmatpush2.bf16.msra.mxu0 0
    %3261 = vmatprep.subr.bf16.mxu0 0
    %3262 = vmatpush2.bf16.msra.mxu0 0
    %3263 = vmatprep.mubr.bf16.mxu0 0
    %3264 = vmatmul.mubr.bf16.gmra.mxu0 %v3208
    %v3265 = vpop.f32.mrf.mxu0
    %v3266 = vadd.f32 0.0, %v3265
    %v3267 = vpop.f32.mrf.mxu0
    %v3268 = vpop.f32.mrf.mxu0
    %v3269 = vadd.f32 0.0, %v3268
    %v3270 = vpop.f32.mrf.mxu0
    %3271 = vmatprep.mubr.bf16.mxu0 0
    %3272 = vmatmul.mubr.bf16.gmra.mxu0 %v3211
    %v3273 = vpop.f32.mrf.mxu0
    %v3274 = vadd.f32 0.0, %v3273
    %v3275 = vpop.f32.mrf.mxu0
    %v3276 = vpop.f32.mrf.mxu0
    %v3277 = vadd.f32 0.0, %v3276
    %v3278 = vpop.f32.mrf.mxu0
    %3279 = vmatprep.mubr.bf16.mxu0 0
    %3280 = vmatmul.mubr.bf16.gmra.mxu0 %v3214
    %v3281 = vpop.f32.mrf.mxu0
    %v3282 = vadd.f32 0.0, %v3281
    %v3283 = vpop.f32.mrf.mxu0
    %v3284 = vpop.f32.mrf.mxu0
    %v3285 = vadd.f32 0.0, %v3284
    %v3286 = vpop.f32.mrf.mxu0
    %3287 = vmatprep.mubr.bf16.mxu0 0
    %3288 = vmatmul.mubr.bf16.gmra.mxu0 %v3217
    %v3289 = vpop.f32.mrf.mxu0
    %v3290 = vadd.f32 0.0, %v3289
    %v3291 = vpop.f32.mrf.mxu0
    %v3292 = vpop.f32.mrf.mxu0
    %v3293 = vadd.f32 0.0, %v3292
    %v3294 = vpop.f32.mrf.mxu0
    %3295 = vmatprep.mubr.bf16.mxu0 0
    %3296 = vmatmul.mubr.bf16.gmra.mxu0 %v3220
    %v3297 = vpop.f32.mrf.mxu0
    %v3298 = vadd.f32 0.0, %v3297
    %v3299 = vpop.f32.mrf.mxu0
    %v3300 = vpop.f32.mrf.mxu0
    %v3301 = vadd.f32 0.0, %v3300
    %v3302 = vpop.f32.mrf.mxu0
    %3303 = vmatprep.mubr.bf16.mxu0 0
    %3304 = vmatmul.mubr.bf16.gmra.mxu0 %v3223
    %v3305 = vpop.f32.mrf.mxu0
    %v3306 = vadd.f32 0.0, %v3305
    %v3307 = vpop.f32.mrf.mxu0
    %v3308 = vpop.f32.mrf.mxu0
    %v3309 = vadd.f32 0.0, %v3308
    %v3310 = vpop.f32.mrf.mxu0
    %3311 = vmatprep.mubr.bf16.mxu0 0
    %3312 = vmatmul.mubr.bf16.gmra.mxu0 %v3226
    %v3313 = vpop.f32.mrf.mxu0
    %v3314 = vadd.f32 0.0, %v3313
    %v3315 = vpop.f32.mrf.mxu0
    %v3316 = vpop.f32.mrf.mxu0
    %v3317 = vadd.f32 0.0, %v3316
    %v3318 = vpop.f32.mrf.mxu0
    %3319 = vmatprep.mubr.bf16.mxu0 0
    %3320 = vmatmul.mubr.bf16.gmra.mxu0 %v3229
    %v3321 = vpop.f32.mrf.mxu0
    %v3322 = vadd.f32 0.0, %v3321
    %v3323 = vpop.f32.mrf.mxu0
    %v3324 = vpop.f32.mrf.mxu0
    %v3325 = vadd.f32 0.0, %v3324
    %v3326 = vpop.f32.mrf.mxu0
    %3327 = vdwg.mxu0
    %v3330 = vunpack.c.l.b16 %v631
    %v3331 = vunpack.c.l.b16 %v632
    %v3332 = vpack.c.b16 %v3331, %v3330
    %v3335 = vsel %vm1010, %v1931, 0
    %v3338 = vsel %vm1010, %v1932, 0
    %v3341 = vsel %vm1010, %v1933, 0
    %v3344 = vsel %vm1010, %v1934, 0
    %v3347 = vsel %vm1010, %v1935, 0
    %v3350 = vsel %vm1010, %v1936, 0
    %v3353 = vsel %vm1010, %v1937, 0
    %v3356 = vsel %vm1010, %v1938, 0
    %3358 = vmatprep.subr.bf16.mxu0 0
    %3359 = vmatpush1.bf16.msra.mxu0 0
    %3360 = vmatprep.subr.bf16.mxu0 0
    %3361 = vmatpush1.bf16.msra.mxu0 0
    %3362 = vmatprep.subr.bf16.mxu0 0
    %3363 = vmatpush1.bf16.msra.mxu0 0
    %3364 = vmatprep.subr.bf16.mxu0 0
    %3365 = vmatpush1.bf16.msra.mxu0 0
    %3366 = vmatprep.subr.bf16.mxu0 0
    %3367 = vmatpush1.bf16.msra.mxu0 0
    %3368 = vmatprep.subr.bf16.mxu0 0
    %3369 = vmatpush1.bf16.msra.mxu0 0
    %3370 = vmatprep.subr.bf16.mxu0 0
    %3371 = vmatpush1.bf16.msra.mxu0 0
    %3372 = vmatprep.subr.bf16.mxu0 0
    %3373 = vmatpush1.bf16.msra.mxu0 %v3332
    %3374 = vmatprep.subr.bf16.mxu0 0
    %3375 = vmatpush2.bf16.msra.mxu0 0
    %3376 = vmatprep.subr.bf16.mxu0 0
    %3377 = vmatpush2.bf16.msra.mxu0 0
    %3378 = vmatprep.subr.bf16.mxu0 0
    %3379 = vmatpush2.bf16.msra.mxu0 0
    %3380 = vmatprep.subr.bf16.mxu0 0
    %3381 = vmatpush2.bf16.msra.mxu0 0
    %3382 = vmatprep.subr.bf16.mxu0 0
    %3383 = vmatpush2.bf16.msra.mxu0 0
    %3384 = vmatprep.subr.bf16.mxu0 0
    %3385 = vmatpush2.bf16.msra.mxu0 0
    %3386 = vmatprep.subr.bf16.mxu0 0
    %3387 = vmatpush2.bf16.msra.mxu0 0
    %3388 = vmatprep.subr.bf16.mxu0 0
    %3389 = vmatpush2.bf16.msra.mxu0 0
    %3390 = vmatprep.mubr.bf16.mxu0 0
    %3391 = vmatmul.mubr.bf16.gmra.mxu0 %v3335
    %v3392 = vpop.f32.mrf.mxu0
    %v3393 = vadd.f32 %v3266, %v3392
    %v3394 = vpop.f32.mrf.mxu0
    %v3395 = vpop.f32.mrf.mxu0
    %v3396 = vadd.f32 %v3269, %v3395
    %v3397 = vpop.f32.mrf.mxu0
    %3398 = vmatprep.mubr.bf16.mxu0 0
    %3399 = vmatmul.mubr.bf16.gmra.mxu0 %v3338
    %v3400 = vpop.f32.mrf.mxu0
    %v3401 = vadd.f32 %v3274, %v3400
    %v3402 = vpop.f32.mrf.mxu0
    %v3403 = vpop.f32.mrf.mxu0
    %v3404 = vadd.f32 %v3277, %v3403
    %v3405 = vpop.f32.mrf.mxu0
    %3406 = vmatprep.mubr.bf16.mxu0 0
    %3407 = vmatmul.mubr.bf16.gmra.mxu0 %v3341
    %v3408 = vpop.f32.mrf.mxu0
    %v3409 = vadd.f32 %v3282, %v3408
    %v3410 = vpop.f32.mrf.mxu0
    %v3411 = vpop.f32.mrf.mxu0
    %v3412 = vadd.f32 %v3285, %v3411
    %v3413 = vpop.f32.mrf.mxu0
    %3414 = vmatprep.mubr.bf16.mxu0 0
    %3415 = vmatmul.mubr.bf16.gmra.mxu0 %v3344
    %v3416 = vpop.f32.mrf.mxu0
    %v3417 = vadd.f32 %v3290, %v3416
    %v3418 = vpop.f32.mrf.mxu0
    %v3419 = vpop.f32.mrf.mxu0
    %v3420 = vadd.f32 %v3293, %v3419
    %v3421 = vpop.f32.mrf.mxu0
    %3422 = vmatprep.mubr.bf16.mxu0 0
    %3423 = vmatmul.mubr.bf16.gmra.mxu0 %v3347
    %v3424 = vpop.f32.mrf.mxu0
    %v3425 = vadd.f32 %v3298, %v3424
    %v3426 = vpop.f32.mrf.mxu0
    %v3427 = vpop.f32.mrf.mxu0
    %v3428 = vadd.f32 %v3301, %v3427
    %v3429 = vpop.f32.mrf.mxu0
    %3430 = vmatprep.mubr.bf16.mxu0 0
    %3431 = vmatmul.mubr.bf16.gmra.mxu0 %v3350
    %v3432 = vpop.f32.mrf.mxu0
    %v3433 = vadd.f32 %v3306, %v3432
    %v3434 = vpop.f32.mrf.mxu0
    %v3435 = vpop.f32.mrf.mxu0
    %v3436 = vadd.f32 %v3309, %v3435
    %v3437 = vpop.f32.mrf.mxu0
    %3438 = vmatprep.mubr.bf16.mxu0 0
    %3439 = vmatmul.mubr.bf16.gmra.mxu0 %v3353
    %v3440 = vpop.f32.mrf.mxu0
    %v3441 = vadd.f32 %v3314, %v3440
    %v3442 = vpop.f32.mrf.mxu0
    %v3443 = vpop.f32.mrf.mxu0
    %v3444 = vadd.f32 %v3317, %v3443
    %v3445 = vpop.f32.mrf.mxu0
    %3446 = vmatprep.mubr.bf16.mxu0 0
    %3447 = vmatmul.mubr.bf16.gmra.mxu0 %v3356
    %v3448 = vpop.f32.mrf.mxu0
    %v3449 = vadd.f32 %v3322, %v3448
    %v3450 = vpop.f32.mrf.mxu0
    %v3451 = vpop.f32.mrf.mxu0
    %v3452 = vadd.f32 %v3325, %v3451
    %v3453 = vpop.f32.mrf.mxu0
    %3454 = vdwg.mxu0
    %v3455 = vld [vmem:[%s6] sm:$0x1]
    %v3457 = vlaneseq
    %v3458 = vshrl.u32 %v3457, 7
    %v3459 = vsub.s32 0, %v3458
    %v3460 = vrot.slane %v3455, %v3459
    %v3462 = vadd.f32 %v3393, %v3460
    %v3463 = vadd.f32 %v3396, %v3460
    %v3464 = vadd.f32 %v3401, %v3460
    %v3465 = vadd.f32 %v3404, %v3460
    %v3466 = vadd.f32 %v3409, %v3460
    %v3467 = vadd.f32 %v3412, %v3460
    %v3468 = vadd.f32 %v3417, %v3460
    %v3469 = vadd.f32 %v3420, %v3460
    %v3470 = vadd.f32 %v3425, %v3460
    %v3471 = vadd.f32 %v3428, %v3460
    %v3472 = vadd.f32 %v3433, %v3460
    %v3473 = vadd.f32 %v3436, %v3460
    %v3474 = vadd.f32 %v3441, %v3460
    %v3475 = vadd.f32 %v3444, %v3460
    %v3476 = vadd.f32 %v3449, %v3460
    %v3477 = vadd.f32 %v3452, %v3460
    %v3478 = vadd.f32 %v3462, %v610
    %v3479 = vadd.f32 %v3463, %v611
    %v3480 = vadd.f32 %v3464, %v612
    %v3481 = vadd.f32 %v3465, %v613
    %v3482 = vadd.f32 %v3466, %v614
    %v3483 = vadd.f32 %v3467, %v615
    %v3484 = vadd.f32 %v3468, %v616
    %v3485 = vadd.f32 %v3469, %v617
    %v3486 = vadd.f32 %v3470, %v618
    %v3487 = vadd.f32 %v3471, %v619
    %v3488 = vadd.f32 %v3472, %v620
    %v3489 = vadd.f32 %v3473, %v621
    %v3490 = vadd.f32 %v3474, %v622
    %v3491 = vadd.f32 %v3475, %v623
    %v3492 = vadd.f32 %v3476, %v624
    %v3493 = vadd.f32 %v3477, %v625
    %v3494 = vld [vmem:[%s7] sm:$0x1]
    %s3495 = scalar_lea.vmem %s7, 1
    %v3496 = vld [vmem:[%s3495] sm:$0x1]
    %v3497 = vsel %vm372, %v3478, 0.0
    %3498 = vadd.xlane.f32.xlu0 %v3497
    %v3499 = vpop.xlane.xlu0 %3498
    %v3500 = vsel %vm372, %v3479, 0.0
    %3501 = vadd.xlane.f32.xlu0 %v3500
    %v3502 = vpop.xlane.xlu0 %3501
    %v3503 = vsel %vm372, %v3480, 0.0
    %3504 = vadd.xlane.f32.xlu0 %v3503
    %v3505 = vpop.xlane.xlu0 %3504
    %v3506 = vsel %vm372, %v3481, 0.0
    %3507 = vadd.xlane.f32.xlu0 %v3506
    %v3508 = vpop.xlane.xlu0 %3507
    %v3509 = vsel %vm372, %v3482, 0.0
    %3510 = vadd.xlane.f32.xlu0 %v3509
    %v3511 = vpop.xlane.xlu0 %3510
    %v3512 = vsel %vm372, %v3483, 0.0
    %3513 = vadd.xlane.f32.xlu0 %v3512
    %v3514 = vpop.xlane.xlu0 %3513
    %v3515 = vsel %vm372, %v3484, 0.0
    %3516 = vadd.xlane.f32.xlu0 %v3515
    %v3517 = vpop.xlane.xlu0 %3516
    %v3518 = vsel %vm372, %v3485, 0.0
    %3519 = vadd.xlane.f32.xlu0 %v3518
    %v3520 = vpop.xlane.xlu0 %3519
    %v3521 = vsel %vm372, %v3486, 0.0
    %3522 = vadd.xlane.f32.xlu0 %v3521
    %v3523 = vpop.xlane.xlu0 %3522
    %v3524 = vsel %vm372, %v3487, 0.0
    %3525 = vadd.xlane.f32.xlu0 %v3524
    %v3526 = vpop.xlane.xlu0 %3525
    %v3527 = vsel %vm372, %v3488, 0.0
    %3528 = vadd.xlane.f32.xlu0 %v3527
    %v3529 = vpop.xlane.xlu0 %3528
    %v3530 = vsel %vm372, %v3489, 0.0
    %3531 = vadd.xlane.f32.xlu0 %v3530
    %v3532 = vpop.xlane.xlu0 %3531
    %v3533 = vsel %vm372, %v3490, 0.0
    %3534 = vadd.xlane.f32.xlu0 %v3533
    %v3535 = vpop.xlane.xlu0 %3534
    %v3536 = vsel %vm372, %v3491, 0.0
    %3537 = vadd.xlane.f32.xlu0 %v3536
    %v3538 = vpop.xlane.xlu0 %3537
    %v3539 = vsel %vm372, %v3492, 0.0
    %3540 = vadd.xlane.f32.xlu0 %v3539
    %v3541 = vpop.xlane.xlu0 %3540
    %v3542 = vsel %vm372, %v3493, 0.0
    %3543 = vadd.xlane.f32.xlu0 %v3542
    %v3544 = vpop.xlane.xlu0 %3543
    %v3545 = vmul.f32 %v3499, %v421
    %v3546 = vmul.f32 %v3502, %v421
    %v3547 = vmul.f32 %v3505, %v421
    %v3548 = vmul.f32 %v3508, %v421
    %v3549 = vmul.f32 %v3511, %v421
    %v3550 = vmul.f32 %v3514, %v421
    %v3551 = vmul.f32 %v3517, %v421
    %v3552 = vmul.f32 %v3520, %v421
    %v3553 = vmul.f32 %v3523, %v421
    %v3554 = vmul.f32 %v3526, %v421
    %v3555 = vmul.f32 %v3529, %v421
    %v3556 = vmul.f32 %v3532, %v421
    %v3557 = vmul.f32 %v3535, %v421
    %v3558 = vmul.f32 %v3538, %v421
    %v3559 = vmul.f32 %v3541, %v421
    %v3560 = vmul.f32 %v3544, %v421
    %v3561 = vsub.f32 %v3478, %v3545
    %v3562 = vsub.f32 %v3479, %v3546
    %v3563 = vsub.f32 %v3480, %v3547
    %v3564 = vsub.f32 %v3481, %v3548
    %v3565 = vsub.f32 %v3482, %v3549
    %v3566 = vsub.f32 %v3483, %v3550
    %v3567 = vsub.f32 %v3484, %v3551
    %v3568 = vsub.f32 %v3485, %v3552
    %v3569 = vsub.f32 %v3486, %v3553
    %v3570 = vsub.f32 %v3487, %v3554
    %v3571 = vsub.f32 %v3488, %v3555
    %v3572 = vsub.f32 %v3489, %v3556
    %v3573 = vsub.f32 %v3490, %v3557
    %v3574 = vsub.f32 %v3491, %v3558
    %v3575 = vsub.f32 %v3492, %v3559
    %v3576 = vsub.f32 %v3493, %v3560
    %v3577 = vmul.f32 %v3561, %v3561
    %v3578 = vmul.f32 %v3562, %v3562
    %v3579 = vmul.f32 %v3563, %v3563
    %v3580 = vmul.f32 %v3564, %v3564
    %v3581 = vmul.f32 %v3565, %v3565
    %v3582 = vmul.f32 %v3566, %v3566
    %v3583 = vmul.f32 %v3567, %v3567
    %v3584 = vmul.f32 %v3568, %v3568
    %v3585 = vmul.f32 %v3569, %v3569
    %v3586 = vmul.f32 %v3570, %v3570
    %v3587 = vmul.f32 %v3571, %v3571
    %v3588 = vmul.f32 %v3572, %v3572
    %v3589 = vmul.f32 %v3573, %v3573
    %v3590 = vmul.f32 %v3574, %v3574
    %v3591 = vmul.f32 %v3575, %v3575
    %v3592 = vmul.f32 %v3576, %v3576
    %v3593 = vsel %vm372, %v3577, 0.0
    %3594 = vadd.xlane.f32.xlu0 %v3593
    %v3595 = vpop.xlane.xlu0 %3594
    %v3596 = vsel %vm372, %v3578, 0.0
    %3597 = vadd.xlane.f32.xlu0 %v3596
    %v3598 = vpop.xlane.xlu0 %3597
    %v3599 = vsel %vm372, %v3579, 0.0
    %3600 = vadd.xlane.f32.xlu0 %v3599
    %v3601 = vpop.xlane.xlu0 %3600
    %v3602 = vsel %vm372, %v3580, 0.0
    %3603 = vadd.xlane.f32.xlu0 %v3602
    %v3604 = vpop.xlane.xlu0 %3603
    %v3605 = vsel %vm372, %v3581, 0.0
    %3606 = vadd.xlane.f32.xlu0 %v3605
    %v3607 = vpop.xlane.xlu0 %3606
    %v3608 = vsel %vm372, %v3582, 0.0
    %3609 = vadd.xlane.f32.xlu0 %v3608
    %v3610 = vpop.xlane.xlu0 %3609
    %v3611 = vsel %vm372, %v3583, 0.0
    %3612 = vadd.xlane.f32.xlu0 %v3611
    %v3613 = vpop.xlane.xlu0 %3612
    %v3614 = vsel %vm372, %v3584, 0.0
    %3615 = vadd.xlane.f32.xlu0 %v3614
    %v3616 = vpop.xlane.xlu0 %3615
    %v3617 = vsel %vm372, %v3585, 0.0
    %3618 = vadd.xlane.f32.xlu0 %v3617
    %v3619 = vpop.xlane.xlu0 %3618
    %v3620 = vsel %vm372, %v3586, 0.0
    %3621 = vadd.xlane.f32.xlu0 %v3620
    %v3622 = vpop.xlane.xlu0 %3621
    %v3623 = vsel %vm372, %v3587, 0.0
    %3624 = vadd.xlane.f32.xlu0 %v3623
    %v3625 = vpop.xlane.xlu0 %3624
    %v3626 = vsel %vm372, %v3588, 0.0
    %3627 = vadd.xlane.f32.xlu0 %v3626
    %v3628 = vpop.xlane.xlu0 %3627
    %v3629 = vsel %vm372, %v3589, 0.0
    %3630 = vadd.xlane.f32.xlu0 %v3629
    %v3631 = vpop.xlane.xlu0 %3630
    %v3632 = vsel %vm372, %v3590, 0.0
    %3633 = vadd.xlane.f32.xlu0 %v3632
    %v3634 = vpop.xlane.xlu0 %3633
    %v3635 = vsel %vm372, %v3591, 0.0
    %3636 = vadd.xlane.f32.xlu0 %v3635
    %v3637 = vpop.xlane.xlu0 %3636
    %v3638 = vsel %vm372, %v3592, 0.0
    %3639 = vadd.xlane.f32.xlu0 %v3638
    %v3640 = vpop.xlane.xlu0 %3639
    %v3641 = vmul.f32 %v3595, %v421
    %v3642 = vmul.f32 %v3598, %v421
    %v3643 = vmul.f32 %v3601, %v421
    %v3644 = vmul.f32 %v3604, %v421
    %v3645 = vmul.f32 %v3607, %v421
    %v3646 = vmul.f32 %v3610, %v421
    %v3647 = vmul.f32 %v3613, %v421
    %v3648 = vmul.f32 %v3616, %v421
    %v3649 = vmul.f32 %v3619, %v421
    %v3650 = vmul.f32 %v3622, %v421
    %v3651 = vmul.f32 %v3625, %v421
    %v3652 = vmul.f32 %v3628, %v421
    %v3653 = vmul.f32 %v3631, %v421
    %v3654 = vmul.f32 %v3634, %v421
    %v3655 = vmul.f32 %v3637, %v421
    %v3656 = vmul.f32 %v3640, %v421
    %v3657 = vadd.f32 %v3641, 1e-12
    %v3658 = vadd.f32 %v3642, 1e-12
    %v3659 = vadd.f32 %v3643, 1e-12
    %v3660 = vadd.f32 %v3644, 1e-12
    %v3661 = vadd.f32 %v3645, 1e-12
    %v3662 = vadd.f32 %v3646, 1e-12
    %v3663 = vadd.f32 %v3647, 1e-12
    %v3664 = vadd.f32 %v3648, 1e-12
    %v3665 = vadd.f32 %v3649, 1e-12
    %v3666 = vadd.f32 %v3650, 1e-12
    %v3667 = vadd.f32 %v3651, 1e-12
    %v3668 = vadd.f32 %v3652, 1e-12
    %v3669 = vadd.f32 %v3653, 1e-12
    %v3670 = vadd.f32 %v3654, 1e-12
    %v3671 = vadd.f32 %v3655, 1e-12
    %v3672 = vadd.f32 %v3656, 1e-12
    %v3673 = vrsqrt.pop %v3657
    %v3674 = vrsqrt.pop %v3658
    %v3675 = vrsqrt.pop %v3659
    %v3676 = vrsqrt.pop %v3660
    %v3677 = vrsqrt.pop %v3661
    %v3678 = vrsqrt.pop %v3662
    %v3679 = vrsqrt.pop %v3663
    %v3680 = vrsqrt.pop %v3664
    %v3681 = vrsqrt.pop %v3665
    %v3682 = vrsqrt.pop %v3666
    %v3683 = vrsqrt.pop %v3667
    %v3684 = vrsqrt.pop %v3668
    %v3685 = vrsqrt.pop %v3669
    %v3686 = vrsqrt.pop %v3670
    %v3687 = vrsqrt.pop %v3671
    %v3688 = vrsqrt.pop %v3672
    %v3689 = vmul.f32 %v3561, %v3673
    %v3690 = vmul.f32 %v3562, %v3674
    %v3691 = vmul.f32 %v3563, %v3675
    %v3692 = vmul.f32 %v3564, %v3676
    %v3693 = vmul.f32 %v3565, %v3677
    %v3694 = vmul.f32 %v3566, %v3678
    %v3695 = vmul.f32 %v3567, %v3679
    %v3696 = vmul.f32 %v3568, %v3680
    %v3697 = vmul.f32 %v3569, %v3681
    %v3698 = vmul.f32 %v3570, %v3682
    %v3699 = vmul.f32 %v3571, %v3683
    %v3700 = vmul.f32 %v3572, %v3684
    %v3701 = vmul.f32 %v3573, %v3685
    %v3702 = vmul.f32 %v3574, %v3686
    %v3703 = vmul.f32 %v3575, %v3687
    %v3704 = vmul.f32 %v3576, %v3688
    %v3706 = vlaneseq
    %v3707 = vshrl.u32 %v3706, 7
    %v3708 = vsub.s32 0, %v3707
    %v3709 = vrot.slane %v3494, %v3708
    %v3711 = vmul.f32 %v3689, %v3709
    %v3712 = vmul.f32 %v3690, %v3709
    %v3713 = vmul.f32 %v3691, %v3709
    %v3714 = vmul.f32 %v3692, %v3709
    %v3715 = vmul.f32 %v3693, %v3709
    %v3716 = vmul.f32 %v3694, %v3709
    %v3717 = vmul.f32 %v3695, %v3709
    %v3718 = vmul.f32 %v3696, %v3709
    %v3719 = vmul.f32 %v3697, %v3709
    %v3720 = vmul.f32 %v3698, %v3709
    %v3721 = vmul.f32 %v3699, %v3709
    %v3722 = vmul.f32 %v3700, %v3709
    %v3723 = vmul.f32 %v3701, %v3709
    %v3724 = vmul.f32 %v3702, %v3709
    %v3725 = vmul.f32 %v3703, %v3709
    %v3726 = vmul.f32 %v3704, %v3709
    %v3728 = vlaneseq
    %v3729 = vshrl.u32 %v3728, 7
    %v3730 = vsub.s32 0, %v3729
    %v3731 = vrot.slane %v3496, %v3730
    %v3733 = vadd.f32 %v3711, %v3731
    %v3734 = vadd.f32 %v3712, %v3731
    %v3735 = vadd.f32 %v3713, %v3731
    %v3736 = vadd.f32 %v3714, %v3731
    %v3737 = vadd.f32 %v3715, %v3731
    %v3738 = vadd.f32 %v3716, %v3731
    %v3739 = vadd.f32 %v3717, %v3731
    %v3740 = vadd.f32 %v3718, %v3731
    %v3741 = vadd.f32 %v3719, %v3731
    %v3742 = vadd.f32 %v3720, %v3731
    %v3743 = vadd.f32 %v3721, %v3731
    %v3744 = vadd.f32 %v3722, %v3731
    %v3745 = vadd.f32 %v3723, %v3731
    %v3746 = vadd.f32 %v3724, %v3731
    %v3747 = vadd.f32 %v3725, %v3731
    %v3748 = vadd.f32 %v3726, %v3731
    %v3749 = vpack.c.bf16 %v3734, %v3733
    %v3750 = vpack.c.bf16 %v3736, %v3735
    %v3751 = vpack.c.bf16 %v3738, %v3737
    %v3752 = vpack.c.bf16 %v3740, %v3739
    %v3753 = vpack.c.bf16 %v3742, %v3741
    %v3754 = vpack.c.bf16 %v3744, %v3743
    %v3755 = vpack.c.bf16 %v3746, %v3745
    %v3756 = vpack.c.bf16 %v3748, %v3747
    %v3757 = vld [vmem:[#allocation11] sm:$0xf]
    %v3758 = vld [vmem:[#allocation11 + $0x4] sm:$0xf]
    %v3759 = vld [vmem:[#allocation11 + $0x8] sm:$0xf]
    %v3760 = vld [vmem:[#allocation11 + $0xc] sm:$0xf]
    %v3761 = vld [vmem:[%s9] sm:$0x1]
    %v3763 = vlaneseq
    %v3764 = vshrl.u32 %v3763, 7
    %v3765 = vsub.s32 0, %v3764
    %v3766 = vrot.slane %v3761, %v3765
    %v3772 = vunpack.c.l.b16 %v3757
    %v3773 = vunpack.c.l.b16 %v3758
    %v3774 = vunpack.c.l.b16 %v3759
    %v3775 = vunpack.c.l.b16 %v3760
    %v3776 = vpack.c.b16 %v3773, %v3772
    %v3777 = vpack.c.b16 %v3775, %v3774
    %v3781 = vsel %vm372, %v3749, 0
    %v3784 = vsel %vm372, %v3750, 0
    %v3787 = vsel %vm372, %v3751, 0
    %v3790 = vsel %vm372, %v3752, 0
    %v3793 = vsel %vm372, %v3753, 0
    %v3796 = vsel %vm372, %v3754, 0
    %v3799 = vsel %vm372, %v3755, 0
    %v3802 = vsel %vm372, %v3756, 0
    %3804 = vmatprep.subr.bf16.mxu0 0
    %3805 = vmatpush1.bf16.msra.mxu0 0
    %3806 = vmatprep.subr.bf16.mxu0 0
    %3807 = vmatpush1.bf16.msra.mxu0 0
    %3808 = vmatprep.subr.bf16.mxu0 0
    %3809 = vmatpush1.bf16.msra.mxu0 0
    %3810 = vmatprep.subr.bf16.mxu0 0
    %3811 = vmatpush1.bf16.msra.mxu0 0
    %3812 = vmatprep.subr.bf16.mxu0 0
    %3813 = vmatpush1.bf16.msra.mxu0 0
    %3814 = vmatprep.subr.bf16.mxu0 0
    %3815 = vmatpush1.bf16.msra.mxu0 0
    %3816 = vmatprep.subr.bf16.mxu0 0
    %3817 = vmatpush1.bf16.msra.mxu0 %v3777
    %3818 = vmatprep.subr.bf16.mxu0 0
    %3819 = vmatpush1.bf16.msra.mxu0 %v3776
    %3820 = vmatprep.subr.bf16.mxu0 0
    %3821 = vmatpush2.bf16.msra.mxu0 0
    %3822 = vmatprep.subr.bf16.mxu0 0
    %3823 = vmatpush2.bf16.msra.mxu0 0
    %3824 = vmatprep.subr.bf16.mxu0 0
    %3825 = vmatpush2.bf16.msra.mxu0 0
    %3826 = vmatprep.subr.bf16.mxu0 0
    %3827 = vmatpush2.bf16.msra.mxu0 0
    %3828 = vmatprep.subr.bf16.mxu0 0
    %3829 = vmatpush2.bf16.msra.mxu0 0
    %3830 = vmatprep.subr.bf16.mxu0 0
    %3831 = vmatpush2.bf16.msra.mxu0 0
    %3832 = vmatprep.subr.bf16.mxu0 0
    %3833 = vmatpush2.bf16.msra.mxu0 0
    %3834 = vmatprep.subr.bf16.mxu0 0
    %3835 = vmatpush2.bf16.msra.mxu0 0
    %3836 = vmatprep.mubr.bf16.mxu0 0
    %3837 = vmatmul.mubr.bf16.gmra.mxu0 %v3781
    %v3838 = vpop.f32.mrf.mxu0
    %v3839 = vadd.f32 %v3766, %v3838
    %v3840 = vpop.f32.mrf.mxu0
    %v3841 = vpop.f32.mrf.mxu0
    %v3842 = vadd.f32 %v3766, %v3841
    %v3843 = vpop.f32.mrf.mxu0
    %3844 = vmatprep.mubr.bf16.mxu0 0
    %3845 = vmatmul.mubr.bf16.gmra.mxu0 %v3784
    %v3846 = vpop.f32.mrf.mxu0
    %v3847 = vadd.f32 %v3766, %v3846
    %v3848 = vpop.f32.mrf.mxu0
    %v3849 = vpop.f32.mrf.mxu0
    %v3850 = vadd.f32 %v3766, %v3849
    %v3851 = vpop.f32.mrf.mxu0
    %3852 = vmatprep.mubr.bf16.mxu0 0
    %3853 = vmatmul.mubr.bf16.gmra.mxu0 %v3787
    %v3854 = vpop.f32.mrf.mxu0
    %v3855 = vadd.f32 %v3766, %v3854
    %v3856 = vpop.f32.mrf.mxu0
    %v3857 = vpop.f32.mrf.mxu0
    %v3858 = vadd.f32 %v3766, %v3857
    %v3859 = vpop.f32.mrf.mxu0
    %3860 = vmatprep.mubr.bf16.mxu0 0
    %3861 = vmatmul.mubr.bf16.gmra.mxu0 %v3790
    %v3862 = vpop.f32.mrf.mxu0
    %v3863 = vadd.f32 %v3766, %v3862
    %v3864 = vpop.f32.mrf.mxu0
    %v3865 = vpop.f32.mrf.mxu0
    %v3866 = vadd.f32 %v3766, %v3865
    %v3867 = vpop.f32.mrf.mxu0
    %3868 = vmatprep.mubr.bf16.mxu0 0
    %3869 = vmatmul.mubr.bf16.gmra.mxu0 %v3793
    %v3870 = vpop.f32.mrf.mxu0
    %v3871 = vadd.f32 %v3766, %v3870
    %v3872 = vpop.f32.mrf.mxu0
    %v3873 = vpop.f32.mrf.mxu0
    %v3874 = vadd.f32 %v3766, %v3873
    %v3875 = vpop.f32.mrf.mxu0
    %3876 = vmatprep.mubr.bf16.mxu0 0
    %3877 = vmatmul.mubr.bf16.gmra.mxu0 %v3796
    %v3878 = vpop.f32.mrf.mxu0
    %v3879 = vadd.f32 %v3766, %v3878
    %v3880 = vpop.f32.mrf.mxu0
    %v3881 = vpop.f32.mrf.mxu0
    %v3882 = vadd.f32 %v3766, %v3881
    %v3883 = vpop.f32.mrf.mxu0
    %3884 = vmatprep.mubr.bf16.mxu0 0
    %3885 = vmatmul.mubr.bf16.gmra.mxu0 %v3799
    %v3886 = vpop.f32.mrf.mxu0
    %v3887 = vadd.f32 %v3766, %v3886
    %v3888 = vpop.f32.mrf.mxu0
    %v3889 = vpop.f32.mrf.mxu0
    %v3890 = vadd.f32 %v3766, %v3889
    %v3891 = vpop.f32.mrf.mxu0
    %3892 = vmatprep.mubr.bf16.mxu0 0
    %3893 = vmatmul.mubr.bf16.gmra.mxu0 %v3802
    %v3894 = vpop.f32.mrf.mxu0
    %v3895 = vadd.f32 %v3766, %v3894
    %v3896 = vpop.f32.mrf.mxu0
    %v3897 = vpop.f32.mrf.mxu0
    %v3898 = vadd.f32 %v3766, %v3897
    %v3899 = vpop.f32.mrf.mxu0
    %3900 = vdwg.mxu0
    %v3901 = vmax.f32 %v3839, 0.0
    %v3902 = vmax.f32 %v3842, 0.0
    %v3903 = vmax.f32 %v3847, 0.0
    %v3904 = vmax.f32 %v3850, 0.0
    %v3905 = vmax.f32 %v3855, 0.0
    %v3906 = vmax.f32 %v3858, 0.0
    %v3907 = vmax.f32 %v3863, 0.0
    %v3908 = vmax.f32 %v3866, 0.0
    %v3909 = vmax.f32 %v3871, 0.0
    %v3910 = vmax.f32 %v3874, 0.0
    %v3911 = vmax.f32 %v3879, 0.0
    %v3912 = vmax.f32 %v3882, 0.0
    %v3913 = vmax.f32 %v3887, 0.0
    %v3914 = vmax.f32 %v3890, 0.0
    %v3915 = vmax.f32 %v3895, 0.0
    %v3916 = vmax.f32 %v3898, 0.0
    %v3917 = vpack.c.bf16 %v3902, %v3901
    %v3918 = vpack.c.bf16 %v3904, %v3903
    %v3919 = vpack.c.bf16 %v3906, %v3905
    %v3920 = vpack.c.bf16 %v3908, %v3907
    %v3921 = vpack.c.bf16 %v3910, %v3909
    %v3922 = vpack.c.bf16 %v3912, %v3911
    %v3923 = vpack.c.bf16 %v3914, %v3913
    %v3924 = vpack.c.bf16 %v3916, %v3915
    %v3925 = vld [vmem:[%s10] sm:$0xf]
    %v3926 = vld [vmem:[%s10 + $0x4] sm:$0xf]
    %v3927 = vld [vmem:[%s10 + $0x8] sm:$0xf]
    %v3928 = vld [vmem:[%s10 + $0xc] sm:$0xf]
    %v3929 = vld [vmem:[%s10 + $0x10] sm:$0xf]
    %v3930 = vld [vmem:[%s10 + $0x14] sm:$0xf]
    %v3931 = vld [vmem:[%s10 + $0x18] sm:$0xf]
    %v3932 = vld [vmem:[%s10 + $0x1c] sm:$0xf]
    %v3933 = vld [vmem:[%s11] sm:$0x1]
    %v3935 = vlaneseq
    %v3936 = vshrl.u32 %v3935, 7
    %v3937 = vsub.s32 0, %v3936
    %v3938 = vrot.slane %v3933, %v3937
    %v3948 = vunpack.c.l.b16 %v3925
    %v3949 = vunpack.c.l.b16 %v3926
    %v3950 = vunpack.c.l.b16 %v3927
    %v3951 = vunpack.c.l.b16 %v3928
    %v3952 = vunpack.c.l.b16 %v3929
    %v3953 = vunpack.c.l.b16 %v3930
    %v3954 = vunpack.c.l.b16 %v3931
    %v3955 = vunpack.c.l.b16 %v3932
    %v3956 = vpack.c.b16 %v3949, %v3948
    %v3957 = vpack.c.b16 %v3951, %v3950
    %v3958 = vpack.c.b16 %v3953, %v3952
    %v3959 = vpack.c.b16 %v3955, %v3954
    %vm3964 = vcmask 523264
    %v3966 = vsel %vm3964, %v3917, 0
    %v3969 = vsel %vm3964, %v3918, 0
    %v3972 = vsel %vm3964, %v3919, 0
    %v3975 = vsel %vm3964, %v3920, 0
    %v3978 = vsel %vm3964, %v3921, 0
    %v3981 = vsel %vm3964, %v3922, 0
    %v3984 = vsel %vm3964, %v3923, 0
    %v3987 = vsel %vm3964, %v3924, 0
    %3989 = vmatprep.subr.bf16.mxu0 0
    %3990 = vmatpush1.bf16.msra.mxu0 0
    %3991 = vmatprep.subr.bf16.mxu0 0
    %3992 = vmatpush1.bf16.msra.mxu0 0
    %3993 = vmatprep.subr.bf16.mxu0 0
    %3994 = vmatpush1.bf16.msra.mxu0 0
    %3995 = vmatprep.subr.bf16.mxu0 0
    %3996 = vmatpush1.bf16.msra.mxu0 0
    %3997 = vmatprep.subr.bf16.mxu0 0
    %3998 = vmatpush1.bf16.msra.mxu0 %v3959
    %3999 = vmatprep.subr.bf16.mxu0 0
    %4000 = vmatpush1.bf16.msra.mxu0 %v3958
    %4001 = vmatprep.subr.bf16.mxu0 0
    %4002 = vmatpush1.bf16.msra.mxu0 %v3957
    %4003 = vmatprep.subr.bf16.mxu0 0
    %4004 = vmatpush1.bf16.msra.mxu0 %v3956
    %4005 = vmatprep.subr.bf16.mxu0 0
    %4006 = vmatpush2.bf16.msra.mxu0 0
    %4007 = vmatprep.subr.bf16.mxu0 0
    %4008 = vmatpush2.bf16.msra.mxu0 0
    %4009 = vmatprep.subr.bf16.mxu0 0
    %4010 = vmatpush2.bf16.msra.mxu0 0
    %4011 = vmatprep.subr.bf16.mxu0 0
    %4012 = vmatpush2.bf16.msra.mxu0 0
    %4013 = vmatprep.subr.bf16.mxu0 0
    %4014 = vmatpush2.bf16.msra.mxu0 0
    %4015 = vmatprep.subr.bf16.mxu0 0
    %4016 = vmatpush2.bf16.msra.mxu0 0
    %4017 = vmatprep.subr.bf16.mxu0 0
    %4018 = vmatpush2.bf16.msra.mxu0 0
    %4019 = vmatprep.subr.bf16.mxu0 0
    %4020 = vmatpush2.bf16.msra.mxu0 0
    %4021 = vmatprep.mubr.bf16.mxu0 0
    %4022 = vmatmul.mubr.bf16.gmra.mxu0 %v3966
    %v4023 = vpop.f32.mrf.mxu0
    %v4024 = vadd.f32 %v3938, %v4023
    %v4025 = vpop.f32.mrf.mxu0
    %v4026 = vpop.f32.mrf.mxu0
    %v4027 = vadd.f32 %v3938, %v4026
    %v4028 = vpop.f32.mrf.mxu0
    %4029 = vmatprep.mubr.bf16.mxu0 0
    %4030 = vmatmul.mubr.bf16.gmra.mxu0 %v3969
    %v4031 = vpop.f32.mrf.mxu0
    %v4032 = vadd.f32 %v3938, %v4031
    %v4033 = vpop.f32.mrf.mxu0
    %v4034 = vpop.f32.mrf.mxu0
    %v4035 = vadd.f32 %v3938, %v4034
    %v4036 = vpop.f32.mrf.mxu0
    %4037 = vmatprep.mubr.bf16.mxu0 0
    %4038 = vmatmul.mubr.bf16.gmra.mxu0 %v3972
    %v4039 = vpop.f32.mrf.mxu0
    %v4040 = vadd.f32 %v3938, %v4039
    %v4041 = vpop.f32.mrf.mxu0
    %v4042 = vpop.f32.mrf.mxu0
    %v4043 = vadd.f32 %v3938, %v4042
    %v4044 = vpop.f32.mrf.mxu0
    %4045 = vmatprep.mubr.bf16.mxu0 0
    %4046 = vmatmul.mubr.bf16.gmra.mxu0 %v3975
    %v4047 = vpop.f32.mrf.mxu0
    %v4048 = vadd.f32 %v3938, %v4047
    %v4049 = vpop.f32.mrf.mxu0
    %v4050 = vpop.f32.mrf.mxu0
    %v4051 = vadd.f32 %v3938, %v4050
    %v4052 = vpop.f32.mrf.mxu0
    %4053 = vmatprep.mubr.bf16.mxu0 0
    %4054 = vmatmul.mubr.bf16.gmra.mxu0 %v3978
    %v4055 = vpop.f32.mrf.mxu0
    %v4056 = vadd.f32 %v3938, %v4055
    %v4057 = vpop.f32.mrf.mxu0
    %v4058 = vpop.f32.mrf.mxu0
    %v4059 = vadd.f32 %v3938, %v4058
    %v4060 = vpop.f32.mrf.mxu0
    %4061 = vmatprep.mubr.bf16.mxu0 0
    %4062 = vmatmul.mubr.bf16.gmra.mxu0 %v3981
    %v4063 = vpop.f32.mrf.mxu0
    %v4064 = vadd.f32 %v3938, %v4063
    %v4065 = vpop.f32.mrf.mxu0
    %v4066 = vpop.f32.mrf.mxu0
    %v4067 = vadd.f32 %v3938, %v4066
    %v4068 = vpop.f32.mrf.mxu0
    %4069 = vmatprep.mubr.bf16.mxu0 0
    %4070 = vmatmul.mubr.bf16.gmra.mxu0 %v3984
    %v4071 = vpop.f32.mrf.mxu0
    %v4072 = vadd.f32 %v3938, %v4071
    %v4073 = vpop.f32.mrf.mxu0
    %v4074 = vpop.f32.mrf.mxu0
    %v4075 = vadd.f32 %v3938, %v4074
    %v4076 = vpop.f32.mrf.mxu0
    %4077 = vmatprep.mubr.bf16.mxu0 0
    %4078 = vmatmul.mubr.bf16.gmra.mxu0 %v3987
    %v4079 = vpop.f32.mrf.mxu0
    %v4080 = vadd.f32 %v3938, %v4079
    %v4081 = vpop.f32.mrf.mxu0
    %v4082 = vpop.f32.mrf.mxu0
    %v4083 = vadd.f32 %v3938, %v4082
    %v4084 = vpop.f32.mrf.mxu0
    %4085 = vdwg.mxu0
    %v4086 = vadd.f32 %v4024, %v3733
    %v4087 = vadd.f32 %v4027, %v3734
    %v4088 = vadd.f32 %v4032, %v3735
    %v4089 = vadd.f32 %v4035, %v3736
    %v4090 = vadd.f32 %v4040, %v3737
    %v4091 = vadd.f32 %v4043, %v3738
    %v4092 = vadd.f32 %v4048, %v3739
    %v4093 = vadd.f32 %v4051, %v3740
    %v4094 = vadd.f32 %v4056, %v3741
    %v4095 = vadd.f32 %v4059, %v3742
    %v4096 = vadd.f32 %v4064, %v3743
    %v4097 = vadd.f32 %v4067, %v3744
    %v4098 = vadd.f32 %v4072, %v3745
    %v4099 = vadd.f32 %v4075, %v3746
    %v4100 = vadd.f32 %v4080, %v3747
    %v4101 = vadd.f32 %v4083, %v3748
    %v4102 = vld [vmem:[%s12] sm:$0x1]
    %s4103 = scalar_lea.vmem %s12, 1
    %v4104 = vld [vmem:[%s4103] sm:$0x1]
    %v4105 = vsel %vm372, %v4086, 0.0
    %4106 = vadd.xlane.f32.xlu0 %v4105
    %v4107 = vpop.xlane.xlu0 %4106
    %v4108 = vsel %vm372, %v4087, 0.0
    %4109 = vadd.xlane.f32.xlu0 %v4108
    %v4110 = vpop.xlane.xlu0 %4109
    %v4111 = vsel %vm372, %v4088, 0.0
    %4112 = vadd.xlane.f32.xlu0 %v4111
    %v4113 = vpop.xlane.xlu0 %4112
    %v4114 = vsel %vm372, %v4089, 0.0
    %4115 = vadd.xlane.f32.xlu0 %v4114
    %v4116 = vpop.xlane.xlu0 %4115
    %v4117 = vsel %vm372, %v4090, 0.0
    %4118 = vadd.xlane.f32.xlu0 %v4117
    %v4119 = vpop.xlane.xlu0 %4118
    %v4120 = vsel %vm372, %v4091, 0.0
    %4121 = vadd.xlane.f32.xlu0 %v4120
    %v4122 = vpop.xlane.xlu0 %4121
    %v4123 = vsel %vm372, %v4092, 0.0
    %4124 = vadd.xlane.f32.xlu0 %v4123
    %v4125 = vpop.xlane.xlu0 %4124
    %v4126 = vsel %vm372, %v4093, 0.0
    %4127 = vadd.xlane.f32.xlu0 %v4126
    %v4128 = vpop.xlane.xlu0 %4127
    %v4129 = vsel %vm372, %v4094, 0.0
    %4130 = vadd.xlane.f32.xlu0 %v4129
    %v4131 = vpop.xlane.xlu0 %4130
    %v4132 = vsel %vm372, %v4095, 0.0
    %4133 = vadd.xlane.f32.xlu0 %v4132
    %v4134 = vpop.xlane.xlu0 %4133
    %v4135 = vsel %vm372, %v4096, 0.0
    %4136 = vadd.xlane.f32.xlu0 %v4135
    %v4137 = vpop.xlane.xlu0 %4136
    %v4138 = vsel %vm372, %v4097, 0.0
    %4139 = vadd.xlane.f32.xlu0 %v4138
    %v4140 = vpop.xlane.xlu0 %4139
    %v4141 = vsel %vm372, %v4098, 0.0
    %4142 = vadd.xlane.f32.xlu0 %v4141
    %v4143 = vpop.xlane.xlu0 %4142
    %v4144 = vsel %vm372, %v4099, 0.0
    %4145 = vadd.xlane.f32.xlu0 %v4144
    %v4146 = vpop.xlane.xlu0 %4145
    %v4147 = vsel %vm372, %v4100, 0.0
    %4148 = vadd.xlane.f32.xlu0 %v4147
    %v4149 = vpop.xlane.xlu0 %4148
    %v4150 = vsel %vm372, %v4101, 0.0
    %4151 = vadd.xlane.f32.xlu0 %v4150
    %v4152 = vpop.xlane.xlu0 %4151
    %v4153 = vmul.f32 %v4107, %v421
    %v4154 = vmul.f32 %v4110, %v421
    %v4155 = vmul.f32 %v4113, %v421
    %v4156 = vmul.f32 %v4116, %v421
    %v4157 = vmul.f32 %v4119, %v421
    %v4158 = vmul.f32 %v4122, %v421
    %v4159 = vmul.f32 %v4125, %v421
    %v4160 = vmul.f32 %v4128, %v421
    %v4161 = vmul.f32 %v4131, %v421
    %v4162 = vmul.f32 %v4134, %v421
    %v4163 = vmul.f32 %v4137, %v421
    %v4164 = vmul.f32 %v4140, %v421
    %v4165 = vmul.f32 %v4143, %v421
    %v4166 = vmul.f32 %v4146, %v421
    %v4167 = vmul.f32 %v4149, %v421
    %v4168 = vmul.f32 %v4152, %v421
    %v4169 = vsub.f32 %v4086, %v4153
    %v4170 = vsub.f32 %v4087, %v4154
    %v4171 = vsub.f32 %v4088, %v4155
    %v4172 = vsub.f32 %v4089, %v4156
    %v4173 = vsub.f32 %v4090, %v4157
    %v4174 = vsub.f32 %v4091, %v4158
    %v4175 = vsub.f32 %v4092, %v4159
    %v4176 = vsub.f32 %v4093, %v4160
    %v4177 = vsub.f32 %v4094, %v4161
    %v4178 = vsub.f32 %v4095, %v4162
    %v4179 = vsub.f32 %v4096, %v4163
    %v4180 = vsub.f32 %v4097, %v4164
    %v4181 = vsub.f32 %v4098, %v4165
    %v4182 = vsub.f32 %v4099, %v4166
    %v4183 = vsub.f32 %v4100, %v4167
    %v4184 = vsub.f32 %v4101, %v4168
    %v4185 = vmul.f32 %v4169, %v4169
    %v4186 = vmul.f32 %v4170, %v4170
    %v4187 = vmul.f32 %v4171, %v4171
    %v4188 = vmul.f32 %v4172, %v4172
    %v4189 = vmul.f32 %v4173, %v4173
    %v4190 = vmul.f32 %v4174, %v4174
    %v4191 = vmul.f32 %v4175, %v4175
    %v4192 = vmul.f32 %v4176, %v4176
    %v4193 = vmul.f32 %v4177, %v4177
    %v4194 = vmul.f32 %v4178, %v4178
    %v4195 = vmul.f32 %v4179, %v4179
    %v4196 = vmul.f32 %v4180, %v4180
    %v4197 = vmul.f32 %v4181, %v4181
    %v4198 = vmul.f32 %v4182, %v4182
    %v4199 = vmul.f32 %v4183, %v4183
    %v4200 = vmul.f32 %v4184, %v4184
    %v4201 = vsel %vm372, %v4185, 0.0
    %4202 = vadd.xlane.f32.xlu0 %v4201
    %v4203 = vpop.xlane.xlu0 %4202
    %v4204 = vsel %vm372, %v4186, 0.0
    %4205 = vadd.xlane.f32.xlu0 %v4204
    %v4206 = vpop.xlane.xlu0 %4205
    %v4207 = vsel %vm372, %v4187, 0.0
    %4208 = vadd.xlane.f32.xlu0 %v4207
    %v4209 = vpop.xlane.xlu0 %4208
    %v4210 = vsel %vm372, %v4188, 0.0
    %4211 = vadd.xlane.f32.xlu0 %v4210
    %v4212 = vpop.xlane.xlu0 %4211
    %v4213 = vsel %vm372, %v4189, 0.0
    %4214 = vadd.xlane.f32.xlu0 %v4213
    %v4215 = vpop.xlane.xlu0 %4214
    %v4216 = vsel %vm372, %v4190, 0.0
    %4217 = vadd.xlane.f32.xlu0 %v4216
    %v4218 = vpop.xlane.xlu0 %4217
    %v4219 = vsel %vm372, %v4191, 0.0
    %4220 = vadd.xlane.f32.xlu0 %v4219
    %v4221 = vpop.xlane.xlu0 %4220
    %v4222 = vsel %vm372, %v4192, 0.0
    %4223 = vadd.xlane.f32.xlu0 %v4222
    %v4224 = vpop.xlane.xlu0 %4223
    %v4225 = vsel %vm372, %v4193, 0.0
    %4226 = vadd.xlane.f32.xlu0 %v4225
    %v4227 = vpop.xlane.xlu0 %4226
    %v4228 = vsel %vm372, %v4194, 0.0
    %4229 = vadd.xlane.f32.xlu0 %v4228
    %v4230 = vpop.xlane.xlu0 %4229
    %v4231 = vsel %vm372, %v4195, 0.0
    %4232 = vadd.xlane.f32.xlu0 %v4231
    %v4233 = vpop.xlane.xlu0 %4232
    %v4234 = vsel %vm372, %v4196, 0.0
    %4235 = vadd.xlane.f32.xlu0 %v4234
    %v4236 = vpop.xlane.xlu0 %4235
    %v4237 = vsel %vm372, %v4197, 0.0
    %4238 = vadd.xlane.f32.xlu0 %v4237
    %v4239 = vpop.xlane.xlu0 %4238
    %v4240 = vsel %vm372, %v4198, 0.0
    %4241 = vadd.xlane.f32.xlu0 %v4240
    %v4242 = vpop.xlane.xlu0 %4241
    %v4243 = vsel %vm372, %v4199, 0.0
    %4244 = vadd.xlane.f32.xlu0 %v4243
    %v4245 = vpop.xlane.xlu0 %4244
    %v4246 = vsel %vm372, %v4200, 0.0
    %4247 = vadd.xlane.f32.xlu0 %v4246
    %v4248 = vpop.xlane.xlu0 %4247
    %v4249 = vmul.f32 %v4203, %v421
    %v4250 = vmul.f32 %v4206, %v421
    %v4251 = vmul.f32 %v4209, %v421
    %v4252 = vmul.f32 %v4212, %v421
    %v4253 = vmul.f32 %v4215, %v421
    %v4254 = vmul.f32 %v4218, %v421
    %v4255 = vmul.f32 %v4221, %v421
    %v4256 = vmul.f32 %v4224, %v421
    %v4257 = vmul.f32 %v4227, %v421
    %v4258 = vmul.f32 %v4230, %v421
    %v4259 = vmul.f32 %v4233, %v421
    %v4260 = vmul.f32 %v4236, %v421
    %v4261 = vmul.f32 %v4239, %v421
    %v4262 = vmul.f32 %v4242, %v421
    %v4263 = vmul.f32 %v4245, %v421
    %v4264 = vmul.f32 %v4248, %v421
    %v4265 = vadd.f32 %v4249, 1e-12
    %v4266 = vadd.f32 %v4250, 1e-12
    %v4267 = vadd.f32 %v4251, 1e-12
    %v4268 = vadd.f32 %v4252, 1e-12
    %v4269 = vadd.f32 %v4253, 1e-12
    %v4270 = vadd.f32 %v4254, 1e-12
    %v4271 = vadd.f32 %v4255, 1e-12
    %v4272 = vadd.f32 %v4256, 1e-12
    %v4273 = vadd.f32 %v4257, 1e-12
    %v4274 = vadd.f32 %v4258, 1e-12
    %v4275 = vadd.f32 %v4259, 1e-12
    %v4276 = vadd.f32 %v4260, 1e-12
    %v4277 = vadd.f32 %v4261, 1e-12
    %v4278 = vadd.f32 %v4262, 1e-12
    %v4279 = vadd.f32 %v4263, 1e-12
    %v4280 = vadd.f32 %v4264, 1e-12
    %v4281 = vrsqrt.pop %v4265
    %v4282 = vrsqrt.pop %v4266
    %v4283 = vrsqrt.pop %v4267
    %v4284 = vrsqrt.pop %v4268
    %v4285 = vrsqrt.pop %v4269
    %v4286 = vrsqrt.pop %v4270
    %v4287 = vrsqrt.pop %v4271
    %v4288 = vrsqrt.pop %v4272
    %v4289 = vrsqrt.pop %v4273
    %v4290 = vrsqrt.pop %v4274
    %v4291 = vrsqrt.pop %v4275
    %v4292 = vrsqrt.pop %v4276
    %v4293 = vrsqrt.pop %v4277
    %v4294 = vrsqrt.pop %v4278
    %v4295 = vrsqrt.pop %v4279
    %v4296 = vrsqrt.pop %v4280
    %v4297 = vmul.f32 %v4169, %v4281
    %v4298 = vmul.f32 %v4170, %v4282
    %v4299 = vmul.f32 %v4171, %v4283
    %v4300 = vmul.f32 %v4172, %v4284
    %v4301 = vmul.f32 %v4173, %v4285
    %v4302 = vmul.f32 %v4174, %v4286
    %v4303 = vmul.f32 %v4175, %v4287
    %v4304 = vmul.f32 %v4176, %v4288
    %v4305 = vmul.f32 %v4177, %v4289
    %v4306 = vmul.f32 %v4178, %v4290
    %v4307 = vmul.f32 %v4179, %v4291
    %v4308 = vmul.f32 %v4180, %v4292
    %v4309 = vmul.f32 %v4181, %v4293
    %v4310 = vmul.f32 %v4182, %v4294
    %v4311 = vmul.f32 %v4183, %v4295
    %v4312 = vmul.f32 %v4184, %v4296
    %v4314 = vlaneseq
    %v4315 = vshrl.u32 %v4314, 7
    %v4316 = vsub.s32 0, %v4315
    %v4317 = vrot.slane %v4102, %v4316
    %v4319 = vmul.f32 %v4297, %v4317
    %v4320 = vmul.f32 %v4298, %v4317
    %v4321 = vmul.f32 %v4299, %v4317
    %v4322 = vmul.f32 %v4300, %v4317
    %v4323 = vmul.f32 %v4301, %v4317
    %v4324 = vmul.f32 %v4302, %v4317
    %v4325 = vmul.f32 %v4303, %v4317
    %v4326 = vmul.f32 %v4304, %v4317
    %v4327 = vmul.f32 %v4305, %v4317
    %v4328 = vmul.f32 %v4306, %v4317
    %v4329 = vmul.f32 %v4307, %v4317
    %v4330 = vmul.f32 %v4308, %v4317
    %v4331 = vmul.f32 %v4309, %v4317
    %v4332 = vmul.f32 %v4310, %v4317
    %v4333 = vmul.f32 %v4311, %v4317
    %v4334 = vmul.f32 %v4312, %v4317
    %v4336 = vlaneseq
    %v4337 = vshrl.u32 %v4336, 7
    %v4338 = vsub.s32 0, %v4337
    %v4339 = vrot.slane %v4104, %v4338
    %v4341 = vadd.f32 %v4319, %v4339
    %v4342 = vadd.f32 %v4320, %v4339
    %v4343 = vadd.f32 %v4321, %v4339
    %v4344 = vadd.f32 %v4322, %v4339
    %v4345 = vadd.f32 %v4323, %v4339
    %v4346 = vadd.f32 %v4324, %v4339
    %v4347 = vadd.f32 %v4325, %v4339
    %v4348 = vadd.f32 %v4326, %v4339
    %v4349 = vadd.f32 %v4327, %v4339
    %v4350 = vadd.f32 %v4328, %v4339
    %v4351 = vadd.f32 %v4329, %v4339
    %v4352 = vadd.f32 %v4330, %v4339
    %v4353 = vadd.f32 %v4331, %v4339
    %v4354 = vadd.f32 %v4332, %v4339
    %v4355 = vadd.f32 %v4333, %v4339
    %v4356 = vadd.f32 %v4334, %v4339
    %s4357 = scalar_lea.vmem %s3, 16
    %v4358 = vld [vmem:[%s4357] sm:$0xf]
    %v4359 = vld [vmem:[%s4357 + $0x4] sm:$0xf]
    %v4360 = vld [vmem:[%s4357 + $0x8] sm:$0xf]
    %v4361 = vld [vmem:[%s4357 + $0xc] sm:$0xf]
    %s4362 = scalar_lea.vmem [#allocation8], 1
    %v4363 = vld [vmem:[%s4362] sm:$0x1]
    %s4364 = scalar_lea.vmem [#allocation9], 16
    %v4365 = vld [vmem:[%s4364] sm:$0xf]
    %v4366 = vld [vmem:[%s4364 + $0x4] sm:$0xf]
    %v4367 = vld [vmem:[%s4364 + $0x8] sm:$0xf]
    %v4368 = vld [vmem:[%s4364 + $0xc] sm:$0xf]
    %v4369 = vpack.c.bf16 %v4342, %v4341
    %v4370 = vpack.c.bf16 %v4344, %v4343
    %v4371 = vpack.c.bf16 %v4346, %v4345
    %v4372 = vpack.c.bf16 %v4348, %v4347
    %v4373 = vpack.c.bf16 %v4350, %v4349
    %v4374 = vpack.c.bf16 %v4352, %v4351
    %v4375 = vpack.c.bf16 %v4354, %v4353
    %v4376 = vpack.c.bf16 %v4356, %v4355
    %v4378 = vlaneseq
    %v4379 = vshrl.u32 %v4378, 7
    %v4380 = vsub.s32 0, %v4379
    %v4381 = vrot.slane %v4363, %v4380
    %v4387 = vunpack.c.l.b16 %v4358
    %v4388 = vunpack.c.l.b16 %v4359
    %v4389 = vunpack.c.l.b16 %v4360
    %v4390 = vunpack.c.l.b16 %v4361
    %v4391 = vpack.c.b16 %v4388, %v4387
    %v4392 = vpack.c.b16 %v4390, %v4389
    %v4396 = vsel %vm372, %v4369, 0
    %v4399 = vsel %vm372, %v4370, 0
    %v4402 = vsel %vm372, %v4371, 0
    %v4405 = vsel %vm372, %v4372, 0
    %v4408 = vsel %vm372, %v4373, 0
    %v4411 = vsel %vm372, %v4374, 0
    %v4414 = vsel %vm372, %v4375, 0
    %v4417 = vsel %vm372, %v4376, 0
    %4419 = vmatprep.subr.bf16.mxu0 0
    %4420 = vmatpush1.bf16.msra.mxu0 0
    %4421 = vmatprep.subr.bf16.mxu0 0
    %4422 = vmatpush1.bf16.msra.mxu0 0
    %4423 = vmatprep.subr.bf16.mxu0 0
    %4424 = vmatpush1.bf16.msra.mxu0 0
    %4425 = vmatprep.subr.bf16.mxu0 0
    %4426 = vmatpush1.bf16.msra.mxu0 0
    %4427 = vmatprep.subr.bf16.mxu0 0
    %4428 = vmatpush1.bf16.msra.mxu0 0
    %4429 = vmatprep.subr.bf16.mxu0 0
    %4430 = vmatpush1.bf16.msra.mxu0 0
    %4431 = vmatprep.subr.bf16.mxu0 0
    %4432 = vmatpush1.bf16.msra.mxu0 %v4392
    %4433 = vmatprep.subr.bf16.mxu0 0
    %4434 = vmatpush1.bf16.msra.mxu0 %v4391
    %4435 = vmatprep.subr.bf16.mxu0 0
    %4436 = vmatpush2.bf16.msra.mxu0 0
    %4437 = vmatprep.subr.bf16.mxu0 0
    %4438 = vmatpush2.bf16.msra.mxu0 0
    %4439 = vmatprep.subr.bf16.mxu0 0
    %4440 = vmatpush2.bf16.msra.mxu0 0
    %4441 = vmatprep.subr.bf16.mxu0 0
    %4442 = vmatpush2.bf16.msra.mxu0 0
    %4443 = vmatprep.subr.bf16.mxu0 0
    %4444 = vmatpush2.bf16.msra.mxu0 0
    %4445 = vmatprep.subr.bf16.mxu0 0
    %4446 = vmatpush2.bf16.msra.mxu0 0
    %4447 = vmatprep.subr.bf16.mxu0 0
    %4448 = vmatpush2.bf16.msra.mxu0 0
    %4449 = vmatprep.subr.bf16.mxu0 0
    %4450 = vmatpush2.bf16.msra.mxu0 0
    %4451 = vmatprep.mubr.bf16.mxu0 0
    %4452 = vmatmul.mubr.bf16.gmra.mxu0 %v4396
    %v4453 = vpop.f32.mrf.mxu0
    %v4454 = vadd.f32 %v4381, %v4453
    %v4455 = vpop.f32.mrf.mxu0
    %v4456 = vpop.f32.mrf.mxu0
    %v4457 = vadd.f32 %v4381, %v4456
    %v4458 = vpop.f32.mrf.mxu0
    %4459 = vmatprep.mubr.bf16.mxu0 0
    %4460 = vmatmul.mubr.bf16.gmra.mxu0 %v4399
    %v4461 = vpop.f32.mrf.mxu0
    %v4462 = vadd.f32 %v4381, %v4461
    %v4463 = vpop.f32.mrf.mxu0
    %v4464 = vpop.f32.mrf.mxu0
    %v4465 = vadd.f32 %v4381, %v4464
    %v4466 = vpop.f32.mrf.mxu0
    %4467 = vmatprep.mubr.bf16.mxu0 0
    %4468 = vmatmul.mubr.bf16.gmra.mxu0 %v4402
    %v4469 = vpop.f32.mrf.mxu0
    %v4470 = vadd.f32 %v4381, %v4469
    %v4471 = vpop.f32.mrf.mxu0
    %v4472 = vpop.f32.mrf.mxu0
    %v4473 = vadd.f32 %v4381, %v4472
    %v4474 = vpop.f32.mrf.mxu0
    %4475 = vmatprep.mubr.bf16.mxu0 0
    %4476 = vmatmul.mubr.bf16.gmra.mxu0 %v4405
    %v4477 = vpop.f32.mrf.mxu0
    %v4478 = vadd.f32 %v4381, %v4477
    %v4479 = vpop.f32.mrf.mxu0
    %v4480 = vpop.f32.mrf.mxu0
    %v4481 = vadd.f32 %v4381, %v4480
    %v4482 = vpop.f32.mrf.mxu0
    %4483 = vmatprep.mubr.bf16.mxu0 0
    %4484 = vmatmul.mubr.bf16.gmra.mxu0 %v4408
    %v4485 = vpop.f32.mrf.mxu0
    %v4486 = vadd.f32 %v4381, %v4485
    %v4487 = vpop.f32.mrf.mxu0
    %v4488 = vpop.f32.mrf.mxu0
    %v4489 = vadd.f32 %v4381, %v4488
    %v4490 = vpop.f32.mrf.mxu0
    %4491 = vmatprep.mubr.bf16.mxu0 0
    %4492 = vmatmul.mubr.bf16.gmra.mxu0 %v4411
    %v4493 = vpop.f32.mrf.mxu0
    %v4494 = vadd.f32 %v4381, %v4493
    %v4495 = vpop.f32.mrf.mxu0
    %v4496 = vpop.f32.mrf.mxu0
    %v4497 = vadd.f32 %v4381, %v4496
    %v4498 = vpop.f32.mrf.mxu0
    %4499 = vmatprep.mubr.bf16.mxu0 0
    %4500 = vmatmul.mubr.bf16.gmra.mxu0 %v4414
    %v4501 = vpop.f32.mrf.mxu0
    %v4502 = vadd.f32 %v4381, %v4501
    %v4503 = vpop.f32.mrf.mxu0
    %v4504 = vpop.f32.mrf.mxu0
    %v4505 = vadd.f32 %v4381, %v4504
    %v4506 = vpop.f32.mrf.mxu0
    %4507 = vmatprep.mubr.bf16.mxu0 0
    %4508 = vmatmul.mubr.bf16.gmra.mxu0 %v4417
    %v4509 = vpop.f32.mrf.mxu0
    %v4510 = vadd.f32 %v4381, %v4509
    %v4511 = vpop.f32.mrf.mxu0
    %v4512 = vpop.f32.mrf.mxu0
    %v4513 = vadd.f32 %v4381, %v4512
    %v4514 = vpop.f32.mrf.mxu0
    %4515 = vdwg.mxu0
    %4516 = vrot.lane.b32.xlu0 %v4391, 96
    %v4517 = vpop.permute.xlu0 %4516
    %4518 = vrot.lane.b32.xlu0 %v4392, 96
    %v4519 = vpop.permute.xlu0 %4518
    %4522 = vrot.lane.b32.xlu0 %v4381, 96
    %v4523 = vpop.permute.xlu0 %4522
    %4525 = vmatprep.subr.bf16.mxu0 0
    %4526 = vmatpush1.bf16.msra.mxu0 0
    %4527 = vmatprep.subr.bf16.mxu0 0
    %4528 = vmatpush1.bf16.msra.mxu0 0
    %4529 = vmatprep.subr.bf16.mxu0 0
    %4530 = vmatpush1.bf16.msra.mxu0 0
    %4531 = vmatprep.subr.bf16.mxu0 0
    %4532 = vmatpush1.bf16.msra.mxu0 0
    %4533 = vmatprep.subr.bf16.mxu0 0
    %4534 = vmatpush1.bf16.msra.mxu0 0
    %4535 = vmatprep.subr.bf16.mxu0 0
    %4536 = vmatpush1.bf16.msra.mxu0 0
    %4537 = vmatprep.subr.bf16.mxu0 0
    %4538 = vmatpush1.bf16.msra.mxu0 %v4519
    %4539 = vmatprep.subr.bf16.mxu0 0
    %4540 = vmatpush1.bf16.msra.mxu0 %v4517
    %4541 = vmatprep.subr.bf16.mxu0 0
    %4542 = vmatpush2.bf16.msra.mxu0 0
    %4543 = vmatprep.subr.bf16.mxu0 0
    %4544 = vmatpush2.bf16.msra.mxu0 0
    %4545 = vmatprep.subr.bf16.mxu0 0
    %4546 = vmatpush2.bf16.msra.mxu0 0
    %4547 = vmatprep.subr.bf16.mxu0 0
    %4548 = vmatpush2.bf16.msra.mxu0 0
    %4549 = vmatprep.subr.bf16.mxu0 0
    %4550 = vmatpush2.bf16.msra.mxu0 0
    %4551 = vmatprep.subr.bf16.mxu0 0
    %4552 = vmatpush2.bf16.msra.mxu0 0
    %4553 = vmatprep.subr.bf16.mxu0 0
    %4554 = vmatpush2.bf16.msra.mxu0 0
    %4555 = vmatprep.subr.bf16.mxu0 0
    %4556 = vmatpush2.bf16.msra.mxu0 0
    %4557 = vmatprep.mubr.bf16.mxu0 0
    %4558 = vmatmul.mubr.bf16.gmra.mxu0 %v4396
    %v4559 = vpop.f32.mrf.mxu0
    %v4560 = vadd.f32 %v4523, %v4559
    %v4561 = vpop.f32.mrf.mxu0
    %v4562 = vpop.f32.mrf.mxu0
    %v4563 = vadd.f32 %v4523, %v4562
    %v4564 = vpop.f32.mrf.mxu0
    %4565 = vmatprep.mubr.bf16.mxu0 0
    %4566 = vmatmul.mubr.bf16.gmra.mxu0 %v4399
    %v4567 = vpop.f32.mrf.mxu0
    %v4568 = vadd.f32 %v4523, %v4567
    %v4569 = vpop.f32.mrf.mxu0
    %v4570 = vpop.f32.mrf.mxu0
    %v4571 = vadd.f32 %v4523, %v4570
    %v4572 = vpop.f32.mrf.mxu0
    %4573 = vmatprep.mubr.bf16.mxu0 0
    %4574 = vmatmul.mubr.bf16.gmra.mxu0 %v4402
    %v4575 = vpop.f32.mrf.mxu0
    %v4576 = vadd.f32 %v4523, %v4575
    %v4577 = vpop.f32.mrf.mxu0
    %v4578 = vpop.f32.mrf.mxu0
    %v4579 = vadd.f32 %v4523, %v4578
    %v4580 = vpop.f32.mrf.mxu0
    %4581 = vmatprep.mubr.bf16.mxu0 0
    %4582 = vmatmul.mubr.bf16.gmra.mxu0 %v4405
    %v4583 = vpop.f32.mrf.mxu0
    %v4584 = vadd.f32 %v4523, %v4583
    %v4585 = vpop.f32.mrf.mxu0
    %v4586 = vpop.f32.mrf.mxu0
    %v4587 = vadd.f32 %v4523, %v4586
    %v4588 = vpop.f32.mrf.mxu0
    %4589 = vmatprep.mubr.bf16.mxu0 0
    %4590 = vmatmul.mubr.bf16.gmra.mxu0 %v4408
    %v4591 = vpop.f32.mrf.mxu0
    %v4592 = vadd.f32 %v4523, %v4591
    %v4593 = vpop.f32.mrf.mxu0
    %v4594 = vpop.f32.mrf.mxu0
    %v4595 = vadd.f32 %v4523, %v4594
    %v4596 = vpop.f32.mrf.mxu0
    %4597 = vmatprep.mubr.bf16.mxu0 0
    %4598 = vmatmul.mubr.bf16.gmra.mxu0 %v4411
    %v4599 = vpop.f32.mrf.mxu0
    %v4600 = vadd.f32 %v4523, %v4599
    %v4601 = vpop.f32.mrf.mxu0
    %v4602 = vpop.f32.mrf.mxu0
    %v4603 = vadd.f32 %v4523, %v4602
    %v4604 = vpop.f32.mrf.mxu0
    %4605 = vmatprep.mubr.bf16.mxu0 0
    %4606 = vmatmul.mubr.bf16.gmra.mxu0 %v4414
    %v4607 = vpop.f32.mrf.mxu0
    %v4608 = vadd.f32 %v4523, %v4607
    %v4609 = vpop.f32.mrf.mxu0
    %v4610 = vpop.f32.mrf.mxu0
    %v4611 = vadd.f32 %v4523, %v4610
    %v4612 = vpop.f32.mrf.mxu0
    %4613 = vmatprep.mubr.bf16.mxu0 0
    %4614 = vmatmul.mubr.bf16.gmra.mxu0 %v4417
    %v4615 = vpop.f32.mrf.mxu0
    %v4616 = vadd.f32 %v4523, %v4615
    %v4617 = vpop.f32.mrf.mxu0
    %v4618 = vpop.f32.mrf.mxu0
    %v4619 = vadd.f32 %v4523, %v4618
    %v4620 = vpop.f32.mrf.mxu0
    %4621 = vdwg.mxu0
    %4622 = vrot.lane.b32.xlu0 %v4391, 64
    %v4623 = vpop.permute.xlu0 %4622
    %4624 = vrot.lane.b32.xlu0 %v4392, 64
    %v4625 = vpop.permute.xlu0 %4624
    %4628 = vrot.lane.b32.xlu0 %v4381, 64
    %v4629 = vpop.permute.xlu0 %4628
    %4631 = vmatprep.subr.bf16.mxu0 0
    %4632 = vmatpush1.bf16.msra.mxu0 0
    %4633 = vmatprep.subr.bf16.mxu0 0
    %4634 = vmatpush1.bf16.msra.mxu0 0
    %4635 = vmatprep.subr.bf16.mxu0 0
    %4636 = vmatpush1.bf16.msra.mxu0 0
    %4637 = vmatprep.subr.bf16.mxu0 0
    %4638 = vmatpush1.bf16.msra.mxu0 0
    %4639 = vmatprep.subr.bf16.mxu0 0
    %4640 = vmatpush1.bf16.msra.mxu0 0
    %4641 = vmatprep.subr.bf16.mxu0 0
    %4642 = vmatpush1.bf16.msra.mxu0 0
    %4643 = vmatprep.subr.bf16.mxu0 0
    %4644 = vmatpush1.bf16.msra.mxu0 %v4625
    %4645 = vmatprep.subr.bf16.mxu0 0
    %4646 = vmatpush1.bf16.msra.mxu0 %v4623
    %4647 = vmatprep.subr.bf16.mxu0 0
    %4648 = vmatpush2.bf16.msra.mxu0 0
    %4649 = vmatprep.subr.bf16.mxu0 0
    %4650 = vmatpush2.bf16.msra.mxu0 0
    %4651 = vmatprep.subr.bf16.mxu0 0
    %4652 = vmatpush2.bf16.msra.mxu0 0
    %4653 = vmatprep.subr.bf16.mxu0 0
    %4654 = vmatpush2.bf16.msra.mxu0 0
    %4655 = vmatprep.subr.bf16.mxu0 0
    %4656 = vmatpush2.bf16.msra.mxu0 0
    %4657 = vmatprep.subr.bf16.mxu0 0
    %4658 = vmatpush2.bf16.msra.mxu0 0
    %4659 = vmatprep.subr.bf16.mxu0 0
    %4660 = vmatpush2.bf16.msra.mxu0 0
    %4661 = vmatprep.subr.bf16.mxu0 0
    %4662 = vmatpush2.bf16.msra.mxu0 0
    %4663 = vmatprep.mubr.bf16.mxu0 0
    %4664 = vmatmul.mubr.bf16.gmra.mxu0 %v4396
    %v4665 = vpop.f32.mrf.mxu0
    %v4666 = vadd.f32 %v4629, %v4665
    %v4667 = vpop.f32.mrf.mxu0
    %v4668 = vpop.f32.mrf.mxu0
    %v4669 = vadd.f32 %v4629, %v4668
    %v4670 = vpop.f32.mrf.mxu0
    %4671 = vmatprep.mubr.bf16.mxu0 0
    %4672 = vmatmul.mubr.bf16.gmra.mxu0 %v4399
    %v4673 = vpop.f32.mrf.mxu0
    %v4674 = vadd.f32 %v4629, %v4673
    %v4675 = vpop.f32.mrf.mxu0
    %v4676 = vpop.f32.mrf.mxu0
    %v4677 = vadd.f32 %v4629, %v4676
    %v4678 = vpop.f32.mrf.mxu0
    %4679 = vmatprep.mubr.bf16.mxu0 0
    %4680 = vmatmul.mubr.bf16.gmra.mxu0 %v4402
    %v4681 = vpop.f32.mrf.mxu0
    %v4682 = vadd.f32 %v4629, %v4681
    %v4683 = vpop.f32.mrf.mxu0
    %v4684 = vpop.f32.mrf.mxu0
    %v4685 = vadd.f32 %v4629, %v4684
    %v4686 = vpop.f32.mrf.mxu0
    %4687 = vmatprep.mubr.bf16.mxu0 0
    %4688 = vmatmul.mubr.bf16.gmra.mxu0 %v4405
    %v4689 = vpop.f32.mrf.mxu0
    %v4690 = vadd.f32 %v4629, %v4689
    %v4691 = vpop.f32.mrf.mxu0
    %v4692 = vpop.f32.mrf.mxu0
    %v4693 = vadd.f32 %v4629, %v4692
    %v4694 = vpop.f32.mrf.mxu0
    %4695 = vmatprep.mubr.bf16.mxu0 0
    %4696 = vmatmul.mubr.bf16.gmra.mxu0 %v4408
    %v4697 = vpop.f32.mrf.mxu0
    %v4698 = vadd.f32 %v4629, %v4697
    %v4699 = vpop.f32.mrf.mxu0
    %v4700 = vpop.f32.mrf.mxu0
    %v4701 = vadd.f32 %v4629, %v4700
    %v4702 = vpop.f32.mrf.mxu0
    %4703 = vmatprep.mubr.bf16.mxu0 0
    %4704 = vmatmul.mubr.bf16.gmra.mxu0 %v4411
    %v4705 = vpop.f32.mrf.mxu0
    %v4706 = vadd.f32 %v4629, %v4705
    %v4707 = vpop.f32.mrf.mxu0
    %v4708 = vpop.f32.mrf.mxu0
    %v4709 = vadd.f32 %v4629, %v4708
    %v4710 = vpop.f32.mrf.mxu0
    %4711 = vmatprep.mubr.bf16.mxu0 0
    %4712 = vmatmul.mubr.bf16.gmra.mxu0 %v4414
    %v4713 = vpop.f32.mrf.mxu0
    %v4714 = vadd.f32 %v4629, %v4713
    %v4715 = vpop.f32.mrf.mxu0
    %v4716 = vpop.f32.mrf.mxu0
    %v4717 = vadd.f32 %v4629, %v4716
    %v4718 = vpop.f32.mrf.mxu0
    %4719 = vmatprep.mubr.bf16.mxu0 0
    %4720 = vmatmul.mubr.bf16.gmra.mxu0 %v4417
    %v4721 = vpop.f32.mrf.mxu0
    %v4722 = vadd.f32 %v4629, %v4721
    %v4723 = vpop.f32.mrf.mxu0
    %v4724 = vpop.f32.mrf.mxu0
    %v4725 = vadd.f32 %v4629, %v4724
    %v4726 = vpop.f32.mrf.mxu0
    %4727 = vdwg.mxu0
    %v4728 = vpack.c.bf16 %v4457, %v4454
    %v4729 = vpack.c.bf16 %v4465, %v4462
    %v4730 = vpack.c.bf16 %v4473, %v4470
    %v4731 = vpack.c.bf16 %v4481, %v4478
    %v4732 = vpack.c.bf16 %v4489, %v4486
    %v4733 = vpack.c.bf16 %v4497, %v4494
    %v4734 = vpack.c.bf16 %v4505, %v4502
    %v4735 = vpack.c.bf16 %v4513, %v4510
    %v4736 = vpack.c.bf16 %v4563, %v4560
    %v4737 = vpack.c.bf16 %v4571, %v4568
    %v4738 = vpack.c.bf16 %v4579, %v4576
    %v4739 = vpack.c.bf16 %v4587, %v4584
    %v4740 = vpack.c.bf16 %v4595, %v4592
    %v4741 = vpack.c.bf16 %v4603, %v4600
    %v4742 = vpack.c.bf16 %v4611, %v4608
    %v4743 = vpack.c.bf16 %v4619, %v4616
    %v4745 = vsel %vm1010, %v4728, 0
    %v4748 = vsel %vm1010, %v4736, 0
    %4750 = vmatprep.subr.bf16.mxu0 0
    %4751 = vmatpush1.bf16.xpose.msra.mxu0 0
    %4752 = vmatprep.subr.bf16.mxu0 0
    %4753 = vmatpush1.bf16.xpose.msra.mxu0 0
    %4754 = vmatprep.subr.bf16.mxu0 0
    %4755 = vmatpush1.bf16.xpose.msra.mxu0 0
    %4756 = vmatprep.subr.bf16.mxu0 0
    %4757 = vmatpush1.bf16.xpose.msra.mxu0 0
    %4758 = vmatprep.subr.bf16.mxu0 0
    %4759 = vmatpush1.bf16.xpose.msra.mxu0 0
    %4760 = vmatprep.subr.bf16.mxu0 0
    %4761 = vmatpush1.bf16.xpose.msra.mxu0 0
    %4762 = vmatprep.subr.bf16.mxu0 0
    %4763 = vmatpush1.bf16.xpose.msra.mxu0 0
    %4764 = vmatprep.subr.bf16.mxu0 0
    %4765 = vmatpush1.bf16.xpose.msra.mxu0 %v4748
    %4766 = vmatprep.subr.bf16.mxu0 0
    %4767 = vmatpush2.bf16.xpose.msra.mxu0 0
    %4768 = vmatprep.subr.bf16.mxu0 0
    %4769 = vmatpush2.bf16.xpose.msra.mxu0 0
    %4770 = vmatprep.subr.bf16.mxu0 0
    %4771 = vmatpush2.bf16.xpose.msra.mxu0 0
    %4772 = vmatprep.subr.bf16.mxu0 0
    %4773 = vmatpush2.bf16.xpose.msra.mxu0 0
    %4774 = vmatprep.subr.bf16.mxu0 0
    %4775 = vmatpush2.bf16.xpose.msra.mxu0 0
    %4776 = vmatprep.subr.bf16.mxu0 0
    %4777 = vmatpush2.bf16.xpose.msra.mxu0 0
    %4778 = vmatprep.subr.bf16.mxu0 0
    %4779 = vmatpush2.bf16.xpose.msra.mxu0 0
    %4780 = vmatprep.subr.bf16.mxu0 0
    %4781 = vmatpush2.bf16.xpose.msra.mxu0 0
    %4782 = vmatprep.mubr.bf16.mxu0 0
    %4783 = vmatmul.mubr.bf16.gmra.mxu0 %v4745
    %v4784 = vpop.f32.mrf.mxu0
    %v4785 = vadd.f32 %v321, %v4784
    %v4786 = vpop.f32.mrf.mxu0
    %v4787 = vpop.f32.mrf.mxu0
    %v4788 = vadd.f32 %v322, %v4787
    %v4789 = vpop.f32.mrf.mxu0
    %4790 = vdwg.mxu0
    %v4792 = vsel %vm1010, %v4729, 0
    %v4795 = vsel %vm1010, %v4737, 0
    %4797 = vmatprep.subr.bf16.mxu0 0
    %4798 = vmatpush1.bf16.xpose.msra.mxu0 0
    %4799 = vmatprep.subr.bf16.mxu0 0
    %4800 = vmatpush1.bf16.xpose.msra.mxu0 0
    %4801 = vmatprep.subr.bf16.mxu0 0
    %4802 = vmatpush1.bf16.xpose.msra.mxu0 0
    %4803 = vmatprep.subr.bf16.mxu0 0
    %4804 = vmatpush1.bf16.xpose.msra.mxu0 0
    %4805 = vmatprep.subr.bf16.mxu0 0
    %4806 = vmatpush1.bf16.xpose.msra.mxu0 0
    %4807 = vmatprep.subr.bf16.mxu0 0
    %4808 = vmatpush1.bf16.xpose.msra.mxu0 0
    %4809 = vmatprep.subr.bf16.mxu0 0
    %4810 = vmatpush1.bf16.xpose.msra.mxu0 0
    %4811 = vmatprep.subr.bf16.mxu0 0
    %4812 = vmatpush1.bf16.xpose.msra.mxu0 %v4795
    %4813 = vmatprep.subr.bf16.mxu0 0
    %4814 = vmatpush2.bf16.xpose.msra.mxu0 0
    %4815 = vmatprep.subr.bf16.mxu0 0
    %4816 = vmatpush2.bf16.xpose.msra.mxu0 0
    %4817 = vmatprep.subr.bf16.mxu0 0
    %4818 = vmatpush2.bf16.xpose.msra.mxu0 0
    %4819 = vmatprep.subr.bf16.mxu0 0
    %4820 = vmatpush2.bf16.xpose.msra.mxu0 0
    %4821 = vmatprep.subr.bf16.mxu0 0
    %4822 = vmatpush2.bf16.xpose.msra.mxu0 0
    %4823 = vmatprep.subr.bf16.mxu0 0
    %4824 = vmatpush2.bf16.xpose.msra.mxu0 0
    %4825 = vmatprep.subr.bf16.mxu0 0
    %4826 = vmatpush2.bf16.xpose.msra.mxu0 0
    %4827 = vmatprep.subr.bf16.mxu0 0
    %4828 = vmatpush2.bf16.xpose.msra.mxu0 0
    %4829 = vmatprep.mubr.bf16.mxu0 0
    %4830 = vmatmul.mubr.bf16.gmra.mxu0 %v4792
    %v4831 = vpop.f32.mrf.mxu0
    %v4832 = vadd.f32 %v323, %v4831
    %v4833 = vpop.f32.mrf.mxu0
    %v4834 = vpop.f32.mrf.mxu0
    %v4835 = vadd.f32 %v324, %v4834
    %v4836 = vpop.f32.mrf.mxu0
    %4837 = vdwg.mxu0
    %v4839 = vsel %vm1010, %v4730, 0
    %v4842 = vsel %vm1010, %v4738, 0
    %4844 = vmatprep.subr.bf16.mxu0 0
    %4845 = vmatpush1.bf16.xpose.msra.mxu0 0
    %4846 = vmatprep.subr.bf16.mxu0 0
    %4847 = vmatpush1.bf16.xpose.msra.mxu0 0
    %4848 = vmatprep.subr.bf16.mxu0 0
    %4849 = vmatpush1.bf16.xpose.msra.mxu0 0
    %4850 = vmatprep.subr.bf16.mxu0 0
    %4851 = vmatpush1.bf16.xpose.msra.mxu0 0
    %4852 = vmatprep.subr.bf16.mxu0 0
    %4853 = vmatpush1.bf16.xpose.msra.mxu0 0
    %4854 = vmatprep.subr.bf16.mxu0 0
    %4855 = vmatpush1.bf16.xpose.msra.mxu0 0
    %4856 = vmatprep.subr.bf16.mxu0 0
    %4857 = vmatpush1.bf16.xpose.msra.mxu0 0
    %4858 = vmatprep.subr.bf16.mxu0 0
    %4859 = vmatpush1.bf16.xpose.msra.mxu0 %v4842
    %4860 = vmatprep.subr.bf16.mxu0 0
    %4861 = vmatpush2.bf16.xpose.msra.mxu0 0
    %4862 = vmatprep.subr.bf16.mxu0 0
    %4863 = vmatpush2.bf16.xpose.msra.mxu0 0
    %4864 = vmatprep.subr.bf16.mxu0 0
    %4865 = vmatpush2.bf16.xpose.msra.mxu0 0
    %4866 = vmatprep.subr.bf16.mxu0 0
    %4867 = vmatpush2.bf16.xpose.msra.mxu0 0
    %4868 = vmatprep.subr.bf16.mxu0 0
    %4869 = vmatpush2.bf16.xpose.msra.mxu0 0
    %4870 = vmatprep.subr.bf16.mxu0 0
    %4871 = vmatpush2.bf16.xpose.msra.mxu0 0
    %4872 = vmatprep.subr.bf16.mxu0 0
    %4873 = vmatpush2.bf16.xpose.msra.mxu0 0
    %4874 = vmatprep.subr.bf16.mxu0 0
    %4875 = vmatpush2.bf16.xpose.msra.mxu0 0
    %4876 = vmatprep.mubr.bf16.mxu0 0
    %4877 = vmatmul.mubr.bf16.gmra.mxu0 %v4839
    %v4878 = vpop.f32.mrf.mxu0
    %v4879 = vadd.f32 %v325, %v4878
    %v4880 = vpop.f32.mrf.mxu0
    %v4881 = vpop.f32.mrf.mxu0
    %v4882 = vadd.f32 %v326, %v4881
    %v4883 = vpop.f32.mrf.mxu0
    %4884 = vdwg.mxu0
    %v4886 = vsel %vm1010, %v4731, 0
    %v4889 = vsel %vm1010, %v4739, 0
    %4891 = vmatprep.subr.bf16.mxu0 0
    %4892 = vmatpush1.bf16.xpose.msra.mxu0 0
    %4893 = vmatprep.subr.bf16.mxu0 0
    %4894 = vmatpush1.bf16.xpose.msra.mxu0 0
    %4895 = vmatprep.subr.bf16.mxu0 0
    %4896 = vmatpush1.bf16.xpose.msra.mxu0 0
    %4897 = vmatprep.subr.bf16.mxu0 0
    %4898 = vmatpush1.bf16.xpose.msra.mxu0 0
    %4899 = vmatprep.subr.bf16.mxu0 0
    %4900 = vmatpush1.bf16.xpose.msra.mxu0 0
    %4901 = vmatprep.subr.bf16.mxu0 0
    %4902 = vmatpush1.bf16.xpose.msra.mxu0 0
    %4903 = vmatprep.subr.bf16.mxu0 0
    %4904 = vmatpush1.bf16.xpose.msra.mxu0 0
    %4905 = vmatprep.subr.bf16.mxu0 0
    %4906 = vmatpush1.bf16.xpose.msra.mxu0 %v4889
    %4907 = vmatprep.subr.bf16.mxu0 0
    %4908 = vmatpush2.bf16.xpose.msra.mxu0 0
    %4909 = vmatprep.subr.bf16.mxu0 0
    %4910 = vmatpush2.bf16.xpose.msra.mxu0 0
    %4911 = vmatprep.subr.bf16.mxu0 0
    %4912 = vmatpush2.bf16.xpose.msra.mxu0 0
    %4913 = vmatprep.subr.bf16.mxu0 0
    %4914 = vmatpush2.bf16.xpose.msra.mxu0 0
    %4915 = vmatprep.subr.bf16.mxu0 0
    %4916 = vmatpush2.bf16.xpose.msra.mxu0 0
    %4917 = vmatprep.subr.bf16.mxu0 0
    %4918 = vmatpush2.bf16.xpose.msra.mxu0 0
    %4919 = vmatprep.subr.bf16.mxu0 0
    %4920 = vmatpush2.bf16.xpose.msra.mxu0 0
    %4921 = vmatprep.subr.bf16.mxu0 0
    %4922 = vmatpush2.bf16.xpose.msra.mxu0 0
    %4923 = vmatprep.mubr.bf16.mxu0 0
    %4924 = vmatmul.mubr.bf16.gmra.mxu0 %v4886
    %v4925 = vpop.f32.mrf.mxu0
    %v4926 = vadd.f32 %v327, %v4925
    %v4927 = vpop.f32.mrf.mxu0
    %v4928 = vpop.f32.mrf.mxu0
    %v4929 = vadd.f32 %v328, %v4928
    %v4930 = vpop.f32.mrf.mxu0
    %4931 = vdwg.mxu0
    %v4933 = vsel %vm1010, %v4732, 0
    %v4936 = vsel %vm1010, %v4740, 0
    %4938 = vmatprep.subr.bf16.mxu0 0
    %4939 = vmatpush1.bf16.xpose.msra.mxu0 0
    %4940 = vmatprep.subr.bf16.mxu0 0
    %4941 = vmatpush1.bf16.xpose.msra.mxu0 0
    %4942 = vmatprep.subr.bf16.mxu0 0
    %4943 = vmatpush1.bf16.xpose.msra.mxu0 0
    %4944 = vmatprep.subr.bf16.mxu0 0
    %4945 = vmatpush1.bf16.xpose.msra.mxu0 0
    %4946 = vmatprep.subr.bf16.mxu0 0
    %4947 = vmatpush1.bf16.xpose.msra.mxu0 0
    %4948 = vmatprep.subr.bf16.mxu0 0
    %4949 = vmatpush1.bf16.xpose.msra.mxu0 0
    %4950 = vmatprep.subr.bf16.mxu0 0
    %4951 = vmatpush1.bf16.xpose.msra.mxu0 0
    %4952 = vmatprep.subr.bf16.mxu0 0
    %4953 = vmatpush1.bf16.xpose.msra.mxu0 %v4936
    %4954 = vmatprep.subr.bf16.mxu0 0
    %4955 = vmatpush2.bf16.xpose.msra.mxu0 0
    %4956 = vmatprep.subr.bf16.mxu0 0
    %4957 = vmatpush2.bf16.xpose.msra.mxu0 0
    %4958 = vmatprep.subr.bf16.mxu0 0
    %4959 = vmatpush2.bf16.xpose.msra.mxu0 0
    %4960 = vmatprep.subr.bf16.mxu0 0
    %4961 = vmatpush2.bf16.xpose.msra.mxu0 0
    %4962 = vmatprep.subr.bf16.mxu0 0
    %4963 = vmatpush2.bf16.xpose.msra.mxu0 0
    %4964 = vmatprep.subr.bf16.mxu0 0
    %4965 = vmatpush2.bf16.xpose.msra.mxu0 0
    %4966 = vmatprep.subr.bf16.mxu0 0
    %4967 = vmatpush2.bf16.xpose.msra.mxu0 0
    %4968 = vmatprep.subr.bf16.mxu0 0
    %4969 = vmatpush2.bf16.xpose.msra.mxu0 0
    %4970 = vmatprep.mubr.bf16.mxu0 0
    %4971 = vmatmul.mubr.bf16.gmra.mxu0 %v4933
    %v4972 = vpop.f32.mrf.mxu0
    %v4973 = vadd.f32 %v329, %v4972
    %v4974 = vpop.f32.mrf.mxu0
    %v4975 = vpop.f32.mrf.mxu0
    %v4976 = vadd.f32 %v330, %v4975
    %v4977 = vpop.f32.mrf.mxu0
    %4978 = vdwg.mxu0
    %v4980 = vsel %vm1010, %v4733, 0
    %v4983 = vsel %vm1010, %v4741, 0
    %4985 = vmatprep.subr.bf16.mxu0 0
    %4986 = vmatpush1.bf16.xpose.msra.mxu0 0
    %4987 = vmatprep.subr.bf16.mxu0 0
    %4988 = vmatpush1.bf16.xpose.msra.mxu0 0
    %4989 = vmatprep.subr.bf16.mxu0 0
    %4990 = vmatpush1.bf16.xpose.msra.mxu0 0
    %4991 = vmatprep.subr.bf16.mxu0 0
    %4992 = vmatpush1.bf16.xpose.msra.mxu0 0
    %4993 = vmatprep.subr.bf16.mxu0 0
    %4994 = vmatpush1.bf16.xpose.msra.mxu0 0
    %4995 = vmatprep.subr.bf16.mxu0 0
    %4996 = vmatpush1.bf16.xpose.msra.mxu0 0
    %4997 = vmatprep.subr.bf16.mxu0 0
    %4998 = vmatpush1.bf16.xpose.msra.mxu0 0
    %4999 = vmatprep.subr.bf16.mxu0 0
    %5000 = vmatpush1.bf16.xpose.msra.mxu0 %v4983
    %5001 = vmatprep.subr.bf16.mxu0 0
    %5002 = vmatpush2.bf16.xpose.msra.mxu0 0
    %5003 = vmatprep.subr.bf16.mxu0 0
    %5004 = vmatpush2.bf16.xpose.msra.mxu0 0
    %5005 = vmatprep.subr.bf16.mxu0 0
    %5006 = vmatpush2.bf16.xpose.msra.mxu0 0
    %5007 = vmatprep.subr.bf16.mxu0 0
    %5008 = vmatpush2.bf16.xpose.msra.mxu0 0
    %5009 = vmatprep.subr.bf16.mxu0 0
    %5010 = vmatpush2.bf16.xpose.msra.mxu0 0
    %5011 = vmatprep.subr.bf16.mxu0 0
    %5012 = vmatpush2.bf16.xpose.msra.mxu0 0
    %5013 = vmatprep.subr.bf16.mxu0 0
    %5014 = vmatpush2.bf16.xpose.msra.mxu0 0
    %5015 = vmatprep.subr.bf16.mxu0 0
    %5016 = vmatpush2.bf16.xpose.msra.mxu0 0
    %5017 = vmatprep.mubr.bf16.mxu0 0
    %5018 = vmatmul.mubr.bf16.gmra.mxu0 %v4980
    %v5019 = vpop.f32.mrf.mxu0
    %v5020 = vadd.f32 %v331, %v5019
    %v5021 = vpop.f32.mrf.mxu0
    %v5022 = vpop.f32.mrf.mxu0
    %v5023 = vadd.f32 %v332, %v5022
    %v5024 = vpop.f32.mrf.mxu0
    %5025 = vdwg.mxu0
    %v5027 = vsel %vm1010, %v4734, 0
    %v5030 = vsel %vm1010, %v4742, 0
    %5032 = vmatprep.subr.bf16.mxu0 0
    %5033 = vmatpush1.bf16.xpose.msra.mxu0 0
    %5034 = vmatprep.subr.bf16.mxu0 0
    %5035 = vmatpush1.bf16.xpose.msra.mxu0 0
    %5036 = vmatprep.subr.bf16.mxu0 0
    %5037 = vmatpush1.bf16.xpose.msra.mxu0 0
    %5038 = vmatprep.subr.bf16.mxu0 0
    %5039 = vmatpush1.bf16.xpose.msra.mxu0 0
    %5040 = vmatprep.subr.bf16.mxu0 0
    %5041 = vmatpush1.bf16.xpose.msra.mxu0 0
    %5042 = vmatprep.subr.bf16.mxu0 0
    %5043 = vmatpush1.bf16.xpose.msra.mxu0 0
    %5044 = vmatprep.subr.bf16.mxu0 0
    %5045 = vmatpush1.bf16.xpose.msra.mxu0 0
    %5046 = vmatprep.subr.bf16.mxu0 0
    %5047 = vmatpush1.bf16.xpose.msra.mxu0 %v5030
    %5048 = vmatprep.subr.bf16.mxu0 0
    %5049 = vmatpush2.bf16.xpose.msra.mxu0 0
    %5050 = vmatprep.subr.bf16.mxu0 0
    %5051 = vmatpush2.bf16.xpose.msra.mxu0 0
    %5052 = vmatprep.subr.bf16.mxu0 0
    %5053 = vmatpush2.bf16.xpose.msra.mxu0 0
    %5054 = vmatprep.subr.bf16.mxu0 0
    %5055 = vmatpush2.bf16.xpose.msra.mxu0 0
    %5056 = vmatprep.subr.bf16.mxu0 0
    %5057 = vmatpush2.bf16.xpose.msra.mxu0 0
    %5058 = vmatprep.subr.bf16.mxu0 0
    %5059 = vmatpush2.bf16.xpose.msra.mxu0 0
    %5060 = vmatprep.subr.bf16.mxu0 0
    %5061 = vmatpush2.bf16.xpose.msra.mxu0 0
    %5062 = vmatprep.subr.bf16.mxu0 0
    %5063 = vmatpush2.bf16.xpose.msra.mxu0 0
    %5064 = vmatprep.mubr.bf16.mxu0 0
    %5065 = vmatmul.mubr.bf16.gmra.mxu0 %v5027
    %v5066 = vpop.f32.mrf.mxu0
    %v5067 = vadd.f32 %v333, %v5066
    %v5068 = vpop.f32.mrf.mxu0
    %v5069 = vpop.f32.mrf.mxu0
    %v5070 = vadd.f32 %v334, %v5069
    %v5071 = vpop.f32.mrf.mxu0
    %5072 = vdwg.mxu0
    %v5074 = vsel %vm1010, %v4735, 0
    %v5077 = vsel %vm1010, %v4743, 0
    %5079 = vmatprep.subr.bf16.mxu0 0
    %5080 = vmatpush1.bf16.xpose.msra.mxu0 0
    %5081 = vmatprep.subr.bf16.mxu0 0
    %5082 = vmatpush1.bf16.xpose.msra.mxu0 0
    %5083 = vmatprep.subr.bf16.mxu0 0
    %5084 = vmatpush1.bf16.xpose.msra.mxu0 0
    %5085 = vmatprep.subr.bf16.mxu0 0
    %5086 = vmatpush1.bf16.xpose.msra.mxu0 0
    %5087 = vmatprep.subr.bf16.mxu0 0
    %5088 = vmatpush1.bf16.xpose.msra.mxu0 0
    %5089 = vmatprep.subr.bf16.mxu0 0
    %5090 = vmatpush1.bf16.xpose.msra.mxu0 0
    %5091 = vmatprep.subr.bf16.mxu0 0
    %5092 = vmatpush1.bf16.xpose.msra.mxu0 0
    %5093 = vmatprep.subr.bf16.mxu0 0
    %5094 = vmatpush1.bf16.xpose.msra.mxu0 %v5077
    %5095 = vmatprep.subr.bf16.mxu0 0
    %5096 = vmatpush2.bf16.xpose.msra.mxu0 0
    %5097 = vmatprep.subr.bf16.mxu0 0
    %5098 = vmatpush2.bf16.xpose.msra.mxu0 0
    %5099 = vmatprep.subr.bf16.mxu0 0
    %5100 = vmatpush2.bf16.xpose.msra.mxu0 0
    %5101 = vmatprep.subr.bf16.mxu0 0
    %5102 = vmatpush2.bf16.xpose.msra.mxu0 0
    %5103 = vmatprep.subr.bf16.mxu0 0
    %5104 = vmatpush2.bf16.xpose.msra.mxu0 0
    %5105 = vmatprep.subr.bf16.mxu0 0
    %5106 = vmatpush2.bf16.xpose.msra.mxu0 0
    %5107 = vmatprep.subr.bf16.mxu0 0
    %5108 = vmatpush2.bf16.xpose.msra.mxu0 0
    %5109 = vmatprep.subr.bf16.mxu0 0
    %5110 = vmatpush2.bf16.xpose.msra.mxu0 0
    %5111 = vmatprep.mubr.bf16.mxu0 0
    %5112 = vmatmul.mubr.bf16.gmra.mxu0 %v5074
    %v5113 = vpop.f32.mrf.mxu0
    %v5114 = vadd.f32 %v335, %v5113
    %v5115 = vpop.f32.mrf.mxu0
    %v5116 = vpop.f32.mrf.mxu0
    %v5117 = vadd.f32 %v336, %v5116
    %v5118 = vpop.f32.mrf.mxu0
    %5119 = vdwg.mxu0
    %v5120 = vsel %vm1010, %v4785, -inf
    %5121 = vmax.xlane.f32.xlu0 %v5120
    %v5122 = vpop.xlane.xlu0 %5121
    %v5123 = vsel %vm1010, %v4788, -inf
    %5124 = vmax.xlane.f32.xlu0 %v5123
    %v5125 = vpop.xlane.xlu0 %5124
    %v5126 = vsel %vm1010, %v4832, -inf
    %5127 = vmax.xlane.f32.xlu0 %v5126
    %v5128 = vpop.xlane.xlu0 %5127
    %v5129 = vsel %vm1010, %v4835, -inf
    %5130 = vmax.xlane.f32.xlu0 %v5129
    %v5131 = vpop.xlane.xlu0 %5130
    %v5132 = vsel %vm1010, %v4879, -inf
    %5133 = vmax.xlane.f32.xlu0 %v5132
    %v5134 = vpop.xlane.xlu0 %5133
    %v5135 = vsel %vm1010, %v4882, -inf
    %5136 = vmax.xlane.f32.xlu0 %v5135
    %v5137 = vpop.xlane.xlu0 %5136
    %v5138 = vsel %vm1010, %v4926, -inf
    %5139 = vmax.xlane.f32.xlu0 %v5138
    %v5140 = vpop.xlane.xlu0 %5139
    %v5141 = vsel %vm1010, %v4929, -inf
    %5142 = vmax.xlane.f32.xlu0 %v5141
    %v5143 = vpop.xlane.xlu0 %5142
    %v5144 = vsel %vm1010, %v4973, -inf
    %5145 = vmax.xlane.f32.xlu0 %v5144
    %v5146 = vpop.xlane.xlu0 %5145
    %v5147 = vsel %vm1010, %v4976, -inf
    %5148 = vmax.xlane.f32.xlu0 %v5147
    %v5149 = vpop.xlane.xlu0 %5148
    %v5150 = vsel %vm1010, %v5020, -inf
    %5151 = vmax.xlane.f32.xlu0 %v5150
    %v5152 = vpop.xlane.xlu0 %5151
    %v5153 = vsel %vm1010, %v5023, -inf
    %5154 = vmax.xlane.f32.xlu0 %v5153
    %v5155 = vpop.xlane.xlu0 %5154
    %v5156 = vsel %vm1010, %v5067, -inf
    %5157 = vmax.xlane.f32.xlu0 %v5156
    %v5158 = vpop.xlane.xlu0 %5157
    %v5159 = vsel %vm1010, %v5070, -inf
    %5160 = vmax.xlane.f32.xlu0 %v5159
    %v5161 = vpop.xlane.xlu0 %5160
    %v5162 = vsel %vm1010, %v5114, -inf
    %5163 = vmax.xlane.f32.xlu0 %v5162
    %v5164 = vpop.xlane.xlu0 %5163
    %v5165 = vsel %vm1010, %v5117, -inf
    %5166 = vmax.xlane.f32.xlu0 %v5165
    %v5167 = vpop.xlane.xlu0 %5166
    %v5168 = vsub.f32 %v4785, %v5122
    %v5169 = vsub.f32 %v4788, %v5125
    %v5170 = vsub.f32 %v4832, %v5128
    %v5171 = vsub.f32 %v4835, %v5131
    %v5172 = vsub.f32 %v4879, %v5134
    %v5173 = vsub.f32 %v4882, %v5137
    %v5174 = vsub.f32 %v4926, %v5140
    %v5175 = vsub.f32 %v4929, %v5143
    %v5176 = vsub.f32 %v4973, %v5146
    %v5177 = vsub.f32 %v4976, %v5149
    %v5178 = vsub.f32 %v5020, %v5152
    %v5179 = vsub.f32 %v5023, %v5155
    %v5180 = vsub.f32 %v5067, %v5158
    %v5181 = vsub.f32 %v5070, %v5161
    %v5182 = vsub.f32 %v5114, %v5164
    %v5183 = vsub.f32 %v5117, %v5167
    %v5184 = vmul.f32 %v5168, 1.442695
    %v5185 = vpow.pop %v5184
    %v5186 = vmul.f32 %v5169, 1.442695
    %v5187 = vpow.pop %v5186
    %v5188 = vmul.f32 %v5170, 1.442695
    %v5189 = vpow.pop %v5188
    %v5190 = vmul.f32 %v5171, 1.442695
    %v5191 = vpow.pop %v5190
    %v5192 = vmul.f32 %v5172, 1.442695
    %v5193 = vpow.pop %v5192
    %v5194 = vmul.f32 %v5173, 1.442695
    %v5195 = vpow.pop %v5194
    %v5196 = vmul.f32 %v5174, 1.442695
    %v5197 = vpow.pop %v5196
    %v5198 = vmul.f32 %v5175, 1.442695
    %v5199 = vpow.pop %v5198
    %v5200 = vmul.f32 %v5176, 1.442695
    %v5201 = vpow.pop %v5200
    %v5202 = vmul.f32 %v5177, 1.442695
    %v5203 = vpow.pop %v5202
    %v5204 = vmul.f32 %v5178, 1.442695
    %v5205 = vpow.pop %v5204
    %v5206 = vmul.f32 %v5179, 1.442695
    %v5207 = vpow.pop %v5206
    %v5208 = vmul.f32 %v5180, 1.442695
    %v5209 = vpow.pop %v5208
    %v5210 = vmul.f32 %v5181, 1.442695
    %v5211 = vpow.pop %v5210
    %v5212 = vmul.f32 %v5182, 1.442695
    %v5213 = vpow.pop %v5212
    %v5214 = vmul.f32 %v5183, 1.442695
    %v5215 = vpow.pop %v5214
    %v5216 = vsel %vm1010, %v5185, 0.0
    %5217 = vadd.xlane.f32.xlu0 %v5216
    %v5218 = vpop.xlane.xlu0 %5217
    %v5219 = vsel %vm1010, %v5187, 0.0
    %5220 = vadd.xlane.f32.xlu0 %v5219
    %v5221 = vpop.xlane.xlu0 %5220
    %v5222 = vsel %vm1010, %v5189, 0.0
    %5223 = vadd.xlane.f32.xlu0 %v5222
    %v5224 = vpop.xlane.xlu0 %5223
    %v5225 = vsel %vm1010, %v5191, 0.0
    %5226 = vadd.xlane.f32.xlu0 %v5225
    %v5227 = vpop.xlane.xlu0 %5226
    %v5228 = vsel %vm1010, %v5193, 0.0
    %5229 = vadd.xlane.f32.xlu0 %v5228
    %v5230 = vpop.xlane.xlu0 %5229
    %v5231 = vsel %vm1010, %v5195, 0.0
    %5232 = vadd.xlane.f32.xlu0 %v5231
    %v5233 = vpop.xlane.xlu0 %5232
    %v5234 = vsel %vm1010, %v5197, 0.0
    %5235 = vadd.xlane.f32.xlu0 %v5234
    %v5236 = vpop.xlane.xlu0 %5235
    %v5237 = vsel %vm1010, %v5199, 0.0
    %5238 = vadd.xlane.f32.xlu0 %v5237
    %v5239 = vpop.xlane.xlu0 %5238
    %v5240 = vsel %vm1010, %v5201, 0.0
    %5241 = vadd.xlane.f32.xlu0 %v5240
    %v5242 = vpop.xlane.xlu0 %5241
    %v5243 = vsel %vm1010, %v5203, 0.0
    %5244 = vadd.xlane.f32.xlu0 %v5243
    %v5245 = vpop.xlane.xlu0 %5244
    %v5246 = vsel %vm1010, %v5205, 0.0
    %5247 = vadd.xlane.f32.xlu0 %v5246
    %v5248 = vpop.xlane.xlu0 %5247
    %v5249 = vsel %vm1010, %v5207, 0.0
    %5250 = vadd.xlane.f32.xlu0 %v5249
    %v5251 = vpop.xlane.xlu0 %5250
    %v5252 = vsel %vm1010, %v5209, 0.0
    %5253 = vadd.xlane.f32.xlu0 %v5252
    %v5254 = vpop.xlane.xlu0 %5253
    %v5255 = vsel %vm1010, %v5211, 0.0
    %5256 = vadd.xlane.f32.xlu0 %v5255
    %v5257 = vpop.xlane.xlu0 %5256
    %v5258 = vsel %vm1010, %v5213, 0.0
    %5259 = vadd.xlane.f32.xlu0 %v5258
    %v5260 = vpop.xlane.xlu0 %5259
    %v5261 = vsel %vm1010, %v5215, 0.0
    %5262 = vadd.xlane.f32.xlu0 %v5261
    %v5263 = vpop.xlane.xlu0 %5262
    %v5264 = vrcp.pop %v5218
    %v5265 = vrcp.pop %v5221
    %v5266 = vrcp.pop %v5224
    %v5267 = vrcp.pop %v5227
    %v5268 = vrcp.pop %v5230
    %v5269 = vrcp.pop %v5233
    %v5270 = vrcp.pop %v5236
    %v5271 = vrcp.pop %v5239
    %v5272 = vrcp.pop %v5242
    %v5273 = vrcp.pop %v5245
    %v5274 = vrcp.pop %v5248
    %v5275 = vrcp.pop %v5251
    %v5276 = vrcp.pop %v5254
    %v5277 = vrcp.pop %v5257
    %v5278 = vrcp.pop %v5260
    %v5279 = vrcp.pop %v5263
    %v5280 = vmul.f32 %v5185, %v5264
    %v5281 = vmul.f32 %v5187, %v5265
    %v5282 = vmul.f32 %v5189, %v5266
    %v5283 = vmul.f32 %v5191, %v5267
    %v5284 = vmul.f32 %v5193, %v5268
    %v5285 = vmul.f32 %v5195, %v5269
    %v5286 = vmul.f32 %v5197, %v5270
    %v5287 = vmul.f32 %v5199, %v5271
    %v5288 = vmul.f32 %v5201, %v5272
    %v5289 = vmul.f32 %v5203, %v5273
    %v5290 = vmul.f32 %v5205, %v5274
    %v5291 = vmul.f32 %v5207, %v5275
    %v5292 = vmul.f32 %v5209, %v5276
    %v5293 = vmul.f32 %v5211, %v5277
    %v5294 = vmul.f32 %v5213, %v5278
    %v5295 = vmul.f32 %v5215, %v5279
    %v5296 = vpack.c.bf16 %v5281, %v5280
    %v5297 = vpack.c.bf16 %v5283, %v5282
    %v5298 = vpack.c.bf16 %v5285, %v5284
    %v5299 = vpack.c.bf16 %v5287, %v5286
    %v5300 = vpack.c.bf16 %v5289, %v5288
    %v5301 = vpack.c.bf16 %v5291, %v5290
    %v5302 = vpack.c.bf16 %v5293, %v5292
    %v5303 = vpack.c.bf16 %v5295, %v5294
    %v5304 = vpack.c.bf16 %v4669, %v4666
    %v5305 = vpack.c.bf16 %v4677, %v4674
    %v5306 = vpack.c.bf16 %v4685, %v4682
    %v5307 = vpack.c.bf16 %v4693, %v4690
    %v5308 = vpack.c.bf16 %v4701, %v4698
    %v5309 = vpack.c.bf16 %v4709, %v4706
    %v5310 = vpack.c.bf16 %v4717, %v4714
    %v5311 = vpack.c.bf16 %v4725, %v4722
    %v5313 = vsel %vm1010, %v5296, 0
    %5315 = vmatprep.subr.bf16.mxu0 0
    %5316 = vmatpush1.bf16.msra.mxu0 0
    %5317 = vmatprep.subr.bf16.mxu0 0
    %5318 = vmatpush1.bf16.msra.mxu0 0
    %5319 = vmatprep.subr.bf16.mxu0 0
    %5320 = vmatpush1.bf16.msra.mxu0 0
    %5321 = vmatprep.subr.bf16.mxu0 0
    %5322 = vmatpush1.bf16.msra.mxu0 0
    %5323 = vmatprep.subr.bf16.mxu0 0
    %5324 = vmatpush1.bf16.msra.mxu0 0
    %5325 = vmatprep.subr.bf16.mxu0 0
    %5326 = vmatpush1.bf16.msra.mxu0 0
    %5327 = vmatprep.subr.bf16.mxu0 0
    %5328 = vmatpush1.bf16.msra.mxu0 0
    %5329 = vmatprep.subr.bf16.mxu0 0
    %5330 = vmatpush1.bf16.msra.mxu0 %v5304
    %5331 = vmatprep.subr.bf16.mxu0 0
    %5332 = vmatpush2.bf16.msra.mxu0 0
    %5333 = vmatprep.subr.bf16.mxu0 0
    %5334 = vmatpush2.bf16.msra.mxu0 0
    %5335 = vmatprep.subr.bf16.mxu0 0
    %5336 = vmatpush2.bf16.msra.mxu0 0
    %5337 = vmatprep.subr.bf16.mxu0 0
    %5338 = vmatpush2.bf16.msra.mxu0 0
    %5339 = vmatprep.subr.bf16.mxu0 0
    %5340 = vmatpush2.bf16.msra.mxu0 0
    %5341 = vmatprep.subr.bf16.mxu0 0
    %5342 = vmatpush2.bf16.msra.mxu0 0
    %5343 = vmatprep.subr.bf16.mxu0 0
    %5344 = vmatpush2.bf16.msra.mxu0 0
    %5345 = vmatprep.subr.bf16.mxu0 0
    %5346 = vmatpush2.bf16.msra.mxu0 0
    %5347 = vmatprep.mubr.bf16.mxu0 0
    %5348 = vmatmul.mubr.bf16.gmra.mxu0 %v5313
    %v5349 = vpop.f32.mrf.mxu0
    %v5350 = vadd.f32 0.0, %v5349
    %v5351 = vpop.f32.mrf.mxu0
    %v5352 = vpop.f32.mrf.mxu0
    %v5353 = vadd.f32 0.0, %v5352
    %v5354 = vpop.f32.mrf.mxu0
    %5355 = vdwg.mxu0
    %v5357 = vsel %vm1010, %v5297, 0
    %5359 = vmatprep.subr.bf16.mxu0 0
    %5360 = vmatpush1.bf16.msra.mxu0 0
    %5361 = vmatprep.subr.bf16.mxu0 0
    %5362 = vmatpush1.bf16.msra.mxu0 0
    %5363 = vmatprep.subr.bf16.mxu0 0
    %5364 = vmatpush1.bf16.msra.mxu0 0
    %5365 = vmatprep.subr.bf16.mxu0 0
    %5366 = vmatpush1.bf16.msra.mxu0 0
    %5367 = vmatprep.subr.bf16.mxu0 0
    %5368 = vmatpush1.bf16.msra.mxu0 0
    %5369 = vmatprep.subr.bf16.mxu0 0
    %5370 = vmatpush1.bf16.msra.mxu0 0
    %5371 = vmatprep.subr.bf16.mxu0 0
    %5372 = vmatpush1.bf16.msra.mxu0 0
    %5373 = vmatprep.subr.bf16.mxu0 0
    %5374 = vmatpush1.bf16.msra.mxu0 %v5305
    %5375 = vmatprep.subr.bf16.mxu0 0
    %5376 = vmatpush2.bf16.msra.mxu0 0
    %5377 = vmatprep.subr.bf16.mxu0 0
    %5378 = vmatpush2.bf16.msra.mxu0 0
    %5379 = vmatprep.subr.bf16.mxu0 0
    %5380 = vmatpush2.bf16.msra.mxu0 0
    %5381 = vmatprep.subr.bf16.mxu0 0
    %5382 = vmatpush2.bf16.msra.mxu0 0
    %5383 = vmatprep.subr.bf16.mxu0 0
    %5384 = vmatpush2.bf16.msra.mxu0 0
    %5385 = vmatprep.subr.bf16.mxu0 0
    %5386 = vmatpush2.bf16.msra.mxu0 0
    %5387 = vmatprep.subr.bf16.mxu0 0
    %5388 = vmatpush2.bf16.msra.mxu0 0
    %5389 = vmatprep.subr.bf16.mxu0 0
    %5390 = vmatpush2.bf16.msra.mxu0 0
    %5391 = vmatprep.mubr.bf16.mxu0 0
    %5392 = vmatmul.mubr.bf16.gmra.mxu0 %v5357
    %v5393 = vpop.f32.mrf.mxu0
    %v5394 = vadd.f32 0.0, %v5393
    %v5395 = vpop.f32.mrf.mxu0
    %v5396 = vpop.f32.mrf.mxu0
    %v5397 = vadd.f32 0.0, %v5396
    %v5398 = vpop.f32.mrf.mxu0
    %5399 = vdwg.mxu0
    %v5401 = vsel %vm1010, %v5298, 0
    %5403 = vmatprep.subr.bf16.mxu0 0
    %5404 = vmatpush1.bf16.msra.mxu0 0
    %5405 = vmatprep.subr.bf16.mxu0 0
    %5406 = vmatpush1.bf16.msra.mxu0 0
    %5407 = vmatprep.subr.bf16.mxu0 0
    %5408 = vmatpush1.bf16.msra.mxu0 0
    %5409 = vmatprep.subr.bf16.mxu0 0
    %5410 = vmatpush1.bf16.msra.mxu0 0
    %5411 = vmatprep.subr.bf16.mxu0 0
    %5412 = vmatpush1.bf16.msra.mxu0 0
    %5413 = vmatprep.subr.bf16.mxu0 0
    %5414 = vmatpush1.bf16.msra.mxu0 0
    %5415 = vmatprep.subr.bf16.mxu0 0
    %5416 = vmatpush1.bf16.msra.mxu0 0
    %5417 = vmatprep.subr.bf16.mxu0 0
    %5418 = vmatpush1.bf16.msra.mxu0 %v5306
    %5419 = vmatprep.subr.bf16.mxu0 0
    %5420 = vmatpush2.bf16.msra.mxu0 0
    %5421 = vmatprep.subr.bf16.mxu0 0
    %5422 = vmatpush2.bf16.msra.mxu0 0
    %5423 = vmatprep.subr.bf16.mxu0 0
    %5424 = vmatpush2.bf16.msra.mxu0 0
    %5425 = vmatprep.subr.bf16.mxu0 0
    %5426 = vmatpush2.bf16.msra.mxu0 0
    %5427 = vmatprep.subr.bf16.mxu0 0
    %5428 = vmatpush2.bf16.msra.mxu0 0
    %5429 = vmatprep.subr.bf16.mxu0 0
    %5430 = vmatpush2.bf16.msra.mxu0 0
    %5431 = vmatprep.subr.bf16.mxu0 0
    %5432 = vmatpush2.bf16.msra.mxu0 0
    %5433 = vmatprep.subr.bf16.mxu0 0
    %5434 = vmatpush2.bf16.msra.mxu0 0
    %5435 = vmatprep.mubr.bf16.mxu0 0
    %5436 = vmatmul.mubr.bf16.gmra.mxu0 %v5401
    %v5437 = vpop.f32.mrf.mxu0
    %v5438 = vadd.f32 0.0, %v5437
    %v5439 = vpop.f32.mrf.mxu0
    %v5440 = vpop.f32.mrf.mxu0
    %v5441 = vadd.f32 0.0, %v5440
    %v5442 = vpop.f32.mrf.mxu0
    %5443 = vdwg.mxu0
    %v5445 = vsel %vm1010, %v5299, 0
    %5447 = vmatprep.subr.bf16.mxu0 0
    %5448 = vmatpush1.bf16.msra.mxu0 0
    %5449 = vmatprep.subr.bf16.mxu0 0
    %5450 = vmatpush1.bf16.msra.mxu0 0
    %5451 = vmatprep.subr.bf16.mxu0 0
    %5452 = vmatpush1.bf16.msra.mxu0 0
    %5453 = vmatprep.subr.bf16.mxu0 0
    %5454 = vmatpush1.bf16.msra.mxu0 0
    %5455 = vmatprep.subr.bf16.mxu0 0
    %5456 = vmatpush1.bf16.msra.mxu0 0
    %5457 = vmatprep.subr.bf16.mxu0 0
    %5458 = vmatpush1.bf16.msra.mxu0 0
    %5459 = vmatprep.subr.bf16.mxu0 0
    %5460 = vmatpush1.bf16.msra.mxu0 0
    %5461 = vmatprep.subr.bf16.mxu0 0
    %5462 = vmatpush1.bf16.msra.mxu0 %v5307
    %5463 = vmatprep.subr.bf16.mxu0 0
    %5464 = vmatpush2.bf16.msra.mxu0 0
    %5465 = vmatprep.subr.bf16.mxu0 0
    %5466 = vmatpush2.bf16.msra.mxu0 0
    %5467 = vmatprep.subr.bf16.mxu0 0
    %5468 = vmatpush2.bf16.msra.mxu0 0
    %5469 = vmatprep.subr.bf16.mxu0 0
    %5470 = vmatpush2.bf16.msra.mxu0 0
    %5471 = vmatprep.subr.bf16.mxu0 0
    %5472 = vmatpush2.bf16.msra.mxu0 0
    %5473 = vmatprep.subr.bf16.mxu0 0
    %5474 = vmatpush2.bf16.msra.mxu0 0
    %5475 = vmatprep.subr.bf16.mxu0 0
    %5476 = vmatpush2.bf16.msra.mxu0 0
    %5477 = vmatprep.subr.bf16.mxu0 0
    %5478 = vmatpush2.bf16.msra.mxu0 0
    %5479 = vmatprep.mubr.bf16.mxu0 0
    %5480 = vmatmul.mubr.bf16.gmra.mxu0 %v5445
    %v5481 = vpop.f32.mrf.mxu0
    %v5482 = vadd.f32 0.0, %v5481
    %v5483 = vpop.f32.mrf.mxu0
    %v5484 = vpop.f32.mrf.mxu0
    %v5485 = vadd.f32 0.0, %v5484
    %v5486 = vpop.f32.mrf.mxu0
    %5487 = vdwg.mxu0
    %v5489 = vsel %vm1010, %v5300, 0
    %5491 = vmatprep.subr.bf16.mxu0 0
    %5492 = vmatpush1.bf16.msra.mxu0 0
    %5493 = vmatprep.subr.bf16.mxu0 0
    %5494 = vmatpush1.bf16.msra.mxu0 0
    %5495 = vmatprep.subr.bf16.mxu0 0
    %5496 = vmatpush1.bf16.msra.mxu0 0
    %5497 = vmatprep.subr.bf16.mxu0 0
    %5498 = vmatpush1.bf16.msra.mxu0 0
    %5499 = vmatprep.subr.bf16.mxu0 0
    %5500 = vmatpush1.bf16.msra.mxu0 0
    %5501 = vmatprep.subr.bf16.mxu0 0
    %5502 = vmatpush1.bf16.msra.mxu0 0
    %5503 = vmatprep.subr.bf16.mxu0 0
    %5504 = vmatpush1.bf16.msra.mxu0 0
    %5505 = vmatprep.subr.bf16.mxu0 0
    %5506 = vmatpush1.bf16.msra.mxu0 %v5308
    %5507 = vmatprep.subr.bf16.mxu0 0
    %5508 = vmatpush2.bf16.msra.mxu0 0
    %5509 = vmatprep.subr.bf16.mxu0 0
    %5510 = vmatpush2.bf16.msra.mxu0 0
    %5511 = vmatprep.subr.bf16.mxu0 0
    %5512 = vmatpush2.bf16.msra.mxu0 0
    %5513 = vmatprep.subr.bf16.mxu0 0
    %5514 = vmatpush2.bf16.msra.mxu0 0
    %5515 = vmatprep.subr.bf16.mxu0 0
    %5516 = vmatpush2.bf16.msra.mxu0 0
    %5517 = vmatprep.subr.bf16.mxu0 0
    %5518 = vmatpush2.bf16.msra.mxu0 0
    %5519 = vmatprep.subr.bf16.mxu0 0
    %5520 = vmatpush2.bf16.msra.mxu0 0
    %5521 = vmatprep.subr.bf16.mxu0 0
    %5522 = vmatpush2.bf16.msra.mxu0 0
    %5523 = vmatprep.mubr.bf16.mxu0 0
    %5524 = vmatmul.mubr.bf16.gmra.mxu0 %v5489
    %v5525 = vpop.f32.mrf.mxu0
    %v5526 = vadd.f32 0.0, %v5525
    %v5527 = vpop.f32.mrf.mxu0
    %v5528 = vpop.f32.mrf.mxu0
    %v5529 = vadd.f32 0.0, %v5528
    %v5530 = vpop.f32.mrf.mxu0
    %5531 = vdwg.mxu0
    %v5533 = vsel %vm1010, %v5301, 0
    %5535 = vmatprep.subr.bf16.mxu0 0
    %5536 = vmatpush1.bf16.msra.mxu0 0
    %5537 = vmatprep.subr.bf16.mxu0 0
    %5538 = vmatpush1.bf16.msra.mxu0 0
    %5539 = vmatprep.subr.bf16.mxu0 0
    %5540 = vmatpush1.bf16.msra.mxu0 0
    %5541 = vmatprep.subr.bf16.mxu0 0
    %5542 = vmatpush1.bf16.msra.mxu0 0
    %5543 = vmatprep.subr.bf16.mxu0 0
    %5544 = vmatpush1.bf16.msra.mxu0 0
    %5545 = vmatprep.subr.bf16.mxu0 0
    %5546 = vmatpush1.bf16.msra.mxu0 0
    %5547 = vmatprep.subr.bf16.mxu0 0
    %5548 = vmatpush1.bf16.msra.mxu0 0
    %5549 = vmatprep.subr.bf16.mxu0 0
    %5550 = vmatpush1.bf16.msra.mxu0 %v5309
    %5551 = vmatprep.subr.bf16.mxu0 0
    %5552 = vmatpush2.bf16.msra.mxu0 0
    %5553 = vmatprep.subr.bf16.mxu0 0
    %5554 = vmatpush2.bf16.msra.mxu0 0
    %5555 = vmatprep.subr.bf16.mxu0 0
    %5556 = vmatpush2.bf16.msra.mxu0 0
    %5557 = vmatprep.subr.bf16.mxu0 0
    %5558 = vmatpush2.bf16.msra.mxu0 0
    %5559 = vmatprep.subr.bf16.mxu0 0
    %5560 = vmatpush2.bf16.msra.mxu0 0
    %5561 = vmatprep.subr.bf16.mxu0 0
    %5562 = vmatpush2.bf16.msra.mxu0 0
    %5563 = vmatprep.subr.bf16.mxu0 0
    %5564 = vmatpush2.bf16.msra.mxu0 0
    %5565 = vmatprep.subr.bf16.mxu0 0
    %5566 = vmatpush2.bf16.msra.mxu0 0
    %5567 = vmatprep.mubr.bf16.mxu0 0
    %5568 = vmatmul.mubr.bf16.gmra.mxu0 %v5533
    %v5569 = vpop.f32.mrf.mxu0
    %v5570 = vadd.f32 0.0, %v5569
    %v5571 = vpop.f32.mrf.mxu0
    %v5572 = vpop.f32.mrf.mxu0
    %v5573 = vadd.f32 0.0, %v5572
    %v5574 = vpop.f32.mrf.mxu0
    %5575 = vdwg.mxu0
    %v5577 = vsel %vm1010, %v5302, 0
    %5579 = vmatprep.subr.bf16.mxu0 0
    %5580 = vmatpush1.bf16.msra.mxu0 0
    %5581 = vmatprep.subr.bf16.mxu0 0
    %5582 = vmatpush1.bf16.msra.mxu0 0
    %5583 = vmatprep.subr.bf16.mxu0 0
    %5584 = vmatpush1.bf16.msra.mxu0 0
    %5585 = vmatprep.subr.bf16.mxu0 0
    %5586 = vmatpush1.bf16.msra.mxu0 0
    %5587 = vmatprep.subr.bf16.mxu0 0
    %5588 = vmatpush1.bf16.msra.mxu0 0
    %5589 = vmatprep.subr.bf16.mxu0 0
    %5590 = vmatpush1.bf16.msra.mxu0 0
    %5591 = vmatprep.subr.bf16.mxu0 0
    %5592 = vmatpush1.bf16.msra.mxu0 0
    %5593 = vmatprep.subr.bf16.mxu0 0
    %5594 = vmatpush1.bf16.msra.mxu0 %v5310
    %5595 = vmatprep.subr.bf16.mxu0 0
    %5596 = vmatpush2.bf16.msra.mxu0 0
    %5597 = vmatprep.subr.bf16.mxu0 0
    %5598 = vmatpush2.bf16.msra.mxu0 0
    %5599 = vmatprep.subr.bf16.mxu0 0
    %5600 = vmatpush2.bf16.msra.mxu0 0
    %5601 = vmatprep.subr.bf16.mxu0 0
    %5602 = vmatpush2.bf16.msra.mxu0 0
    %5603 = vmatprep.subr.bf16.mxu0 0
    %5604 = vmatpush2.bf16.msra.mxu0 0
    %5605 = vmatprep.subr.bf16.mxu0 0
    %5606 = vmatpush2.bf16.msra.mxu0 0
    %5607 = vmatprep.subr.bf16.mxu0 0
    %5608 = vmatpush2.bf16.msra.mxu0 0
    %5609 = vmatprep.subr.bf16.mxu0 0
    %5610 = vmatpush2.bf16.msra.mxu0 0
    %5611 = vmatprep.mubr.bf16.mxu0 0
    %5612 = vmatmul.mubr.bf16.gmra.mxu0 %v5577
    %v5613 = vpop.f32.mrf.mxu0
    %v5614 = vadd.f32 0.0, %v5613
    %v5615 = vpop.f32.mrf.mxu0
    %v5616 = vpop.f32.mrf.mxu0
    %v5617 = vadd.f32 0.0, %v5616
    %v5618 = vpop.f32.mrf.mxu0
    %5619 = vdwg.mxu0
    %v5621 = vsel %vm1010, %v5303, 0
    %5623 = vmatprep.subr.bf16.mxu0 0
    %5624 = vmatpush1.bf16.msra.mxu0 0
    %5625 = vmatprep.subr.bf16.mxu0 0
    %5626 = vmatpush1.bf16.msra.mxu0 0
    %5627 = vmatprep.subr.bf16.mxu0 0
    %5628 = vmatpush1.bf16.msra.mxu0 0
    %5629 = vmatprep.subr.bf16.mxu0 0
    %5630 = vmatpush1.bf16.msra.mxu0 0
    %5631 = vmatprep.subr.bf16.mxu0 0
    %5632 = vmatpush1.bf16.msra.mxu0 0
    %5633 = vmatprep.subr.bf16.mxu0 0
    %5634 = vmatpush1.bf16.msra.mxu0 0
    %5635 = vmatprep.subr.bf16.mxu0 0
    %5636 = vmatpush1.bf16.msra.mxu0 0
    %5637 = vmatprep.subr.bf16.mxu0 0
    %5638 = vmatpush1.bf16.msra.mxu0 %v5311
    %5639 = vmatprep.subr.bf16.mxu0 0
    %5640 = vmatpush2.bf16.msra.mxu0 0
    %5641 = vmatprep.subr.bf16.mxu0 0
    %5642 = vmatpush2.bf16.msra.mxu0 0
    %5643 = vmatprep.subr.bf16.mxu0 0
    %5644 = vmatpush2.bf16.msra.mxu0 0
    %5645 = vmatprep.subr.bf16.mxu0 0
    %5646 = vmatpush2.bf16.msra.mxu0 0
    %5647 = vmatprep.subr.bf16.mxu0 0
    %5648 = vmatpush2.bf16.msra.mxu0 0
    %5649 = vmatprep.subr.bf16.mxu0 0
    %5650 = vmatpush2.bf16.msra.mxu0 0
    %5651 = vmatprep.subr.bf16.mxu0 0
    %5652 = vmatpush2.bf16.msra.mxu0 0
    %5653 = vmatprep.subr.bf16.mxu0 0
    %5654 = vmatpush2.bf16.msra.mxu0 0
    %5655 = vmatprep.mubr.bf16.mxu0 0
    %5656 = vmatmul.mubr.bf16.gmra.mxu0 %v5621
    %v5657 = vpop.f32.mrf.mxu0
    %v5658 = vadd.f32 0.0, %v5657
    %v5659 = vpop.f32.mrf.mxu0
    %v5660 = vpop.f32.mrf.mxu0
    %v5661 = vadd.f32 0.0, %v5660
    %v5662 = vpop.f32.mrf.mxu0
    %5663 = vdwg.mxu0
    %v5664 = vpack.c.bf16 %v5353, %v5350
    %v5665 = vpack.c.bf16 %v5397, %v5394
    %v5666 = vpack.c.bf16 %v5441, %v5438
    %v5667 = vpack.c.bf16 %v5485, %v5482
    %v5668 = vpack.c.bf16 %v5529, %v5526
    %v5669 = vpack.c.bf16 %v5573, %v5570
    %v5670 = vpack.c.bf16 %v5617, %v5614
    %v5671 = vpack.c.bf16 %v5661, %v5658
    %5672 = vrot.lane.b32.xlu0 %v4391, 112
    %v5673 = vpop.permute.xlu0 %5672
    %5674 = vrot.lane.b32.xlu0 %v4392, 112
    %v5675 = vpop.permute.xlu0 %5674
    %5678 = vrot.lane.b32.xlu0 %v4381, 112
    %v5679 = vpop.permute.xlu0 %5678
    %5681 = vmatprep.subr.bf16.mxu0 0
    %5682 = vmatpush1.bf16.msra.mxu0 0
    %5683 = vmatprep.subr.bf16.mxu0 0
    %5684 = vmatpush1.bf16.msra.mxu0 0
    %5685 = vmatprep.subr.bf16.mxu0 0
    %5686 = vmatpush1.bf16.msra.mxu0 0
    %5687 = vmatprep.subr.bf16.mxu0 0
    %5688 = vmatpush1.bf16.msra.mxu0 0
    %5689 = vmatprep.subr.bf16.mxu0 0
    %5690 = vmatpush1.bf16.msra.mxu0 0
    %5691 = vmatprep.subr.bf16.mxu0 0
    %5692 = vmatpush1.bf16.msra.mxu0 0
    %5693 = vmatprep.subr.bf16.mxu0 0
    %5694 = vmatpush1.bf16.msra.mxu0 %v5675
    %5695 = vmatprep.subr.bf16.mxu0 0
    %5696 = vmatpush1.bf16.msra.mxu0 %v5673
    %5697 = vmatprep.subr.bf16.mxu0 0
    %5698 = vmatpush2.bf16.msra.mxu0 0
    %5699 = vmatprep.subr.bf16.mxu0 0
    %5700 = vmatpush2.bf16.msra.mxu0 0
    %5701 = vmatprep.subr.bf16.mxu0 0
    %5702 = vmatpush2.bf16.msra.mxu0 0
    %5703 = vmatprep.subr.bf16.mxu0 0
    %5704 = vmatpush2.bf16.msra.mxu0 0
    %5705 = vmatprep.subr.bf16.mxu0 0
    %5706 = vmatpush2.bf16.msra.mxu0 0
    %5707 = vmatprep.subr.bf16.mxu0 0
    %5708 = vmatpush2.bf16.msra.mxu0 0
    %5709 = vmatprep.subr.bf16.mxu0 0
    %5710 = vmatpush2.bf16.msra.mxu0 0
    %5711 = vmatprep.subr.bf16.mxu0 0
    %5712 = vmatpush2.bf16.msra.mxu0 0
    %5713 = vmatprep.mubr.bf16.mxu0 0
    %5714 = vmatmul.mubr.bf16.gmra.mxu0 %v4396
    %v5715 = vpop.f32.mrf.mxu0
    %v5716 = vadd.f32 %v5679, %v5715
    %v5717 = vpop.f32.mrf.mxu0
    %v5718 = vpop.f32.mrf.mxu0
    %v5719 = vadd.f32 %v5679, %v5718
    %v5720 = vpop.f32.mrf.mxu0
    %5721 = vmatprep.mubr.bf16.mxu0 0
    %5722 = vmatmul.mubr.bf16.gmra.mxu0 %v4399
    %v5723 = vpop.f32.mrf.mxu0
    %v5724 = vadd.f32 %v5679, %v5723
    %v5725 = vpop.f32.mrf.mxu0
    %v5726 = vpop.f32.mrf.mxu0
    %v5727 = vadd.f32 %v5679, %v5726
    %v5728 = vpop.f32.mrf.mxu0
    %5729 = vmatprep.mubr.bf16.mxu0 0
    %5730 = vmatmul.mubr.bf16.gmra.mxu0 %v4402
    %v5731 = vpop.f32.mrf.mxu0
    %v5732 = vadd.f32 %v5679, %v5731
    %v5733 = vpop.f32.mrf.mxu0
    %v5734 = vpop.f32.mrf.mxu0
    %v5735 = vadd.f32 %v5679, %v5734
    %v5736 = vpop.f32.mrf.mxu0
    %5737 = vmatprep.mubr.bf16.mxu0 0
    %5738 = vmatmul.mubr.bf16.gmra.mxu0 %v4405
    %v5739 = vpop.f32.mrf.mxu0
    %v5740 = vadd.f32 %v5679, %v5739
    %v5741 = vpop.f32.mrf.mxu0
    %v5742 = vpop.f32.mrf.mxu0
    %v5743 = vadd.f32 %v5679, %v5742
    %v5744 = vpop.f32.mrf.mxu0
    %5745 = vmatprep.mubr.bf16.mxu0 0
    %5746 = vmatmul.mubr.bf16.gmra.mxu0 %v4408
    %v5747 = vpop.f32.mrf.mxu0
    %v5748 = vadd.f32 %v5679, %v5747
    %v5749 = vpop.f32.mrf.mxu0
    %v5750 = vpop.f32.mrf.mxu0
    %v5751 = vadd.f32 %v5679, %v5750
    %v5752 = vpop.f32.mrf.mxu0
    %5753 = vmatprep.mubr.bf16.mxu0 0
    %5754 = vmatmul.mubr.bf16.gmra.mxu0 %v4411
    %v5755 = vpop.f32.mrf.mxu0
    %v5756 = vadd.f32 %v5679, %v5755
    %v5757 = vpop.f32.mrf.mxu0
    %v5758 = vpop.f32.mrf.mxu0
    %v5759 = vadd.f32 %v5679, %v5758
    %v5760 = vpop.f32.mrf.mxu0
    %5761 = vmatprep.mubr.bf16.mxu0 0
    %5762 = vmatmul.mubr.bf16.gmra.mxu0 %v4414
    %v5763 = vpop.f32.mrf.mxu0
    %v5764 = vadd.f32 %v5679, %v5763
    %v5765 = vpop.f32.mrf.mxu0
    %v5766 = vpop.f32.mrf.mxu0
    %v5767 = vadd.f32 %v5679, %v5766
    %v5768 = vpop.f32.mrf.mxu0
    %5769 = vmatprep.mubr.bf16.mxu0 0
    %5770 = vmatmul.mubr.bf16.gmra.mxu0 %v4417
    %v5771 = vpop.f32.mrf.mxu0
    %v5772 = vadd.f32 %v5679, %v5771
    %v5773 = vpop.f32.mrf.mxu0
    %v5774 = vpop.f32.mrf.mxu0
    %v5775 = vadd.f32 %v5679, %v5774
    %v5776 = vpop.f32.mrf.mxu0
    %5777 = vdwg.mxu0
    %5778 = vrot.lane.b32.xlu0 %v4391, 80
    %v5779 = vpop.permute.xlu0 %5778
    %5780 = vrot.lane.b32.xlu0 %v4392, 80
    %v5781 = vpop.permute.xlu0 %5780
    %5784 = vrot.lane.b32.xlu0 %v4381, 80
    %v5785 = vpop.permute.xlu0 %5784
    %5787 = vmatprep.subr.bf16.mxu0 0
    %5788 = vmatpush1.bf16.msra.mxu0 0
    %5789 = vmatprep.subr.bf16.mxu0 0
    %5790 = vmatpush1.bf16.msra.mxu0 0
    %5791 = vmatprep.subr.bf16.mxu0 0
    %5792 = vmatpush1.bf16.msra.mxu0 0
    %5793 = vmatprep.subr.bf16.mxu0 0
    %5794 = vmatpush1.bf16.msra.mxu0 0
    %5795 = vmatprep.subr.bf16.mxu0 0
    %5796 = vmatpush1.bf16.msra.mxu0 0
    %5797 = vmatprep.subr.bf16.mxu0 0
    %5798 = vmatpush1.bf16.msra.mxu0 0
    %5799 = vmatprep.subr.bf16.mxu0 0
    %5800 = vmatpush1.bf16.msra.mxu0 %v5781
    %5801 = vmatprep.subr.bf16.mxu0 0
    %5802 = vmatpush1.bf16.msra.mxu0 %v5779
    %5803 = vmatprep.subr.bf16.mxu0 0
    %5804 = vmatpush2.bf16.msra.mxu0 0
    %5805 = vmatprep.subr.bf16.mxu0 0
    %5806 = vmatpush2.bf16.msra.mxu0 0
    %5807 = vmatprep.subr.bf16.mxu0 0
    %5808 = vmatpush2.bf16.msra.mxu0 0
    %5809 = vmatprep.subr.bf16.mxu0 0
    %5810 = vmatpush2.bf16.msra.mxu0 0
    %5811 = vmatprep.subr.bf16.mxu0 0
    %5812 = vmatpush2.bf16.msra.mxu0 0
    %5813 = vmatprep.subr.bf16.mxu0 0
    %5814 = vmatpush2.bf16.msra.mxu0 0
    %5815 = vmatprep.subr.bf16.mxu0 0
    %5816 = vmatpush2.bf16.msra.mxu0 0
    %5817 = vmatprep.subr.bf16.mxu0 0
    %5818 = vmatpush2.bf16.msra.mxu0 0
    %5819 = vmatprep.mubr.bf16.mxu0 0
    %5820 = vmatmul.mubr.bf16.gmra.mxu0 %v4396
    %v5821 = vpop.f32.mrf.mxu0
    %v5822 = vadd.f32 %v5785, %v5821
    %v5823 = vpop.f32.mrf.mxu0
    %v5824 = vpop.f32.mrf.mxu0
    %v5825 = vadd.f32 %v5785, %v5824
    %v5826 = vpop.f32.mrf.mxu0
    %5827 = vmatprep.mubr.bf16.mxu0 0
    %5828 = vmatmul.mubr.bf16.gmra.mxu0 %v4399
    %v5829 = vpop.f32.mrf.mxu0
    %v5830 = vadd.f32 %v5785, %v5829
    %v5831 = vpop.f32.mrf.mxu0
    %v5832 = vpop.f32.mrf.mxu0
    %v5833 = vadd.f32 %v5785, %v5832
    %v5834 = vpop.f32.mrf.mxu0
    %5835 = vmatprep.mubr.bf16.mxu0 0
    %5836 = vmatmul.mubr.bf16.gmra.mxu0 %v4402
    %v5837 = vpop.f32.mrf.mxu0
    %v5838 = vadd.f32 %v5785, %v5837
    %v5839 = vpop.f32.mrf.mxu0
    %v5840 = vpop.f32.mrf.mxu0
    %v5841 = vadd.f32 %v5785, %v5840
    %v5842 = vpop.f32.mrf.mxu0
    %5843 = vmatprep.mubr.bf16.mxu0 0
    %5844 = vmatmul.mubr.bf16.gmra.mxu0 %v4405
    %v5845 = vpop.f32.mrf.mxu0
    %v5846 = vadd.f32 %v5785, %v5845
    %v5847 = vpop.f32.mrf.mxu0
    %v5848 = vpop.f32.mrf.mxu0
    %v5849 = vadd.f32 %v5785, %v5848
    %v5850 = vpop.f32.mrf.mxu0
    %5851 = vmatprep.mubr.bf16.mxu0 0
    %5852 = vmatmul.mubr.bf16.gmra.mxu0 %v4408
    %v5853 = vpop.f32.mrf.mxu0
    %v5854 = vadd.f32 %v5785, %v5853
    %v5855 = vpop.f32.mrf.mxu0
    %v5856 = vpop.f32.mrf.mxu0
    %v5857 = vadd.f32 %v5785, %v5856
    %v5858 = vpop.f32.mrf.mxu0
    %5859 = vmatprep.mubr.bf16.mxu0 0
    %5860 = vmatmul.mubr.bf16.gmra.mxu0 %v4411
    %v5861 = vpop.f32.mrf.mxu0
    %v5862 = vadd.f32 %v5785, %v5861
    %v5863 = vpop.f32.mrf.mxu0
    %v5864 = vpop.f32.mrf.mxu0
    %v5865 = vadd.f32 %v5785, %v5864
    %v5866 = vpop.f32.mrf.mxu0
    %5867 = vmatprep.mubr.bf16.mxu0 0
    %5868 = vmatmul.mubr.bf16.gmra.mxu0 %v4414
    %v5869 = vpop.f32.mrf.mxu0
    %v5870 = vadd.f32 %v5785, %v5869
    %v5871 = vpop.f32.mrf.mxu0
    %v5872 = vpop.f32.mrf.mxu0
    %v5873 = vadd.f32 %v5785, %v5872
    %v5874 = vpop.f32.mrf.mxu0
    %5875 = vmatprep.mubr.bf16.mxu0 0
    %5876 = vmatmul.mubr.bf16.gmra.mxu0 %v4417
    %v5877 = vpop.f32.mrf.mxu0
    %v5878 = vadd.f32 %v5785, %v5877
    %v5879 = vpop.f32.mrf.mxu0
    %v5880 = vpop.f32.mrf.mxu0
    %v5881 = vadd.f32 %v5785, %v5880
    %v5882 = vpop.f32.mrf.mxu0
    %5883 = vdwg.mxu0
    %5884 = vrot.lane.b32.xlu0 %v4391, 48
    %v5885 = vpop.permute.xlu0 %5884
    %5886 = vrot.lane.b32.xlu0 %v4392, 48
    %v5887 = vpop.permute.xlu0 %5886
    %5890 = vrot.lane.b32.xlu0 %v4381, 48
    %v5891 = vpop.permute.xlu0 %5890
    %5893 = vmatprep.subr.bf16.mxu0 0
    %5894 = vmatpush1.bf16.msra.mxu0 0
    %5895 = vmatprep.subr.bf16.mxu0 0
    %5896 = vmatpush1.bf16.msra.mxu0 0
    %5897 = vmatprep.subr.bf16.mxu0 0
    %5898 = vmatpush1.bf16.msra.mxu0 0
    %5899 = vmatprep.subr.bf16.mxu0 0
    %5900 = vmatpush1.bf16.msra.mxu0 0
    %5901 = vmatprep.subr.bf16.mxu0 0
    %5902 = vmatpush1.bf16.msra.mxu0 0
    %5903 = vmatprep.subr.bf16.mxu0 0
    %5904 = vmatpush1.bf16.msra.mxu0 0
    %5905 = vmatprep.subr.bf16.mxu0 0
    %5906 = vmatpush1.bf16.msra.mxu0 %v5887
    %5907 = vmatprep.subr.bf16.mxu0 0
    %5908 = vmatpush1.bf16.msra.mxu0 %v5885
    %5909 = vmatprep.subr.bf16.mxu0 0
    %5910 = vmatpush2.bf16.msra.mxu0 0
    %5911 = vmatprep.subr.bf16.mxu0 0
    %5912 = vmatpush2.bf16.msra.mxu0 0
    %5913 = vmatprep.subr.bf16.mxu0 0
    %5914 = vmatpush2.bf16.msra.mxu0 0
    %5915 = vmatprep.subr.bf16.mxu0 0
    %5916 = vmatpush2.bf16.msra.mxu0 0
    %5917 = vmatprep.subr.bf16.mxu0 0
    %5918 = vmatpush2.bf16.msra.mxu0 0
    %5919 = vmatprep.subr.bf16.mxu0 0
    %5920 = vmatpush2.bf16.msra.mxu0 0
    %5921 = vmatprep.subr.bf16.mxu0 0
    %5922 = vmatpush2.bf16.msra.mxu0 0
    %5923 = vmatprep.subr.bf16.mxu0 0
    %5924 = vmatpush2.bf16.msra.mxu0 0
    %5925 = vmatprep.mubr.bf16.mxu0 0
    %5926 = vmatmul.mubr.bf16.gmra.mxu0 %v4396
    %v5927 = vpop.f32.mrf.mxu0
    %v5928 = vadd.f32 %v5891, %v5927
    %v5929 = vpop.f32.mrf.mxu0
    %v5930 = vpop.f32.mrf.mxu0
    %v5931 = vadd.f32 %v5891, %v5930
    %v5932 = vpop.f32.mrf.mxu0
    %5933 = vmatprep.mubr.bf16.mxu0 0
    %5934 = vmatmul.mubr.bf16.gmra.mxu0 %v4399
    %v5935 = vpop.f32.mrf.mxu0
    %v5936 = vadd.f32 %v5891, %v5935
    %v5937 = vpop.f32.mrf.mxu0
    %v5938 = vpop.f32.mrf.mxu0
    %v5939 = vadd.f32 %v5891, %v5938
    %v5940 = vpop.f32.mrf.mxu0
    %5941 = vmatprep.mubr.bf16.mxu0 0
    %5942 = vmatmul.mubr.bf16.gmra.mxu0 %v4402
    %v5943 = vpop.f32.mrf.mxu0
    %v5944 = vadd.f32 %v5891, %v5943
    %v5945 = vpop.f32.mrf.mxu0
    %v5946 = vpop.f32.mrf.mxu0
    %v5947 = vadd.f32 %v5891, %v5946
    %v5948 = vpop.f32.mrf.mxu0
    %5949 = vmatprep.mubr.bf16.mxu0 0
    %5950 = vmatmul.mubr.bf16.gmra.mxu0 %v4405
    %v5951 = vpop.f32.mrf.mxu0
    %v5952 = vadd.f32 %v5891, %v5951
    %v5953 = vpop.f32.mrf.mxu0
    %v5954 = vpop.f32.mrf.mxu0
    %v5955 = vadd.f32 %v5891, %v5954
    %v5956 = vpop.f32.mrf.mxu0
    %5957 = vmatprep.mubr.bf16.mxu0 0
    %5958 = vmatmul.mubr.bf16.gmra.mxu0 %v4408
    %v5959 = vpop.f32.mrf.mxu0
    %v5960 = vadd.f32 %v5891, %v5959
    %v5961 = vpop.f32.mrf.mxu0
    %v5962 = vpop.f32.mrf.mxu0
    %v5963 = vadd.f32 %v5891, %v5962
    %v5964 = vpop.f32.mrf.mxu0
    %5965 = vmatprep.mubr.bf16.mxu0 0
    %5966 = vmatmul.mubr.bf16.gmra.mxu0 %v4411
    %v5967 = vpop.f32.mrf.mxu0
    %v5968 = vadd.f32 %v5891, %v5967
    %v5969 = vpop.f32.mrf.mxu0
    %v5970 = vpop.f32.mrf.mxu0
    %v5971 = vadd.f32 %v5891, %v5970
    %v5972 = vpop.f32.mrf.mxu0
    %5973 = vmatprep.mubr.bf16.mxu0 0
    %5974 = vmatmul.mubr.bf16.gmra.mxu0 %v4414
    %v5975 = vpop.f32.mrf.mxu0
    %v5976 = vadd.f32 %v5891, %v5975
    %v5977 = vpop.f32.mrf.mxu0
    %v5978 = vpop.f32.mrf.mxu0
    %v5979 = vadd.f32 %v5891, %v5978
    %v5980 = vpop.f32.mrf.mxu0
    %5981 = vmatprep.mubr.bf16.mxu0 0
    %5982 = vmatmul.mubr.bf16.gmra.mxu0 %v4417
    %v5983 = vpop.f32.mrf.mxu0
    %v5984 = vadd.f32 %v5891, %v5983
    %v5985 = vpop.f32.mrf.mxu0
    %v5986 = vpop.f32.mrf.mxu0
    %v5987 = vadd.f32 %v5891, %v5986
    %v5988 = vpop.f32.mrf.mxu0
    %5989 = vdwg.mxu0
    %v5990 = vpack.c.bf16 %v5719, %v5716
    %v5991 = vpack.c.bf16 %v5727, %v5724
    %v5992 = vpack.c.bf16 %v5735, %v5732
    %v5993 = vpack.c.bf16 %v5743, %v5740
    %v5994 = vpack.c.bf16 %v5751, %v5748
    %v5995 = vpack.c.bf16 %v5759, %v5756
    %v5996 = vpack.c.bf16 %v5767, %v5764
    %v5997 = vpack.c.bf16 %v5775, %v5772
    %v5998 = vpack.c.bf16 %v5825, %v5822
    %v5999 = vpack.c.bf16 %v5833, %v5830
    %v6000 = vpack.c.bf16 %v5841, %v5838
    %v6001 = vpack.c.bf16 %v5849, %v5846
    %v6002 = vpack.c.bf16 %v5857, %v5854
    %v6003 = vpack.c.bf16 %v5865, %v5862
    %v6004 = vpack.c.bf16 %v5873, %v5870
    %v6005 = vpack.c.bf16 %v5881, %v5878
    %v6007 = vsel %vm1010, %v5990, 0
    %v6010 = vsel %vm1010, %v5998, 0
    %6012 = vmatprep.subr.bf16.mxu0 0
    %6013 = vmatpush1.bf16.xpose.msra.mxu0 0
    %6014 = vmatprep.subr.bf16.mxu0 0
    %6015 = vmatpush1.bf16.xpose.msra.mxu0 0
    %6016 = vmatprep.subr.bf16.mxu0 0
    %6017 = vmatpush1.bf16.xpose.msra.mxu0 0
    %6018 = vmatprep.subr.bf16.mxu0 0
    %6019 = vmatpush1.bf16.xpose.msra.mxu0 0
    %6020 = vmatprep.subr.bf16.mxu0 0
    %6021 = vmatpush1.bf16.xpose.msra.mxu0 0
    %6022 = vmatprep.subr.bf16.mxu0 0
    %6023 = vmatpush1.bf16.xpose.msra.mxu0 0
    %6024 = vmatprep.subr.bf16.mxu0 0
    %6025 = vmatpush1.bf16.xpose.msra.mxu0 0
    %6026 = vmatprep.subr.bf16.mxu0 0
    %6027 = vmatpush1.bf16.xpose.msra.mxu0 %v6010
    %6028 = vmatprep.subr.bf16.mxu0 0
    %6029 = vmatpush2.bf16.xpose.msra.mxu0 0
    %6030 = vmatprep.subr.bf16.mxu0 0
    %6031 = vmatpush2.bf16.xpose.msra.mxu0 0
    %6032 = vmatprep.subr.bf16.mxu0 0
    %6033 = vmatpush2.bf16.xpose.msra.mxu0 0
    %6034 = vmatprep.subr.bf16.mxu0 0
    %6035 = vmatpush2.bf16.xpose.msra.mxu0 0
    %6036 = vmatprep.subr.bf16.mxu0 0
    %6037 = vmatpush2.bf16.xpose.msra.mxu0 0
    %6038 = vmatprep.subr.bf16.mxu0 0
    %6039 = vmatpush2.bf16.xpose.msra.mxu0 0
    %6040 = vmatprep.subr.bf16.mxu0 0
    %6041 = vmatpush2.bf16.xpose.msra.mxu0 0
    %6042 = vmatprep.subr.bf16.mxu0 0
    %6043 = vmatpush2.bf16.xpose.msra.mxu0 0
    %6044 = vmatprep.mubr.bf16.mxu0 0
    %6045 = vmatmul.mubr.bf16.gmra.mxu0 %v6007
    %v6046 = vpop.f32.mrf.mxu0
    %v6047 = vadd.f32 %v321, %v6046
    %v6048 = vpop.f32.mrf.mxu0
    %v6049 = vpop.f32.mrf.mxu0
    %v6050 = vadd.f32 %v322, %v6049
    %v6051 = vpop.f32.mrf.mxu0
    %6052 = vdwg.mxu0
    %v6054 = vsel %vm1010, %v5991, 0
    %v6057 = vsel %vm1010, %v5999, 0
    %6059 = vmatprep.subr.bf16.mxu0 0
    %6060 = vmatpush1.bf16.xpose.msra.mxu0 0
    %6061 = vmatprep.subr.bf16.mxu0 0
    %6062 = vmatpush1.bf16.xpose.msra.mxu0 0
    %6063 = vmatprep.subr.bf16.mxu0 0
    %6064 = vmatpush1.bf16.xpose.msra.mxu0 0
    %6065 = vmatprep.subr.bf16.mxu0 0
    %6066 = vmatpush1.bf16.xpose.msra.mxu0 0
    %6067 = vmatprep.subr.bf16.mxu0 0
    %6068 = vmatpush1.bf16.xpose.msra.mxu0 0
    %6069 = vmatprep.subr.bf16.mxu0 0
    %6070 = vmatpush1.bf16.xpose.msra.mxu0 0
    %6071 = vmatprep.subr.bf16.mxu0 0
    %6072 = vmatpush1.bf16.xpose.msra.mxu0 0
    %6073 = vmatprep.subr.bf16.mxu0 0
    %6074 = vmatpush1.bf16.xpose.msra.mxu0 %v6057
    %6075 = vmatprep.subr.bf16.mxu0 0
    %6076 = vmatpush2.bf16.xpose.msra.mxu0 0
    %6077 = vmatprep.subr.bf16.mxu0 0
    %6078 = vmatpush2.bf16.xpose.msra.mxu0 0
    %6079 = vmatprep.subr.bf16.mxu0 0
    %6080 = vmatpush2.bf16.xpose.msra.mxu0 0
    %6081 = vmatprep.subr.bf16.mxu0 0
    %6082 = vmatpush2.bf16.xpose.msra.mxu0 0
    %6083 = vmatprep.subr.bf16.mxu0 0
    %6084 = vmatpush2.bf16.xpose.msra.mxu0 0
    %6085 = vmatprep.subr.bf16.mxu0 0
    %6086 = vmatpush2.bf16.xpose.msra.mxu0 0
    %6087 = vmatprep.subr.bf16.mxu0 0
    %6088 = vmatpush2.bf16.xpose.msra.mxu0 0
    %6089 = vmatprep.subr.bf16.mxu0 0
    %6090 = vmatpush2.bf16.xpose.msra.mxu0 0
    %6091 = vmatprep.mubr.bf16.mxu0 0
    %6092 = vmatmul.mubr.bf16.gmra.mxu0 %v6054
    %v6093 = vpop.f32.mrf.mxu0
    %v6094 = vadd.f32 %v323, %v6093
    %v6095 = vpop.f32.mrf.mxu0
    %v6096 = vpop.f32.mrf.mxu0
    %v6097 = vadd.f32 %v324, %v6096
    %v6098 = vpop.f32.mrf.mxu0
    %6099 = vdwg.mxu0
    %v6101 = vsel %vm1010, %v5992, 0
    %v6104 = vsel %vm1010, %v6000, 0
    %6106 = vmatprep.subr.bf16.mxu0 0
    %6107 = vmatpush1.bf16.xpose.msra.mxu0 0
    %6108 = vmatprep.subr.bf16.mxu0 0
    %6109 = vmatpush1.bf16.xpose.msra.mxu0 0
    %6110 = vmatprep.subr.bf16.mxu0 0
    %6111 = vmatpush1.bf16.xpose.msra.mxu0 0
    %6112 = vmatprep.subr.bf16.mxu0 0
    %6113 = vmatpush1.bf16.xpose.msra.mxu0 0
    %6114 = vmatprep.subr.bf16.mxu0 0
    %6115 = vmatpush1.bf16.xpose.msra.mxu0 0
    %6116 = vmatprep.subr.bf16.mxu0 0
    %6117 = vmatpush1.bf16.xpose.msra.mxu0 0
    %6118 = vmatprep.subr.bf16.mxu0 0
    %6119 = vmatpush1.bf16.xpose.msra.mxu0 0
    %6120 = vmatprep.subr.bf16.mxu0 0
    %6121 = vmatpush1.bf16.xpose.msra.mxu0 %v6104
    %6122 = vmatprep.subr.bf16.mxu0 0
    %6123 = vmatpush2.bf16.xpose.msra.mxu0 0
    %6124 = vmatprep.subr.bf16.mxu0 0
    %6125 = vmatpush2.bf16.xpose.msra.mxu0 0
    %6126 = vmatprep.subr.bf16.mxu0 0
    %6127 = vmatpush2.bf16.xpose.msra.mxu0 0
    %6128 = vmatprep.subr.bf16.mxu0 0
    %6129 = vmatpush2.bf16.xpose.msra.mxu0 0
    %6130 = vmatprep.subr.bf16.mxu0 0
    %6131 = vmatpush2.bf16.xpose.msra.mxu0 0
    %6132 = vmatprep.subr.bf16.mxu0 0
    %6133 = vmatpush2.bf16.xpose.msra.mxu0 0
    %6134 = vmatprep.subr.bf16.mxu0 0
    %6135 = vmatpush2.bf16.xpose.msra.mxu0 0
    %6136 = vmatprep.subr.bf16.mxu0 0
    %6137 = vmatpush2.bf16.xpose.msra.mxu0 0
    %6138 = vmatprep.mubr.bf16.mxu0 0
    %6139 = vmatmul.mubr.bf16.gmra.mxu0 %v6101
    %v6140 = vpop.f32.mrf.mxu0
    %v6141 = vadd.f32 %v325, %v6140
    %v6142 = vpop.f32.mrf.mxu0
    %v6143 = vpop.f32.mrf.mxu0
    %v6144 = vadd.f32 %v326, %v6143
    %v6145 = vpop.f32.mrf.mxu0
    %6146 = vdwg.mxu0
    %v6148 = vsel %vm1010, %v5993, 0
    %v6151 = vsel %vm1010, %v6001, 0
    %6153 = vmatprep.subr.bf16.mxu0 0
    %6154 = vmatpush1.bf16.xpose.msra.mxu0 0
    %6155 = vmatprep.subr.bf16.mxu0 0
    %6156 = vmatpush1.bf16.xpose.msra.mxu0 0
    %6157 = vmatprep.subr.bf16.mxu0 0
    %6158 = vmatpush1.bf16.xpose.msra.mxu0 0
    %6159 = vmatprep.subr.bf16.mxu0 0
    %6160 = vmatpush1.bf16.xpose.msra.mxu0 0
    %6161 = vmatprep.subr.bf16.mxu0 0
    %6162 = vmatpush1.bf16.xpose.msra.mxu0 0
    %6163 = vmatprep.subr.bf16.mxu0 0
    %6164 = vmatpush1.bf16.xpose.msra.mxu0 0
    %6165 = vmatprep.subr.bf16.mxu0 0
    %6166 = vmatpush1.bf16.xpose.msra.mxu0 0
    %6167 = vmatprep.subr.bf16.mxu0 0
    %6168 = vmatpush1.bf16.xpose.msra.mxu0 %v6151
    %6169 = vmatprep.subr.bf16.mxu0 0
    %6170 = vmatpush2.bf16.xpose.msra.mxu0 0
    %6171 = vmatprep.subr.bf16.mxu0 0
    %6172 = vmatpush2.bf16.xpose.msra.mxu0 0
    %6173 = vmatprep.subr.bf16.mxu0 0
    %6174 = vmatpush2.bf16.xpose.msra.mxu0 0
    %6175 = vmatprep.subr.bf16.mxu0 0
    %6176 = vmatpush2.bf16.xpose.msra.mxu0 0
    %6177 = vmatprep.subr.bf16.mxu0 0
    %6178 = vmatpush2.bf16.xpose.msra.mxu0 0
    %6179 = vmatprep.subr.bf16.mxu0 0
    %6180 = vmatpush2.bf16.xpose.msra.mxu0 0
    %6181 = vmatprep.subr.bf16.mxu0 0
    %6182 = vmatpush2.bf16.xpose.msra.mxu0 0
    %6183 = vmatprep.subr.bf16.mxu0 0
    %6184 = vmatpush2.bf16.xpose.msra.mxu0 0
    %6185 = vmatprep.mubr.bf16.mxu0 0
    %6186 = vmatmul.mubr.bf16.gmra.mxu0 %v6148
    %v6187 = vpop.f32.mrf.mxu0
    %v6188 = vadd.f32 %v327, %v6187
    %v6189 = vpop.f32.mrf.mxu0
    %v6190 = vpop.f32.mrf.mxu0
    %v6191 = vadd.f32 %v328, %v6190
    %v6192 = vpop.f32.mrf.mxu0
    %6193 = vdwg.mxu0
    %v6195 = vsel %vm1010, %v5994, 0
    %v6198 = vsel %vm1010, %v6002, 0
    %6200 = vmatprep.subr.bf16.mxu0 0
    %6201 = vmatpush1.bf16.xpose.msra.mxu0 0
    %6202 = vmatprep.subr.bf16.mxu0 0
    %6203 = vmatpush1.bf16.xpose.msra.mxu0 0
    %6204 = vmatprep.subr.bf16.mxu0 0
    %6205 = vmatpush1.bf16.xpose.msra.mxu0 0
    %6206 = vmatprep.subr.bf16.mxu0 0
    %6207 = vmatpush1.bf16.xpose.msra.mxu0 0
    %6208 = vmatprep.subr.bf16.mxu0 0
    %6209 = vmatpush1.bf16.xpose.msra.mxu0 0
    %6210 = vmatprep.subr.bf16.mxu0 0
    %6211 = vmatpush1.bf16.xpose.msra.mxu0 0
    %6212 = vmatprep.subr.bf16.mxu0 0
    %6213 = vmatpush1.bf16.xpose.msra.mxu0 0
    %6214 = vmatprep.subr.bf16.mxu0 0
    %6215 = vmatpush1.bf16.xpose.msra.mxu0 %v6198
    %6216 = vmatprep.subr.bf16.mxu0 0
    %6217 = vmatpush2.bf16.xpose.msra.mxu0 0
    %6218 = vmatprep.subr.bf16.mxu0 0
    %6219 = vmatpush2.bf16.xpose.msra.mxu0 0
    %6220 = vmatprep.subr.bf16.mxu0 0
    %6221 = vmatpush2.bf16.xpose.msra.mxu0 0
    %6222 = vmatprep.subr.bf16.mxu0 0
    %6223 = vmatpush2.bf16.xpose.msra.mxu0 0
    %6224 = vmatprep.subr.bf16.mxu0 0
    %6225 = vmatpush2.bf16.xpose.msra.mxu0 0
    %6226 = vmatprep.subr.bf16.mxu0 0
    %6227 = vmatpush2.bf16.xpose.msra.mxu0 0
    %6228 = vmatprep.subr.bf16.mxu0 0
    %6229 = vmatpush2.bf16.xpose.msra.mxu0 0
    %6230 = vmatprep.subr.bf16.mxu0 0
    %6231 = vmatpush2.bf16.xpose.msra.mxu0 0
    %6232 = vmatprep.mubr.bf16.mxu0 0
    %6233 = vmatmul.mubr.bf16.gmra.mxu0 %v6195
    %v6234 = vpop.f32.mrf.mxu0
    %v6235 = vadd.f32 %v329, %v6234
    %v6236 = vpop.f32.mrf.mxu0
    %v6237 = vpop.f32.mrf.mxu0
    %v6238 = vadd.f32 %v330, %v6237
    %v6239 = vpop.f32.mrf.mxu0
    %6240 = vdwg.mxu0
    %v6242 = vsel %vm1010, %v5995, 0
    %v6245 = vsel %vm1010, %v6003, 0
    %6247 = vmatprep.subr.bf16.mxu0 0
    %6248 = vmatpush1.bf16.xpose.msra.mxu0 0
    %6249 = vmatprep.subr.bf16.mxu0 0
    %6250 = vmatpush1.bf16.xpose.msra.mxu0 0
    %6251 = vmatprep.subr.bf16.mxu0 0
    %6252 = vmatpush1.bf16.xpose.msra.mxu0 0
    %6253 = vmatprep.subr.bf16.mxu0 0
    %6254 = vmatpush1.bf16.xpose.msra.mxu0 0
    %6255 = vmatprep.subr.bf16.mxu0 0
    %6256 = vmatpush1.bf16.xpose.msra.mxu0 0
    %6257 = vmatprep.subr.bf16.mxu0 0
    %6258 = vmatpush1.bf16.xpose.msra.mxu0 0
    %6259 = vmatprep.subr.bf16.mxu0 0
    %6260 = vmatpush1.bf16.xpose.msra.mxu0 0
    %6261 = vmatprep.subr.bf16.mxu0 0
    %6262 = vmatpush1.bf16.xpose.msra.mxu0 %v6245
    %6263 = vmatprep.subr.bf16.mxu0 0
    %6264 = vmatpush2.bf16.xpose.msra.mxu0 0
    %6265 = vmatprep.subr.bf16.mxu0 0
    %6266 = vmatpush2.bf16.xpose.msra.mxu0 0
    %6267 = vmatprep.subr.bf16.mxu0 0
    %6268 = vmatpush2.bf16.xpose.msra.mxu0 0
    %6269 = vmatprep.subr.bf16.mxu0 0
    %6270 = vmatpush2.bf16.xpose.msra.mxu0 0
    %6271 = vmatprep.subr.bf16.mxu0 0
    %6272 = vmatpush2.bf16.xpose.msra.mxu0 0
    %6273 = vmatprep.subr.bf16.mxu0 0
    %6274 = vmatpush2.bf16.xpose.msra.mxu0 0
    %6275 = vmatprep.subr.bf16.mxu0 0
    %6276 = vmatpush2.bf16.xpose.msra.mxu0 0
    %6277 = vmatprep.subr.bf16.mxu0 0
    %6278 = vmatpush2.bf16.xpose.msra.mxu0 0
    %6279 = vmatprep.mubr.bf16.mxu0 0
    %6280 = vmatmul.mubr.bf16.gmra.mxu0 %v6242
    %v6281 = vpop.f32.mrf.mxu0
    %v6282 = vadd.f32 %v331, %v6281
    %v6283 = vpop.f32.mrf.mxu0
    %v6284 = vpop.f32.mrf.mxu0
    %v6285 = vadd.f32 %v332, %v6284
    %v6286 = vpop.f32.mrf.mxu0
    %6287 = vdwg.mxu0
    %v6289 = vsel %vm1010, %v5996, 0
    %v6292 = vsel %vm1010, %v6004, 0
    %6294 = vmatprep.subr.bf16.mxu0 0
    %6295 = vmatpush1.bf16.xpose.msra.mxu0 0
    %6296 = vmatprep.subr.bf16.mxu0 0
    %6297 = vmatpush1.bf16.xpose.msra.mxu0 0
    %6298 = vmatprep.subr.bf16.mxu0 0
    %6299 = vmatpush1.bf16.xpose.msra.mxu0 0
    %6300 = vmatprep.subr.bf16.mxu0 0
    %6301 = vmatpush1.bf16.xpose.msra.mxu0 0
    %6302 = vmatprep.subr.bf16.mxu0 0
    %6303 = vmatpush1.bf16.xpose.msra.mxu0 0
    %6304 = vmatprep.subr.bf16.mxu0 0
    %6305 = vmatpush1.bf16.xpose.msra.mxu0 0
    %6306 = vmatprep.subr.bf16.mxu0 0
    %6307 = vmatpush1.bf16.xpose.msra.mxu0 0
    %6308 = vmatprep.subr.bf16.mxu0 0
    %6309 = vmatpush1.bf16.xpose.msra.mxu0 %v6292
    %6310 = vmatprep.subr.bf16.mxu0 0
    %6311 = vmatpush2.bf16.xpose.msra.mxu0 0
    %6312 = vmatprep.subr.bf16.mxu0 0
    %6313 = vmatpush2.bf16.xpose.msra.mxu0 0
    %6314 = vmatprep.subr.bf16.mxu0 0
    %6315 = vmatpush2.bf16.xpose.msra.mxu0 0
    %6316 = vmatprep.subr.bf16.mxu0 0
    %6317 = vmatpush2.bf16.xpose.msra.mxu0 0
    %6318 = vmatprep.subr.bf16.mxu0 0
    %6319 = vmatpush2.bf16.xpose.msra.mxu0 0
    %6320 = vmatprep.subr.bf16.mxu0 0
    %6321 = vmatpush2.bf16.xpose.msra.mxu0 0
    %6322 = vmatprep.subr.bf16.mxu0 0
    %6323 = vmatpush2.bf16.xpose.msra.mxu0 0
    %6324 = vmatprep.subr.bf16.mxu0 0
    %6325 = vmatpush2.bf16.xpose.msra.mxu0 0
    %6326 = vmatprep.mubr.bf16.mxu0 0
    %6327 = vmatmul.mubr.bf16.gmra.mxu0 %v6289
    %v6328 = vpop.f32.mrf.mxu0
    %v6329 = vadd.f32 %v333, %v6328
    %v6330 = vpop.f32.mrf.mxu0
    %v6331 = vpop.f32.mrf.mxu0
    %v6332 = vadd.f32 %v334, %v6331
    %v6333 = vpop.f32.mrf.mxu0
    %6334 = vdwg.mxu0
    %v6336 = vsel %vm1010, %v5997, 0
    %v6339 = vsel %vm1010, %v6005, 0
    %6341 = vmatprep.subr.bf16.mxu0 0
    %6342 = vmatpush1.bf16.xpose.msra.mxu0 0
    %6343 = vmatprep.subr.bf16.mxu0 0
    %6344 = vmatpush1.bf16.xpose.msra.mxu0 0
    %6345 = vmatprep.subr.bf16.mxu0 0
    %6346 = vmatpush1.bf16.xpose.msra.mxu0 0
    %6347 = vmatprep.subr.bf16.mxu0 0
    %6348 = vmatpush1.bf16.xpose.msra.mxu0 0
    %6349 = vmatprep.subr.bf16.mxu0 0
    %6350 = vmatpush1.bf16.xpose.msra.mxu0 0
    %6351 = vmatprep.subr.bf16.mxu0 0
    %6352 = vmatpush1.bf16.xpose.msra.mxu0 0
    %6353 = vmatprep.subr.bf16.mxu0 0
    %6354 = vmatpush1.bf16.xpose.msra.mxu0 0
    %6355 = vmatprep.subr.bf16.mxu0 0
    %6356 = vmatpush1.bf16.xpose.msra.mxu0 %v6339
    %6357 = vmatprep.subr.bf16.mxu0 0
    %6358 = vmatpush2.bf16.xpose.msra.mxu0 0
    %6359 = vmatprep.subr.bf16.mxu0 0
    %6360 = vmatpush2.bf16.xpose.msra.mxu0 0
    %6361 = vmatprep.subr.bf16.mxu0 0
    %6362 = vmatpush2.bf16.xpose.msra.mxu0 0
    %6363 = vmatprep.subr.bf16.mxu0 0
    %6364 = vmatpush2.bf16.xpose.msra.mxu0 0
    %6365 = vmatprep.subr.bf16.mxu0 0
    %6366 = vmatpush2.bf16.xpose.msra.mxu0 0
    %6367 = vmatprep.subr.bf16.mxu0 0
    %6368 = vmatpush2.bf16.xpose.msra.mxu0 0
    %6369 = vmatprep.subr.bf16.mxu0 0
    %6370 = vmatpush2.bf16.xpose.msra.mxu0 0
    %6371 = vmatprep.subr.bf16.mxu0 0
    %6372 = vmatpush2.bf16.xpose.msra.mxu0 0
    %6373 = vmatprep.mubr.bf16.mxu0 0
    %6374 = vmatmul.mubr.bf16.gmra.mxu0 %v6336
    %v6375 = vpop.f32.mrf.mxu0
    %v6376 = vadd.f32 %v335, %v6375
    %v6377 = vpop.f32.mrf.mxu0
    %v6378 = vpop.f32.mrf.mxu0
    %v6379 = vadd.f32 %v336, %v6378
    %v6380 = vpop.f32.mrf.mxu0
    %6381 = vdwg.mxu0
    %v6382 = vsel %vm1010, %v6047, -inf
    %6383 = vmax.xlane.f32.xlu0 %v6382
    %v6384 = vpop.xlane.xlu0 %6383
    %v6385 = vsel %vm1010, %v6050, -inf
    %6386 = vmax.xlane.f32.xlu0 %v6385
    %v6387 = vpop.xlane.xlu0 %6386
    %v6388 = vsel %vm1010, %v6094, -inf
    %6389 = vmax.xlane.f32.xlu0 %v6388
    %v6390 = vpop.xlane.xlu0 %6389
    %v6391 = vsel %vm1010, %v6097, -inf
    %6392 = vmax.xlane.f32.xlu0 %v6391
    %v6393 = vpop.xlane.xlu0 %6392
    %v6394 = vsel %vm1010, %v6141, -inf
    %6395 = vmax.xlane.f32.xlu0 %v6394
    %v6396 = vpop.xlane.xlu0 %6395
    %v6397 = vsel %vm1010, %v6144, -inf
    %6398 = vmax.xlane.f32.xlu0 %v6397
    %v6399 = vpop.xlane.xlu0 %6398
    %v6400 = vsel %vm1010, %v6188, -inf
    %6401 = vmax.xlane.f32.xlu0 %v6400
    %v6402 = vpop.xlane.xlu0 %6401
    %v6403 = vsel %vm1010, %v6191, -inf
    %6404 = vmax.xlane.f32.xlu0 %v6403
    %v6405 = vpop.xlane.xlu0 %6404
    %v6406 = vsel %vm1010, %v6235, -inf
    %6407 = vmax.xlane.f32.xlu0 %v6406
    %v6408 = vpop.xlane.xlu0 %6407
    %v6409 = vsel %vm1010, %v6238, -inf
    %6410 = vmax.xlane.f32.xlu0 %v6409
    %v6411 = vpop.xlane.xlu0 %6410
    %v6412 = vsel %vm1010, %v6282, -inf
    %6413 = vmax.xlane.f32.xlu0 %v6412
    %v6414 = vpop.xlane.xlu0 %6413
    %v6415 = vsel %vm1010, %v6285, -inf
    %6416 = vmax.xlane.f32.xlu0 %v6415
    %v6417 = vpop.xlane.xlu0 %6416
    %v6418 = vsel %vm1010, %v6329, -inf
    %6419 = vmax.xlane.f32.xlu0 %v6418
    %v6420 = vpop.xlane.xlu0 %6419
    %v6421 = vsel %vm1010, %v6332, -inf
    %6422 = vmax.xlane.f32.xlu0 %v6421
    %v6423 = vpop.xlane.xlu0 %6422
    %v6424 = vsel %vm1010, %v6376, -inf
    %6425 = vmax.xlane.f32.xlu0 %v6424
    %v6426 = vpop.xlane.xlu0 %6425
    %v6427 = vsel %vm1010, %v6379, -inf
    %6428 = vmax.xlane.f32.xlu0 %v6427
    %v6429 = vpop.xlane.xlu0 %6428
    %v6430 = vsub.f32 %v6047, %v6384
    %v6431 = vsub.f32 %v6050, %v6387
    %v6432 = vsub.f32 %v6094, %v6390
    %v6433 = vsub.f32 %v6097, %v6393
    %v6434 = vsub.f32 %v6141, %v6396
    %v6435 = vsub.f32 %v6144, %v6399
    %v6436 = vsub.f32 %v6188, %v6402
    %v6437 = vsub.f32 %v6191, %v6405
    %v6438 = vsub.f32 %v6235, %v6408
    %v6439 = vsub.f32 %v6238, %v6411
    %v6440 = vsub.f32 %v6282, %v6414
    %v6441 = vsub.f32 %v6285, %v6417
    %v6442 = vsub.f32 %v6329, %v6420
    %v6443 = vsub.f32 %v6332, %v6423
    %v6444 = vsub.f32 %v6376, %v6426
    %v6445 = vsub.f32 %v6379, %v6429
    %v6446 = vmul.f32 %v6430, 1.442695
    %v6447 = vpow.pop %v6446
    %v6448 = vmul.f32 %v6431, 1.442695
    %v6449 = vpow.pop %v6448
    %v6450 = vmul.f32 %v6432, 1.442695
    %v6451 = vpow.pop %v6450
    %v6452 = vmul.f32 %v6433, 1.442695
    %v6453 = vpow.pop %v6452
    %v6454 = vmul.f32 %v6434, 1.442695
    %v6455 = vpow.pop %v6454
    %v6456 = vmul.f32 %v6435, 1.442695
    %v6457 = vpow.pop %v6456
    %v6458 = vmul.f32 %v6436, 1.442695
    %v6459 = vpow.pop %v6458
    %v6460 = vmul.f32 %v6437, 1.442695
    %v6461 = vpow.pop %v6460
    %v6462 = vmul.f32 %v6438, 1.442695
    %v6463 = vpow.pop %v6462
    %v6464 = vmul.f32 %v6439, 1.442695
    %v6465 = vpow.pop %v6464
    %v6466 = vmul.f32 %v6440, 1.442695
    %v6467 = vpow.pop %v6466
    %v6468 = vmul.f32 %v6441, 1.442695
    %v6469 = vpow.pop %v6468
    %v6470 = vmul.f32 %v6442, 1.442695
    %v6471 = vpow.pop %v6470
    %v6472 = vmul.f32 %v6443, 1.442695
    %v6473 = vpow.pop %v6472
    %v6474 = vmul.f32 %v6444, 1.442695
    %v6475 = vpow.pop %v6474
    %v6476 = vmul.f32 %v6445, 1.442695
    %v6477 = vpow.pop %v6476
    %v6478 = vsel %vm1010, %v6447, 0.0
    %6479 = vadd.xlane.f32.xlu0 %v6478
    %v6480 = vpop.xlane.xlu0 %6479
    %v6481 = vsel %vm1010, %v6449, 0.0
    %6482 = vadd.xlane.f32.xlu0 %v6481
    %v6483 = vpop.xlane.xlu0 %6482
    %v6484 = vsel %vm1010, %v6451, 0.0
    %6485 = vadd.xlane.f32.xlu0 %v6484
    %v6486 = vpop.xlane.xlu0 %6485
    %v6487 = vsel %vm1010, %v6453, 0.0
    %6488 = vadd.xlane.f32.xlu0 %v6487
    %v6489 = vpop.xlane.xlu0 %6488
    %v6490 = vsel %vm1010, %v6455, 0.0
    %6491 = vadd.xlane.f32.xlu0 %v6490
    %v6492 = vpop.xlane.xlu0 %6491
    %v6493 = vsel %vm1010, %v6457, 0.0
    %6494 = vadd.xlane.f32.xlu0 %v6493
    %v6495 = vpop.xlane.xlu0 %6494
    %v6496 = vsel %vm1010, %v6459, 0.0
    %6497 = vadd.xlane.f32.xlu0 %v6496
    %v6498 = vpop.xlane.xlu0 %6497
    %v6499 = vsel %vm1010, %v6461, 0.0
    %6500 = vadd.xlane.f32.xlu0 %v6499
    %v6501 = vpop.xlane.xlu0 %6500
    %v6502 = vsel %vm1010, %v6463, 0.0
    %6503 = vadd.xlane.f32.xlu0 %v6502
    %v6504 = vpop.xlane.xlu0 %6503
    %v6505 = vsel %vm1010, %v6465, 0.0
    %6506 = vadd.xlane.f32.xlu0 %v6505
    %v6507 = vpop.xlane.xlu0 %6506
    %v6508 = vsel %vm1010, %v6467, 0.0
    %6509 = vadd.xlane.f32.xlu0 %v6508
    %v6510 = vpop.xlane.xlu0 %6509
    %v6511 = vsel %vm1010, %v6469, 0.0
    %6512 = vadd.xlane.f32.xlu0 %v6511
    %v6513 = vpop.xlane.xlu0 %6512
    %v6514 = vsel %vm1010, %v6471, 0.0
    %6515 = vadd.xlane.f32.xlu0 %v6514
    %v6516 = vpop.xlane.xlu0 %6515
    %v6517 = vsel %vm1010, %v6473, 0.0
    %6518 = vadd.xlane.f32.xlu0 %v6517
    %v6519 = vpop.xlane.xlu0 %6518
    %v6520 = vsel %vm1010, %v6475, 0.0
    %6521 = vadd.xlane.f32.xlu0 %v6520
    %v6522 = vpop.xlane.xlu0 %6521
    %v6523 = vsel %vm1010, %v6477, 0.0
    %6524 = vadd.xlane.f32.xlu0 %v6523
    %v6525 = vpop.xlane.xlu0 %6524
    %v6526 = vrcp.pop %v6480
    %v6527 = vrcp.pop %v6483
    %v6528 = vrcp.pop %v6486
    %v6529 = vrcp.pop %v6489
    %v6530 = vrcp.pop %v6492
    %v6531 = vrcp.pop %v6495
    %v6532 = vrcp.pop %v6498
    %v6533 = vrcp.pop %v6501
    %v6534 = vrcp.pop %v6504
    %v6535 = vrcp.pop %v6507
    %v6536 = vrcp.pop %v6510
    %v6537 = vrcp.pop %v6513
    %v6538 = vrcp.pop %v6516
    %v6539 = vrcp.pop %v6519
    %v6540 = vrcp.pop %v6522
    %v6541 = vrcp.pop %v6525
    %v6542 = vmul.f32 %v6447, %v6526
    %v6543 = vmul.f32 %v6449, %v6527
    %v6544 = vmul.f32 %v6451, %v6528
    %v6545 = vmul.f32 %v6453, %v6529
    %v6546 = vmul.f32 %v6455, %v6530
    %v6547 = vmul.f32 %v6457, %v6531
    %v6548 = vmul.f32 %v6459, %v6532
    %v6549 = vmul.f32 %v6461, %v6533
    %v6550 = vmul.f32 %v6463, %v6534
    %v6551 = vmul.f32 %v6465, %v6535
    %v6552 = vmul.f32 %v6467, %v6536
    %v6553 = vmul.f32 %v6469, %v6537
    %v6554 = vmul.f32 %v6471, %v6538
    %v6555 = vmul.f32 %v6473, %v6539
    %v6556 = vmul.f32 %v6475, %v6540
    %v6557 = vmul.f32 %v6477, %v6541
    %v6558 = vpack.c.bf16 %v6543, %v6542
    %v6559 = vpack.c.bf16 %v6545, %v6544
    %v6560 = vpack.c.bf16 %v6547, %v6546
    %v6561 = vpack.c.bf16 %v6549, %v6548
    %v6562 = vpack.c.bf16 %v6551, %v6550
    %v6563 = vpack.c.bf16 %v6553, %v6552
    %v6564 = vpack.c.bf16 %v6555, %v6554
    %v6565 = vpack.c.bf16 %v6557, %v6556
    %v6566 = vpack.c.bf16 %v5931, %v5928
    %v6567 = vpack.c.bf16 %v5939, %v5936
    %v6568 = vpack.c.bf16 %v5947, %v5944
    %v6569 = vpack.c.bf16 %v5955, %v5952
    %v6570 = vpack.c.bf16 %v5963, %v5960
    %v6571 = vpack.c.bf16 %v5971, %v5968
    %v6572 = vpack.c.bf16 %v5979, %v5976
    %v6573 = vpack.c.bf16 %v5987, %v5984
    %v6575 = vsel %vm1010, %v6558, 0
    %6577 = vmatprep.subr.bf16.mxu0 0
    %6578 = vmatpush1.bf16.msra.mxu0 0
    %6579 = vmatprep.subr.bf16.mxu0 0
    %6580 = vmatpush1.bf16.msra.mxu0 0
    %6581 = vmatprep.subr.bf16.mxu0 0
    %6582 = vmatpush1.bf16.msra.mxu0 0
    %6583 = vmatprep.subr.bf16.mxu0 0
    %6584 = vmatpush1.bf16.msra.mxu0 0
    %6585 = vmatprep.subr.bf16.mxu0 0
    %6586 = vmatpush1.bf16.msra.mxu0 0
    %6587 = vmatprep.subr.bf16.mxu0 0
    %6588 = vmatpush1.bf16.msra.mxu0 0
    %6589 = vmatprep.subr.bf16.mxu0 0
    %6590 = vmatpush1.bf16.msra.mxu0 0
    %6591 = vmatprep.subr.bf16.mxu0 0
    %6592 = vmatpush1.bf16.msra.mxu0 %v6566
    %6593 = vmatprep.subr.bf16.mxu0 0
    %6594 = vmatpush2.bf16.msra.mxu0 0
    %6595 = vmatprep.subr.bf16.mxu0 0
    %6596 = vmatpush2.bf16.msra.mxu0 0
    %6597 = vmatprep.subr.bf16.mxu0 0
    %6598 = vmatpush2.bf16.msra.mxu0 0
    %6599 = vmatprep.subr.bf16.mxu0 0
    %6600 = vmatpush2.bf16.msra.mxu0 0
    %6601 = vmatprep.subr.bf16.mxu0 0
    %6602 = vmatpush2.bf16.msra.mxu0 0
    %6603 = vmatprep.subr.bf16.mxu0 0
    %6604 = vmatpush2.bf16.msra.mxu0 0
    %6605 = vmatprep.subr.bf16.mxu0 0
    %6606 = vmatpush2.bf16.msra.mxu0 0
    %6607 = vmatprep.subr.bf16.mxu0 0
    %6608 = vmatpush2.bf16.msra.mxu0 0
    %6609 = vmatprep.mubr.bf16.mxu0 0
    %6610 = vmatmul.mubr.bf16.gmra.mxu0 %v6575
    %v6611 = vpop.f32.mrf.mxu0
    %v6612 = vadd.f32 0.0, %v6611
    %v6613 = vpop.f32.mrf.mxu0
    %v6614 = vpop.f32.mrf.mxu0
    %v6615 = vadd.f32 0.0, %v6614
    %v6616 = vpop.f32.mrf.mxu0
    %6617 = vdwg.mxu0
    %v6619 = vsel %vm1010, %v6559, 0
    %6621 = vmatprep.subr.bf16.mxu0 0
    %6622 = vmatpush1.bf16.msra.mxu0 0
    %6623 = vmatprep.subr.bf16.mxu0 0
    %6624 = vmatpush1.bf16.msra.mxu0 0
    %6625 = vmatprep.subr.bf16.mxu0 0
    %6626 = vmatpush1.bf16.msra.mxu0 0
    %6627 = vmatprep.subr.bf16.mxu0 0
    %6628 = vmatpush1.bf16.msra.mxu0 0
    %6629 = vmatprep.subr.bf16.mxu0 0
    %6630 = vmatpush1.bf16.msra.mxu0 0
    %6631 = vmatprep.subr.bf16.mxu0 0
    %6632 = vmatpush1.bf16.msra.mxu0 0
    %6633 = vmatprep.subr.bf16.mxu0 0
    %6634 = vmatpush1.bf16.msra.mxu0 0
    %6635 = vmatprep.subr.bf16.mxu0 0
    %6636 = vmatpush1.bf16.msra.mxu0 %v6567
    %6637 = vmatprep.subr.bf16.mxu0 0
    %6638 = vmatpush2.bf16.msra.mxu0 0
    %6639 = vmatprep.subr.bf16.mxu0 0
    %6640 = vmatpush2.bf16.msra.mxu0 0
    %6641 = vmatprep.subr.bf16.mxu0 0
    %6642 = vmatpush2.bf16.msra.mxu0 0
    %6643 = vmatprep.subr.bf16.mxu0 0
    %6644 = vmatpush2.bf16.msra.mxu0 0
    %6645 = vmatprep.subr.bf16.mxu0 0
    %6646 = vmatpush2.bf16.msra.mxu0 0
    %6647 = vmatprep.subr.bf16.mxu0 0
    %6648 = vmatpush2.bf16.msra.mxu0 0
    %6649 = vmatprep.subr.bf16.mxu0 0
    %6650 = vmatpush2.bf16.msra.mxu0 0
    %6651 = vmatprep.subr.bf16.mxu0 0
    %6652 = vmatpush2.bf16.msra.mxu0 0
    %6653 = vmatprep.mubr.bf16.mxu0 0
    %6654 = vmatmul.mubr.bf16.gmra.mxu0 %v6619
    %v6655 = vpop.f32.mrf.mxu0
    %v6656 = vadd.f32 0.0, %v6655
    %v6657 = vpop.f32.mrf.mxu0
    %v6658 = vpop.f32.mrf.mxu0
    %v6659 = vadd.f32 0.0, %v6658
    %v6660 = vpop.f32.mrf.mxu0
    %6661 = vdwg.mxu0
    %v6663 = vsel %vm1010, %v6560, 0
    %6665 = vmatprep.subr.bf16.mxu0 0
    %6666 = vmatpush1.bf16.msra.mxu0 0
    %6667 = vmatprep.subr.bf16.mxu0 0
    %6668 = vmatpush1.bf16.msra.mxu0 0
    %6669 = vmatprep.subr.bf16.mxu0 0
    %6670 = vmatpush1.bf16.msra.mxu0 0
    %6671 = vmatprep.subr.bf16.mxu0 0
    %6672 = vmatpush1.bf16.msra.mxu0 0
    %6673 = vmatprep.subr.bf16.mxu0 0
    %6674 = vmatpush1.bf16.msra.mxu0 0
    %6675 = vmatprep.subr.bf16.mxu0 0
    %6676 = vmatpush1.bf16.msra.mxu0 0
    %6677 = vmatprep.subr.bf16.mxu0 0
    %6678 = vmatpush1.bf16.msra.mxu0 0
    %6679 = vmatprep.subr.bf16.mxu0 0
    %6680 = vmatpush1.bf16.msra.mxu0 %v6568
    %6681 = vmatprep.subr.bf16.mxu0 0
    %6682 = vmatpush2.bf16.msra.mxu0 0
    %6683 = vmatprep.subr.bf16.mxu0 0
    %6684 = vmatpush2.bf16.msra.mxu0 0
    %6685 = vmatprep.subr.bf16.mxu0 0
    %6686 = vmatpush2.bf16.msra.mxu0 0
    %6687 = vmatprep.subr.bf16.mxu0 0
    %6688 = vmatpush2.bf16.msra.mxu0 0
    %6689 = vmatprep.subr.bf16.mxu0 0
    %6690 = vmatpush2.bf16.msra.mxu0 0
    %6691 = vmatprep.subr.bf16.mxu0 0
    %6692 = vmatpush2.bf16.msra.mxu0 0
    %6693 = vmatprep.subr.bf16.mxu0 0
    %6694 = vmatpush2.bf16.msra.mxu0 0
    %6695 = vmatprep.subr.bf16.mxu0 0
    %6696 = vmatpush2.bf16.msra.mxu0 0
    %6697 = vmatprep.mubr.bf16.mxu0 0
    %6698 = vmatmul.mubr.bf16.gmra.mxu0 %v6663
    %v6699 = vpop.f32.mrf.mxu0
    %v6700 = vadd.f32 0.0, %v6699
    %v6701 = vpop.f32.mrf.mxu0
    %v6702 = vpop.f32.mrf.mxu0
    %v6703 = vadd.f32 0.0, %v6702
    %v6704 = vpop.f32.mrf.mxu0
    %6705 = vdwg.mxu0
    %v6707 = vsel %vm1010, %v6561, 0
    %6709 = vmatprep.subr.bf16.mxu0 0
    %6710 = vmatpush1.bf16.msra.mxu0 0
    %6711 = vmatprep.subr.bf16.mxu0 0
    %6712 = vmatpush1.bf16.msra.mxu0 0
    %6713 = vmatprep.subr.bf16.mxu0 0
    %6714 = vmatpush1.bf16.msra.mxu0 0
    %6715 = vmatprep.subr.bf16.mxu0 0
    %6716 = vmatpush1.bf16.msra.mxu0 0
    %6717 = vmatprep.subr.bf16.mxu0 0
    %6718 = vmatpush1.bf16.msra.mxu0 0
    %6719 = vmatprep.subr.bf16.mxu0 0
    %6720 = vmatpush1.bf16.msra.mxu0 0
    %6721 = vmatprep.subr.bf16.mxu0 0
    %6722 = vmatpush1.bf16.msra.mxu0 0
    %6723 = vmatprep.subr.bf16.mxu0 0
    %6724 = vmatpush1.bf16.msra.mxu0 %v6569
    %6725 = vmatprep.subr.bf16.mxu0 0
    %6726 = vmatpush2.bf16.msra.mxu0 0
    %6727 = vmatprep.subr.bf16.mxu0 0
    %6728 = vmatpush2.bf16.msra.mxu0 0
    %6729 = vmatprep.subr.bf16.mxu0 0
    %6730 = vmatpush2.bf16.msra.mxu0 0
    %6731 = vmatprep.subr.bf16.mxu0 0
    %6732 = vmatpush2.bf16.msra.mxu0 0
    %6733 = vmatprep.subr.bf16.mxu0 0
    %6734 = vmatpush2.bf16.msra.mxu0 0
    %6735 = vmatprep.subr.bf16.mxu0 0
    %6736 = vmatpush2.bf16.msra.mxu0 0
    %6737 = vmatprep.subr.bf16.mxu0 0
    %6738 = vmatpush2.bf16.msra.mxu0 0
    %6739 = vmatprep.subr.bf16.mxu0 0
    %6740 = vmatpush2.bf16.msra.mxu0 0
    %6741 = vmatprep.mubr.bf16.mxu0 0
    %6742 = vmatmul.mubr.bf16.gmra.mxu0 %v6707
    %v6743 = vpop.f32.mrf.mxu0
    %v6744 = vadd.f32 0.0, %v6743
    %v6745 = vpop.f32.mrf.mxu0
    %v6746 = vpop.f32.mrf.mxu0
    %v6747 = vadd.f32 0.0, %v6746
    %v6748 = vpop.f32.mrf.mxu0
    %6749 = vdwg.mxu0
    %v6751 = vsel %vm1010, %v6562, 0
    %6753 = vmatprep.subr.bf16.mxu0 0
    %6754 = vmatpush1.bf16.msra.mxu0 0
    %6755 = vmatprep.subr.bf16.mxu0 0
    %6756 = vmatpush1.bf16.msra.mxu0 0
    %6757 = vmatprep.subr.bf16.mxu0 0
    %6758 = vmatpush1.bf16.msra.mxu0 0
    %6759 = vmatprep.subr.bf16.mxu0 0
    %6760 = vmatpush1.bf16.msra.mxu0 0
    %6761 = vmatprep.subr.bf16.mxu0 0
    %6762 = vmatpush1.bf16.msra.mxu0 0
    %6763 = vmatprep.subr.bf16.mxu0 0
    %6764 = vmatpush1.bf16.msra.mxu0 0
    %6765 = vmatprep.subr.bf16.mxu0 0
    %6766 = vmatpush1.bf16.msra.mxu0 0
    %6767 = vmatprep.subr.bf16.mxu0 0
    %6768 = vmatpush1.bf16.msra.mxu0 %v6570
    %6769 = vmatprep.subr.bf16.mxu0 0
    %6770 = vmatpush2.bf16.msra.mxu0 0
    %6771 = vmatprep.subr.bf16.mxu0 0
    %6772 = vmatpush2.bf16.msra.mxu0 0
    %6773 = vmatprep.subr.bf16.mxu0 0
    %6774 = vmatpush2.bf16.msra.mxu0 0
    %6775 = vmatprep.subr.bf16.mxu0 0
    %6776 = vmatpush2.bf16.msra.mxu0 0
    %6777 = vmatprep.subr.bf16.mxu0 0
    %6778 = vmatpush2.bf16.msra.mxu0 0
    %6779 = vmatprep.subr.bf16.mxu0 0
    %6780 = vmatpush2.bf16.msra.mxu0 0
    %6781 = vmatprep.subr.bf16.mxu0 0
    %6782 = vmatpush2.bf16.msra.mxu0 0
    %6783 = vmatprep.subr.bf16.mxu0 0
    %6784 = vmatpush2.bf16.msra.mxu0 0
    %6785 = vmatprep.mubr.bf16.mxu0 0
    %6786 = vmatmul.mubr.bf16.gmra.mxu0 %v6751
    %v6787 = vpop.f32.mrf.mxu0
    %v6788 = vadd.f32 0.0, %v6787
    %v6789 = vpop.f32.mrf.mxu0
    %v6790 = vpop.f32.mrf.mxu0
    %v6791 = vadd.f32 0.0, %v6790
    %v6792 = vpop.f32.mrf.mxu0
    %6793 = vdwg.mxu0
    %v6795 = vsel %vm1010, %v6563, 0
    %6797 = vmatprep.subr.bf16.mxu0 0
    %6798 = vmatpush1.bf16.msra.mxu0 0
    %6799 = vmatprep.subr.bf16.mxu0 0
    %6800 = vmatpush1.bf16.msra.mxu0 0
    %6801 = vmatprep.subr.bf16.mxu0 0
    %6802 = vmatpush1.bf16.msra.mxu0 0
    %6803 = vmatprep.subr.bf16.mxu0 0
    %6804 = vmatpush1.bf16.msra.mxu0 0
    %6805 = vmatprep.subr.bf16.mxu0 0
    %6806 = vmatpush1.bf16.msra.mxu0 0
    %6807 = vmatprep.subr.bf16.mxu0 0
    %6808 = vmatpush1.bf16.msra.mxu0 0
    %6809 = vmatprep.subr.bf16.mxu0 0
    %6810 = vmatpush1.bf16.msra.mxu0 0
    %6811 = vmatprep.subr.bf16.mxu0 0
    %6812 = vmatpush1.bf16.msra.mxu0 %v6571
    %6813 = vmatprep.subr.bf16.mxu0 0
    %6814 = vmatpush2.bf16.msra.mxu0 0
    %6815 = vmatprep.subr.bf16.mxu0 0
    %6816 = vmatpush2.bf16.msra.mxu0 0
    %6817 = vmatprep.subr.bf16.mxu0 0
    %6818 = vmatpush2.bf16.msra.mxu0 0
    %6819 = vmatprep.subr.bf16.mxu0 0
    %6820 = vmatpush2.bf16.msra.mxu0 0
    %6821 = vmatprep.subr.bf16.mxu0 0
    %6822 = vmatpush2.bf16.msra.mxu0 0
    %6823 = vmatprep.subr.bf16.mxu0 0
    %6824 = vmatpush2.bf16.msra.mxu0 0
    %6825 = vmatprep.subr.bf16.mxu0 0
    %6826 = vmatpush2.bf16.msra.mxu0 0
    %6827 = vmatprep.subr.bf16.mxu0 0
    %6828 = vmatpush2.bf16.msra.mxu0 0
    %6829 = vmatprep.mubr.bf16.mxu0 0
    %6830 = vmatmul.mubr.bf16.gmra.mxu0 %v6795
    %v6831 = vpop.f32.mrf.mxu0
    %v6832 = vadd.f32 0.0, %v6831
    %v6833 = vpop.f32.mrf.mxu0
    %v6834 = vpop.f32.mrf.mxu0
    %v6835 = vadd.f32 0.0, %v6834
    %v6836 = vpop.f32.mrf.mxu0
    %6837 = vdwg.mxu0
    %v6839 = vsel %vm1010, %v6564, 0
    %6841 = vmatprep.subr.bf16.mxu0 0
    %6842 = vmatpush1.bf16.msra.mxu0 0
    %6843 = vmatprep.subr.bf16.mxu0 0
    %6844 = vmatpush1.bf16.msra.mxu0 0
    %6845 = vmatprep.subr.bf16.mxu0 0
    %6846 = vmatpush1.bf16.msra.mxu0 0
    %6847 = vmatprep.subr.bf16.mxu0 0
    %6848 = vmatpush1.bf16.msra.mxu0 0
    %6849 = vmatprep.subr.bf16.mxu0 0
    %6850 = vmatpush1.bf16.msra.mxu0 0
    %6851 = vmatprep.subr.bf16.mxu0 0
    %6852 = vmatpush1.bf16.msra.mxu0 0
    %6853 = vmatprep.subr.bf16.mxu0 0
    %6854 = vmatpush1.bf16.msra.mxu0 0
    %6855 = vmatprep.subr.bf16.mxu0 0
    %6856 = vmatpush1.bf16.msra.mxu0 %v6572
    %6857 = vmatprep.subr.bf16.mxu0 0
    %6858 = vmatpush2.bf16.msra.mxu0 0
    %6859 = vmatprep.subr.bf16.mxu0 0
    %6860 = vmatpush2.bf16.msra.mxu0 0
    %6861 = vmatprep.subr.bf16.mxu0 0
    %6862 = vmatpush2.bf16.msra.mxu0 0
    %6863 = vmatprep.subr.bf16.mxu0 0
    %6864 = vmatpush2.bf16.msra.mxu0 0
    %6865 = vmatprep.subr.bf16.mxu0 0
    %6866 = vmatpush2.bf16.msra.mxu0 0
    %6867 = vmatprep.subr.bf16.mxu0 0
    %6868 = vmatpush2.bf16.msra.mxu0 0
    %6869 = vmatprep.subr.bf16.mxu0 0
    %6870 = vmatpush2.bf16.msra.mxu0 0
    %6871 = vmatprep.subr.bf16.mxu0 0
    %6872 = vmatpush2.bf16.msra.mxu0 0
    %6873 = vmatprep.mubr.bf16.mxu0 0
    %6874 = vmatmul.mubr.bf16.gmra.mxu0 %v6839
    %v6875 = vpop.f32.mrf.mxu0
    %v6876 = vadd.f32 0.0, %v6875
    %v6877 = vpop.f32.mrf.mxu0
    %v6878 = vpop.f32.mrf.mxu0
    %v6879 = vadd.f32 0.0, %v6878
    %v6880 = vpop.f32.mrf.mxu0
    %6881 = vdwg.mxu0
    %v6883 = vsel %vm1010, %v6565, 0
    %6885 = vmatprep.subr.bf16.mxu0 0
    %6886 = vmatpush1.bf16.msra.mxu0 0
    %6887 = vmatprep.subr.bf16.mxu0 0
    %6888 = vmatpush1.bf16.msra.mxu0 0
    %6889 = vmatprep.subr.bf16.mxu0 0
    %6890 = vmatpush1.bf16.msra.mxu0 0
    %6891 = vmatprep.subr.bf16.mxu0 0
    %6892 = vmatpush1.bf16.msra.mxu0 0
    %6893 = vmatprep.subr.bf16.mxu0 0
    %6894 = vmatpush1.bf16.msra.mxu0 0
    %6895 = vmatprep.subr.bf16.mxu0 0
    %6896 = vmatpush1.bf16.msra.mxu0 0
    %6897 = vmatprep.subr.bf16.mxu0 0
    %6898 = vmatpush1.bf16.msra.mxu0 0
    %6899 = vmatprep.subr.bf16.mxu0 0
    %6900 = vmatpush1.bf16.msra.mxu0 %v6573
    %6901 = vmatprep.subr.bf16.mxu0 0
    %6902 = vmatpush2.bf16.msra.mxu0 0
    %6903 = vmatprep.subr.bf16.mxu0 0
    %6904 = vmatpush2.bf16.msra.mxu0 0
    %6905 = vmatprep.subr.bf16.mxu0 0
    %6906 = vmatpush2.bf16.msra.mxu0 0
    %6907 = vmatprep.subr.bf16.mxu0 0
    %6908 = vmatpush2.bf16.msra.mxu0 0
    %6909 = vmatprep.subr.bf16.mxu0 0
    %6910 = vmatpush2.bf16.msra.mxu0 0
    %6911 = vmatprep.subr.bf16.mxu0 0
    %6912 = vmatpush2.bf16.msra.mxu0 0
    %6913 = vmatprep.subr.bf16.mxu0 0
    %6914 = vmatpush2.bf16.msra.mxu0 0
    %6915 = vmatprep.subr.bf16.mxu0 0
    %6916 = vmatpush2.bf16.msra.mxu0 0
    %6917 = vmatprep.mubr.bf16.mxu0 0
    %6918 = vmatmul.mubr.bf16.gmra.mxu0 %v6883
    %v6919 = vpop.f32.mrf.mxu0
    %v6920 = vadd.f32 0.0, %v6919
    %v6921 = vpop.f32.mrf.mxu0
    %v6922 = vpop.f32.mrf.mxu0
    %v6923 = vadd.f32 0.0, %v6922
    %v6924 = vpop.f32.mrf.mxu0
    %6925 = vdwg.mxu0
    %v6926 = vpack.c.bf16 %v6615, %v6612
    %v6927 = vpack.c.bf16 %v6659, %v6656
    %v6928 = vpack.c.bf16 %v6703, %v6700
    %v6929 = vpack.c.bf16 %v6747, %v6744
    %v6930 = vpack.c.bf16 %v6791, %v6788
    %v6931 = vpack.c.bf16 %v6835, %v6832
    %v6932 = vpack.c.bf16 %v6879, %v6876
    %v6933 = vpack.c.bf16 %v6923, %v6920
    %v6936 = vunpack.c.l.b16 %v4367
    %v6937 = vunpack.c.l.b16 %v4368
    %v6938 = vpack.c.b16 %v6937, %v6936
    %v6941 = vsel %vm1010, %v6926, 0
    %v6944 = vsel %vm1010, %v6927, 0
    %v6947 = vsel %vm1010, %v6928, 0
    %v6950 = vsel %vm1010, %v6929, 0
    %v6953 = vsel %vm1010, %v6930, 0
    %v6956 = vsel %vm1010, %v6931, 0
    %v6959 = vsel %vm1010, %v6932, 0
    %v6962 = vsel %vm1010, %v6933, 0
    %6964 = vmatprep.subr.bf16.mxu0 0
    %6965 = vmatpush1.bf16.msra.mxu0 0
    %6966 = vmatprep.subr.bf16.mxu0 0
    %6967 = vmatpush1.bf16.msra.mxu0 0
    %6968 = vmatprep.subr.bf16.mxu0 0
    %6969 = vmatpush1.bf16.msra.mxu0 0
    %6970 = vmatprep.subr.bf16.mxu0 0
    %6971 = vmatpush1.bf16.msra.mxu0 0
    %6972 = vmatprep.subr.bf16.mxu0 0
    %6973 = vmatpush1.bf16.msra.mxu0 0
    %6974 = vmatprep.subr.bf16.mxu0 0
    %6975 = vmatpush1.bf16.msra.mxu0 0
    %6976 = vmatprep.subr.bf16.mxu0 0
    %6977 = vmatpush1.bf16.msra.mxu0 0
    %6978 = vmatprep.subr.bf16.mxu0 0
    %6979 = vmatpush1.bf16.msra.mxu0 %v6938
    %6980 = vmatprep.subr.bf16.mxu0 0
    %6981 = vmatpush2.bf16.msra.mxu0 0
    %6982 = vmatprep.subr.bf16.mxu0 0
    %6983 = vmatpush2.bf16.msra.mxu0 0
    %6984 = vmatprep.subr.bf16.mxu0 0
    %6985 = vmatpush2.bf16.msra.mxu0 0
    %6986 = vmatprep.subr.bf16.mxu0 0
    %6987 = vmatpush2.bf16.msra.mxu0 0
    %6988 = vmatprep.subr.bf16.mxu0 0
    %6989 = vmatpush2.bf16.msra.mxu0 0
    %6990 = vmatprep.subr.bf16.mxu0 0
    %6991 = vmatpush2.bf16.msra.mxu0 0
    %6992 = vmatprep.subr.bf16.mxu0 0
    %6993 = vmatpush2.bf16.msra.mxu0 0
    %6994 = vmatprep.subr.bf16.mxu0 0
    %6995 = vmatpush2.bf16.msra.mxu0 0
    %6996 = vmatprep.mubr.bf16.mxu0 0
    %6997 = vmatmul.mubr.bf16.gmra.mxu0 %v6941
    %v6998 = vpop.f32.mrf.mxu0
    %v6999 = vadd.f32 0.0, %v6998
    %v7000 = vpop.f32.mrf.mxu0
    %v7001 = vpop.f32.mrf.mxu0
    %v7002 = vadd.f32 0.0, %v7001
    %v7003 = vpop.f32.mrf.mxu0
    %7004 = vmatprep.mubr.bf16.mxu0 0
    %7005 = vmatmul.mubr.bf16.gmra.mxu0 %v6944
    %v7006 = vpop.f32.mrf.mxu0
    %v7007 = vadd.f32 0.0, %v7006
    %v7008 = vpop.f32.mrf.mxu0
    %v7009 = vpop.f32.mrf.mxu0
    %v7010 = vadd.f32 0.0, %v7009
    %v7011 = vpop.f32.mrf.mxu0
    %7012 = vmatprep.mubr.bf16.mxu0 0
    %7013 = vmatmul.mubr.bf16.gmra.mxu0 %v6947
    %v7014 = vpop.f32.mrf.mxu0
    %v7015 = vadd.f32 0.0, %v7014
    %v7016 = vpop.f32.mrf.mxu0
    %v7017 = vpop.f32.mrf.mxu0
    %v7018 = vadd.f32 0.0, %v7017
    %v7019 = vpop.f32.mrf.mxu0
    %7020 = vmatprep.mubr.bf16.mxu0 0
    %7021 = vmatmul.mubr.bf16.gmra.mxu0 %v6950
    %v7022 = vpop.f32.mrf.mxu0
    %v7023 = vadd.f32 0.0, %v7022
    %v7024 = vpop.f32.mrf.mxu0
    %v7025 = vpop.f32.mrf.mxu0
    %v7026 = vadd.f32 0.0, %v7025
    %v7027 = vpop.f32.mrf.mxu0
    %7028 = vmatprep.mubr.bf16.mxu0 0
    %7029 = vmatmul.mubr.bf16.gmra.mxu0 %v6953
    %v7030 = vpop.f32.mrf.mxu0
    %v7031 = vadd.f32 0.0, %v7030
    %v7032 = vpop.f32.mrf.mxu0
    %v7033 = vpop.f32.mrf.mxu0
    %v7034 = vadd.f32 0.0, %v7033
    %v7035 = vpop.f32.mrf.mxu0
    %7036 = vmatprep.mubr.bf16.mxu0 0
    %7037 = vmatmul.mubr.bf16.gmra.mxu0 %v6956
    %v7038 = vpop.f32.mrf.mxu0
    %v7039 = vadd.f32 0.0, %v7038
    %v7040 = vpop.f32.mrf.mxu0
    %v7041 = vpop.f32.mrf.mxu0
    %v7042 = vadd.f32 0.0, %v7041
    %v7043 = vpop.f32.mrf.mxu0
    %7044 = vmatprep.mubr.bf16.mxu0 0
    %7045 = vmatmul.mubr.bf16.gmra.mxu0 %v6959
    %v7046 = vpop.f32.mrf.mxu0
    %v7047 = vadd.f32 0.0, %v7046
    %v7048 = vpop.f32.mrf.mxu0
    %v7049 = vpop.f32.mrf.mxu0
    %v7050 = vadd.f32 0.0, %v7049
    %v7051 = vpop.f32.mrf.mxu0
    %7052 = vmatprep.mubr.bf16.mxu0 0
    %7053 = vmatmul.mubr.bf16.gmra.mxu0 %v6962
    %v7054 = vpop.f32.mrf.mxu0
    %v7055 = vadd.f32 0.0, %v7054
    %v7056 = vpop.f32.mrf.mxu0
    %v7057 = vpop.f32.mrf.mxu0
    %v7058 = vadd.f32 0.0, %v7057
    %v7059 = vpop.f32.mrf.mxu0
    %7060 = vdwg.mxu0
    %v7063 = vunpack.c.l.b16 %v4365
    %v7064 = vunpack.c.l.b16 %v4366
    %v7065 = vpack.c.b16 %v7064, %v7063
    %v7068 = vsel %vm1010, %v5664, 0
    %v7071 = vsel %vm1010, %v5665, 0
    %v7074 = vsel %vm1010, %v5666, 0
    %v7077 = vsel %vm1010, %v5667, 0
    %v7080 = vsel %vm1010, %v5668, 0
    %v7083 = vsel %vm1010, %v5669, 0
    %v7086 = vsel %vm1010, %v5670, 0
    %v7089 = vsel %vm1010, %v5671, 0
    %7091 = vmatprep.subr.bf16.mxu0 0
    %7092 = vmatpush1.bf16.msra.mxu0 0
    %7093 = vmatprep.subr.bf16.mxu0 0
    %7094 = vmatpush1.bf16.msra.mxu0 0
    %7095 = vmatprep.subr.bf16.mxu0 0
    %7096 = vmatpush1.bf16.msra.mxu0 0
    %7097 = vmatprep.subr.bf16.mxu0 0
    %7098 = vmatpush1.bf16.msra.mxu0 0
    %7099 = vmatprep.subr.bf16.mxu0 0
    %7100 = vmatpush1.bf16.msra.mxu0 0
    %7101 = vmatprep.subr.bf16.mxu0 0
    %7102 = vmatpush1.bf16.msra.mxu0 0
    %7103 = vmatprep.subr.bf16.mxu0 0
    %7104 = vmatpush1.bf16.msra.mxu0 0
    %7105 = vmatprep.subr.bf16.mxu0 0
    %7106 = vmatpush1.bf16.msra.mxu0 %v7065
    %7107 = vmatprep.subr.bf16.mxu0 0
    %7108 = vmatpush2.bf16.msra.mxu0 0
    %7109 = vmatprep.subr.bf16.mxu0 0
    %7110 = vmatpush2.bf16.msra.mxu0 0
    %7111 = vmatprep.subr.bf16.mxu0 0
    %7112 = vmatpush2.bf16.msra.mxu0 0
    %7113 = vmatprep.subr.bf16.mxu0 0
    %7114 = vmatpush2.bf16.msra.mxu0 0
    %7115 = vmatprep.subr.bf16.mxu0 0
    %7116 = vmatpush2.bf16.msra.mxu0 0
    %7117 = vmatprep.subr.bf16.mxu0 0
    %7118 = vmatpush2.bf16.msra.mxu0 0
    %7119 = vmatprep.subr.bf16.mxu0 0
    %7120 = vmatpush2.bf16.msra.mxu0 0
    %7121 = vmatprep.subr.bf16.mxu0 0
    %7122 = vmatpush2.bf16.msra.mxu0 0
    %7123 = vmatprep.mubr.bf16.mxu0 0
    %7124 = vmatmul.mubr.bf16.gmra.mxu0 %v7068
    %v7125 = vpop.f32.mrf.mxu0
    %v7126 = vadd.f32 %v6999, %v7125
    %v7127 = vpop.f32.mrf.mxu0
    %v7128 = vpop.f32.mrf.mxu0
    %v7129 = vadd.f32 %v7002, %v7128
    %v7130 = vpop.f32.mrf.mxu0
    %7131 = vmatprep.mubr.bf16.mxu0 0
    %7132 = vmatmul.mubr.bf16.gmra.mxu0 %v7071
    %v7133 = vpop.f32.mrf.mxu0
    %v7134 = vadd.f32 %v7007, %v7133
    %v7135 = vpop.f32.mrf.mxu0
    %v7136 = vpop.f32.mrf.mxu0
    %v7137 = vadd.f32 %v7010, %v7136
    %v7138 = vpop.f32.mrf.mxu0
    %7139 = vmatprep.mubr.bf16.mxu0 0
    %7140 = vmatmul.mubr.bf16.gmra.mxu0 %v7074
    %v7141 = vpop.f32.mrf.mxu0
    %v7142 = vadd.f32 %v7015, %v7141
    %v7143 = vpop.f32.mrf.mxu0
    %v7144 = vpop.f32.mrf.mxu0
    %v7145 = vadd.f32 %v7018, %v7144
    %v7146 = vpop.f32.mrf.mxu0
    %7147 = vmatprep.mubr.bf16.mxu0 0
    %7148 = vmatmul.mubr.bf16.gmra.mxu0 %v7077
    %v7149 = vpop.f32.mrf.mxu0
    %v7150 = vadd.f32 %v7023, %v7149
    %v7151 = vpop.f32.mrf.mxu0
    %v7152 = vpop.f32.mrf.mxu0
    %v7153 = vadd.f32 %v7026, %v7152
    %v7154 = vpop.f32.mrf.mxu0
    %7155 = vmatprep.mubr.bf16.mxu0 0
    %7156 = vmatmul.mubr.bf16.gmra.mxu0 %v7080
    %v7157 = vpop.f32.mrf.mxu0
    %v7158 = vadd.f32 %v7031, %v7157
    %v7159 = vpop.f32.mrf.mxu0
    %v7160 = vpop.f32.mrf.mxu0
    %v7161 = vadd.f32 %v7034, %v7160
    %v7162 = vpop.f32.mrf.mxu0
    %7163 = vmatprep.mubr.bf16.mxu0 0
    %7164 = vmatmul.mubr.bf16.gmra.mxu0 %v7083
    %v7165 = vpop.f32.mrf.mxu0
    %v7166 = vadd.f32 %v7039, %v7165
    %v7167 = vpop.f32.mrf.mxu0
    %v7168 = vpop.f32.mrf.mxu0
    %v7169 = vadd.f32 %v7042, %v7168
    %v7170 = vpop.f32.mrf.mxu0
    %7171 = vmatprep.mubr.bf16.mxu0 0
    %7172 = vmatmul.mubr.bf16.gmra.mxu0 %v7086
    %v7173 = vpop.f32.mrf.mxu0
    %v7174 = vadd.f32 %v7047, %v7173
    %v7175 = vpop.f32.mrf.mxu0
    %v7176 = vpop.f32.mrf.mxu0
    %v7177 = vadd.f32 %v7050, %v7176
    %v7178 = vpop.f32.mrf.mxu0
    %7179 = vmatprep.mubr.bf16.mxu0 0
    %7180 = vmatmul.mubr.bf16.gmra.mxu0 %v7089
    %v7181 = vpop.f32.mrf.mxu0
    %v7182 = vadd.f32 %v7055, %v7181
    %v7183 = vpop.f32.mrf.mxu0
    %v7184 = vpop.f32.mrf.mxu0
    %v7185 = vadd.f32 %v7058, %v7184
    %v7186 = vpop.f32.mrf.mxu0
    %7187 = vdwg.mxu0
    %s7188 = scalar_lea.vmem %s6, 1
    %v7189 = vld [vmem:[%s7188] sm:$0x1]
    %v7191 = vlaneseq
    %v7192 = vshrl.u32 %v7191, 7
    %v7193 = vsub.s32 0, %v7192
    %v7194 = vrot.slane %v7189, %v7193
    %v7196 = vadd.f32 %v7126, %v7194
    %v7197 = vadd.f32 %v7129, %v7194
    %v7198 = vadd.f32 %v7134, %v7194
    %v7199 = vadd.f32 %v7137, %v7194
    %v7200 = vadd.f32 %v7142, %v7194
    %v7201 = vadd.f32 %v7145, %v7194
    %v7202 = vadd.f32 %v7150, %v7194
    %v7203 = vadd.f32 %v7153, %v7194
    %v7204 = vadd.f32 %v7158, %v7194
    %v7205 = vadd.f32 %v7161, %v7194
    %v7206 = vadd.f32 %v7166, %v7194
    %v7207 = vadd.f32 %v7169, %v7194
    %v7208 = vadd.f32 %v7174, %v7194
    %v7209 = vadd.f32 %v7177, %v7194
    %v7210 = vadd.f32 %v7182, %v7194
    %v7211 = vadd.f32 %v7185, %v7194
    %v7212 = vadd.f32 %v7196, %v4341
    %v7213 = vadd.f32 %v7197, %v4342
    %v7214 = vadd.f32 %v7198, %v4343
    %v7215 = vadd.f32 %v7199, %v4344
    %v7216 = vadd.f32 %v7200, %v4345
    %v7217 = vadd.f32 %v7201, %v4346
    %v7218 = vadd.f32 %v7202, %v4347
    %v7219 = vadd.f32 %v7203, %v4348
    %v7220 = vadd.f32 %v7204, %v4349
    %v7221 = vadd.f32 %v7205, %v4350
    %v7222 = vadd.f32 %v7206, %v4351
    %v7223 = vadd.f32 %v7207, %v4352
    %v7224 = vadd.f32 %v7208, %v4353
    %v7225 = vadd.f32 %v7209, %v4354
    %v7226 = vadd.f32 %v7210, %v4355
    %v7227 = vadd.f32 %v7211, %v4356
    %s7228 = scalar_lea.vmem %s7, 2
    %v7229 = vld [vmem:[%s7228] sm:$0x1]
    %s7230 = scalar_lea.vmem %s7, 3
    %v7231 = vld [vmem:[%s7230] sm:$0x1]
    %v7232 = vsel %vm372, %v7212, 0.0
    %7233 = vadd.xlane.f32.xlu0 %v7232
    %v7234 = vpop.xlane.xlu0 %7233
    %v7235 = vsel %vm372, %v7213, 0.0
    %7236 = vadd.xlane.f32.xlu0 %v7235
    %v7237 = vpop.xlane.xlu0 %7236
    %v7238 = vsel %vm372, %v7214, 0.0
    %7239 = vadd.xlane.f32.xlu0 %v7238
    %v7240 = vpop.xlane.xlu0 %7239
    %v7241 = vsel %vm372, %v7215, 0.0
    %7242 = vadd.xlane.f32.xlu0 %v7241
    %v7243 = vpop.xlane.xlu0 %7242
    %v7244 = vsel %vm372, %v7216, 0.0
    %7245 = vadd.xlane.f32.xlu0 %v7244
    %v7246 = vpop.xlane.xlu0 %7245
    %v7247 = vsel %vm372, %v7217, 0.0
    %7248 = vadd.xlane.f32.xlu0 %v7247
    %v7249 = vpop.xlane.xlu0 %7248
    %v7250 = vsel %vm372, %v7218, 0.0
    %7251 = vadd.xlane.f32.xlu0 %v7250
    %v7252 = vpop.xlane.xlu0 %7251
    %v7253 = vsel %vm372, %v7219, 0.0
    %7254 = vadd.xlane.f32.xlu0 %v7253
    %v7255 = vpop.xlane.xlu0 %7254
    %v7256 = vsel %vm372, %v7220, 0.0
    %7257 = vadd.xlane.f32.xlu0 %v7256
    %v7258 = vpop.xlane.xlu0 %7257
    %v7259 = vsel %vm372, %v7221, 0.0
    %7260 = vadd.xlane.f32.xlu0 %v7259
    %v7261 = vpop.xlane.xlu0 %7260
    %v7262 = vsel %vm372, %v7222, 0.0
    %7263 = vadd.xlane.f32.xlu0 %v7262
    %v7264 = vpop.xlane.xlu0 %7263
    %v7265 = vsel %vm372, %v7223, 0.0
    %7266 = vadd.xlane.f32.xlu0 %v7265
    %v7267 = vpop.xlane.xlu0 %7266
    %v7268 = vsel %vm372, %v7224, 0.0
    %7269 = vadd.xlane.f32.xlu0 %v7268
    %v7270 = vpop.xlane.xlu0 %7269
    %v7271 = vsel %vm372, %v7225, 0.0
    %7272 = vadd.xlane.f32.xlu0 %v7271
    %v7273 = vpop.xlane.xlu0 %7272
    %v7274 = vsel %vm372, %v7226, 0.0
    %7275 = vadd.xlane.f32.xlu0 %v7274
    %v7276 = vpop.xlane.xlu0 %7275
    %v7277 = vsel %vm372, %v7227, 0.0
    %7278 = vadd.xlane.f32.xlu0 %v7277
    %v7279 = vpop.xlane.xlu0 %7278
    %v7280 = vmul.f32 %v7234, %v421
    %v7281 = vmul.f32 %v7237, %v421
    %v7282 = vmul.f32 %v7240, %v421
    %v7283 = vmul.f32 %v7243, %v421
    %v7284 = vmul.f32 %v7246, %v421
    %v7285 = vmul.f32 %v7249, %v421
    %v7286 = vmul.f32 %v7252, %v421
    %v7287 = vmul.f32 %v7255, %v421
    %v7288 = vmul.f32 %v7258, %v421
    %v7289 = vmul.f32 %v7261, %v421
    %v7290 = vmul.f32 %v7264, %v421
    %v7291 = vmul.f32 %v7267, %v421
    %v7292 = vmul.f32 %v7270, %v421
    %v7293 = vmul.f32 %v7273, %v421
    %v7294 = vmul.f32 %v7276, %v421
    %v7295 = vmul.f32 %v7279, %v421
    %v7296 = vsub.f32 %v7212, %v7280
    %v7297 = vsub.f32 %v7213, %v7281
    %v7298 = vsub.f32 %v7214, %v7282
    %v7299 = vsub.f32 %v7215, %v7283
    %v7300 = vsub.f32 %v7216, %v7284
    %v7301 = vsub.f32 %v7217, %v7285
    %v7302 = vsub.f32 %v7218, %v7286
    %v7303 = vsub.f32 %v7219, %v7287
    %v7304 = vsub.f32 %v7220, %v7288
    %v7305 = vsub.f32 %v7221, %v7289
    %v7306 = vsub.f32 %v7222, %v7290
    %v7307 = vsub.f32 %v7223, %v7291
    %v7308 = vsub.f32 %v7224, %v7292
    %v7309 = vsub.f32 %v7225, %v7293
    %v7310 = vsub.f32 %v7226, %v7294
    %v7311 = vsub.f32 %v7227, %v7295
    %v7312 = vmul.f32 %v7296, %v7296
    %v7313 = vmul.f32 %v7297, %v7297
    %v7314 = vmul.f32 %v7298, %v7298
    %v7315 = vmul.f32 %v7299, %v7299
    %v7316 = vmul.f32 %v7300, %v7300
    %v7317 = vmul.f32 %v7301, %v7301
    %v7318 = vmul.f32 %v7302, %v7302
    %v7319 = vmul.f32 %v7303, %v7303
    %v7320 = vmul.f32 %v7304, %v7304
    %v7321 = vmul.f32 %v7305, %v7305
    %v7322 = vmul.f32 %v7306, %v7306
    %v7323 = vmul.f32 %v7307, %v7307
    %v7324 = vmul.f32 %v7308, %v7308
    %v7325 = vmul.f32 %v7309, %v7309
    %v7326 = vmul.f32 %v7310, %v7310
    %v7327 = vmul.f32 %v7311, %v7311
    %v7328 = vsel %vm372, %v7312, 0.0
    %7329 = vadd.xlane.f32.xlu0 %v7328
    %v7330 = vpop.xlane.xlu0 %7329
    %v7331 = vsel %vm372, %v7313, 0.0
    %7332 = vadd.xlane.f32.xlu0 %v7331
    %v7333 = vpop.xlane.xlu0 %7332
    %v7334 = vsel %vm372, %v7314, 0.0
    %7335 = vadd.xlane.f32.xlu0 %v7334
    %v7336 = vpop.xlane.xlu0 %7335
    %v7337 = vsel %vm372, %v7315, 0.0
    %7338 = vadd.xlane.f32.xlu0 %v7337
    %v7339 = vpop.xlane.xlu0 %7338
    %v7340 = vsel %vm372, %v7316, 0.0
    %7341 = vadd.xlane.f32.xlu0 %v7340
    %v7342 = vpop.xlane.xlu0 %7341
    %v7343 = vsel %vm372, %v7317, 0.0
    %7344 = vadd.xlane.f32.xlu0 %v7343
    %v7345 = vpop.xlane.xlu0 %7344
    %v7346 = vsel %vm372, %v7318, 0.0
    %7347 = vadd.xlane.f32.xlu0 %v7346
    %v7348 = vpop.xlane.xlu0 %7347
    %v7349 = vsel %vm372, %v7319, 0.0
    %7350 = vadd.xlane.f32.xlu0 %v7349
    %v7351 = vpop.xlane.xlu0 %7350
    %v7352 = vsel %vm372, %v7320, 0.0
    %7353 = vadd.xlane.f32.xlu0 %v7352
    %v7354 = vpop.xlane.xlu0 %7353
    %v7355 = vsel %vm372, %v7321, 0.0
    %7356 = vadd.xlane.f32.xlu0 %v7355
    %v7357 = vpop.xlane.xlu0 %7356
    %v7358 = vsel %vm372, %v7322, 0.0
    %7359 = vadd.xlane.f32.xlu0 %v7358
    %v7360 = vpop.xlane.xlu0 %7359
    %v7361 = vsel %vm372, %v7323, 0.0
    %7362 = vadd.xlane.f32.xlu0 %v7361
    %v7363 = vpop.xlane.xlu0 %7362
    %v7364 = vsel %vm372, %v7324, 0.0
    %7365 = vadd.xlane.f32.xlu0 %v7364
    %v7366 = vpop.xlane.xlu0 %7365
    %v7367 = vsel %vm372, %v7325, 0.0
    %7368 = vadd.xlane.f32.xlu0 %v7367
    %v7369 = vpop.xlane.xlu0 %7368
    %v7370 = vsel %vm372, %v7326, 0.0
    %7371 = vadd.xlane.f32.xlu0 %v7370
    %v7372 = vpop.xlane.xlu0 %7371
    %v7373 = vsel %vm372, %v7327, 0.0
    %7374 = vadd.xlane.f32.xlu0 %v7373
    %v7375 = vpop.xlane.xlu0 %7374
    %v7376 = vmul.f32 %v7330, %v421
    %v7377 = vmul.f32 %v7333, %v421
    %v7378 = vmul.f32 %v7336, %v421
    %v7379 = vmul.f32 %v7339, %v421
    %v7380 = vmul.f32 %v7342, %v421
    %v7381 = vmul.f32 %v7345, %v421
    %v7382 = vmul.f32 %v7348, %v421
    %v7383 = vmul.f32 %v7351, %v421
    %v7384 = vmul.f32 %v7354, %v421
    %v7385 = vmul.f32 %v7357, %v421
    %v7386 = vmul.f32 %v7360, %v421
    %v7387 = vmul.f32 %v7363, %v421
    %v7388 = vmul.f32 %v7366, %v421
    %v7389 = vmul.f32 %v7369, %v421
    %v7390 = vmul.f32 %v7372, %v421
    %v7391 = vmul.f32 %v7375, %v421
    %v7392 = vadd.f32 %v7376, 1e-12
    %v7393 = vadd.f32 %v7377, 1e-12
    %v7394 = vadd.f32 %v7378, 1e-12
    %v7395 = vadd.f32 %v7379, 1e-12
    %v7396 = vadd.f32 %v7380, 1e-12
    %v7397 = vadd.f32 %v7381, 1e-12
    %v7398 = vadd.f32 %v7382, 1e-12
    %v7399 = vadd.f32 %v7383, 1e-12
    %v7400 = vadd.f32 %v7384, 1e-12
    %v7401 = vadd.f32 %v7385, 1e-12
    %v7402 = vadd.f32 %v7386, 1e-12
    %v7403 = vadd.f32 %v7387, 1e-12
    %v7404 = vadd.f32 %v7388, 1e-12
    %v7405 = vadd.f32 %v7389, 1e-12
    %v7406 = vadd.f32 %v7390, 1e-12
    %v7407 = vadd.f32 %v7391, 1e-12
    %v7408 = vrsqrt.pop %v7392
    %v7409 = vrsqrt.pop %v7393
    %v7410 = vrsqrt.pop %v7394
    %v7411 = vrsqrt.pop %v7395
    %v7412 = vrsqrt.pop %v7396
    %v7413 = vrsqrt.pop %v7397
    %v7414 = vrsqrt.pop %v7398
    %v7415 = vrsqrt.pop %v7399
    %v7416 = vrsqrt.pop %v7400
    %v7417 = vrsqrt.pop %v7401
    %v7418 = vrsqrt.pop %v7402
    %v7419 = vrsqrt.pop %v7403
    %v7420 = vrsqrt.pop %v7404
    %v7421 = vrsqrt.pop %v7405
    %v7422 = vrsqrt.pop %v7406
    %v7423 = vrsqrt.pop %v7407
    %v7424 = vmul.f32 %v7296, %v7408
    %v7425 = vmul.f32 %v7297, %v7409
    %v7426 = vmul.f32 %v7298, %v7410
    %v7427 = vmul.f32 %v7299, %v7411
    %v7428 = vmul.f32 %v7300, %v7412
    %v7429 = vmul.f32 %v7301, %v7413
    %v7430 = vmul.f32 %v7302, %v7414
    %v7431 = vmul.f32 %v7303, %v7415
    %v7432 = vmul.f32 %v7304, %v7416
    %v7433 = vmul.f32 %v7305, %v7417
    %v7434 = vmul.f32 %v7306, %v7418
    %v7435 = vmul.f32 %v7307, %v7419
    %v7436 = vmul.f32 %v7308, %v7420
    %v7437 = vmul.f32 %v7309, %v7421
    %v7438 = vmul.f32 %v7310, %v7422
    %v7439 = vmul.f32 %v7311, %v7423
    %v7441 = vlaneseq
    %v7442 = vshrl.u32 %v7441, 7
    %v7443 = vsub.s32 0, %v7442
    %v7444 = vrot.slane %v7229, %v7443
    %v7446 = vmul.f32 %v7424, %v7444
    %v7447 = vmul.f32 %v7425, %v7444
    %v7448 = vmul.f32 %v7426, %v7444
    %v7449 = vmul.f32 %v7427, %v7444
    %v7450 = vmul.f32 %v7428, %v7444
    %v7451 = vmul.f32 %v7429, %v7444
    %v7452 = vmul.f32 %v7430, %v7444
    %v7453 = vmul.f32 %v7431, %v7444
    %v7454 = vmul.f32 %v7432, %v7444
    %v7455 = vmul.f32 %v7433, %v7444
    %v7456 = vmul.f32 %v7434, %v7444
    %v7457 = vmul.f32 %v7435, %v7444
    %v7458 = vmul.f32 %v7436, %v7444
    %v7459 = vmul.f32 %v7437, %v7444
    %v7460 = vmul.f32 %v7438, %v7444
    %v7461 = vmul.f32 %v7439, %v7444
    %v7463 = vlaneseq
    %v7464 = vshrl.u32 %v7463, 7
    %v7465 = vsub.s32 0, %v7464
    %v7466 = vrot.slane %v7231, %v7465
    %v7468 = vadd.f32 %v7446, %v7466
    %v7469 = vadd.f32 %v7447, %v7466
    %v7470 = vadd.f32 %v7448, %v7466
    %v7471 = vadd.f32 %v7449, %v7466
    %v7472 = vadd.f32 %v7450, %v7466
    %v7473 = vadd.f32 %v7451, %v7466
    %v7474 = vadd.f32 %v7452, %v7466
    %v7475 = vadd.f32 %v7453, %v7466
    %v7476 = vadd.f32 %v7454, %v7466
    %v7477 = vadd.f32 %v7455, %v7466
    %v7478 = vadd.f32 %v7456, %v7466
    %v7479 = vadd.f32 %v7457, %v7466
    %v7480 = vadd.f32 %v7458, %v7466
    %v7481 = vadd.f32 %v7459, %v7466
    %v7482 = vadd.f32 %v7460, %v7466
    %v7483 = vadd.f32 %v7461, %v7466
    %v7484 = vpack.c.bf16 %v7469, %v7468
    %v7485 = vpack.c.bf16 %v7471, %v7470
    %v7486 = vpack.c.bf16 %v7473, %v7472
    %v7487 = vpack.c.bf16 %v7475, %v7474
    %v7488 = vpack.c.bf16 %v7477, %v7476
    %v7489 = vpack.c.bf16 %v7479, %v7478
    %v7490 = vpack.c.bf16 %v7481, %v7480
    %v7491 = vpack.c.bf16 %v7483, %v7482
    %s7492 = scalar_lea.vmem [#allocation11], 16
    %v7493 = vld [vmem:[%s7492] sm:$0xf]
    %v7494 = vld [vmem:[%s7492 + $0x4] sm:$0xf]
    %v7495 = vld [vmem:[%s7492 + $0x8] sm:$0xf]
    %v7496 = vld [vmem:[%s7492 + $0xc] sm:$0xf]
    %s7497 = scalar_lea.vmem %s9, 1
    %v7498 = vld [vmem:[%s7497] sm:$0x1]
    %v7500 = vlaneseq
    %v7501 = vshrl.u32 %v7500, 7
    %v7502 = vsub.s32 0, %v7501
    %v7503 = vrot.slane %v7498, %v7502
    %v7509 = vunpack.c.l.b16 %v7493
    %v7510 = vunpack.c.l.b16 %v7494
    %v7511 = vunpack.c.l.b16 %v7495
    %v7512 = vunpack.c.l.b16 %v7496
    %v7513 = vpack.c.b16 %v7510, %v7509
    %v7514 = vpack.c.b16 %v7512, %v7511
    %v7518 = vsel %vm372, %v7484, 0
    %v7521 = vsel %vm372, %v7485, 0
    %v7524 = vsel %vm372, %v7486, 0
    %v7527 = vsel %vm372, %v7487, 0
    %v7530 = vsel %vm372, %v7488, 0
    %v7533 = vsel %vm372, %v7489, 0
    %v7536 = vsel %vm372, %v7490, 0
    %v7539 = vsel %vm372, %v7491, 0
    %7541 = vmatprep.subr.bf16.mxu0 0
    %7542 = vmatpush1.bf16.msra.mxu0 0
    %7543 = vmatprep.subr.bf16.mxu0 0
    %7544 = vmatpush1.bf16.msra.mxu0 0
    %7545 = vmatprep.subr.bf16.mxu0 0
    %7546 = vmatpush1.bf16.msra.mxu0 0
    %7547 = vmatprep.subr.bf16.mxu0 0
    %7548 = vmatpush1.bf16.msra.mxu0 0
    %7549 = vmatprep.subr.bf16.mxu0 0
    %7550 = vmatpush1.bf16.msra.mxu0 0
    %7551 = vmatprep.subr.bf16.mxu0 0
    %7552 = vmatpush1.bf16.msra.mxu0 0
    %7553 = vmatprep.subr.bf16.mxu0 0
    %7554 = vmatpush1.bf16.msra.mxu0 %v7514
    %7555 = vmatprep.subr.bf16.mxu0 0
    %7556 = vmatpush1.bf16.msra.mxu0 %v7513
    %7557 = vmatprep.subr.bf16.mxu0 0
    %7558 = vmatpush2.bf16.msra.mxu0 0
    %7559 = vmatprep.subr.bf16.mxu0 0
    %7560 = vmatpush2.bf16.msra.mxu0 0
    %7561 = vmatprep.subr.bf16.mxu0 0
    %7562 = vmatpush2.bf16.msra.mxu0 0
    %7563 = vmatprep.subr.bf16.mxu0 0
    %7564 = vmatpush2.bf16.msra.mxu0 0
    %7565 = vmatprep.subr.bf16.mxu0 0
    %7566 = vmatpush2.bf16.msra.mxu0 0
    %7567 = vmatprep.subr.bf16.mxu0 0
    %7568 = vmatpush2.bf16.msra.mxu0 0
    %7569 = vmatprep.subr.bf16.mxu0 0
    %7570 = vmatpush2.bf16.msra.mxu0 0
    %7571 = vmatprep.subr.bf16.mxu0 0
    %7572 = vmatpush2.bf16.msra.mxu0 0
    %7573 = vmatprep.mubr.bf16.mxu0 0
    %7574 = vmatmul.mubr.bf16.gmra.mxu0 %v7518
    %v7575 = vpop.f32.mrf.mxu0
    %v7576 = vadd.f32 %v7503, %v7575
    %v7577 = vpop.f32.mrf.mxu0
    %v7578 = vpop.f32.mrf.mxu0
    %v7579 = vadd.f32 %v7503, %v7578
    %v7580 = vpop.f32.mrf.mxu0
    %7581 = vmatprep.mubr.bf16.mxu0 0
    %7582 = vmatmul.mubr.bf16.gmra.mxu0 %v7521
    %v7583 = vpop.f32.mrf.mxu0
    %v7584 = vadd.f32 %v7503, %v7583
    %v7585 = vpop.f32.mrf.mxu0
    %v7586 = vpop.f32.mrf.mxu0
    %v7587 = vadd.f32 %v7503, %v7586
    %v7588 = vpop.f32.mrf.mxu0
    %7589 = vmatprep.mubr.bf16.mxu0 0
    %7590 = vmatmul.mubr.bf16.gmra.mxu0 %v7524
    %v7591 = vpop.f32.mrf.mxu0
    %v7592 = vadd.f32 %v7503, %v7591
    %v7593 = vpop.f32.mrf.mxu0
    %v7594 = vpop.f32.mrf.mxu0
    %v7595 = vadd.f32 %v7503, %v7594
    %v7596 = vpop.f32.mrf.mxu0
    %7597 = vmatprep.mubr.bf16.mxu0 0
    %7598 = vmatmul.mubr.bf16.gmra.mxu0 %v7527
    %v7599 = vpop.f32.mrf.mxu0
    %v7600 = vadd.f32 %v7503, %v7599
    %v7601 = vpop.f32.mrf.mxu0
    %v7602 = vpop.f32.mrf.mxu0
    %v7603 = vadd.f32 %v7503, %v7602
    %v7604 = vpop.f32.mrf.mxu0
    %7605 = vmatprep.mubr.bf16.mxu0 0
    %7606 = vmatmul.mubr.bf16.gmra.mxu0 %v7530
    %v7607 = vpop.f32.mrf.mxu0
    %v7608 = vadd.f32 %v7503, %v7607
    %v7609 = vpop.f32.mrf.mxu0
    %v7610 = vpop.f32.mrf.mxu0
    %v7611 = vadd.f32 %v7503, %v7610
    %v7612 = vpop.f32.mrf.mxu0
    %7613 = vmatprep.mubr.bf16.mxu0 0
    %7614 = vmatmul.mubr.bf16.gmra.mxu0 %v7533
    %v7615 = vpop.f32.mrf.mxu0
    %v7616 = vadd.f32 %v7503, %v7615
    %v7617 = vpop.f32.mrf.mxu0
    %v7618 = vpop.f32.mrf.mxu0
    %v7619 = vadd.f32 %v7503, %v7618
    %v7620 = vpop.f32.mrf.mxu0
    %7621 = vmatprep.mubr.bf16.mxu0 0
    %7622 = vmatmul.mubr.bf16.gmra.mxu0 %v7536
    %v7623 = vpop.f32.mrf.mxu0
    %v7624 = vadd.f32 %v7503, %v7623
    %v7625 = vpop.f32.mrf.mxu0
    %v7626 = vpop.f32.mrf.mxu0
    %v7627 = vadd.f32 %v7503, %v7626
    %v7628 = vpop.f32.mrf.mxu0
    %7629 = vmatprep.mubr.bf16.mxu0 0
    %7630 = vmatmul.mubr.bf16.gmra.mxu0 %v7539
    %v7631 = vpop.f32.mrf.mxu0
    %v7632 = vadd.f32 %v7503, %v7631
    %v7633 = vpop.f32.mrf.mxu0
    %v7634 = vpop.f32.mrf.mxu0
    %v7635 = vadd.f32 %v7503, %v7634
    %v7636 = vpop.f32.mrf.mxu0
    %7637 = vdwg.mxu0
    %v7638 = vmax.f32 %v7576, 0.0
    %v7639 = vmax.f32 %v7579, 0.0
    %v7640 = vmax.f32 %v7584, 0.0
    %v7641 = vmax.f32 %v7587, 0.0
    %v7642 = vmax.f32 %v7592, 0.0
    %v7643 = vmax.f32 %v7595, 0.0
    %v7644 = vmax.f32 %v7600, 0.0
    %v7645 = vmax.f32 %v7603, 0.0
    %v7646 = vmax.f32 %v7608, 0.0
    %v7647 = vmax.f32 %v7611, 0.0
    %v7648 = vmax.f32 %v7616, 0.0
    %v7649 = vmax.f32 %v7619, 0.0
    %v7650 = vmax.f32 %v7624, 0.0
    %v7651 = vmax.f32 %v7627, 0.0
    %v7652 = vmax.f32 %v7632, 0.0
    %v7653 = vmax.f32 %v7635, 0.0
    %v7654 = vpack.c.bf16 %v7639, %v7638
    %v7655 = vpack.c.bf16 %v7641, %v7640
    %v7656 = vpack.c.bf16 %v7643, %v7642
    %v7657 = vpack.c.bf16 %v7645, %v7644
    %v7658 = vpack.c.bf16 %v7647, %v7646
    %v7659 = vpack.c.bf16 %v7649, %v7648
    %v7660 = vpack.c.bf16 %v7651, %v7650
    %v7661 = vpack.c.bf16 %v7653, %v7652
    %s7662 = scalar_lea.vmem %s10, 32
    %v7663 = vld [vmem:[%s7662] sm:$0xf]
    %v7664 = vld [vmem:[%s7662 + $0x4] sm:$0xf]
    %v7665 = vld [vmem:[%s7662 + $0x8] sm:$0xf]
    %v7666 = vld [vmem:[%s7662 + $0xc] sm:$0xf]
    %v7667 = vld [vmem:[%s7662 + $0x10] sm:$0xf]
    %v7668 = vld [vmem:[%s7662 + $0x14] sm:$0xf]
    %v7669 = vld [vmem:[%s7662 + $0x18] sm:$0xf]
    %v7670 = vld [vmem:[%s7662 + $0x1c] sm:$0xf]
    %s7671 = scalar_lea.vmem %s11, 1
    %v7672 = vld [vmem:[%s7671] sm:$0x1]
    %v7674 = vlaneseq
    %v7675 = vshrl.u32 %v7674, 7
    %v7676 = vsub.s32 0, %v7675
    %v7677 = vrot.slane %v7672, %v7676
    %v7687 = vunpack.c.l.b16 %v7663
    %v7688 = vunpack.c.l.b16 %v7664
    %v7689 = vunpack.c.l.b16 %v7665
    %v7690 = vunpack.c.l.b16 %v7666
    %v7691 = vunpack.c.l.b16 %v7667
    %v7692 = vunpack.c.l.b16 %v7668
    %v7693 = vunpack.c.l.b16 %v7669
    %v7694 = vunpack.c.l.b16 %v7670
    %v7695 = vpack.c.b16 %v7688, %v7687
    %v7696 = vpack.c.b16 %v7690, %v7689
    %v7697 = vpack.c.b16 %v7692, %v7691
    %v7698 = vpack.c.b16 %v7694, %v7693
    %v7704 = vsel %vm3964, %v7654, 0
    %v7707 = vsel %vm3964, %v7655, 0
    %v7710 = vsel %vm3964, %v7656, 0
    %v7713 = vsel %vm3964, %v7657, 0
    %v7716 = vsel %vm3964, %v7658, 0
    %v7719 = vsel %vm3964, %v7659, 0
    %v7722 = vsel %vm3964, %v7660, 0
    %v7725 = vsel %vm3964, %v7661, 0
    %7727 = vmatprep.subr.bf16.mxu0 0
    %7728 = vmatpush1.bf16.msra.mxu0 0
    %7729 = vmatprep.subr.bf16.mxu0 0
    %7730 = vmatpush1.bf16.msra.mxu0 0
    %7731 = vmatprep.subr.bf16.mxu0 0
    %7732 = vmatpush1.bf16.msra.mxu0 0
    %7733 = vmatprep.subr.bf16.mxu0 0
    %7734 = vmatpush1.bf16.msra.mxu0 0
    %7735 = vmatprep.subr.bf16.mxu0 0
    %7736 = vmatpush1.bf16.msra.mxu0 %v7698
    %7737 = vmatprep.subr.bf16.mxu0 0
    %7738 = vmatpush1.bf16.msra.mxu0 %v7697
    %7739 = vmatprep.subr.bf16.mxu0 0
    %7740 = vmatpush1.bf16.msra.mxu0 %v7696
    %7741 = vmatprep.subr.bf16.mxu0 0
    %7742 = vmatpush1.bf16.msra.mxu0 %v7695
    %7743 = vmatprep.subr.bf16.mxu0 0
    %7744 = vmatpush2.bf16.msra.mxu0 0
    %7745 = vmatprep.subr.bf16.mxu0 0
    %7746 = vmatpush2.bf16.msra.mxu0 0
    %7747 = vmatprep.subr.bf16.mxu0 0
    %7748 = vmatpush2.bf16.msra.mxu0 0
    %7749 = vmatprep.subr.bf16.mxu0 0
    %7750 = vmatpush2.bf16.msra.mxu0 0
    %7751 = vmatprep.subr.bf16.mxu0 0
    %7752 = vmatpush2.bf16.msra.mxu0 0
    %7753 = vmatprep.subr.bf16.mxu0 0
    %7754 = vmatpush2.bf16.msra.mxu0 0
    %7755 = vmatprep.subr.bf16.mxu0 0
    %7756 = vmatpush2.bf16.msra.mxu0 0
    %7757 = vmatprep.subr.bf16.mxu0 0
    %7758 = vmatpush2.bf16.msra.mxu0 0
    %7759 = vmatprep.mubr.bf16.mxu0 0
    %7760 = vmatmul.mubr.bf16.gmra.mxu0 %v7704
    %v7761 = vpop.f32.mrf.mxu0
    %v7762 = vadd.f32 %v7677, %v7761
    %v7763 = vpop.f32.mrf.mxu0
    %v7764 = vpop.f32.mrf.mxu0
    %v7765 = vadd.f32 %v7677, %v7764
    %v7766 = vpop.f32.mrf.mxu0
    %7767 = vmatprep.mubr.bf16.mxu0 0
    %7768 = vmatmul.mubr.bf16.gmra.mxu0 %v7707
    %v7769 = vpop.f32.mrf.mxu0
    %v7770 = vadd.f32 %v7677, %v7769
    %v7771 = vpop.f32.mrf.mxu0
    %v7772 = vpop.f32.mrf.mxu0
    %v7773 = vadd.f32 %v7677, %v7772
    %v7774 = vpop.f32.mrf.mxu0
    %7775 = vmatprep.mubr.bf16.mxu0 0
    %7776 = vmatmul.mubr.bf16.gmra.mxu0 %v7710
    %v7777 = vpop.f32.mrf.mxu0
    %v7778 = vadd.f32 %v7677, %v7777
    %v7779 = vpop.f32.mrf.mxu0
    %v7780 = vpop.f32.mrf.mxu0
    %v7781 = vadd.f32 %v7677, %v7780
    %v7782 = vpop.f32.mrf.mxu0
    %7783 = vmatprep.mubr.bf16.mxu0 0
    %7784 = vmatmul.mubr.bf16.gmra.mxu0 %v7713
    %v7785 = vpop.f32.mrf.mxu0
    %v7786 = vadd.f32 %v7677, %v7785
    %v7787 = vpop.f32.mrf.mxu0
    %v7788 = vpop.f32.mrf.mxu0
    %v7789 = vadd.f32 %v7677, %v7788
    %v7790 = vpop.f32.mrf.mxu0
    %7791 = vmatprep.mubr.bf16.mxu0 0
    %7792 = vmatmul.mubr.bf16.gmra.mxu0 %v7716
    %v7793 = vpop.f32.mrf.mxu0
    %v7794 = vadd.f32 %v7677, %v7793
    %v7795 = vpop.f32.mrf.mxu0
    %v7796 = vpop.f32.mrf.mxu0
    %v7797 = vadd.f32 %v7677, %v7796
    %v7798 = vpop.f32.mrf.mxu0
    %7799 = vmatprep.mubr.bf16.mxu0 0
    %7800 = vmatmul.mubr.bf16.gmra.mxu0 %v7719
    %v7801 = vpop.f32.mrf.mxu0
    %v7802 = vadd.f32 %v7677, %v7801
    %v7803 = vpop.f32.mrf.mxu0
    %v7804 = vpop.f32.mrf.mxu0
    %v7805 = vadd.f32 %v7677, %v7804
    %v7806 = vpop.f32.mrf.mxu0
    %7807 = vmatprep.mubr.bf16.mxu0 0
    %7808 = vmatmul.mubr.bf16.gmra.mxu0 %v7722
    %v7809 = vpop.f32.mrf.mxu0
    %v7810 = vadd.f32 %v7677, %v7809
    %v7811 = vpop.f32.mrf.mxu0
    %v7812 = vpop.f32.mrf.mxu0
    %v7813 = vadd.f32 %v7677, %v7812
    %v7814 = vpop.f32.mrf.mxu0
    %7815 = vmatprep.mubr.bf16.mxu0 0
    %7816 = vmatmul.mubr.bf16.gmra.mxu0 %v7725
    %v7817 = vpop.f32.mrf.mxu0
    %v7818 = vadd.f32 %v7677, %v7817
    %v7819 = vpop.f32.mrf.mxu0
    %v7820 = vpop.f32.mrf.mxu0
    %v7821 = vadd.f32 %v7677, %v7820
    %v7822 = vpop.f32.mrf.mxu0
    %7823 = vdwg.mxu0
    %v7824 = vadd.f32 %v7762, %v7468
    %v7825 = vadd.f32 %v7765, %v7469
    %v7826 = vadd.f32 %v7770, %v7470
    %v7827 = vadd.f32 %v7773, %v7471
    %v7828 = vadd.f32 %v7778, %v7472
    %v7829 = vadd.f32 %v7781, %v7473
    %v7830 = vadd.f32 %v7786, %v7474
    %v7831 = vadd.f32 %v7789, %v7475
    %v7832 = vadd.f32 %v7794, %v7476
    %v7833 = vadd.f32 %v7797, %v7477
    %v7834 = vadd.f32 %v7802, %v7478
    %v7835 = vadd.f32 %v7805, %v7479
    %v7836 = vadd.f32 %v7810, %v7480
    %v7837 = vadd.f32 %v7813, %v7481
    %v7838 = vadd.f32 %v7818, %v7482
    %v7839 = vadd.f32 %v7821, %v7483
    %s7840 = scalar_lea.vmem %s12, 2
    %v7841 = vld [vmem:[%s7840] sm:$0x1]
    %s7842 = scalar_lea.vmem %s12, 3
    %v7843 = vld [vmem:[%s7842] sm:$0x1]
    %v7844 = vsel %vm372, %v7824, 0.0
    %7845 = vadd.xlane.f32.xlu0 %v7844
    %v7846 = vpop.xlane.xlu0 %7845
    %v7847 = vsel %vm372, %v7825, 0.0
    %7848 = vadd.xlane.f32.xlu0 %v7847
    %v7849 = vpop.xlane.xlu0 %7848
    %v7850 = vsel %vm372, %v7826, 0.0
    %7851 = vadd.xlane.f32.xlu0 %v7850
    %v7852 = vpop.xlane.xlu0 %7851
    %v7853 = vsel %vm372, %v7827, 0.0
    %7854 = vadd.xlane.f32.xlu0 %v7853
    %v7855 = vpop.xlane.xlu0 %7854
    %v7856 = vsel %vm372, %v7828, 0.0
    %7857 = vadd.xlane.f32.xlu0 %v7856
    %v7858 = vpop.xlane.xlu0 %7857
    %v7859 = vsel %vm372, %v7829, 0.0
    %7860 = vadd.xlane.f32.xlu0 %v7859
    %v7861 = vpop.xlane.xlu0 %7860
    %v7862 = vsel %vm372, %v7830, 0.0
    %7863 = vadd.xlane.f32.xlu0 %v7862
    %v7864 = vpop.xlane.xlu0 %7863
    %v7865 = vsel %vm372, %v7831, 0.0
    %7866 = vadd.xlane.f32.xlu0 %v7865
    %v7867 = vpop.xlane.xlu0 %7866
    %v7868 = vsel %vm372, %v7832, 0.0
    %7869 = vadd.xlane.f32.xlu0 %v7868
    %v7870 = vpop.xlane.xlu0 %7869
    %v7871 = vsel %vm372, %v7833, 0.0
    %7872 = vadd.xlane.f32.xlu0 %v7871
    %v7873 = vpop.xlane.xlu0 %7872
    %v7874 = vsel %vm372, %v7834, 0.0
    %7875 = vadd.xlane.f32.xlu0 %v7874
    %v7876 = vpop.xlane.xlu0 %7875
    %v7877 = vsel %vm372, %v7835, 0.0
    %7878 = vadd.xlane.f32.xlu0 %v7877
    %v7879 = vpop.xlane.xlu0 %7878
    %v7880 = vsel %vm372, %v7836, 0.0
    %7881 = vadd.xlane.f32.xlu0 %v7880
    %v7882 = vpop.xlane.xlu0 %7881
    %v7883 = vsel %vm372, %v7837, 0.0
    %7884 = vadd.xlane.f32.xlu0 %v7883
    %v7885 = vpop.xlane.xlu0 %7884
    %v7886 = vsel %vm372, %v7838, 0.0
    %7887 = vadd.xlane.f32.xlu0 %v7886
    %v7888 = vpop.xlane.xlu0 %7887
    %v7889 = vsel %vm372, %v7839, 0.0
    %7890 = vadd.xlane.f32.xlu0 %v7889
    %v7891 = vpop.xlane.xlu0 %7890
    %v7892 = vmul.f32 %v7846, %v421
    %v7893 = vmul.f32 %v7849, %v421
    %v7894 = vmul.f32 %v7852, %v421
    %v7895 = vmul.f32 %v7855, %v421
    %v7896 = vmul.f32 %v7858, %v421
    %v7897 = vmul.f32 %v7861, %v421
    %v7898 = vmul.f32 %v7864, %v421
    %v7899 = vmul.f32 %v7867, %v421
    %v7900 = vmul.f32 %v7870, %v421
    %v7901 = vmul.f32 %v7873, %v421
    %v7902 = vmul.f32 %v7876, %v421
    %v7903 = vmul.f32 %v7879, %v421
    %v7904 = vmul.f32 %v7882, %v421
    %v7905 = vmul.f32 %v7885, %v421
    %v7906 = vmul.f32 %v7888, %v421
    %v7907 = vmul.f32 %v7891, %v421
    %v7908 = vsub.f32 %v7824, %v7892
    %v7909 = vsub.f32 %v7825, %v7893
    %v7910 = vsub.f32 %v7826, %v7894
    %v7911 = vsub.f32 %v7827, %v7895
    %v7912 = vsub.f32 %v7828, %v7896
    %v7913 = vsub.f32 %v7829, %v7897
    %v7914 = vsub.f32 %v7830, %v7898
    %v7915 = vsub.f32 %v7831, %v7899
    %v7916 = vsub.f32 %v7832, %v7900
    %v7917 = vsub.f32 %v7833, %v7901
    %v7918 = vsub.f32 %v7834, %v7902
    %v7919 = vsub.f32 %v7835, %v7903
    %v7920 = vsub.f32 %v7836, %v7904
    %v7921 = vsub.f32 %v7837, %v7905
    %v7922 = vsub.f32 %v7838, %v7906
    %v7923 = vsub.f32 %v7839, %v7907
    %v7924 = vmul.f32 %v7908, %v7908
    %v7925 = vmul.f32 %v7909, %v7909
    %v7926 = vmul.f32 %v7910, %v7910
    %v7927 = vmul.f32 %v7911, %v7911
    %v7928 = vmul.f32 %v7912, %v7912
    %v7929 = vmul.f32 %v7913, %v7913
    %v7930 = vmul.f32 %v7914, %v7914
    %v7931 = vmul.f32 %v7915, %v7915
    %v7932 = vmul.f32 %v7916, %v7916
    %v7933 = vmul.f32 %v7917, %v7917
    %v7934 = vmul.f32 %v7918, %v7918
    %v7935 = vmul.f32 %v7919, %v7919
    %v7936 = vmul.f32 %v7920, %v7920
    %v7937 = vmul.f32 %v7921, %v7921
    %v7938 = vmul.f32 %v7922, %v7922
    %v7939 = vmul.f32 %v7923, %v7923
    %v7940 = vsel %vm372, %v7924, 0.0
    %7941 = vadd.xlane.f32.xlu0 %v7940
    %v7942 = vpop.xlane.xlu0 %7941
    %v7943 = vsel %vm372, %v7925, 0.0
    %7944 = vadd.xlane.f32.xlu0 %v7943
    %v7945 = vpop.xlane.xlu0 %7944
    %v7946 = vsel %vm372, %v7926, 0.0
    %7947 = vadd.xlane.f32.xlu0 %v7946
    %v7948 = vpop.xlane.xlu0 %7947
    %v7949 = vsel %vm372, %v7927, 0.0
    %7950 = vadd.xlane.f32.xlu0 %v7949
    %v7951 = vpop.xlane.xlu0 %7950
    %v7952 = vsel %vm372, %v7928, 0.0
    %7953 = vadd.xlane.f32.xlu0 %v7952
    %v7954 = vpop.xlane.xlu0 %7953
    %v7955 = vsel %vm372, %v7929, 0.0
    %7956 = vadd.xlane.f32.xlu0 %v7955
    %v7957 = vpop.xlane.xlu0 %7956
    %v7958 = vsel %vm372, %v7930, 0.0
    %7959 = vadd.xlane.f32.xlu0 %v7958
    %v7960 = vpop.xlane.xlu0 %7959
    %v7961 = vsel %vm372, %v7931, 0.0
    %7962 = vadd.xlane.f32.xlu0 %v7961
    %v7963 = vpop.xlane.xlu0 %7962
    %v7964 = vsel %vm372, %v7932, 0.0
    %7965 = vadd.xlane.f32.xlu0 %v7964
    %v7966 = vpop.xlane.xlu0 %7965
    %v7967 = vsel %vm372, %v7933, 0.0
    %7968 = vadd.xlane.f32.xlu0 %v7967
    %v7969 = vpop.xlane.xlu0 %7968
    %v7970 = vsel %vm372, %v7934, 0.0
    %7971 = vadd.xlane.f32.xlu0 %v7970
    %v7972 = vpop.xlane.xlu0 %7971
    %v7973 = vsel %vm372, %v7935, 0.0
    %7974 = vadd.xlane.f32.xlu0 %v7973
    %v7975 = vpop.xlane.xlu0 %7974
    %v7976 = vsel %vm372, %v7936, 0.0
    %7977 = vadd.xlane.f32.xlu0 %v7976
    %v7978 = vpop.xlane.xlu0 %7977
    %v7979 = vsel %vm372, %v7937, 0.0
    %7980 = vadd.xlane.f32.xlu0 %v7979
    %v7981 = vpop.xlane.xlu0 %7980
    %v7982 = vsel %vm372, %v7938, 0.0
    %7983 = vadd.xlane.f32.xlu0 %v7982
    %v7984 = vpop.xlane.xlu0 %7983
    %v7985 = vsel %vm372, %v7939, 0.0
    %7986 = vadd.xlane.f32.xlu0 %v7985
    %v7987 = vpop.xlane.xlu0 %7986
    %v7988 = vmul.f32 %v7942, %v421
    %v7989 = vmul.f32 %v7945, %v421
    %v7990 = vmul.f32 %v7948, %v421
    %v7991 = vmul.f32 %v7951, %v421
    %v7992 = vmul.f32 %v7954, %v421
    %v7993 = vmul.f32 %v7957, %v421
    %v7994 = vmul.f32 %v7960, %v421
    %v7995 = vmul.f32 %v7963, %v421
    %v7996 = vmul.f32 %v7966, %v421
    %v7997 = vmul.f32 %v7969, %v421
    %v7998 = vmul.f32 %v7972, %v421
    %v7999 = vmul.f32 %v7975, %v421
    %v8000 = vmul.f32 %v7978, %v421
    %v8001 = vmul.f32 %v7981, %v421
    %v8002 = vmul.f32 %v7984, %v421
    %v8003 = vmul.f32 %v7987, %v421
    %v8004 = vadd.f32 %v7988, 1e-12
    %v8005 = vadd.f32 %v7989, 1e-12
    %v8006 = vadd.f32 %v7990, 1e-12
    %v8007 = vadd.f32 %v7991, 1e-12
    %v8008 = vadd.f32 %v7992, 1e-12
    %v8009 = vadd.f32 %v7993, 1e-12
    %v8010 = vadd.f32 %v7994, 1e-12
    %v8011 = vadd.f32 %v7995, 1e-12
    %v8012 = vadd.f32 %v7996, 1e-12
    %v8013 = vadd.f32 %v7997, 1e-12
    %v8014 = vadd.f32 %v7998, 1e-12
    %v8015 = vadd.f32 %v7999, 1e-12
    %v8016 = vadd.f32 %v8000, 1e-12
    %v8017 = vadd.f32 %v8001, 1e-12
    %v8018 = vadd.f32 %v8002, 1e-12
    %v8019 = vadd.f32 %v8003, 1e-12
    %v8020 = vrsqrt.pop %v8004
    %v8021 = vrsqrt.pop %v8005
    %v8022 = vrsqrt.pop %v8006
    %v8023 = vrsqrt.pop %v8007
    %v8024 = vrsqrt.pop %v8008
    %v8025 = vrsqrt.pop %v8009
    %v8026 = vrsqrt.pop %v8010
    %v8027 = vrsqrt.pop %v8011
    %v8028 = vrsqrt.pop %v8012
    %v8029 = vrsqrt.pop %v8013
    %v8030 = vrsqrt.pop %v8014
    %v8031 = vrsqrt.pop %v8015
    %v8032 = vrsqrt.pop %v8016
    %v8033 = vrsqrt.pop %v8017
    %v8034 = vrsqrt.pop %v8018
    %v8035 = vrsqrt.pop %v8019
    %v8036 = vmul.f32 %v7908, %v8020
    %v8037 = vmul.f32 %v7909, %v8021
    %v8038 = vmul.f32 %v7910, %v8022
    %v8039 = vmul.f32 %v7911, %v8023
    %v8040 = vmul.f32 %v7912, %v8024
    %v8041 = vmul.f32 %v7913, %v8025
    %v8042 = vmul.f32 %v7914, %v8026
    %v8043 = vmul.f32 %v7915, %v8027
    %v8044 = vmul.f32 %v7916, %v8028
    %v8045 = vmul.f32 %v7917, %v8029
    %v8046 = vmul.f32 %v7918, %v8030
    %v8047 = vmul.f32 %v7919, %v8031
    %v8048 = vmul.f32 %v7920, %v8032
    %v8049 = vmul.f32 %v7921, %v8033
    %v8050 = vmul.f32 %v7922, %v8034
    %v8051 = vmul.f32 %v7923, %v8035
    %v8053 = vlaneseq
    %v8054 = vshrl.u32 %v8053, 7
    %v8055 = vsub.s32 0, %v8054
    %v8056 = vrot.slane %v7841, %v8055
    %v8058 = vmul.f32 %v8036, %v8056
    %v8059 = vmul.f32 %v8037, %v8056
    %v8060 = vmul.f32 %v8038, %v8056
    %v8061 = vmul.f32 %v8039, %v8056
    %v8062 = vmul.f32 %v8040, %v8056
    %v8063 = vmul.f32 %v8041, %v8056
    %v8064 = vmul.f32 %v8042, %v8056
    %v8065 = vmul.f32 %v8043, %v8056
    %v8066 = vmul.f32 %v8044, %v8056
    %v8067 = vmul.f32 %v8045, %v8056
    %v8068 = vmul.f32 %v8046, %v8056
    %v8069 = vmul.f32 %v8047, %v8056
    %v8070 = vmul.f32 %v8048, %v8056
    %v8071 = vmul.f32 %v8049, %v8056
    %v8072 = vmul.f32 %v8050, %v8056
    %v8073 = vmul.f32 %v8051, %v8056
    %v8075 = vlaneseq
    %v8076 = vshrl.u32 %v8075, 7
    %v8077 = vsub.s32 0, %v8076
    %v8078 = vrot.slane %v7843, %v8077
    %v8080 = vadd.f32 %v8058, %v8078
    %v8081 = vadd.f32 %v8059, %v8078
    %v8082 = vadd.f32 %v8060, %v8078
    %v8083 = vadd.f32 %v8061, %v8078
    %v8084 = vadd.f32 %v8062, %v8078
    %v8085 = vadd.f32 %v8063, %v8078
    %v8086 = vadd.f32 %v8064, %v8078
    %v8087 = vadd.f32 %v8065, %v8078
    %v8088 = vadd.f32 %v8066, %v8078
    %v8089 = vadd.f32 %v8067, %v8078
    %v8090 = vadd.f32 %v8068, %v8078
    %v8091 = vadd.f32 %v8069, %v8078
    %v8092 = vadd.f32 %v8070, %v8078
    %v8093 = vadd.f32 %v8071, %v8078
    %v8094 = vadd.f32 %v8072, %v8078
    %v8095 = vadd.f32 %v8073, %v8078
    %v8096 = vld [vmem:[%s13] sm:$0x1]
    %v8098 = vlaneseq
    %v8099 = vshrl.u32 %v8098, 7
    %v8100 = vsub.s32 0, %v8099
    %v8101 = vrot.slane %v8096, %v8100
    %v8103 = vmul.f32 %v8080, %v8101
    %v8104 = vmul.f32 %v8081, %v8101
    %v8105 = vmul.f32 %v8082, %v8101
    %v8106 = vmul.f32 %v8083, %v8101
    %v8107 = vmul.f32 %v8084, %v8101
    %v8108 = vmul.f32 %v8085, %v8101
    %v8109 = vmul.f32 %v8086, %v8101
    %v8110 = vmul.f32 %v8087, %v8101
    %v8111 = vmul.f32 %v8088, %v8101
    %v8112 = vmul.f32 %v8089, %v8101
    %v8113 = vmul.f32 %v8090, %v8101
    %v8114 = vmul.f32 %v8091, %v8101
    %v8115 = vmul.f32 %v8092, %v8101
    %v8116 = vmul.f32 %v8093, %v8101
    %v8117 = vmul.f32 %v8094, %v8101
    %v8118 = vmul.f32 %v8095, %v8101
    %v8119 = vsel %vm372, %v8103, 0.0
    %8120 = vadd.xlane.f32.xlu0 %v8119
    %v8121 = vpop.xlane.xlu0 %8120
    %v8122 = vsel %vm372, %v8104, 0.0
    %8123 = vadd.xlane.f32.xlu0 %v8122
    %v8124 = vpop.xlane.xlu0 %8123
    %v8125 = vsel %vm372, %v8105, 0.0
    %8126 = vadd.xlane.f32.xlu0 %v8125
    %v8127 = vpop.xlane.xlu0 %8126
    %v8128 = vsel %vm372, %v8106, 0.0
    %8129 = vadd.xlane.f32.xlu0 %v8128
    %v8130 = vpop.xlane.xlu0 %8129
    %v8131 = vsel %vm372, %v8107, 0.0
    %8132 = vadd.xlane.f32.xlu0 %v8131
    %v8133 = vpop.xlane.xlu0 %8132
    %v8134 = vsel %vm372, %v8108, 0.0
    %8135 = vadd.xlane.f32.xlu0 %v8134
    %v8136 = vpop.xlane.xlu0 %8135
    %v8137 = vsel %vm372, %v8109, 0.0
    %8138 = vadd.xlane.f32.xlu0 %v8137
    %v8139 = vpop.xlane.xlu0 %8138
    %v8140 = vsel %vm372, %v8110, 0.0
    %8141 = vadd.xlane.f32.xlu0 %v8140
    %v8142 = vpop.xlane.xlu0 %8141
    %v8143 = vsel %vm372, %v8111, 0.0
    %8144 = vadd.xlane.f32.xlu0 %v8143
    %v8145 = vpop.xlane.xlu0 %8144
    %v8146 = vsel %vm372, %v8112, 0.0
    %8147 = vadd.xlane.f32.xlu0 %v8146
    %v8148 = vpop.xlane.xlu0 %8147
    %v8149 = vsel %vm372, %v8113, 0.0
    %8150 = vadd.xlane.f32.xlu0 %v8149
    %v8151 = vpop.xlane.xlu0 %8150
    %v8152 = vsel %vm372, %v8114, 0.0
    %8153 = vadd.xlane.f32.xlu0 %v8152
    %v8154 = vpop.xlane.xlu0 %8153
    %v8155 = vsel %vm372, %v8115, 0.0
    %8156 = vadd.xlane.f32.xlu0 %v8155
    %v8157 = vpop.xlane.xlu0 %8156
    %v8158 = vsel %vm372, %v8116, 0.0
    %8159 = vadd.xlane.f32.xlu0 %v8158
    %v8160 = vpop.xlane.xlu0 %8159
    %v8161 = vsel %vm372, %v8117, 0.0
    %8162 = vadd.xlane.f32.xlu0 %v8161
    %v8163 = vpop.xlane.xlu0 %8162
    %v8164 = vsel %vm372, %v8118, 0.0
    %8165 = vadd.xlane.f32.xlu0 %v8164
    %v8166 = vpop.xlane.xlu0 %8165
    %s8167 = sld [smem:[#allocation2]]
    %v8168 = vstv %s8167
    %v8169 = vadd.f32 %v8121, %v8168
    %v8170 = vadd.f32 %v8124, %v8168
    %v8171 = vadd.f32 %v8127, %v8168
    %v8172 = vadd.f32 %v8130, %v8168
    %v8173 = vadd.f32 %v8133, %v8168
    %v8174 = vadd.f32 %v8136, %v8168
    %v8175 = vadd.f32 %v8139, %v8168
    %v8176 = vadd.f32 %v8142, %v8168
    %v8177 = vadd.f32 %v8145, %v8168
    %v8178 = vadd.f32 %v8148, %v8168
    %v8179 = vadd.f32 %v8151, %v8168
    %v8180 = vadd.f32 %v8154, %v8168
    %v8181 = vadd.f32 %v8157, %v8168
    %v8182 = vadd.f32 %v8160, %v8168
    %v8183 = vadd.f32 %v8163, %v8168
    %v8184 = vadd.f32 %v8166, %v8168
    %vm8185 = vcmp.lt.s32.totalorder %v124, 10
    %v8186 = vsel %vm8185, -9e+15, -1e+30
    %vm8187 = vcmp.gt.f32.partialorder %v119, 0.5
    %v8204 = vlaneseq
    %v8205 = vshrl.u32 %v8204, 7
    %v8206 = vsub.s32 %v124, %v8205
    %v8207 = vrot.slane %v8169, %v8206
    %v8208 = vadd.s32 %v124, 4294967288
    %v8209 = vlaneseq
    %v8210 = vshrl.u32 %v8209, 7
    %v8211 = vsub.s32 %v8208, %v8210
    %v8212 = vrot.slane %v8170, %v8211
    %vm8213 = vcmask 130112
    %v8214 = vsel %vm8213, %v8212, %v8207
    %v8215 = vlaneseq
    %v8216 = vshrl.u32 %v8215, 7
    %v8217 = vsub.s32 %v124, %v8216
    %v8218 = vrot.slane %v8171, %v8217
    %v8219 = vlaneseq
    %v8220 = vshrl.u32 %v8219, 7
    %v8221 = vsub.s32 %v8208, %v8220
    %v8222 = vrot.slane %v8172, %v8221
    %v8223 = vsel %vm8213, %v8222, %v8218
    %v8224 = vlaneseq
    %v8225 = vshrl.u32 %v8224, 7
    %v8226 = vsub.s32 %v124, %v8225
    %v8227 = vrot.slane %v8173, %v8226
    %v8228 = vlaneseq
    %v8229 = vshrl.u32 %v8228, 7
    %v8230 = vsub.s32 %v8208, %v8229
    %v8231 = vrot.slane %v8174, %v8230
    %v8232 = vsel %vm8213, %v8231, %v8227
    %v8233 = vlaneseq
    %v8234 = vshrl.u32 %v8233, 7
    %v8235 = vsub.s32 %v124, %v8234
    %v8236 = vrot.slane %v8175, %v8235
    %v8237 = vlaneseq
    %v8238 = vshrl.u32 %v8237, 7
    %v8239 = vsub.s32 %v8208, %v8238
    %v8240 = vrot.slane %v8176, %v8239
    %v8241 = vsel %vm8213, %v8240, %v8236
    %v8242 = vlaneseq
    %v8243 = vshrl.u32 %v8242, 7
    %v8244 = vsub.s32 %v124, %v8243
    %v8245 = vrot.slane %v8177, %v8244
    %v8246 = vlaneseq
    %v8247 = vshrl.u32 %v8246, 7
    %v8248 = vsub.s32 %v8208, %v8247
    %v8249 = vrot.slane %v8178, %v8248
    %v8250 = vsel %vm8213, %v8249, %v8245
    %v8251 = vlaneseq
    %v8252 = vshrl.u32 %v8251, 7
    %v8253 = vsub.s32 %v124, %v8252
    %v8254 = vrot.slane %v8179, %v8253
    %v8255 = vlaneseq
    %v8256 = vshrl.u32 %v8255, 7
    %v8257 = vsub.s32 %v8208, %v8256
    %v8258 = vrot.slane %v8180, %v8257
    %v8259 = vsel %vm8213, %v8258, %v8254
    %v8260 = vlaneseq
    %v8261 = vshrl.u32 %v8260, 7
    %v8262 = vsub.s32 %v124, %v8261
    %v8263 = vrot.slane %v8181, %v8262
    %v8264 = vlaneseq
    %v8265 = vshrl.u32 %v8264, 7
    %v8266 = vsub.s32 %v8208, %v8265
    %v8267 = vrot.slane %v8182, %v8266
    %v8268 = vsel %vm8213, %v8267, %v8263
    %v8269 = vlaneseq
    %v8270 = vshrl.u32 %v8269, 7
    %v8271 = vsub.s32 %v124, %v8270
    %v8272 = vrot.slane %v8183, %v8271
    %v8273 = vlaneseq
    %v8274 = vshrl.u32 %v8273, 7
    %v8275 = vsub.s32 %v8208, %v8274
    %v8276 = vrot.slane %v8184, %v8275
    %v8277 = vsel %vm8213, %v8276, %v8272
    %vm8278 = vcmask 1041409
    %v8279 = vsel %vm8278, %v8223, %v8214
    %vm8280 = vcmask 1042434
    %v8281 = vsel %vm8280, %v8232, %v8279
    %vm8282 = vcmask 1043459
    %v8283 = vsel %vm8282, %v8241, %v8281
    %vm8284 = vcmask 1044484
    %v8285 = vsel %vm8284, %v8250, %v8283
    %vm8286 = vcmask 1045509
    %v8287 = vsel %vm8286, %v8259, %v8285
    %vm8288 = vcmask 1046534
    %v8289 = vsel %vm8288, %v8268, %v8287
    %vm8290 = vcmask 1047559
    %v8291 = vsel %vm8290, %v8277, %v8289
    %v8293 = vsel %vm8187, %v8291, %v8186
    %v8294 = vsel %vm1010, %v8293, -inf
    %8295 = vmax.xlane.f32.xlu0 %v8294
    %v8296 = vpop.xlane.xlu0 %8295
    %v8297 = vsub.f32 %v8293, %v8296
    %v8298 = vmul.f32 %v8297, 1.442695
    %v8299 = vpow.pop %v8298
    %v8300 = vsel %vm1010, %v8299, 0.0
    %8301 = vadd.xlane.f32.xlu0 %v8300
    %v8302 = vpop.xlane.xlu0 %8301
    %v8303 = vrcp.pop %v8302
    %v8304 = vmul.f32 %v8299, %v8303
    %8305 = vst.msk [vmem:[#allocation12] sm:$0xff] %vm1010, %v8304
    // Predicated region
    $region82: #{tpu_custom_call.1} parent=1 // pred_check
      _
    $region83: #{tpu_custom_call.1} parent=1 // pred_check_branch
      %8307 = sbr.rel (0) target = $region85
    $region84: #{tpu_custom_call.1} parent=1 // pred_region
      %s8309 = ssub.s32 128, 128
      %8310 = vsyncadd [#allocation5], %s8309
      %s8312 = sshll.u32 [#allocation12], 4
      %s8313 = int_to_ptr.vmem [resolvable:$true] %s8312
      %8315 = dma.vmem_to_hbm [thread:$0]  %s8313, 128, %s15, [#allocation5]
    $region85: #{tpu_custom_call.1} parent=1 // pred_fallthru
      _
    // Predicated region
    $region86: #{tpu_custom_call.1} parent=1 // pred_check
      _
    $region87: #{tpu_custom_call.1} parent=1 // pred_check_branch
      %8317 = sbr.rel (0) target = $region89
    $region88: #{tpu_custom_call.1} parent=1 // pred_region
      %8318 = dma.done [#allocation5], 128
    $region89: #{tpu_custom_call.1} parent=1 // pred_fallthru
      _
    %8319 = vsyncpa [#allocation4], 1
    %8320 = vsyncpa [#allocation7], 1
    %8321 = vsyncpa [#allocation10], 1
    %8322 = vsyncpa [#allocation5], 1

</llo_original>
